<compile_context>
chip_gen: v5e
topology: v5e:2x2
jax: 0.10.0
libtpu: 0.0.40
codegen_flags: <defaults>
</compile_context>

<pallas_src>
import functools

import jax
import jax.numpy as jnp
from jax.experimental import pallas as pl
from jax.experimental.pallas import tpu as pltpu


def _round_up(n, m):
    return ((n + m - 1) // m) * m


def _pad_axis(a, axis, size):
    pad = [(0, 0)] * a.ndim
    ax = axis % a.ndim
    pad[ax] = (0, size - a.shape[ax])
    return jnp.pad(a, pad)


def _sum2d(a):
    # full reduce of a 2-D tile to (1, 1) via chained keepdims reductions
    return jnp.sum(jnp.sum(a, axis=1, keepdims=True), axis=0, keepdims=True)


def _rnn_diff_kernel(
    # scalars (SMEM)
    kwrw_ref,                      # (2,) f32: [kld_weight, rec_weight]
    # lane-dense inputs (resident VMEM blocks)
    in_ref,                        # (S*Bp, Fin) = cat([x, time_emb, step_emb, x_noisy])
    eps_ref,                       # (S*Bp, Hp)  rsample noise (h-padded with zeros)
    dn_ref,                        # (S*Bp, xd)  diffusion noise
    # fused, (8,128)-padded weights
    w_pre, b_pre,                  # prologue block-matmul: (Fin, 6Hp), (1, 6Hp)
    w_mv_x, w_mv_h, b_mv,          # enc_mean|enc_logvar fused: (Hp,2Hp),(Hp,2Hp),(1,2Hp)
    w_z, b_z,                      # z_proj: (Hp,Hp),(1,Hp)
    w_dz, w_do, b_d2,              # denoiser (epilogue only): (Hp,Hp),(Hp,xd),(1,xd)
    w_g_zh,                        # LSTM recurrent half cat([enc_emb,h]): (2Hp,4Hp)
    # outputs
    loss_ref, kld_ref, diff_ref,   # (1,1) each
    # scratch
    zh_ref,                        # VMEM (Bp, 2Hp): persistent cat([enc_emb, h_prev])
    enc_ref,                       # VMEM (S*Bp, Hp): enc_emb per step for the epilogue
    *, seq_len, batch, batch_pad, x_dim, h_pad,
):
    S, B, Bp, xd, Hp = seq_len, batch, batch_pad, x_dim, h_pad

    # ---------- prologue: ONE fused recurrence-free matmul over S*Bp rows ----------
    # TODO(synk): FeatureAttention / AttentionNet not provided; x_proj and the
    # denoiser pre-terms use linear / MLP stand-ins.
    pre = jnp.dot(in_ref[...], w_pre[...], preferred_element_type=jnp.float32) + b_pre[...]
    x_proj = pre[:, :Hp]                       # FeatureAttention stand-in output
    pre_hdn = pre[:, Hp:2 * Hp]                # x_noisy / time_emb / step_emb half of denoiser
    pre_gates = pre[:, 2 * Hp:]                # x / time_emb half of the LSTM gates
    pre_mv = jnp.dot(x_proj, w_mv_x[...], preferred_element_type=jnp.float32) + b_mv[...]

    eps = eps_ref[...]

    # ---------- sequential recurrence (3 small matmuls on the serial chain) ----------
    # TODO(synk): n_layers > 1 not implemented in-kernel (example uses n_layers=1).
    h_prev = jnp.zeros((Bp, Hp), jnp.float32)
    c_prev = jnp.zeros((Bp, Hp), jnp.float32)
    kld_acc = jnp.zeros((Bp, Hp), jnp.float32)   # elementwise KLD terms, reduced at end

    for t in range(S):
        r0 = t * Bp                               # multiple of 8 -> aligned sublanes
        hidden_t = h_prev + c_prev

        # enc_mean|enc_logvar fused; x_proj half precomputed in the prologue
        mv = pre_mv[r0:r0 + Bp] + jnp.dot(hidden_t, w_mv_h[...],
                                          preferred_element_type=jnp.float32)
        enc_mean = mv[:, :Hp]
        enc_logvar = mv[:, Hp:]
        std = jnp.exp(0.5 * enc_logvar)           # single EUP op; var derived on VPU
        var = std * std
        z_t = enc_mean + std * eps[r0:r0 + Bp]    # rsample
        enc_emb = jax.nn.softplus(
            jnp.dot(z_t, w_z[...], preferred_element_type=jnp.float32) + b_z[...])

        # kld_gaussianstd terms (padded hidden cols contribute exactly 0)
        kld_acc = kld_acc + (1.0 + enc_logvar - enc_mean * enc_mean - var)

        # stash enc_emb for the batched epilogue denoiser (off the critical path)
        enc_ref[r0:r0 + Bp, :] = enc_emb

        # LSTM gates: persistent scratch instead of per-step concatenate
        zh_ref[:, :Hp] = enc_emb
        zh_ref[:, Hp:] = h_prev
        gates = pre_gates[r0:r0 + Bp] + jnp.dot(zh_ref[...], w_g_zh[...],
                                                preferred_element_type=jnp.float32)
        i_g = jax.nn.sigmoid(gates[:, :Hp])
        f_g = jax.nn.sigmoid(gates[:, Hp:2 * Hp])
        g_g = jnp.tanh(gates[:, 2 * Hp:3 * Hp])
        o_g = jax.nn.sigmoid(gates[:, 3 * Hp:])
        c_prev = f_g * c_prev + i_g * g_g
        h_prev = o_g * jnp.tanh(c_prev)

    # ---------- epilogue: batched denoiser + masked deferred reductions ----------
    # TODO(synk): GaussianDiffusion.log_prob stand-in = one DDPM noise-prediction
    # MSE step with a 2-layer MLP denoiser.
    hdn = jnp.tanh(pre_hdn + jnp.dot(enc_ref[...], w_dz[...],
                                     preferred_element_type=jnp.float32))
    pred = jnp.dot(hdn, w_do[...], preferred_element_type=jnp.float32) + b_d2[...]

    # masks for the zero-padded batch rows (Bp - B per step)
    bmask_x = (jax.lax.broadcasted_iota(jnp.int32, (Bp, xd), 0) < B).astype(jnp.float32)
    rmask = jnp.tile(bmask_x, (S, 1))                                   # (S*Bp, xd)
    bmask_h = (jax.lax.broadcasted_iota(jnp.int32, (Bp, Hp), 0) < B).astype(jnp.float32)

    sq = ((pred - dn_ref[...]) ** 2) * rmask
    diff = _sum2d(sq) / float(B * xd)              # sum_t of per-step mean MSE
    kld = -0.5 * _sum2d(kld_acc * bmask_h)         # sum over time/batch/hidden

    kw = kwrw_ref[0]
    rw = kwrw_ref[1]
    kld_ref[...] = kld
    diff_ref[...] = diff
    loss_ref[...] = (kld * kw + diff * rw) / float(S)


def init_params(key, x_dim, h_dim, time_dim, diff_dim):
    """Deterministic synthetic parameters (shapes follow RNNDiff.__init__)."""
    def lin(k, fan_in, fan_out):
        return (0.1 / jnp.sqrt(fan_in)) * jax.random.normal(k, (fan_in, fan_out), jnp.float32)

    ks = jax.random.split(key, 24)
    return {
        # x_proj (FeatureAttention stand-in)
        "w_xp": lin(ks[0], x_dim, h_dim), "b_xp": jnp.zeros((1, h_dim), jnp.float32),
        # enc_mean (Linear(2h, h) split into x_proj / hidden halves)
        "w_mx": lin(ks[1], h_dim, h_dim), "w_mh": lin(ks[2], h_dim, h_dim),
        "b_m": jnp.zeros((1, h_dim), jnp.float32),
        # enc_logvar
        "w_vx": lin(ks[3], h_dim, h_dim), "w_vh": lin(ks[4], h_dim, h_dim),
        "b_v": jnp.zeros((1, h_dim), jnp.float32),
        # z_proj: Linear(h, h) + Softplus
        "w_z": lin(ks[5], h_dim, h_dim), "b_z": jnp.zeros((1, h_dim), jnp.float32),
        # denoise net (AttentionNet stand-in)
        "w_dx": lin(ks[6], x_dim, h_dim), "w_dz": lin(ks[7], h_dim, h_dim),
        "w_dt": lin(ks[8], time_dim, h_dim), "w_ds": lin(ks[9], diff_dim, h_dim),
        "b_d1": jnp.zeros((1, h_dim), jnp.float32),
        "w_do": lin(ks[10], h_dim, x_dim), "b_d2": jnp.zeros((1, x_dim), jnp.float32),
        # LSTM (1 layer), input = x_dim + h_dim + time_dim, gate order i,f,g,o
        "w_ix": lin(ks[11], x_dim, 4 * h_dim), "w_iz": lin(ks[12], h_dim, 4 * h_dim),
        "w_it": lin(ks[13], time_dim, 4 * h_dim),
        "b_ih": jnp.zeros((1, 4 * h_dim), jnp.float32),
        "w_hh": lin(ks[14], h_dim, 4 * h_dim),
        "b_hh": jnp.zeros((1, 4 * h_dim), jnp.float32),
    }


def _fuse_params(p, xd, td, dd, h, Hp):
    """Offline weight fusion + zero-padding of every hidden block h -> Hp (128-aligned)."""
    def padc(w):                       # pad trailing hidden dim h -> Hp
        return _pad_axis(w, -1, Hp)

    def padr(w):                       # pad leading hidden dim h -> Hp
        return _pad_axis(w, 0, Hp)

    def pad_blocks(w, n):              # (..., n*h) -> (..., n*Hp), per-block pad
        parts = [w[..., i * h:(i + 1) * h] for i in range(n)]
        return jnp.concatenate([padc(q) for q in parts], axis=-1)

    z = lambda r, c: jnp.zeros((r, c), jnp.float32)

    # Fused prologue block matrix: rows = [x | time_emb | step_emb | x_noisy],
    # cols = [x_proj(Hp) | pre_hdn(Hp) | pre_gates(4Hp)].  Zero blocks where an
    # input does not feed an output.
    w_pre = jnp.concatenate([
        jnp.concatenate([padc(p["w_xp"]), z(xd, Hp),      pad_blocks(p["w_ix"], 4)], axis=1),
        jnp.concatenate([z(td, Hp),       padc(p["w_dt"]), pad_blocks(p["w_it"], 4)], axis=1),
        jnp.concatenate([z(dd, Hp),       padc(p["w_ds"]), z(dd, 4 * Hp)], axis=1),
        jnp.concatenate([z(xd, Hp),       padc(p["w_dx"]), z(xd, 4 * Hp)], axis=1),
    ], axis=0)                                                    # (Fin, 6Hp)
    b_pre = jnp.concatenate([padc(p["b_xp"]), padc(p["b_d1"]),
                             pad_blocks(p["b_ih"] + p["b_hh"], 4)], axis=1)   # (1, 6Hp)

    return {
        "w_pre": w_pre, "b_pre": b_pre,
        # enc_mean | enc_logvar fused along the output dim (each block Hp-aligned)
        "w_mv_x": jnp.concatenate([padr(padc(p["w_mx"])), padr(padc(p["w_vx"]))], axis=1),
        "w_mv_h": jnp.concatenate([padr(padc(p["w_mh"])), padr(padc(p["w_vh"]))], axis=1),
        "b_mv": jnp.concatenate([padc(p["b_m"]), padc(p["b_v"])], axis=1),
        "w_z": padr(padc(p["w_z"])), "b_z": padc(p["b_z"]),
        # denoiser halves used only in the batched epilogue
        "w_dz": padr(padc(p["w_dz"])), "w_do": padr(p["w_do"]), "b_d2": p["b_d2"],
        # LSTM recurrent half: cat([enc_emb, h_prev]) rows, per-gate padded cols
        "w_g_zh": jnp.concatenate([padr(pad_blocks(p["w_iz"], 4)),
                                   padr(pad_blocks(p["w_hh"], 4))], axis=0),
    }


_FUSED_ORDER = [
    "w_pre", "b_pre",
    "w_mv_x", "w_mv_h", "b_mv",
    "w_z", "b_z",
    "w_dz", "w_do", "b_d2",
    "w_g_zh",
]


def rnn_diff_forward(params, ts, kld_weight, rec_weight, aux, *,
                     x_dim, h_dim, diff_dim):
    B, S, tot = ts.shape
    td = tot - x_dim
    xd = x_dim
    Bp = _round_up(B, 8)          # sublane-aligned batch
    Hp = _round_up(h_dim, 128)    # lane-aligned hidden
    eps, dn, sab, s1ab, semb = aux  # each (S, B, *)

    x = jnp.transpose(ts[:, :, :xd], (1, 0, 2)).astype(jnp.float32)   # (S,B,xd)
    te = jnp.transpose(ts[:, :, xd:], (1, 0, 2)).astype(jnp.float32)  # (S,B,td)

    # Fold x_noisy construction into the wrapper so the width-1 sqrt(alpha_bar)
    # columns never enter the kernel.
    x_noisy = sab * x + s1ab * dn                                     # (S,B,xd)

    def pad_b(a):   # zero-pad batch B -> Bp and flatten time-major
        a = jnp.pad(a, ((0, 0), (0, Bp - B), (0, 0)))
        return a.reshape(S * Bp, a.shape[-1])

    slab = pad_b(jnp.concatenate([x, te, semb, x_noisy], axis=-1))    # (S*Bp, Fin)
    eps_p = pad_b(_pad_axis(eps, -1, Hp))                             # (S*Bp, Hp)
    dn_p = pad_b(dn)                                                  # (S*Bp, xd)

    kwrw = jnp.array([kld_weight, rec_weight], jnp.float32)           # SMEM scalars

    fused = _fuse_params(params, xd, td, diff_dim, h_dim, Hp)
    weights = [fused[n] for n in _FUSED_ORDER]

    def vmem_full(arr):
        nd = arr.ndim
        return pl.BlockSpec(arr.shape, lambda i, nd=nd: (0,) * nd)

    in_specs = ([pl.BlockSpec(memory_space=pltpu.MemorySpace.SMEM)]
                + [vmem_full(slab), vmem_full(eps_p), vmem_full(dn_p)]
                + [vmem_full(w) for w in weights])

    out_shape = tuple(jax.ShapeDtypeStruct((1, 1), jnp.float32) for _ in range(3))
    out_specs = [pl.BlockSpec((1, 1), lambda i: (0, 0)) for _ in range(3)]

    kernel = functools.partial(
        _rnn_diff_kernel,
        seq_len=S, batch=B, batch_pad=Bp, x_dim=xd, h_pad=Hp)

    loss, kld, diff = pl.pallas_call(
        kernel,
        out_shape=out_shape,
        grid_spec=pltpu.PrefetchScalarGridSpec(
            num_scalar_prefetch=0,
            grid=(1,),                 # single invocation; time loop is in-kernel
            in_specs=in_specs,
            out_specs=out_specs,
            scratch_shapes=[
                pltpu.VMEM((Bp, 2 * Hp), jnp.float32),      # cat([enc_emb, h_prev])
                pltpu.VMEM((S * Bp, Hp), jnp.float32),      # enc_emb per step
            ],
        ),
        compiler_params=pltpu.CompilerParams(
            dimension_semantics=("arbitrary",)),
    )(kwrw, slab, eps_p, dn_p, *weights)

    return loss[0, 0], kld[0, 0], diff[0, 0]


def make_aux(key, S, B, x_dim, h_dim, diff_dim, diff_steps):
    """Precompute all stochastic inputs (RNG has no in-kernel torch equivalent)."""
    k1, k2, k3 = jax.random.split(key, 3)
    eps = jax.random.normal(k1, (S, B, h_dim), jnp.float32)       # rsample noise
    dn = jax.random.normal(k2, (S, B, x_dim), jnp.float32)        # diffusion noise
    t_step = jax.random.randint(k3, (S, B), 0, diff_steps)        # diffusion timesteps

    betas = jnp.linspace(1e-4, 0.02, diff_steps, dtype=jnp.float32)
    alpha_bar = jnp.cumprod(1.0 - betas)
    sab = jnp.sqrt(alpha_bar)[t_step][:, :, None]                 # (S,B,1)
    s1ab = jnp.sqrt(1.0 - alpha_bar)[t_step][:, :, None]          # (S,B,1)

    half = diff_dim // 2
    freqs = jnp.exp(-jnp.log(10000.0) * jnp.arange(half, dtype=jnp.float32) / half)
    ang = t_step[:, :, None].astype(jnp.float32) * freqs          # (S,B,half)
    semb = jnp.concatenate([jnp.sin(ang), jnp.cos(ang)], axis=-1)  # (S,B,diff_dim)
    return eps, dn, sab, s1ab, semb


if __name__ == "__main__":
    # Small shapes consistent with the module's forward:
    # ts: (B, S, x_dim + time_dim), cond_dim = h_dim + time_dim
    B, S = 2, 8
    x_dim, h_dim, time_dim = 8, 32, 16
    diff_dim, diff_steps = 16, 10

    root = jax.random.PRNGKey(0)
    k_ts, k_par, k_aux = jax.random.split(root, 3)

    ts = jax.random.normal(k_ts, (B, S, x_dim + time_dim), jnp.float32)
    params = init_params(k_par, x_dim, h_dim, time_dim, diff_dim)
    aux = make_aux(k_aux, S, B, x_dim, h_dim, diff_dim, diff_steps)

    loss, kld, diff = rnn_diff_forward(
        params, ts, kld_weight=1.0, rec_weight=1.0, aux=aux,
        x_dim=x_dim, h_dim=h_dim, diff_dim=diff_dim)

    jax.block_until_ready((loss, kld, diff))
    assert jnp.isfinite(loss) and jnp.isfinite(kld) and jnp.isfinite(diff)
    print("KERNEL_OK")
</pallas_src>

<mosaic_0001>
module attributes {stable_mosaic.version = 11 : i64} {
  func.func @_rnn_diff_kernel(%arg0: i32, %arg1: memref<2xf32, #tpu.memory_space<smem>>, %arg2: memref<64x48xf32, #tpu.memory_space<vmem>>, %arg3: memref<64x128xf32, #tpu.memory_space<vmem>>, %arg4: memref<64x8xf32, #tpu.memory_space<vmem>>, %arg5: memref<48x768xf32, #tpu.memory_space<vmem>>, %arg6: memref<1x768xf32, #tpu.memory_space<vmem>>, %arg7: memref<128x256xf32, #tpu.memory_space<vmem>>, %arg8: memref<128x256xf32, #tpu.memory_space<vmem>>, %arg9: memref<1x256xf32, #tpu.memory_space<vmem>>, %arg10: memref<128x128xf32, #tpu.memory_space<vmem>>, %arg11: memref<1x128xf32, #tpu.memory_space<vmem>>, %arg12: memref<128x128xf32, #tpu.memory_space<vmem>>, %arg13: memref<128x8xf32, #tpu.memory_space<vmem>>, %arg14: memref<1x8xf32, #tpu.memory_space<vmem>>, %arg15: memref<256x512xf32, #tpu.memory_space<vmem>>, %arg16: memref<1x1xf32, #tpu.memory_space<vmem>>, %arg17: memref<1x1xf32, #tpu.memory_space<vmem>>, %arg18: memref<1x1xf32, #tpu.memory_space<vmem>>, %arg19: memref<8x256xf32, #tpu.memory_space<vmem>>, %arg20: memref<64x128xf32, #tpu.memory_space<vmem>>) attributes {dimension_semantics = [#tpu.dimension_semantics<arbitrary>], iteration_bounds = array<i64: 1>, scalar_prefetch = 0 : i64, scratch_operands = 2 : i64, tpu.core_type = #tpu.core_type<tc>, window_params = [{transform_indices = @transform_0, window_bounds = array<i64: 2>}, {pipeline_mode = #tpu.pipeline_mode<synchronous>, transform_indices = @transform_1, window_bounds = array<i64: 64, 48>}, {pipeline_mode = #tpu.pipeline_mode<synchronous>, transform_indices = @transform_2, window_bounds = array<i64: 64, 128>}, {pipeline_mode = #tpu.pipeline_mode<synchronous>, transform_indices = @transform_3, window_bounds = array<i64: 64, 8>}, {pipeline_mode = #tpu.pipeline_mode<synchronous>, transform_indices = @transform_4, window_bounds = array<i64: 48, 768>}, {pipeline_mode = #tpu.pipeline_mode<synchronous>, transform_indices = @transform_5, window_bounds = array<i64: 1, 768>}, {pipeline_mode = #tpu.pipeline_mode<synchronous>, transform_indices = @transform_6, window_bounds = array<i64: 128, 256>}, {pipeline_mode = #tpu.pipeline_mode<synchronous>, transform_indices = @transform_7, window_bounds = array<i64: 128, 256>}, {pipeline_mode = #tpu.pipeline_mode<synchronous>, transform_indices = @transform_8, window_bounds = array<i64: 1, 256>}, {pipeline_mode = #tpu.pipeline_mode<synchronous>, transform_indices = @transform_9, window_bounds = array<i64: 128, 128>}, {pipeline_mode = #tpu.pipeline_mode<synchronous>, transform_indices = @transform_10, window_bounds = array<i64: 1, 128>}, {pipeline_mode = #tpu.pipeline_mode<synchronous>, transform_indices = @transform_11, window_bounds = array<i64: 128, 128>}, {pipeline_mode = #tpu.pipeline_mode<synchronous>, transform_indices = @transform_12, window_bounds = array<i64: 128, 8>}, {pipeline_mode = #tpu.pipeline_mode<synchronous>, transform_indices = @transform_13, window_bounds = array<i64: 1, 8>}, {pipeline_mode = #tpu.pipeline_mode<synchronous>, transform_indices = @transform_14, window_bounds = array<i64: 256, 512>}, {pipeline_mode = #tpu.pipeline_mode<synchronous>, transform_indices = @transform_15, window_bounds = array<i64: 1, 1>}, {pipeline_mode = #tpu.pipeline_mode<synchronous>, transform_indices = @transform_16, window_bounds = array<i64: 1, 1>}, {pipeline_mode = #tpu.pipeline_mode<synchronous>, transform_indices = @transform_17, window_bounds = array<i64: 1, 1>}]} {
    %c0 = arith.constant 0 : index
    %c0_0 = arith.constant 0 : index
    %0 = vector.load %arg2[%c0, %c0_0] : memref<64x48xf32, #tpu.memory_space<vmem>>, vector<64x48xf32>
    %c0_1 = arith.constant 0 : index
    %c0_2 = arith.constant 0 : index
    %1 = vector.load %arg5[%c0_1, %c0_2] : memref<48x768xf32, #tpu.memory_space<vmem>>, vector<48x768xf32>
    %cst = arith.constant dense<0.000000e+00> : vector<64x768xf32>
    %2 = tpu.matmul %0, %1, %cst {dimension_numbers = #tpu.dot_dimension_numbers<[1], [0], [0], [1], [0, 0, 1, 1], [], []>} : vector<64x48xf32>, vector<48x768xf32>, vector<64x768xf32> -> vector<64x768xf32>
    %c0_3 = arith.constant 0 : index
    %c0_4 = arith.constant 0 : index
    %3 = vector.load %arg6[%c0_3, %c0_4] : memref<1x768xf32, #tpu.memory_space<vmem>>, vector<1x768xf32>
    %4 = vector.broadcast %3 : vector<1x768xf32> to vector<64x768xf32>
    %5 = arith.addf %2, %4 : vector<64x768xf32>
    %6 = vector.extract_strided_slice %5 {offsets = [0, 0], sizes = [64, 128], strides = [1, 1]} : vector<64x768xf32> to vector<64x128xf32>
    %7 = vector.extract_strided_slice %5 {offsets = [0, 128], sizes = [64, 128], strides = [1, 1]} : vector<64x768xf32> to vector<64x128xf32>
    %8 = vector.extract_strided_slice %5 {offsets = [0, 256], sizes = [64, 512], strides = [1, 1]} : vector<64x768xf32> to vector<64x512xf32>
    %c0_5 = arith.constant 0 : index
    %c0_6 = arith.constant 0 : index
    %9 = vector.load %arg7[%c0_5, %c0_6] : memref<128x256xf32, #tpu.memory_space<vmem>>, vector<128x256xf32>
    %cst_7 = arith.constant dense<0.000000e+00> : vector<64x256xf32>
    %10 = tpu.matmul %6, %9, %cst_7 {dimension_numbers = #tpu.dot_dimension_numbers<[1], [0], [0], [1], [0, 0, 1, 1], [], []>} : vector<64x128xf32>, vector<128x256xf32>, vector<64x256xf32> -> vector<64x256xf32>
    %c0_8 = arith.constant 0 : index
    %c0_9 = arith.constant 0 : index
    %11 = vector.load %arg9[%c0_8, %c0_9] : memref<1x256xf32, #tpu.memory_space<vmem>>, vector<1x256xf32>
    %12 = vector.broadcast %11 : vector<1x256xf32> to vector<64x256xf32>
    %13 = arith.addf %10, %12 : vector<64x256xf32>
    %c0_10 = arith.constant 0 : index
    %c0_11 = arith.constant 0 : index
    %14 = vector.load %arg3[%c0_10, %c0_11] : memref<64x128xf32, #tpu.memory_space<vmem>>, vector<64x128xf32>
    %cst_12 = arith.constant 0.000000e+00 : f32
    %15 = vector.broadcast %cst_12 : f32 to vector<8x128xf32>
    %cst_13 = arith.constant 0.000000e+00 : f32
    %16 = vector.broadcast %cst_13 : f32 to vector<8x128xf32>
    %cst_14 = arith.constant 0.000000e+00 : f32
    %17 = vector.broadcast %cst_14 : f32 to vector<8x128xf32>
    %18 = arith.addf %15, %16 : vector<8x128xf32>
    %19 = vector.extract_strided_slice %13 {offsets = [0, 0], sizes = [8, 256], strides = [1, 1]} : vector<64x256xf32> to vector<8x256xf32>
    %c0_15 = arith.constant 0 : index
    %c0_16 = arith.constant 0 : index
    %20 = vector.load %arg8[%c0_15, %c0_16] : memref<128x256xf32, #tpu.memory_space<vmem>>, vector<128x256xf32>
    %cst_17 = arith.constant dense<0.000000e+00> : vector<8x256xf32>
    %21 = tpu.matmul %18, %20, %cst_17 {dimension_numbers = #tpu.dot_dimension_numbers<[1], [0], [0], [1], [0, 0, 1, 1], [], []>} : vector<8x128xf32>, vector<128x256xf32>, vector<8x256xf32> -> vector<8x256xf32>
    %22 = arith.addf %19, %21 : vector<8x256xf32>
    %23 = vector.extract_strided_slice %22 {offsets = [0, 0], sizes = [8, 128], strides = [1, 1]} : vector<8x256xf32> to vector<8x128xf32>
    %24 = vector.extract_strided_slice %22 {offsets = [0, 128], sizes = [8, 128], strides = [1, 1]} : vector<8x256xf32> to vector<8x128xf32>
    %cst_18 = arith.constant 5.000000e-01 : f32
    %25 = vector.broadcast %cst_18 : f32 to vector<8x128xf32>
    %26 = arith.mulf %25, %24 : vector<8x128xf32>
    %27 = math.exp %26 : vector<8x128xf32>
    %28 = arith.mulf %27, %27 : vector<8x128xf32>
    %29 = vector.extract_strided_slice %14 {offsets = [0, 0], sizes = [8, 128], strides = [1, 1]} : vector<64x128xf32> to vector<8x128xf32>
    %30 = arith.mulf %27, %29 : vector<8x128xf32>
    %31 = arith.addf %23, %30 : vector<8x128xf32>
    %c0_19 = arith.constant 0 : index
    %c0_20 = arith.constant 0 : index
    %32 = vector.load %arg10[%c0_19, %c0_20] : memref<128x128xf32, #tpu.memory_space<vmem>>, vector<128x128xf32>
    %cst_21 = arith.constant dense<0.000000e+00> : vector<8x128xf32>
    %33 = tpu.matmul %31, %32, %cst_21 {dimension_numbers = #tpu.dot_dimension_numbers<[1], [0], [0], [1], [0, 0, 1, 1], [], []>} : vector<8x128xf32>, vector<128x128xf32>, vector<8x128xf32> -> vector<8x128xf32>
    %c0_22 = arith.constant 0 : index
    %c0_23 = arith.constant 0 : index
    %34 = vector.load %arg11[%c0_22, %c0_23] : memref<1x128xf32, #tpu.memory_space<vmem>>, vector<1x128xf32>
    %35 = vector.broadcast %34 : vector<1x128xf32> to vector<8x128xf32>
    %36 = arith.addf %33, %35 : vector<8x128xf32>
    %cst_24 = arith.constant 0.000000e+00 : f32
    %37 = vector.broadcast %cst_24 : f32 to vector<8x128xf32>
    %38 = arith.maximumf %36, %37 : vector<8x128xf32>
    %39 = vector.broadcast %cst_24 : f32 to vector<8x128xf32>
    %40 = arith.subf %36, %39 : vector<8x128xf32>
    %41 = arith.cmpf one, %40, %40 : vector<8x128xf32>
    %42 = vector.broadcast %cst_24 : f32 to vector<8x128xf32>
    %43 = arith.addf %36, %42 : vector<8x128xf32>
    %44 = math.absf %40 : vector<8x128xf32>
    %cst_25 = arith.constant 0.000000e+00 : f32
    %45 = vector.broadcast %cst_25 : f32 to vector<8x128xf32>
    %46 = arith.subf %45, %44 : vector<8x128xf32>
    %47 = math.exp %46 : vector<8x128xf32>
    %48 = math.log1p %47 : vector<8x128xf32>
    %49 = arith.addf %38, %48 : vector<8x128xf32>
    %50 = arith.select %41, %43, %49 : vector<8x128xi1>, vector<8x128xf32>
    %cst_26 = arith.constant 1.000000e+00 : f32
    %51 = vector.broadcast %cst_26 : f32 to vector<8x128xf32>
    %52 = arith.addf %51, %24 : vector<8x128xf32>
    %53 = arith.mulf %23, %23 : vector<8x128xf32>
    %54 = arith.subf %52, %53 : vector<8x128xf32>
    %55 = arith.subf %54, %28 : vector<8x128xf32>
    %56 = arith.addf %17, %55 : vector<8x128xf32>
    %c0_27 = arith.constant 0 : index
    %c0_28 = arith.constant 0 : index
    %57 = vector.load %arg20[%c0_27, %c0_28] : memref<64x128xf32, #tpu.memory_space<vmem>>, vector<8x128xf32>
    tpu.vector_store %arg20[%c0_27, %c0_28], %50 {strides = array<i32>} : memref<64x128xf32, #tpu.memory_space<vmem>>, vector<8x128xf32>,
    %c0_29 = arith.constant 0 : index
    %c0_30 = arith.constant 0 : index
    %58 = vector.load %arg19[%c0_29, %c0_30] : memref<8x256xf32, #tpu.memory_space<vmem>>, vector<8x128xf32>
    tpu.vector_store %arg19[%c0_29, %c0_30], %50 {strides = array<i32>} : memref<8x256xf32, #tpu.memory_space<vmem>>, vector<8x128xf32>,
    %c0_31 = arith.constant 0 : index
    %c128 = arith.constant 128 : index
    %59 = vector.load %arg19[%c0_31, %c128] : memref<8x256xf32, #tpu.memory_space<vmem>>, vector<8x128xf32>
    tpu.vector_store %arg19[%c0_31, %c128], %15 {strides = array<i32>} : memref<8x256xf32, #tpu.memory_space<vmem>>, vector<8x128xf32>,
    %60 = vector.extract_strided_slice %8 {offsets = [0, 0], sizes = [8, 512], strides = [1, 1]} : vector<64x512xf32> to vector<8x512xf32>
    %c0_32 = arith.constant 0 : index
    %c0_33 = arith.constant 0 : index
    %61 = vector.load %arg19[%c0_32, %c0_33] : memref<8x256xf32, #tpu.memory_space<vmem>>, vector<8x256xf32>
    %c0_34 = arith.constant 0 : index
    %c0_35 = arith.constant 0 : index
    %62 = vector.load %arg15[%c0_34, %c0_35] : memref<256x512xf32, #tpu.memory_space<vmem>>, vector<256x512xf32>
    %cst_36 = arith.constant dense<0.000000e+00> : vector<8x512xf32>
    %63 = tpu.matmul %61, %62, %cst_36 {dimension_numbers = #tpu.dot_dimension_numbers<[1], [0], [0], [1], [0, 0, 1, 1], [], []>} : vector<8x256xf32>, vector<256x512xf32>, vector<8x512xf32> -> vector<8x512xf32>
    %64 = arith.addf %60, %63 : vector<8x512xf32>
    %65 = vector.extract_strided_slice %64 {offsets = [0, 0], sizes = [8, 128], strides = [1, 1]} : vector<8x512xf32> to vector<8x128xf32>
    %66 = arith.negf %65 : vector<8x128xf32>
    %67 = math.exp %66 : vector<8x128xf32>
    %cst_37 = arith.constant 1.000000e+00 : f32
    %68 = vector.broadcast %cst_37 : f32 to vector<8x128xf32>
    %69 = arith.addf %68, %67 : vector<8x128xf32>
    %70 = arith.divf %68, %69 : vector<8x128xf32>
    %71 = vector.extract_strided_slice %64 {offsets = [0, 128], sizes = [8, 128], strides = [1, 1]} : vector<8x512xf32> to vector<8x128xf32>
    %72 = arith.negf %71 : vector<8x128xf32>
    %73 = math.exp %72 : vector<8x128xf32>
    %cst_38 = arith.constant 1.000000e+00 : f32
    %74 = vector.broadcast %cst_38 : f32 to vector<8x128xf32>
    %75 = arith.addf %74, %73 : vector<8x128xf32>
    %76 = arith.divf %74, %75 : vector<8x128xf32>
    %77 = vector.extract_strided_slice %64 {offsets = [0, 256], sizes = [8, 128], strides = [1, 1]} : vector<8x512xf32> to vector<8x128xf32>
    %78 = math.tanh %77 : vector<8x128xf32>
    %79 = vector.extract_strided_slice %64 {offsets = [0, 384], sizes = [8, 128], strides = [1, 1]} : vector<8x512xf32> to vector<8x128xf32>
    %80 = arith.negf %79 : vector<8x128xf32>
    %81 = math.exp %80 : vector<8x128xf32>
    %cst_39 = arith.constant 1.000000e+00 : f32
    %82 = vector.broadcast %cst_39 : f32 to vector<8x128xf32>
    %83 = arith.addf %82, %81 : vector<8x128xf32>
    %84 = arith.divf %82, %83 : vector<8x128xf32>
    %85 = arith.mulf %76, %16 : vector<8x128xf32>
    %86 = arith.mulf %70, %78 : vector<8x128xf32>
    %87 = arith.addf %85, %86 : vector<8x128xf32>
    %88 = math.tanh %87 : vector<8x128xf32>
    %89 = arith.mulf %84, %88 : vector<8x128xf32>
    %90 = arith.addf %89, %87 : vector<8x128xf32>
    %91 = vector.extract_strided_slice %13 {offsets = [8, 0], sizes = [8, 256], strides = [1, 1]} : vector<64x256xf32> to vector<8x256xf32>
    %c0_40 = arith.constant 0 : index
    %c0_41 = arith.constant 0 : index
    %92 = vector.load %arg8[%c0_40, %c0_41] : memref<128x256xf32, #tpu.memory_space<vmem>>, vector<128x256xf32>
    %cst_42 = arith.constant dense<0.000000e+00> : vector<8x256xf32>
    %93 = tpu.matmul %90, %92, %cst_42 {dimension_numbers = #tpu.dot_dimension_numbers<[1], [0], [0], [1], [0, 0, 1, 1], [], []>} : vector<8x128xf32>, vector<128x256xf32>, vector<8x256xf32> -> vector<8x256xf32>
    %94 = arith.addf %91, %93 : vector<8x256xf32>
    %95 = vector.extract_strided_slice %94 {offsets = [0, 0], sizes = [8, 128], strides = [1, 1]} : vector<8x256xf32> to vector<8x128xf32>
    %96 = vector.extract_strided_slice %94 {offsets = [0, 128], sizes = [8, 128], strides = [1, 1]} : vector<8x256xf32> to vector<8x128xf32>
    %cst_43 = arith.constant 5.000000e-01 : f32
    %97 = vector.broadcast %cst_43 : f32 to vector<8x128xf32>
    %98 = arith.mulf %97, %96 : vector<8x128xf32>
    %99 = math.exp %98 : vector<8x128xf32>
    %100 = arith.mulf %99, %99 : vector<8x128xf32>
    %101 = vector.extract_strided_slice %14 {offsets = [8, 0], sizes = [8, 128], strides = [1, 1]} : vector<64x128xf32> to vector<8x128xf32>
    %102 = arith.mulf %99, %101 : vector<8x128xf32>
    %103 = arith.addf %95, %102 : vector<8x128xf32>
    %c0_44 = arith.constant 0 : index
    %c0_45 = arith.constant 0 : index
    %104 = vector.load %arg10[%c0_44, %c0_45] : memref<128x128xf32, #tpu.memory_space<vmem>>, vector<128x128xf32>
    %cst_46 = arith.constant dense<0.000000e+00> : vector<8x128xf32>
    %105 = tpu.matmul %103, %104, %cst_46 {dimension_numbers = #tpu.dot_dimension_numbers<[1], [0], [0], [1], [0, 0, 1, 1], [], []>} : vector<8x128xf32>, vector<128x128xf32>, vector<8x128xf32> -> vector<8x128xf32>
    %c0_47 = arith.constant 0 : index
    %c0_48 = arith.constant 0 : index
    %106 = vector.load %arg11[%c0_47, %c0_48] : memref<1x128xf32, #tpu.memory_space<vmem>>, vector<1x128xf32>
    %107 = vector.broadcast %106 : vector<1x128xf32> to vector<8x128xf32>
    %108 = arith.addf %105, %107 : vector<8x128xf32>
    %cst_49 = arith.constant 0.000000e+00 : f32
    %109 = vector.broadcast %cst_49 : f32 to vector<8x128xf32>
    %110 = arith.maximumf %108, %109 : vector<8x128xf32>
    %111 = vector.broadcast %cst_49 : f32 to vector<8x128xf32>
    %112 = arith.subf %108, %111 : vector<8x128xf32>
    %113 = arith.cmpf one, %112, %112 : vector<8x128xf32>
    %114 = vector.broadcast %cst_49 : f32 to vector<8x128xf32>
    %115 = arith.addf %108, %114 : vector<8x128xf32>
    %116 = math.absf %112 : vector<8x128xf32>
    %cst_50 = arith.constant 0.000000e+00 : f32
    %117 = vector.broadcast %cst_50 : f32 to vector<8x128xf32>
    %118 = arith.subf %117, %116 : vector<8x128xf32>
    %119 = math.exp %118 : vector<8x128xf32>
    %120 = math.log1p %119 : vector<8x128xf32>
    %121 = arith.addf %110, %120 : vector<8x128xf32>
    %122 = arith.select %113, %115, %121 : vector<8x128xi1>, vector<8x128xf32>
    %cst_51 = arith.constant 1.000000e+00 : f32
    %123 = vector.broadcast %cst_51 : f32 to vector<8x128xf32>
    %124 = arith.addf %123, %96 : vector<8x128xf32>
    %125 = arith.mulf %95, %95 : vector<8x128xf32>
    %126 = arith.subf %124, %125 : vector<8x128xf32>
    %127 = arith.subf %126, %100 : vector<8x128xf32>
    %128 = arith.addf %56, %127 : vector<8x128xf32>
    %c8 = arith.constant 8 : index
    %c0_52 = arith.constant 0 : index
    %129 = vector.load %arg20[%c8, %c0_52] : memref<64x128xf32, #tpu.memory_space<vmem>>, vector<8x128xf32>
    tpu.vector_store %arg20[%c8, %c0_52], %122 {strides = array<i32>} : memref<64x128xf32, #tpu.memory_space<vmem>>, vector<8x128xf32>,
    %c0_53 = arith.constant 0 : index
    %c0_54 = arith.constant 0 : index
    %130 = vector.load %arg19[%c0_53, %c0_54] : memref<8x256xf32, #tpu.memory_space<vmem>>, vector<8x128xf32>
    tpu.vector_store %arg19[%c0_53, %c0_54], %122 {strides = array<i32>} : memref<8x256xf32, #tpu.memory_space<vmem>>, vector<8x128xf32>,
    %c0_55 = arith.constant 0 : index
    %c128_56 = arith.constant 128 : index
    %131 = vector.load %arg19[%c0_55, %c128_56] : memref<8x256xf32, #tpu.memory_space<vmem>>, vector<8x128xf32>
    tpu.vector_store %arg19[%c0_55, %c128_56], %89 {strides = array<i32>} : memref<8x256xf32, #tpu.memory_space<vmem>>, vector<8x128xf32>,
    %132 = vector.extract_strided_slice %8 {offsets = [8, 0], sizes = [8, 512], strides = [1, 1]} : vector<64x512xf32> to vector<8x512xf32>
    %c0_57 = arith.constant 0 : index
    %c0_58 = arith.constant 0 : index
    %133 = vector.load %arg19[%c0_57, %c0_58] : memref<8x256xf32, #tpu.memory_space<vmem>>, vector<8x256xf32>
    %c0_59 = arith.constant 0 : index
    %c0_60 = arith.constant 0 : index
    %134 = vector.load %arg15[%c0_59, %c0_60] : memref<256x512xf32, #tpu.memory_space<vmem>>, vector<256x512xf32>
    %cst_61 = arith.constant dense<0.000000e+00> : vector<8x512xf32>
    %135 = tpu.matmul %133, %134, %cst_61 {dimension_numbers = #tpu.dot_dimension_numbers<[1], [0], [0], [1], [0, 0, 1, 1], [], []>} : vector<8x256xf32>, vector<256x512xf32>, vector<8x512xf32> -> vector<8x512xf32>
    %136 = arith.addf %132, %135 : vector<8x512xf32>
    %137 = vector.extract_strided_slice %136 {offsets = [0, 0], sizes = [8, 128], strides = [1, 1]} : vector<8x512xf32> to vector<8x128xf32>
    %138 = arith.negf %137 : vector<8x128xf32>
    %139 = math.exp %138 : vector<8x128xf32>
    %cst_62 = arith.constant 1.000000e+00 : f32
    %140 = vector.broadcast %cst_62 : f32 to vector<8x128xf32>
    %141 = arith.addf %140, %139 : vector<8x128xf32>
    %142 = arith.divf %140, %141 : vector<8x128xf32>
    %143 = vector.extract_strided_slice %136 {offsets = [0, 128], sizes = [8, 128], strides = [1, 1]} : vector<8x512xf32> to vector<8x128xf32>
    %144 = arith.negf %143 : vector<8x128xf32>
    %145 = math.exp %144 : vector<8x128xf32>
    %cst_63 = arith.constant 1.000000e+00 : f32
    %146 = vector.broadcast %cst_63 : f32 to vector<8x128xf32>
    %147 = arith.addf %146, %145 : vector<8x128xf32>
    %148 = arith.divf %146, %147 : vector<8x128xf32>
    %149 = vector.extract_strided_slice %136 {offsets = [0, 256], sizes = [8, 128], strides = [1, 1]} : vector<8x512xf32> to vector<8x128xf32>
    %150 = math.tanh %149 : vector<8x128xf32>
    %151 = vector.extract_strided_slice %136 {offsets = [0, 384], sizes = [8, 128], strides = [1, 1]} : vector<8x512xf32> to vector<8x128xf32>
    %152 = arith.negf %151 : vector<8x128xf32>
    %153 = math.exp %152 : vector<8x128xf32>
    %cst_64 = arith.constant 1.000000e+00 : f32
    %154 = vector.broadcast %cst_64 : f32 to vector<8x128xf32>
    %155 = arith.addf %154, %153 : vector<8x128xf32>
    %156 = arith.divf %154, %155 : vector<8x128xf32>
    %157 = arith.mulf %148, %87 : vector<8x128xf32>
    %158 = arith.mulf %142, %150 : vector<8x128xf32>
    %159 = arith.addf %157, %158 : vector<8x128xf32>
    %160 = math.tanh %159 : vector<8x128xf32>
    %161 = arith.mulf %156, %160 : vector<8x128xf32>
    %162 = arith.addf %161, %159 : vector<8x128xf32>
    %163 = vector.extract_strided_slice %13 {offsets = [16, 0], sizes = [8, 256], strides = [1, 1]} : vector<64x256xf32> to vector<8x256xf32>
    %c0_65 = arith.constant 0 : index
    %c0_66 = arith.constant 0 : index
    %164 = vector.load %arg8[%c0_65, %c0_66] : memref<128x256xf32, #tpu.memory_space<vmem>>, vector<128x256xf32>
    %cst_67 = arith.constant dense<0.000000e+00> : vector<8x256xf32>
    %165 = tpu.matmul %162, %164, %cst_67 {dimension_numbers = #tpu.dot_dimension_numbers<[1], [0], [0], [1], [0, 0, 1, 1], [], []>} : vector<8x128xf32>, vector<128x256xf32>, vector<8x256xf32> -> vector<8x256xf32>
    %166 = arith.addf %163, %165 : vector<8x256xf32>
    %167 = vector.extract_strided_slice %166 {offsets = [0, 0], sizes = [8, 128], strides = [1, 1]} : vector<8x256xf32> to vector<8x128xf32>
    %168 = vector.extract_strided_slice %166 {offsets = [0, 128], sizes = [8, 128], strides = [1, 1]} : vector<8x256xf32> to vector<8x128xf32>
    %cst_68 = arith.constant 5.000000e-01 : f32
    %169 = vector.broadcast %cst_68 : f32 to vector<8x128xf32>
    %170 = arith.mulf %169, %168 : vector<8x128xf32>
    %171 = math.exp %170 : vector<8x128xf32>
    %172 = arith.mulf %171, %171 : vector<8x128xf32>
    %173 = vector.extract_strided_slice %14 {offsets = [16, 0], sizes = [8, 128], strides = [1, 1]} : vector<64x128xf32> to vector<8x128xf32>
    %174 = arith.mulf %171, %173 : vector<8x128xf32>
    %175 = arith.addf %167, %174 : vector<8x128xf32>
    %c0_69 = arith.constant 0 : index
    %c0_70 = arith.constant 0 : index
    %176 = vector.load %arg10[%c0_69, %c0_70] : memref<128x128xf32, #tpu.memory_space<vmem>>, vector<128x128xf32>
    %cst_71 = arith.constant dense<0.000000e+00> : vector<8x128xf32>
    %177 = tpu.matmul %175, %176, %cst_71 {dimension_numbers = #tpu.dot_dimension_numbers<[1], [0], [0], [1], [0, 0, 1, 1], [], []>} : vector<8x128xf32>, vector<128x128xf32>, vector<8x128xf32> -> vector<8x128xf32>
    %c0_72 = arith.constant 0 : index
    %c0_73 = arith.constant 0 : index
    %178 = vector.load %arg11[%c0_72, %c0_73] : memref<1x128xf32, #tpu.memory_space<vmem>>, vector<1x128xf32>
    %179 = vector.broadcast %178 : vector<1x128xf32> to vector<8x128xf32>
    %180 = arith.addf %177, %179 : vector<8x128xf32>
    %cst_74 = arith.constant 0.000000e+00 : f32
    %181 = vector.broadcast %cst_74 : f32 to vector<8x128xf32>
    %182 = arith.maximumf %180, %181 : vector<8x128xf32>
    %183 = vector.broadcast %cst_74 : f32 to vector<8x128xf32>
    %184 = arith.subf %180, %183 : vector<8x128xf32>
    %185 = arith.cmpf one, %184, %184 : vector<8x128xf32>
    %186 = vector.broadcast %cst_74 : f32 to vector<8x128xf32>
    %187 = arith.addf %180, %186 : vector<8x128xf32>
    %188 = math.absf %184 : vector<8x128xf32>
    %cst_75 = arith.constant 0.000000e+00 : f32
    %189 = vector.broadcast %cst_75 : f32 to vector<8x128xf32>
    %190 = arith.subf %189, %188 : vector<8x128xf32>
    %191 = math.exp %190 : vector<8x128xf32>
    %192 = math.log1p %191 : vector<8x128xf32>
    %193 = arith.addf %182, %192 : vector<8x128xf32>
    %194 = arith.select %185, %187, %193 : vector<8x128xi1>, vector<8x128xf32>
    %cst_76 = arith.constant 1.000000e+00 : f32
    %195 = vector.broadcast %cst_76 : f32 to vector<8x128xf32>
    %196 = arith.addf %195, %168 : vector<8x128xf32>
    %197 = arith.mulf %167, %167 : vector<8x128xf32>
    %198 = arith.subf %196, %197 : vector<8x128xf32>
    %199 = arith.subf %198, %172 : vector<8x128xf32>
    %200 = arith.addf %128, %199 : vector<8x128xf32>
    %c16 = arith.constant 16 : index
    %c0_77 = arith.constant 0 : index
    %201 = vector.load %arg20[%c16, %c0_77] : memref<64x128xf32, #tpu.memory_space<vmem>>, vector<8x128xf32>
    tpu.vector_store %arg20[%c16, %c0_77], %194 {strides = array<i32>} : memref<64x128xf32, #tpu.memory_space<vmem>>, vector<8x128xf32>,
    %c0_78 = arith.constant 0 : index
    %c0_79 = arith.constant 0 : index
    %202 = vector.load %arg19[%c0_78, %c0_79] : memref<8x256xf32, #tpu.memory_space<vmem>>, vector<8x128xf32>
    tpu.vector_store %arg19[%c0_78, %c0_79], %194 {strides = array<i32>} : memref<8x256xf32, #tpu.memory_space<vmem>>, vector<8x128xf32>,
    %c0_80 = arith.constant 0 : index
    %c128_81 = arith.constant 128 : index
    %203 = vector.load %arg19[%c0_80, %c128_81] : memref<8x256xf32, #tpu.memory_space<vmem>>, vector<8x128xf32>
    tpu.vector_store %arg19[%c0_80, %c128_81], %161 {strides = array<i32>} : memref<8x256xf32, #tpu.memory_space<vmem>>, vector<8x128xf32>,
    %204 = vector.extract_strided_slice %8 {offsets = [16, 0], sizes = [8, 512], strides = [1, 1]} : vector<64x512xf32> to vector<8x512xf32>
    %c0_82 = arith.constant 0 : index
    %c0_83 = arith.constant 0 : index
    %205 = vector.load %arg19[%c0_82, %c0_83] : memref<8x256xf32, #tpu.memory_space<vmem>>, vector<8x256xf32>
    %c0_84 = arith.constant 0 : index
    %c0_85 = arith.constant 0 : index
    %206 = vector.load %arg15[%c0_84, %c0_85] : memref<256x512xf32, #tpu.memory_space<vmem>>, vector<256x512xf32>
    %cst_86 = arith.constant dense<0.000000e+00> : vector<8x512xf32>
    %207 = tpu.matmul %205, %206, %cst_86 {dimension_numbers = #tpu.dot_dimension_numbers<[1], [0], [0], [1], [0, 0, 1, 1], [], []>} : vector<8x256xf32>, vector<256x512xf32>, vector<8x512xf32> -> vector<8x512xf32>
    %208 = arith.addf %204, %207 : vector<8x512xf32>
    %209 = vector.extract_strided_slice %208 {offsets = [0, 0], sizes = [8, 128], strides = [1, 1]} : vector<8x512xf32> to vector<8x128xf32>
    %210 = arith.negf %209 : vector<8x128xf32>
    %211 = math.exp %210 : vector<8x128xf32>
    %cst_87 = arith.constant 1.000000e+00 : f32
    %212 = vector.broadcast %cst_87 : f32 to vector<8x128xf32>
    %213 = arith.addf %212, %211 : vector<8x128xf32>
    %214 = arith.divf %212, %213 : vector<8x128xf32>
    %215 = vector.extract_strided_slice %208 {offsets = [0, 128], sizes = [8, 128], strides = [1, 1]} : vector<8x512xf32> to vector<8x128xf32>
    %216 = arith.negf %215 : vector<8x128xf32>
    %217 = math.exp %216 : vector<8x128xf32>
    %cst_88 = arith.constant 1.000000e+00 : f32
    %218 = vector.broadcast %cst_88 : f32 to vector<8x128xf32>
    %219 = arith.addf %218, %217 : vector<8x128xf32>
    %220 = arith.divf %218, %219 : vector<8x128xf32>
    %221 = vector.extract_strided_slice %208 {offsets = [0, 256], sizes = [8, 128], strides = [1, 1]} : vector<8x512xf32> to vector<8x128xf32>
    %222 = math.tanh %221 : vector<8x128xf32>
    %223 = vector.extract_strided_slice %208 {offsets = [0, 384], sizes = [8, 128], strides = [1, 1]} : vector<8x512xf32> to vector<8x128xf32>
    %224 = arith.negf %223 : vector<8x128xf32>
    %225 = math.exp %224 : vector<8x128xf32>
    %cst_89 = arith.constant 1.000000e+00 : f32
    %226 = vector.broadcast %cst_89 : f32 to vector<8x128xf32>
    %227 = arith.addf %226, %225 : vector<8x128xf32>
    %228 = arith.divf %226, %227 : vector<8x128xf32>
    %229 = arith.mulf %220, %159 : vector<8x128xf32>
    %230 = arith.mulf %214, %222 : vector<8x128xf32>
    %231 = arith.addf %229, %230 : vector<8x128xf32>
    %232 = math.tanh %231 : vector<8x128xf32>
    %233 = arith.mulf %228, %232 : vector<8x128xf32>
    %234 = arith.addf %233, %231 : vector<8x128xf32>
    %235 = vector.extract_strided_slice %13 {offsets = [24, 0], sizes = [8, 256], strides = [1, 1]} : vector<64x256xf32> to vector<8x256xf32>
    %c0_90 = arith.constant 0 : index
    %c0_91 = arith.constant 0 : index
    %236 = vector.load %arg8[%c0_90, %c0_91] : memref<128x256xf32, #tpu.memory_space<vmem>>, vector<128x256xf32>
    %cst_92 = arith.constant dense<0.000000e+00> : vector<8x256xf32>
    %237 = tpu.matmul %234, %236, %cst_92 {dimension_numbers = #tpu.dot_dimension_numbers<[1], [0], [0], [1], [0, 0, 1, 1], [], []>} : vector<8x128xf32>, vector<128x256xf32>, vector<8x256xf32> -> vector<8x256xf32>
    %238 = arith.addf %235, %237 : vector<8x256xf32>
    %239 = vector.extract_strided_slice %238 {offsets = [0, 0], sizes = [8, 128], strides = [1, 1]} : vector<8x256xf32> to vector<8x128xf32>
    %240 = vector.extract_strided_slice %238 {offsets = [0, 128], sizes = [8, 128], strides = [1, 1]} : vector<8x256xf32> to vector<8x128xf32>
    %cst_93 = arith.constant 5.000000e-01 : f32
    %241 = vector.broadcast %cst_93 : f32 to vector<8x128xf32>
    %242 = arith.mulf %241, %240 : vector<8x128xf32>
    %243 = math.exp %242 : vector<8x128xf32>
    %244 = arith.mulf %243, %243 : vector<8x128xf32>
    %245 = vector.extract_strided_slice %14 {offsets = [24, 0], sizes = [8, 128], strides = [1, 1]} : vector<64x128xf32> to vector<8x128xf32>
    %246 = arith.mulf %243, %245 : vector<8x128xf32>
    %247 = arith.addf %239, %246 : vector<8x128xf32>
    %c0_94 = arith.constant 0 : index
    %c0_95 = arith.constant 0 : index
    %248 = vector.load %arg10[%c0_94, %c0_95] : memref<128x128xf32, #tpu.memory_space<vmem>>, vector<128x128xf32>
    %cst_96 = arith.constant dense<0.000000e+00> : vector<8x128xf32>
    %249 = tpu.matmul %247, %248, %cst_96 {dimension_numbers = #tpu.dot_dimension_numbers<[1], [0], [0], [1], [0, 0, 1, 1], [], []>} : vector<8x128xf32>, vector<128x128xf32>, vector<8x128xf32> -> vector<8x128xf32>
    %c0_97 = arith.constant 0 : index
    %c0_98 = arith.constant 0 : index
    %250 = vector.load %arg11[%c0_97, %c0_98] : memref<1x128xf32, #tpu.memory_space<vmem>>, vector<1x128xf32>
    %251 = vector.broadcast %250 : vector<1x128xf32> to vector<8x128xf32>
    %252 = arith.addf %249, %251 : vector<8x128xf32>
    %cst_99 = arith.constant 0.000000e+00 : f32
    %253 = vector.broadcast %cst_99 : f32 to vector<8x128xf32>
    %254 = arith.maximumf %252, %253 : vector<8x128xf32>
    %255 = vector.broadcast %cst_99 : f32 to vector<8x128xf32>
    %256 = arith.subf %252, %255 : vector<8x128xf32>
    %257 = arith.cmpf one, %256, %256 : vector<8x128xf32>
    %258 = vector.broadcast %cst_99 : f32 to vector<8x128xf32>
    %259 = arith.addf %252, %258 : vector<8x128xf32>
    %260 = math.absf %256 : vector<8x128xf32>
    %cst_100 = arith.constant 0.000000e+00 : f32
    %261 = vector.broadcast %cst_100 : f32 to vector<8x128xf32>
    %262 = arith.subf %261, %260 : vector<8x128xf32>
    %263 = math.exp %262 : vector<8x128xf32>
    %264 = math.log1p %263 : vector<8x128xf32>
    %265 = arith.addf %254, %264 : vector<8x128xf32>
    %266 = arith.select %257, %259, %265 : vector<8x128xi1>, vector<8x128xf32>
    %cst_101 = arith.constant 1.000000e+00 : f32
    %267 = vector.broadcast %cst_101 : f32 to vector<8x128xf32>
    %268 = arith.addf %267, %240 : vector<8x128xf32>
    %269 = arith.mulf %239, %239 : vector<8x128xf32>
    %270 = arith.subf %268, %269 : vector<8x128xf32>
    %271 = arith.subf %270, %244 : vector<8x128xf32>
    %272 = arith.addf %200, %271 : vector<8x128xf32>
    %c24 = arith.constant 24 : index
    %c0_102 = arith.constant 0 : index
    %273 = vector.load %arg20[%c24, %c0_102] : memref<64x128xf32, #tpu.memory_space<vmem>>, vector<8x128xf32>
    tpu.vector_store %arg20[%c24, %c0_102], %266 {strides = array<i32>} : memref<64x128xf32, #tpu.memory_space<vmem>>, vector<8x128xf32>,
    %c0_103 = arith.constant 0 : index
    %c0_104 = arith.constant 0 : index
    %274 = vector.load %arg19[%c0_103, %c0_104] : memref<8x256xf32, #tpu.memory_space<vmem>>, vector<8x128xf32>
    tpu.vector_store %arg19[%c0_103, %c0_104], %266 {strides = array<i32>} : memref<8x256xf32, #tpu.memory_space<vmem>>, vector<8x128xf32>,
    %c0_105 = arith.constant 0 : index
    %c128_106 = arith.constant 128 : index
    %275 = vector.load %arg19[%c0_105, %c128_106] : memref<8x256xf32, #tpu.memory_space<vmem>>, vector<8x128xf32>
    tpu.vector_store %arg19[%c0_105, %c128_106], %233 {strides = array<i32>} : memref<8x256xf32, #tpu.memory_space<vmem>>, vector<8x128xf32>,
    %276 = vector.extract_strided_slice %8 {offsets = [24, 0], sizes = [8, 512], strides = [1, 1]} : vector<64x512xf32> to vector<8x512xf32>
    %c0_107 = arith.constant 0 : index
    %c0_108 = arith.constant 0 : index
    %277 = vector.load %arg19[%c0_107, %c0_108] : memref<8x256xf32, #tpu.memory_space<vmem>>, vector<8x256xf32>
    %c0_109 = arith.constant 0 : index
    %c0_110 = arith.constant 0 : index
    %278 = vector.load %arg15[%c0_109, %c0_110] : memref<256x512xf32, #tpu.memory_space<vmem>>, vector<256x512xf32>
    %cst_111 = arith.constant dense<0.000000e+00> : vector<8x512xf32>
    %279 = tpu.matmul %277, %278, %cst_111 {dimension_numbers = #tpu.dot_dimension_numbers<[1], [0], [0], [1], [0, 0, 1, 1], [], []>} : vector<8x256xf32>, vector<256x512xf32>, vector<8x512xf32> -> vector<8x512xf32>
    %280 = arith.addf %276, %279 : vector<8x512xf32>
    %281 = vector.extract_strided_slice %280 {offsets = [0, 0], sizes = [8, 128], strides = [1, 1]} : vector<8x512xf32> to vector<8x128xf32>
    %282 = arith.negf %281 : vector<8x128xf32>
    %283 = math.exp %282 : vector<8x128xf32>
    %cst_112 = arith.constant 1.000000e+00 : f32
    %284 = vector.broadcast %cst_112 : f32 to vector<8x128xf32>
    %285 = arith.addf %284, %283 : vector<8x128xf32>
    %286 = arith.divf %284, %285 : vector<8x128xf32>
    %287 = vector.extract_strided_slice %280 {offsets = [0, 128], sizes = [8, 128], strides = [1, 1]} : vector<8x512xf32> to vector<8x128xf32>
    %288 = arith.negf %287 : vector<8x128xf32>
    %289 = math.exp %288 : vector<8x128xf32>
    %cst_113 = arith.constant 1.000000e+00 : f32
    %290 = vector.broadcast %cst_113 : f32 to vector<8x128xf32>
    %291 = arith.addf %290, %289 : vector<8x128xf32>
    %292 = arith.divf %290, %291 : vector<8x128xf32>
    %293 = vector.extract_strided_slice %280 {offsets = [0, 256], sizes = [8, 128], strides = [1, 1]} : vector<8x512xf32> to vector<8x128xf32>
    %294 = math.tanh %293 : vector<8x128xf32>
    %295 = vector.extract_strided_slice %280 {offsets = [0, 384], sizes = [8, 128], strides = [1, 1]} : vector<8x512xf32> to vector<8x128xf32>
    %296 = arith.negf %295 : vector<8x128xf32>
    %297 = math.exp %296 : vector<8x128xf32>
    %cst_114 = arith.constant 1.000000e+00 : f32
    %298 = vector.broadcast %cst_114 : f32 to vector<8x128xf32>
    %299 = arith.addf %298, %297 : vector<8x128xf32>
    %300 = arith.divf %298, %299 : vector<8x128xf32>
    %301 = arith.mulf %292, %231 : vector<8x128xf32>
    %302 = arith.mulf %286, %294 : vector<8x128xf32>
    %303 = arith.addf %301, %302 : vector<8x128xf32>
    %304 = math.tanh %303 : vector<8x128xf32>
    %305 = arith.mulf %300, %304 : vector<8x128xf32>
    %306 = arith.addf %305, %303 : vector<8x128xf32>
    %307 = vector.extract_strided_slice %13 {offsets = [32, 0], sizes = [8, 256], strides = [1, 1]} : vector<64x256xf32> to vector<8x256xf32>
    %c0_115 = arith.constant 0 : index
    %c0_116 = arith.constant 0 : index
    %308 = vector.load %arg8[%c0_115, %c0_116] : memref<128x256xf32, #tpu.memory_space<vmem>>, vector<128x256xf32>
    %cst_117 = arith.constant dense<0.000000e+00> : vector<8x256xf32>
    %309 = tpu.matmul %306, %308, %cst_117 {dimension_numbers = #tpu.dot_dimension_numbers<[1], [0], [0], [1], [0, 0, 1, 1], [], []>} : vector<8x128xf32>, vector<128x256xf32>, vector<8x256xf32> -> vector<8x256xf32>
    %310 = arith.addf %307, %309 : vector<8x256xf32>
    %311 = vector.extract_strided_slice %310 {offsets = [0, 0], sizes = [8, 128], strides = [1, 1]} : vector<8x256xf32> to vector<8x128xf32>
    %312 = vector.extract_strided_slice %310 {offsets = [0, 128], sizes = [8, 128], strides = [1, 1]} : vector<8x256xf32> to vector<8x128xf32>
    %cst_118 = arith.constant 5.000000e-01 : f32
    %313 = vector.broadcast %cst_118 : f32 to vector<8x128xf32>
    %314 = arith.mulf %313, %312 : vector<8x128xf32>
    %315 = math.exp %314 : vector<8x128xf32>
    %316 = arith.mulf %315, %315 : vector<8x128xf32>
    %317 = vector.extract_strided_slice %14 {offsets = [32, 0], sizes = [8, 128], strides = [1, 1]} : vector<64x128xf32> to vector<8x128xf32>
    %318 = arith.mulf %315, %317 : vector<8x128xf32>
    %319 = arith.addf %311, %318 : vector<8x128xf32>
    %c0_119 = arith.constant 0 : index
    %c0_120 = arith.constant 0 : index
    %320 = vector.load %arg10[%c0_119, %c0_120] : memref<128x128xf32, #tpu.memory_space<vmem>>, vector<128x128xf32>
    %cst_121 = arith.constant dense<0.000000e+00> : vector<8x128xf32>
    %321 = tpu.matmul %319, %320, %cst_121 {dimension_numbers = #tpu.dot_dimension_numbers<[1], [0], [0], [1], [0, 0, 1, 1], [], []>} : vector<8x128xf32>, vector<128x128xf32>, vector<8x128xf32> -> vector<8x128xf32>
    %c0_122 = arith.constant 0 : index
    %c0_123 = arith.constant 0 : index
    %322 = vector.load %arg11[%c0_122, %c0_123] : memref<1x128xf32, #tpu.memory_space<vmem>>, vector<1x128xf32>
    %323 = vector.broadcast %322 : vector<1x128xf32> to vector<8x128xf32>
    %324 = arith.addf %321, %323 : vector<8x128xf32>
    %cst_124 = arith.constant 0.000000e+00 : f32
    %325 = vector.broadcast %cst_124 : f32 to vector<8x128xf32>
    %326 = arith.maximumf %324, %325 : vector<8x128xf32>
    %327 = vector.broadcast %cst_124 : f32 to vector<8x128xf32>
    %328 = arith.subf %324, %327 : vector<8x128xf32>
    %329 = arith.cmpf one, %328, %328 : vector<8x128xf32>
    %330 = vector.broadcast %cst_124 : f32 to vector<8x128xf32>
    %331 = arith.addf %324, %330 : vector<8x128xf32>
    %332 = math.absf %328 : vector<8x128xf32>
    %cst_125 = arith.constant 0.000000e+00 : f32
    %333 = vector.broadcast %cst_125 : f32 to vector<8x128xf32>
    %334 = arith.subf %333, %332 : vector<8x128xf32>
    %335 = math.exp %334 : vector<8x128xf32>
    %336 = math.log1p %335 : vector<8x128xf32>
    %337 = arith.addf %326, %336 : vector<8x128xf32>
    %338 = arith.select %329, %331, %337 : vector<8x128xi1>, vector<8x128xf32>
    %cst_126 = arith.constant 1.000000e+00 : f32
    %339 = vector.broadcast %cst_126 : f32 to vector<8x128xf32>
    %340 = arith.addf %339, %312 : vector<8x128xf32>
    %341 = arith.mulf %311, %311 : vector<8x128xf32>
    %342 = arith.subf %340, %341 : vector<8x128xf32>
    %343 = arith.subf %342, %316 : vector<8x128xf32>
    %344 = arith.addf %272, %343 : vector<8x128xf32>
    %c32 = arith.constant 32 : index
    %c0_127 = arith.constant 0 : index
    %345 = vector.load %arg20[%c32, %c0_127] : memref<64x128xf32, #tpu.memory_space<vmem>>, vector<8x128xf32>
    tpu.vector_store %arg20[%c32, %c0_127], %338 {strides = array<i32>} : memref<64x128xf32, #tpu.memory_space<vmem>>, vector<8x128xf32>,
    %c0_128 = arith.constant 0 : index
    %c0_129 = arith.constant 0 : index
    %346 = vector.load %arg19[%c0_128, %c0_129] : memref<8x256xf32, #tpu.memory_space<vmem>>, vector<8x128xf32>
    tpu.vector_store %arg19[%c0_128, %c0_129], %338 {strides = array<i32>} : memref<8x256xf32, #tpu.memory_space<vmem>>, vector<8x128xf32>,
    %c0_130 = arith.constant 0 : index
    %c128_131 = arith.constant 128 : index
    %347 = vector.load %arg19[%c0_130, %c128_131] : memref<8x256xf32, #tpu.memory_space<vmem>>, vector<8x128xf32>
    tpu.vector_store %arg19[%c0_130, %c128_131], %305 {strides = array<i32>} : memref<8x256xf32, #tpu.memory_space<vmem>>, vector<8x128xf32>,
    %348 = vector.extract_strided_slice %8 {offsets = [32, 0], sizes = [8, 512], strides = [1, 1]} : vector<64x512xf32> to vector<8x512xf32>
    %c0_132 = arith.constant 0 : index
    %c0_133 = arith.constant 0 : index
    %349 = vector.load %arg19[%c0_132, %c0_133] : memref<8x256xf32, #tpu.memory_space<vmem>>, vector<8x256xf32>
    %c0_134 = arith.constant 0 : index
    %c0_135 = arith.constant 0 : index
    %350 = vector.load %arg15[%c0_134, %c0_135] : memref<256x512xf32, #tpu.memory_space<vmem>>, vector<256x512xf32>
    %cst_136 = arith.constant dense<0.000000e+00> : vector<8x512xf32>
    %351 = tpu.matmul %349, %350, %cst_136 {dimension_numbers = #tpu.dot_dimension_numbers<[1], [0], [0], [1], [0, 0, 1, 1], [], []>} : vector<8x256xf32>, vector<256x512xf32>, vector<8x512xf32> -> vector<8x512xf32>
    %352 = arith.addf %348, %351 : vector<8x512xf32>
    %353 = vector.extract_strided_slice %352 {offsets = [0, 0], sizes = [8, 128], strides = [1, 1]} : vector<8x512xf32> to vector<8x128xf32>
    %354 = arith.negf %353 : vector<8x128xf32>
    %355 = math.exp %354 : vector<8x128xf32>
    %cst_137 = arith.constant 1.000000e+00 : f32
    %356 = vector.broadcast %cst_137 : f32 to vector<8x128xf32>
    %357 = arith.addf %356, %355 : vector<8x128xf32>
    %358 = arith.divf %356, %357 : vector<8x128xf32>
    %359 = vector.extract_strided_slice %352 {offsets = [0, 128], sizes = [8, 128], strides = [1, 1]} : vector<8x512xf32> to vector<8x128xf32>
    %360 = arith.negf %359 : vector<8x128xf32>
    %361 = math.exp %360 : vector<8x128xf32>
    %cst_138 = arith.constant 1.000000e+00 : f32
    %362 = vector.broadcast %cst_138 : f32 to vector<8x128xf32>
    %363 = arith.addf %362, %361 : vector<8x128xf32>
    %364 = arith.divf %362, %363 : vector<8x128xf32>
    %365 = vector.extract_strided_slice %352 {offsets = [0, 256], sizes = [8, 128], strides = [1, 1]} : vector<8x512xf32> to vector<8x128xf32>
    %366 = math.tanh %365 : vector<8x128xf32>
    %367 = vector.extract_strided_slice %352 {offsets = [0, 384], sizes = [8, 128], strides = [1, 1]} : vector<8x512xf32> to vector<8x128xf32>
    %368 = arith.negf %367 : vector<8x128xf32>
    %369 = math.exp %368 : vector<8x128xf32>
    %cst_139 = arith.constant 1.000000e+00 : f32
    %370 = vector.broadcast %cst_139 : f32 to vector<8x128xf32>
    %371 = arith.addf %370, %369 : vector<8x128xf32>
    %372 = arith.divf %370, %371 : vector<8x128xf32>
    %373 = arith.mulf %364, %303 : vector<8x128xf32>
    %374 = arith.mulf %358, %366 : vector<8x128xf32>
    %375 = arith.addf %373, %374 : vector<8x128xf32>
    %376 = math.tanh %375 : vector<8x128xf32>
    %377 = arith.mulf %372, %376 : vector<8x128xf32>
    %378 = arith.addf %377, %375 : vector<8x128xf32>
    %379 = vector.extract_strided_slice %13 {offsets = [40, 0], sizes = [8, 256], strides = [1, 1]} : vector<64x256xf32> to vector<8x256xf32>
    %c0_140 = arith.constant 0 : index
    %c0_141 = arith.constant 0 : index
    %380 = vector.load %arg8[%c0_140, %c0_141] : memref<128x256xf32, #tpu.memory_space<vmem>>, vector<128x256xf32>
    %cst_142 = arith.constant dense<0.000000e+00> : vector<8x256xf32>
    %381 = tpu.matmul %378, %380, %cst_142 {dimension_numbers = #tpu.dot_dimension_numbers<[1], [0], [0], [1], [0, 0, 1, 1], [], []>} : vector<8x128xf32>, vector<128x256xf32>, vector<8x256xf32> -> vector<8x256xf32>
    %382 = arith.addf %379, %381 : vector<8x256xf32>
    %383 = vector.extract_strided_slice %382 {offsets = [0, 0], sizes = [8, 128], strides = [1, 1]} : vector<8x256xf32> to vector<8x128xf32>
    %384 = vector.extract_strided_slice %382 {offsets = [0, 128], sizes = [8, 128], strides = [1, 1]} : vector<8x256xf32> to vector<8x128xf32>
    %cst_143 = arith.constant 5.000000e-01 : f32
    %385 = vector.broadcast %cst_143 : f32 to vector<8x128xf32>
    %386 = arith.mulf %385, %384 : vector<8x128xf32>
    %387 = math.exp %386 : vector<8x128xf32>
    %388 = arith.mulf %387, %387 : vector<8x128xf32>
    %389 = vector.extract_strided_slice %14 {offsets = [40, 0], sizes = [8, 128], strides = [1, 1]} : vector<64x128xf32> to vector<8x128xf32>
    %390 = arith.mulf %387, %389 : vector<8x128xf32>
    %391 = arith.addf %383, %390 : vector<8x128xf32>
    %c0_144 = arith.constant 0 : index
    %c0_145 = arith.constant 0 : index
    %392 = vector.load %arg10[%c0_144, %c0_145] : memref<128x128xf32, #tpu.memory_space<vmem>>, vector<128x128xf32>
    %cst_146 = arith.constant dense<0.000000e+00> : vector<8x128xf32>
    %393 = tpu.matmul %391, %392, %cst_146 {dimension_numbers = #tpu.dot_dimension_numbers<[1], [0], [0], [1], [0, 0, 1, 1], [], []>} : vector<8x128xf32>, vector<128x128xf32>, vector<8x128xf32> -> vector<8x128xf32>
    %c0_147 = arith.constant 0 : index
    %c0_148 = arith.constant 0 : index
    %394 = vector.load %arg11[%c0_147, %c0_148] : memref<1x128xf32, #tpu.memory_space<vmem>>, vector<1x128xf32>
    %395 = vector.broadcast %394 : vector<1x128xf32> to vector<8x128xf32>
    %396 = arith.addf %393, %395 : vector<8x128xf32>
    %cst_149 = arith.constant 0.000000e+00 : f32
    %397 = vector.broadcast %cst_149 : f32 to vector<8x128xf32>
    %398 = arith.maximumf %396, %397 : vector<8x128xf32>
    %399 = vector.broadcast %cst_149 : f32 to vector<8x128xf32>
    %400 = arith.subf %396, %399 : vector<8x128xf32>
    %401 = arith.cmpf one, %400, %400 : vector<8x128xf32>
    %402 = vector.broadcast %cst_149 : f32 to vector<8x128xf32>
    %403 = arith.addf %396, %402 : vector<8x128xf32>
    %404 = math.absf %400 : vector<8x128xf32>
    %cst_150 = arith.constant 0.000000e+00 : f32
    %405 = vector.broadcast %cst_150 : f32 to vector<8x128xf32>
    %406 = arith.subf %405, %404 : vector<8x128xf32>
    %407 = math.exp %406 : vector<8x128xf32>
    %408 = math.log1p %407 : vector<8x128xf32>
    %409 = arith.addf %398, %408 : vector<8x128xf32>
    %410 = arith.select %401, %403, %409 : vector<8x128xi1>, vector<8x128xf32>
    %cst_151 = arith.constant 1.000000e+00 : f32
    %411 = vector.broadcast %cst_151 : f32 to vector<8x128xf32>
    %412 = arith.addf %411, %384 : vector<8x128xf32>
    %413 = arith.mulf %383, %383 : vector<8x128xf32>
    %414 = arith.subf %412, %413 : vector<8x128xf32>
    %415 = arith.subf %414, %388 : vector<8x128xf32>
    %416 = arith.addf %344, %415 : vector<8x128xf32>
    %c40 = arith.constant 40 : index
    %c0_152 = arith.constant 0 : index
    %417 = vector.load %arg20[%c40, %c0_152] : memref<64x128xf32, #tpu.memory_space<vmem>>, vector<8x128xf32>
    tpu.vector_store %arg20[%c40, %c0_152], %410 {strides = array<i32>} : memref<64x128xf32, #tpu.memory_space<vmem>>, vector<8x128xf32>,
    %c0_153 = arith.constant 0 : index
    %c0_154 = arith.constant 0 : index
    %418 = vector.load %arg19[%c0_153, %c0_154] : memref<8x256xf32, #tpu.memory_space<vmem>>, vector<8x128xf32>
    tpu.vector_store %arg19[%c0_153, %c0_154], %410 {strides = array<i32>} : memref<8x256xf32, #tpu.memory_space<vmem>>, vector<8x128xf32>,
    %c0_155 = arith.constant 0 : index
    %c128_156 = arith.constant 128 : index
    %419 = vector.load %arg19[%c0_155, %c128_156] : memref<8x256xf32, #tpu.memory_space<vmem>>, vector<8x128xf32>
    tpu.vector_store %arg19[%c0_155, %c128_156], %377 {strides = array<i32>} : memref<8x256xf32, #tpu.memory_space<vmem>>, vector<8x128xf32>,
    %420 = vector.extract_strided_slice %8 {offsets = [40, 0], sizes = [8, 512], strides = [1, 1]} : vector<64x512xf32> to vector<8x512xf32>
    %c0_157 = arith.constant 0 : index
    %c0_158 = arith.constant 0 : index
    %421 = vector.load %arg19[%c0_157, %c0_158] : memref<8x256xf32, #tpu.memory_space<vmem>>, vector<8x256xf32>
    %c0_159 = arith.constant 0 : index
    %c0_160 = arith.constant 0 : index
    %422 = vector.load %arg15[%c0_159, %c0_160] : memref<256x512xf32, #tpu.memory_space<vmem>>, vector<256x512xf32>
    %cst_161 = arith.constant dense<0.000000e+00> : vector<8x512xf32>
    %423 = tpu.matmul %421, %422, %cst_161 {dimension_numbers = #tpu.dot_dimension_numbers<[1], [0], [0], [1], [0, 0, 1, 1], [], []>} : vector<8x256xf32>, vector<256x512xf32>, vector<8x512xf32> -> vector<8x512xf32>
    %424 = arith.addf %420, %423 : vector<8x512xf32>
    %425 = vector.extract_strided_slice %424 {offsets = [0, 0], sizes = [8, 128], strides = [1, 1]} : vector<8x512xf32> to vector<8x128xf32>
    %426 = arith.negf %425 : vector<8x128xf32>
    %427 = math.exp %426 : vector<8x128xf32>
    %cst_162 = arith.constant 1.000000e+00 : f32
    %428 = vector.broadcast %cst_162 : f32 to vector<8x128xf32>
    %429 = arith.addf %428, %427 : vector<8x128xf32>
    %430 = arith.divf %428, %429 : vector<8x128xf32>
    %431 = vector.extract_strided_slice %424 {offsets = [0, 128], sizes = [8, 128], strides = [1, 1]} : vector<8x512xf32> to vector<8x128xf32>
    %432 = arith.negf %431 : vector<8x128xf32>
    %433 = math.exp %432 : vector<8x128xf32>
    %cst_163 = arith.constant 1.000000e+00 : f32
    %434 = vector.broadcast %cst_163 : f32 to vector<8x128xf32>
    %435 = arith.addf %434, %433 : vector<8x128xf32>
    %436 = arith.divf %434, %435 : vector<8x128xf32>
    %437 = vector.extract_strided_slice %424 {offsets = [0, 256], sizes = [8, 128], strides = [1, 1]} : vector<8x512xf32> to vector<8x128xf32>
    %438 = math.tanh %437 : vector<8x128xf32>
    %439 = vector.extract_strided_slice %424 {offsets = [0, 384], sizes = [8, 128], strides = [1, 1]} : vector<8x512xf32> to vector<8x128xf32>
    %440 = arith.negf %439 : vector<8x128xf32>
    %441 = math.exp %440 : vector<8x128xf32>
    %cst_164 = arith.constant 1.000000e+00 : f32
    %442 = vector.broadcast %cst_164 : f32 to vector<8x128xf32>
    %443 = arith.addf %442, %441 : vector<8x128xf32>
    %444 = arith.divf %442, %443 : vector<8x128xf32>
    %445 = arith.mulf %436, %375 : vector<8x128xf32>
    %446 = arith.mulf %430, %438 : vector<8x128xf32>
    %447 = arith.addf %445, %446 : vector<8x128xf32>
    %448 = math.tanh %447 : vector<8x128xf32>
    %449 = arith.mulf %444, %448 : vector<8x128xf32>
    %450 = arith.addf %449, %447 : vector<8x128xf32>
    %451 = vector.extract_strided_slice %13 {offsets = [48, 0], sizes = [8, 256], strides = [1, 1]} : vector<64x256xf32> to vector<8x256xf32>
    %c0_165 = arith.constant 0 : index
    %c0_166 = arith.constant 0 : index
    %452 = vector.load %arg8[%c0_165, %c0_166] : memref<128x256xf32, #tpu.memory_space<vmem>>, vector<128x256xf32>
    %cst_167 = arith.constant dense<0.000000e+00> : vector<8x256xf32>
    %453 = tpu.matmul %450, %452, %cst_167 {dimension_numbers = #tpu.dot_dimension_numbers<[1], [0], [0], [1], [0, 0, 1, 1], [], []>} : vector<8x128xf32>, vector<128x256xf32>, vector<8x256xf32> -> vector<8x256xf32>
    %454 = arith.addf %451, %453 : vector<8x256xf32>
    %455 = vector.extract_strided_slice %454 {offsets = [0, 0], sizes = [8, 128], strides = [1, 1]} : vector<8x256xf32> to vector<8x128xf32>
    %456 = vector.extract_strided_slice %454 {offsets = [0, 128], sizes = [8, 128], strides = [1, 1]} : vector<8x256xf32> to vector<8x128xf32>
    %cst_168 = arith.constant 5.000000e-01 : f32
    %457 = vector.broadcast %cst_168 : f32 to vector<8x128xf32>
    %458 = arith.mulf %457, %456 : vector<8x128xf32>
    %459 = math.exp %458 : vector<8x128xf32>
    %460 = arith.mulf %459, %459 : vector<8x128xf32>
    %461 = vector.extract_strided_slice %14 {offsets = [48, 0], sizes = [8, 128], strides = [1, 1]} : vector<64x128xf32> to vector<8x128xf32>
    %462 = arith.mulf %459, %461 : vector<8x128xf32>
    %463 = arith.addf %455, %462 : vector<8x128xf32>
    %c0_169 = arith.constant 0 : index
    %c0_170 = arith.constant 0 : index
    %464 = vector.load %arg10[%c0_169, %c0_170] : memref<128x128xf32, #tpu.memory_space<vmem>>, vector<128x128xf32>
    %cst_171 = arith.constant dense<0.000000e+00> : vector<8x128xf32>
    %465 = tpu.matmul %463, %464, %cst_171 {dimension_numbers = #tpu.dot_dimension_numbers<[1], [0], [0], [1], [0, 0, 1, 1], [], []>} : vector<8x128xf32>, vector<128x128xf32>, vector<8x128xf32> -> vector<8x128xf32>
    %c0_172 = arith.constant 0 : index
    %c0_173 = arith.constant 0 : index
    %466 = vector.load %arg11[%c0_172, %c0_173] : memref<1x128xf32, #tpu.memory_space<vmem>>, vector<1x128xf32>
    %467 = vector.broadcast %466 : vector<1x128xf32> to vector<8x128xf32>
    %468 = arith.addf %465, %467 : vector<8x128xf32>
    %cst_174 = arith.constant 0.000000e+00 : f32
    %469 = vector.broadcast %cst_174 : f32 to vector<8x128xf32>
    %470 = arith.maximumf %468, %469 : vector<8x128xf32>
    %471 = vector.broadcast %cst_174 : f32 to vector<8x128xf32>
    %472 = arith.subf %468, %471 : vector<8x128xf32>
    %473 = arith.cmpf one, %472, %472 : vector<8x128xf32>
    %474 = vector.broadcast %cst_174 : f32 to vector<8x128xf32>
    %475 = arith.addf %468, %474 : vector<8x128xf32>
    %476 = math.absf %472 : vector<8x128xf32>
    %cst_175 = arith.constant 0.000000e+00 : f32
    %477 = vector.broadcast %cst_175 : f32 to vector<8x128xf32>
    %478 = arith.subf %477, %476 : vector<8x128xf32>
    %479 = math.exp %478 : vector<8x128xf32>
    %480 = math.log1p %479 : vector<8x128xf32>
    %481 = arith.addf %470, %480 : vector<8x128xf32>
    %482 = arith.select %473, %475, %481 : vector<8x128xi1>, vector<8x128xf32>
    %cst_176 = arith.constant 1.000000e+00 : f32
    %483 = vector.broadcast %cst_176 : f32 to vector<8x128xf32>
    %484 = arith.addf %483, %456 : vector<8x128xf32>
    %485 = arith.mulf %455, %455 : vector<8x128xf32>
    %486 = arith.subf %484, %485 : vector<8x128xf32>
    %487 = arith.subf %486, %460 : vector<8x128xf32>
    %488 = arith.addf %416, %487 : vector<8x128xf32>
    %c48 = arith.constant 48 : index
    %c0_177 = arith.constant 0 : index
    %489 = vector.load %arg20[%c48, %c0_177] : memref<64x128xf32, #tpu.memory_space<vmem>>, vector<8x128xf32>
    tpu.vector_store %arg20[%c48, %c0_177], %482 {strides = array<i32>} : memref<64x128xf32, #tpu.memory_space<vmem>>, vector<8x128xf32>,
    %c0_178 = arith.constant 0 : index
    %c0_179 = arith.constant 0 : index
    %490 = vector.load %arg19[%c0_178, %c0_179] : memref<8x256xf32, #tpu.memory_space<vmem>>, vector<8x128xf32>
    tpu.vector_store %arg19[%c0_178, %c0_179], %482 {strides = array<i32>} : memref<8x256xf32, #tpu.memory_space<vmem>>, vector<8x128xf32>,
    %c0_180 = arith.constant 0 : index
    %c128_181 = arith.constant 128 : index
    %491 = vector.load %arg19[%c0_180, %c128_181] : memref<8x256xf32, #tpu.memory_space<vmem>>, vector<8x128xf32>
    tpu.vector_store %arg19[%c0_180, %c128_181], %449 {strides = array<i32>} : memref<8x256xf32, #tpu.memory_space<vmem>>, vector<8x128xf32>,
    %492 = vector.extract_strided_slice %8 {offsets = [48, 0], sizes = [8, 512], strides = [1, 1]} : vector<64x512xf32> to vector<8x512xf32>
    %c0_182 = arith.constant 0 : index
    %c0_183 = arith.constant 0 : index
    %493 = vector.load %arg19[%c0_182, %c0_183] : memref<8x256xf32, #tpu.memory_space<vmem>>, vector<8x256xf32>
    %c0_184 = arith.constant 0 : index
    %c0_185 = arith.constant 0 : index
    %494 = vector.load %arg15[%c0_184, %c0_185] : memref<256x512xf32, #tpu.memory_space<vmem>>, vector<256x512xf32>
    %cst_186 = arith.constant dense<0.000000e+00> : vector<8x512xf32>
    %495 = tpu.matmul %493, %494, %cst_186 {dimension_numbers = #tpu.dot_dimension_numbers<[1], [0], [0], [1], [0, 0, 1, 1], [], []>} : vector<8x256xf32>, vector<256x512xf32>, vector<8x512xf32> -> vector<8x512xf32>
    %496 = arith.addf %492, %495 : vector<8x512xf32>
    %497 = vector.extract_strided_slice %496 {offsets = [0, 0], sizes = [8, 128], strides = [1, 1]} : vector<8x512xf32> to vector<8x128xf32>
    %498 = arith.negf %497 : vector<8x128xf32>
    %499 = math.exp %498 : vector<8x128xf32>
    %cst_187 = arith.constant 1.000000e+00 : f32
    %500 = vector.broadcast %cst_187 : f32 to vector<8x128xf32>
    %501 = arith.addf %500, %499 : vector<8x128xf32>
    %502 = arith.divf %500, %501 : vector<8x128xf32>
    %503 = vector.extract_strided_slice %496 {offsets = [0, 128], sizes = [8, 128], strides = [1, 1]} : vector<8x512xf32> to vector<8x128xf32>
    %504 = arith.negf %503 : vector<8x128xf32>
    %505 = math.exp %504 : vector<8x128xf32>
    %cst_188 = arith.constant 1.000000e+00 : f32
    %506 = vector.broadcast %cst_188 : f32 to vector<8x128xf32>
    %507 = arith.addf %506, %505 : vector<8x128xf32>
    %508 = arith.divf %506, %507 : vector<8x128xf32>
    %509 = vector.extract_strided_slice %496 {offsets = [0, 256], sizes = [8, 128], strides = [1, 1]} : vector<8x512xf32> to vector<8x128xf32>
    %510 = math.tanh %509 : vector<8x128xf32>
    %511 = vector.extract_strided_slice %496 {offsets = [0, 384], sizes = [8, 128], strides = [1, 1]} : vector<8x512xf32> to vector<8x128xf32>
    %512 = arith.negf %511 : vector<8x128xf32>
    %513 = math.exp %512 : vector<8x128xf32>
    %cst_189 = arith.constant 1.000000e+00 : f32
    %514 = vector.broadcast %cst_189 : f32 to vector<8x128xf32>
    %515 = arith.addf %514, %513 : vector<8x128xf32>
    %516 = arith.divf %514, %515 : vector<8x128xf32>
    %517 = arith.mulf %508, %447 : vector<8x128xf32>
    %518 = arith.mulf %502, %510 : vector<8x128xf32>
    %519 = arith.addf %517, %518 : vector<8x128xf32>
    %520 = math.tanh %519 : vector<8x128xf32>
    %521 = arith.mulf %516, %520 : vector<8x128xf32>
    %522 = arith.addf %521, %519 : vector<8x128xf32>
    %523 = vector.extract_strided_slice %13 {offsets = [56, 0], sizes = [8, 256], strides = [1, 1]} : vector<64x256xf32> to vector<8x256xf32>
    %c0_190 = arith.constant 0 : index
    %c0_191 = arith.constant 0 : index
    %524 = vector.load %arg8[%c0_190, %c0_191] : memref<128x256xf32, #tpu.memory_space<vmem>>, vector<128x256xf32>
    %cst_192 = arith.constant dense<0.000000e+00> : vector<8x256xf32>
    %525 = tpu.matmul %522, %524, %cst_192 {dimension_numbers = #tpu.dot_dimension_numbers<[1], [0], [0], [1], [0, 0, 1, 1], [], []>} : vector<8x128xf32>, vector<128x256xf32>, vector<8x256xf32> -> vector<8x256xf32>
    %526 = arith.addf %523, %525 : vector<8x256xf32>
    %527 = vector.extract_strided_slice %526 {offsets = [0, 0], sizes = [8, 128], strides = [1, 1]} : vector<8x256xf32> to vector<8x128xf32>
    %528 = vector.extract_strided_slice %526 {offsets = [0, 128], sizes = [8, 128], strides = [1, 1]} : vector<8x256xf32> to vector<8x128xf32>
    %cst_193 = arith.constant 5.000000e-01 : f32
    %529 = vector.broadcast %cst_193 : f32 to vector<8x128xf32>
    %530 = arith.mulf %529, %528 : vector<8x128xf32>
    %531 = math.exp %530 : vector<8x128xf32>
    %532 = arith.mulf %531, %531 : vector<8x128xf32>
    %533 = vector.extract_strided_slice %14 {offsets = [56, 0], sizes = [8, 128], strides = [1, 1]} : vector<64x128xf32> to vector<8x128xf32>
    %534 = arith.mulf %531, %533 : vector<8x128xf32>
    %535 = arith.addf %527, %534 : vector<8x128xf32>
    %c0_194 = arith.constant 0 : index
    %c0_195 = arith.constant 0 : index
    %536 = vector.load %arg10[%c0_194, %c0_195] : memref<128x128xf32, #tpu.memory_space<vmem>>, vector<128x128xf32>
    %cst_196 = arith.constant dense<0.000000e+00> : vector<8x128xf32>
    %537 = tpu.matmul %535, %536, %cst_196 {dimension_numbers = #tpu.dot_dimension_numbers<[1], [0], [0], [1], [0, 0, 1, 1], [], []>} : vector<8x128xf32>, vector<128x128xf32>, vector<8x128xf32> -> vector<8x128xf32>
    %c0_197 = arith.constant 0 : index
    %c0_198 = arith.constant 0 : index
    %538 = vector.load %arg11[%c0_197, %c0_198] : memref<1x128xf32, #tpu.memory_space<vmem>>, vector<1x128xf32>
    %539 = vector.broadcast %538 : vector<1x128xf32> to vector<8x128xf32>
    %540 = arith.addf %537, %539 : vector<8x128xf32>
    %cst_199 = arith.constant 0.000000e+00 : f32
    %541 = vector.broadcast %cst_199 : f32 to vector<8x128xf32>
    %542 = arith.maximumf %540, %541 : vector<8x128xf32>
    %543 = vector.broadcast %cst_199 : f32 to vector<8x128xf32>
    %544 = arith.subf %540, %543 : vector<8x128xf32>
    %545 = arith.cmpf one, %544, %544 : vector<8x128xf32>
    %546 = vector.broadcast %cst_199 : f32 to vector<8x128xf32>
    %547 = arith.addf %540, %546 : vector<8x128xf32>
    %548 = math.absf %544 : vector<8x128xf32>
    %cst_200 = arith.constant 0.000000e+00 : f32
    %549 = vector.broadcast %cst_200 : f32 to vector<8x128xf32>
    %550 = arith.subf %549, %548 : vector<8x128xf32>
    %551 = math.exp %550 : vector<8x128xf32>
    %552 = math.log1p %551 : vector<8x128xf32>
    %553 = arith.addf %542, %552 : vector<8x128xf32>
    %554 = arith.select %545, %547, %553 : vector<8x128xi1>, vector<8x128xf32>
    %cst_201 = arith.constant 1.000000e+00 : f32
    %555 = vector.broadcast %cst_201 : f32 to vector<8x128xf32>
    %556 = arith.addf %555, %528 : vector<8x128xf32>
    %557 = arith.mulf %527, %527 : vector<8x128xf32>
    %558 = arith.subf %556, %557 : vector<8x128xf32>
    %559 = arith.subf %558, %532 : vector<8x128xf32>
    %560 = arith.addf %488, %559 : vector<8x128xf32>
    %c56 = arith.constant 56 : index
    %c0_202 = arith.constant 0 : index
    %561 = vector.load %arg20[%c56, %c0_202] : memref<64x128xf32, #tpu.memory_space<vmem>>, vector<8x128xf32>
    tpu.vector_store %arg20[%c56, %c0_202], %554 {strides = array<i32>} : memref<64x128xf32, #tpu.memory_space<vmem>>, vector<8x128xf32>,
    %c0_203 = arith.constant 0 : index
    %c0_204 = arith.constant 0 : index
    %562 = vector.load %arg19[%c0_203, %c0_204] : memref<8x256xf32, #tpu.memory_space<vmem>>, vector<8x128xf32>
    tpu.vector_store %arg19[%c0_203, %c0_204], %554 {strides = array<i32>} : memref<8x256xf32, #tpu.memory_space<vmem>>, vector<8x128xf32>,
    %c0_205 = arith.constant 0 : index
    %c128_206 = arith.constant 128 : index
    %563 = vector.load %arg19[%c0_205, %c128_206] : memref<8x256xf32, #tpu.memory_space<vmem>>, vector<8x128xf32>
    tpu.vector_store %arg19[%c0_205, %c128_206], %521 {strides = array<i32>} : memref<8x256xf32, #tpu.memory_space<vmem>>, vector<8x128xf32>,
    %c0_207 = arith.constant 0 : index
    %c0_208 = arith.constant 0 : index
    %564 = vector.load %arg20[%c0_207, %c0_208] : memref<64x128xf32, #tpu.memory_space<vmem>>, vector<64x128xf32>
    %c0_209 = arith.constant 0 : index
    %c0_210 = arith.constant 0 : index
    %565 = vector.load %arg12[%c0_209, %c0_210] : memref<128x128xf32, #tpu.memory_space<vmem>>, vector<128x128xf32>
    %cst_211 = arith.constant dense<0.000000e+00> : vector<64x128xf32>
    %566 = tpu.matmul %564, %565, %cst_211 {dimension_numbers = #tpu.dot_dimension_numbers<[1], [0], [0], [1], [0, 0, 1, 1], [], []>} : vector<64x128xf32>, vector<128x128xf32>, vector<64x128xf32> -> vector<64x128xf32>
    %567 = arith.addf %7, %566 : vector<64x128xf32>
    %568 = math.tanh %567 : vector<64x128xf32>
    %c0_212 = arith.constant 0 : index
    %c0_213 = arith.constant 0 : index
    %569 = vector.load %arg13[%c0_212, %c0_213] : memref<128x8xf32, #tpu.memory_space<vmem>>, vector<128x8xf32>
    %cst_214 = arith.constant dense<0.000000e+00> : vector<64x8xf32>
    %570 = tpu.matmul %568, %569, %cst_214 {dimension_numbers = #tpu.dot_dimension_numbers<[1], [0], [0], [1], [0, 0, 1, 1], [], []>} : vector<64x128xf32>, vector<128x8xf32>, vector<64x8xf32> -> vector<64x8xf32>
    %c0_215 = arith.constant 0 : index
    %c0_216 = arith.constant 0 : index
    %571 = vector.load %arg14[%c0_215, %c0_216] : memref<1x8xf32, #tpu.memory_space<vmem>>, vector<1x8xf32>
    %572 = vector.broadcast %571 : vector<1x8xf32> to vector<64x8xf32>
    %573 = arith.addf %570, %572 : vector<64x8xf32>
    %574 = tpu.iota {dimensions = array<i32: 0>} : vector<8x8xi32>
    %c2_i32 = arith.constant 2 : i32
    %575 = vector.broadcast %c2_i32 : i32 to vector<8x8xi32>
    %576 = arith.cmpi slt, %574, %575 : vector<8x8xi32>
    %577 = arith.extui %576 : vector<8x8xi1> to vector<8x8xi32>
    %578 = arith.sitofp %577 : vector<8x8xi32> to vector<8x8xf32>
    %579 = tpu.concatenate %578, %578, %578, %578, %578, %578, %578, %578 in 0 : vector<8x8xf32>, vector<8x8xf32>, vector<8x8xf32>, vector<8x8xf32>, vector<8x8xf32>, vector<8x8xf32>, vector<8x8xf32>, vector<8x8xf32> -> vector<64x8xf32>
    %580 = tpu.iota {dimensions = array<i32: 0>} : vector<8x128xi32>
    %c2_i32_217 = arith.constant 2 : i32
    %581 = vector.broadcast %c2_i32_217 : i32 to vector<8x128xi32>
    %582 = arith.cmpi slt, %580, %581 : vector<8x128xi32>
    %583 = arith.extui %582 : vector<8x128xi1> to vector<8x128xi32>
    %584 = arith.sitofp %583 : vector<8x128xi32> to vector<8x128xf32>
    %c0_218 = arith.constant 0 : index
    %c0_219 = arith.constant 0 : index
    %585 = vector.load %arg4[%c0_218, %c0_219] : memref<64x8xf32, #tpu.memory_space<vmem>>, vector<64x8xf32>
    %586 = arith.subf %573, %585 : vector<64x8xf32>
    %587 = arith.mulf %586, %586 : vector<64x8xf32>
    %588 = arith.mulf %587, %579 : vector<64x8xf32>
    %cst_220 = arith.constant dense<0.000000e+00> : vector<64xf32>
    %589 = vector.multi_reduction <add>, %588, %cst_220 [1] : vector<64x8xf32> to vector<64xf32>
    %590 = vector.shape_cast %589 : vector<64xf32> to vector<64x1xf32>
    %cst_221 = arith.constant dense<0.000000e+00> : vector<1xf32>
    %591 = vector.multi_reduction <add>, %590, %cst_221 [0] : vector<64x1xf32> to vector<1xf32>
    %592 = vector.shape_cast %591 : vector<1xf32> to vector<1x1xf32>
    %cst_222 = arith.constant 1.600000e+01 : f32
    %593 = vector.broadcast %cst_222 : f32 to vector<1x1xf32>
    %594 = arith.divf %592, %593 : vector<1x1xf32>
    %595 = arith.mulf %560, %584 : vector<8x128xf32>
    %cst_223 = arith.constant dense<0.000000e+00> : vector<8xf32>
    %596 = vector.multi_reduction <add>, %595, %cst_223 [1] : vector<8x128xf32> to vector<8xf32>
    %597 = vector.shape_cast %596 : vector<8xf32> to vector<8x1xf32>
    %cst_224 = arith.constant dense<0.000000e+00> : vector<1xf32>
    %598 = vector.multi_reduction <add>, %597, %cst_224 [0] : vector<8x1xf32> to vector<1xf32>
    %599 = vector.shape_cast %598 : vector<1xf32> to vector<1x1xf32>
    %cst_225 = arith.constant -5.000000e-01 : f32
    %600 = vector.broadcast %cst_225 : f32 to vector<1x1xf32>
    %601 = arith.mulf %600, %599 : vector<1x1xf32>
    %c0_226 = arith.constant 0 : index
    %602 = memref.load %arg1[%c0_226] : memref<2xf32, #tpu.memory_space<smem>>
    %c1 = arith.constant 1 : index
    %603 = memref.load %arg1[%c1] : memref<2xf32, #tpu.memory_space<smem>>
    %c0_227 = arith.constant 0 : index
    %c0_228 = arith.constant 0 : index
    %604 = vector.load %arg17[%c0_227, %c0_228] : memref<1x1xf32, #tpu.memory_space<vmem>>, vector<1x1xf32>
    tpu.vector_store %arg17[%c0_227, %c0_228], %601 {strides = array<i32>} : memref<1x1xf32, #tpu.memory_space<vmem>>, vector<1x1xf32>,
    %c0_229 = arith.constant 0 : index
    %c0_230 = arith.constant 0 : index
    %605 = vector.load %arg18[%c0_229, %c0_230] : memref<1x1xf32, #tpu.memory_space<vmem>>, vector<1x1xf32>
    tpu.vector_store %arg18[%c0_229, %c0_230], %594 {strides = array<i32>} : memref<1x1xf32, #tpu.memory_space<vmem>>, vector<1x1xf32>,
    %606 = vector.broadcast %602 : f32 to vector<1x1xf32>
    %607 = arith.mulf %601, %606 : vector<1x1xf32>
    %608 = vector.broadcast %603 : f32 to vector<1x1xf32>
    %609 = arith.mulf %594, %608 : vector<1x1xf32>
    %610 = arith.addf %607, %609 : vector<1x1xf32>
    %cst_231 = arith.constant 8.000000e+00 : f32
    %611 = vector.broadcast %cst_231 : f32 to vector<1x1xf32>
    %612 = arith.divf %610, %611 : vector<1x1xf32>
    %c0_232 = arith.constant 0 : index
    %c0_233 = arith.constant 0 : index
    %613 = vector.load %arg16[%c0_232, %c0_233] : memref<1x1xf32, #tpu.memory_space<vmem>>, vector<1x1xf32>
    tpu.vector_store %arg16[%c0_232, %c0_233], %612 {strides = array<i32>} : memref<1x1xf32, #tpu.memory_space<vmem>>, vector<1x1xf32>,
    return
  }
  func.func @transform_0(%arg0: i32) -> i32 {
    %c0_i32 = arith.constant 0 : i32
    %c0_i32_0 = arith.constant 0 : i32
    return %c0_i32 : i32
  }
  func.func @transform_1(%arg0: i32) -> (i32, i32) {
    %c0_i32 = arith.constant 0 : i32
    %c0_i32_0 = arith.constant 0 : i32
    %c0_i32_1 = arith.constant 0 : i32
    return %c0_i32, %c0_i32_0 : i32, i32
  }
  func.func @transform_2(%arg0: i32) -> (i32, i32) {
    %c0_i32 = arith.constant 0 : i32
    %c0_i32_0 = arith.constant 0 : i32
    %c0_i32_1 = arith.constant 0 : i32
    return %c0_i32, %c0_i32_0 : i32, i32
  }
  func.func @transform_3(%arg0: i32) -> (i32, i32) {
    %c0_i32 = arith.constant 0 : i32
    %c0_i32_0 = arith.constant 0 : i32
    %c0_i32_1 = arith.constant 0 : i32
    return %c0_i32, %c0_i32_0 : i32, i32
  }
  func.func @transform_4(%arg0: i32) -> (i32, i32) {
    %c0_i32 = arith.constant 0 : i32
    %c0_i32_0 = arith.constant 0 : i32
    %c0_i32_1 = arith.constant 0 : i32
    return %c0_i32, %c0_i32_0 : i32, i32
  }
  func.func @transform_5(%arg0: i32) -> (i32, i32) {
    %c0_i32 = arith.constant 0 : i32
    %c0_i32_0 = arith.constant 0 : i32
    %c0_i32_1 = arith.constant 0 : i32
    return %c0_i32, %c0_i32_0 : i32, i32
  }
  func.func @transform_6(%arg0: i32) -> (i32, i32) {
    %c0_i32 = arith.constant 0 : i32
    %c0_i32_0 = arith.constant 0 : i32
    %c0_i32_1 = arith.constant 0 : i32
    return %c0_i32, %c0_i32_0 : i32, i32
  }
  func.func @transform_7(%arg0: i32) -> (i32, i32) {
    %c0_i32 = arith.constant 0 : i32
    %c0_i32_0 = arith.constant 0 : i32
    %c0_i32_1 = arith.constant 0 : i32
    return %c0_i32, %c0_i32_0 : i32, i32
  }
  func.func @transform_8(%arg0: i32) -> (i32, i32) {
    %c0_i32 = arith.constant 0 : i32
    %c0_i32_0 = arith.constant 0 : i32
    %c0_i32_1 = arith.constant 0 : i32
    return %c0_i32, %c0_i32_0 : i32, i32
  }
  func.func @transform_9(%arg0: i32) -> (i32, i32) {
    %c0_i32 = arith.constant 0 : i32
    %c0_i32_0 = arith.constant 0 : i32
    %c0_i32_1 = arith.constant 0 : i32
    return %c0_i32, %c0_i32_0 : i32, i32
  }
  func.func @transform_10(%arg0: i32) -> (i32, i32) {
    %c0_i32 = arith.constant 0 : i32
    %c0_i32_0 = arith.constant 0 : i32
    %c0_i32_1 = arith.constant 0 : i32
    return %c0_i32, %c0_i32_0 : i32, i32
  }
  func.func @transform_11(%arg0: i32) -> (i32, i32) {
    %c0_i32 = arith.constant 0 : i32
    %c0_i32_0 = arith.constant 0 : i32
    %c0_i32_1 = arith.constant 0 : i32
    return %c0_i32, %c0_i32_0 : i32, i32
  }
  func.func @transform_12(%arg0: i32) -> (i32, i32) {
    %c0_i32 = arith.constant 0 : i32
    %c0_i32_0 = arith.constant 0 : i32
    %c0_i32_1 = arith.constant 0 : i32
    return %c0_i32, %c0_i32_0 : i32, i32
  }
  func.func @transform_13(%arg0: i32) -> (i32, i32) {
    %c0_i32 = arith.constant 0 : i32
    %c0_i32_0 = arith.constant 0 : i32
    %c0_i32_1 = arith.constant 0 : i32
    return %c0_i32, %c0_i32_0 : i32, i32
  }
  func.func @transform_14(%arg0: i32) -> (i32, i32) {
    %c0_i32 = arith.constant 0 : i32
    %c0_i32_0 = arith.constant 0 : i32
    %c0_i32_1 = arith.constant 0 : i32
    return %c0_i32, %c0_i32_0 : i32, i32
  }
  func.func @transform_15(%arg0: i32) -> (i32, i32) {
    %c0_i32 = arith.constant 0 : i32
    %c0_i32_0 = arith.constant 0 : i32
    %c0_i32_1 = arith.constant 0 : i32
    return %c0_i32, %c0_i32_0 : i32, i32
  }
  func.func @transform_16(%arg0: i32) -> (i32, i32) {
    %c0_i32 = arith.constant 0 : i32
    %c0_i32_0 = arith.constant 0 : i32
    %c0_i32_1 = arith.constant 0 : i32
    return %c0_i32, %c0_i32_0 : i32, i32
  }
  func.func @transform_17(%arg0: i32) -> (i32, i32) {
    %c0_i32 = arith.constant 0 : i32
    %c0_i32_0 = arith.constant 0 : i32
    %c0_i32_1 = arith.constant 0 : i32
    return %c0_i32, %c0_i32_0 : i32, i32
  }
}

</mosaic_0001>

<llo_original>
// kernel: tpu_custom_call.1
$region0: #{tpu_custom_call.1}
  #allocation0 [shape = 'u32[]', space=smem, size = 0x4, offset = 0x4, fixed_abs, tag = 'smem constant byte address 0x4 - core index']
  #allocation1 [shape = 'u32[72,128]{1,0:T(1,128)}', space=vmem, size = 0x9000, scoped, tag = 'internal scratch']
  #allocation2 [shape = 'f32[8,256]{1,0:T(8,128)}', space=vmem, size = 0x2000, scoped, tag = 'scratch operand']
  #allocation3 [shape = 'f32[64,128]{1,0:T(8,128)}', space=vmem, size = 0x8000, scoped, tag = 'scratch operand']
  %s0 = inlined_call_operand.vmem [shape: f32[2], index: 0, kind: input, shape index: {}]
  %s1 = inlined_call_operand.vmem [shape: f32[64,48], index: 1, kind: input, shape index: {}]
  %s2 = inlined_call_operand.hbm [shape: f32[64,128], index: 2, kind: input, shape index: {}]
  %s3 = inlined_call_operand.vmem [shape: f32[64,8], index: 3, kind: input, shape index: {}]
  %s4 = inlined_call_operand.hbm [shape: f32[48,768], index: 4, kind: input, shape index: {}]
  %s5 = inlined_call_operand.vmem [shape: f32[1,768], index: 5, kind: input, shape index: {}]
  %s6 = inlined_call_operand.hbm [shape: f32[128,256], index: 6, kind: input, shape index: {}]
  %s7 = inlined_call_operand.hbm [shape: f32[128,256], index: 7, kind: input, shape index: {}]
  %s8 = inlined_call_operand.vmem [shape: f32[1,256], index: 8, kind: input, shape index: {}]
  %s9 = inlined_call_operand.vmem [shape: f32[128,128], index: 9, kind: input, shape index: {}]
  %s10 = inlined_call_operand.vmem [shape: f32[1,128], index: 10, kind: input, shape index: {}]
  %s11 = inlined_call_operand.vmem [shape: f32[128,128], index: 11, kind: input, shape index: {}]
  %s12 = inlined_call_operand.vmem [shape: f32[128,8], index: 12, kind: input, shape index: {}]
  %s13 = inlined_call_operand.vmem [shape: f32[1,8], index: 13, kind: input, shape index: {}]
  %s14 = inlined_call_operand.hbm [shape: f32[256,512], index: 14, kind: input, shape index: {}]
  %s15 = inlined_call_operand.hbm [shape: f32[1,1], index: 15, kind: output, shape index: {0}]
  %s16 = inlined_call_operand.hbm [shape: f32[1,1], index: 16, kind: output, shape index: {1}]
  %s17 = inlined_call_operand.hbm [shape: f32[1,1], index: 17, kind: output, shape index: {2}]
  %18 = xla_tuple %s15, %s16, %s17
  %s19 = sld [smem:[#allocation0]]
  $region110: #{tpu_custom_call.1} parent=0
    _
  %s21 = ssub.s32 1, %s19
  %s22 = scalar_select 0, %s21, %s19
  $region1: #{tpu_custom_call.1} parent=0
    #allocation4 [shape = 'u8[512]{0}', space=smem, size = 0x200, scoped, tag = 'input window, operand 0, single buffered']
    #allocation5 [shape = 's32[1]{0}', space=sflag, size = 0x4, scoped, tag = 'scoped memory for tpu_custom_call.1']
    #allocation6 [shape = 's32[1]{0}', space=sflag, size = 0x4, scoped, tag = 'scoped memory for tpu_custom_call.1']
    #allocation7 [shape = 's32[1]{0}', space=sflag, size = 0x4, scoped, tag = 'scoped memory for tpu_custom_call.1']
    #allocation8 [shape = 'u8[32768]{0}', space=vmem, size = 0x8000, scoped, tag = 'input window, operand 2, single buffered']
    #allocation9 [shape = 'u8[147456]{0}', space=vmem, size = 0x24000, scoped, tag = 'input window, operand 4, single buffered']
    #allocation10 [shape = 's32[1]{0}', space=sflag, size = 0x4, scoped, tag = 'scoped memory for tpu_custom_call.1']
    #allocation11 [shape = 'u8[131072]{0}', space=vmem, size = 0x20000, scoped, tag = 'input window, operand 6, single buffered']
    #allocation12 [shape = 'u8[131072]{0}', space=vmem, size = 0x20000, scoped, tag = 'input window, operand 7, single buffered']
    #allocation13 [shape = 's32[1]{0}', space=sflag, size = 0x4, scoped, tag = 'scoped memory for tpu_custom_call.1']
    #allocation14 [shape = 'u8[524288]{0}', space=vmem, size = 0x80000, scoped, tag = 'input window, operand 14, single buffered']
    #allocation15 [shape = 'u8[512]{0}', space=vmem, size = 0x400, scoped, tag = 'output window, operand 0, single buffered']
    #allocation16 [shape = 'u8[512]{0}', space=vmem, size = 0x400, scoped, tag = 'output window, operand 1, single buffered']
    #allocation17 [shape = 's32[1]{0}', space=sflag, size = 0x4, scoped, tag = 'scoped memory for tpu_custom_call.1']
    #allocation18 [shape = 'u8[512]{0}', space=vmem, size = 0x400, scoped, tag = 'output window, operand 2, single buffered']
    %23 = vsyncpa [#allocation7], 0
    %24 = vsyncpa [#allocation5], 0
    %25 = vsyncpa [#allocation10], 0
    %26 = vsyncpa [#allocation13], 0
    %27 = vsyncpa [#allocation6], 0
    %28 = vsyncpa [#allocation17], 0
    // Predicated region
    $region2: #{tpu_custom_call.1} parent=1 // pred_check
      _
    $region3: #{tpu_custom_call.1} parent=1 // pred_check_branch
      %30 = sbr.rel (0) target = $region5
    $region4: #{tpu_custom_call.1} parent=1 // pred_region
      %32 = vsyncadd [#allocation7], 0
      %s34 = sshll.u32 %s0, 4
      %s35 = int_to_ptr.vmem [resolvable:$true] %s34
      %37 = dma.vmem_to_smem %s35, 16, [#allocation4], [#allocation7]
    $region5: #{tpu_custom_call.1} parent=1 // pred_fallthru
      _
    // Predicated region
    $region6: #{tpu_custom_call.1} parent=1 // pred_check
      _
    $region7: #{tpu_custom_call.1} parent=1 // pred_check_branch
      %39 = sbr.rel (0) target = $region9
    $region8: #{tpu_custom_call.1} parent=1 // pred_region
      _
    $region9: #{tpu_custom_call.1} parent=1 // pred_fallthru
      _
    // Predicated region
    $region10: #{tpu_custom_call.1} parent=1 // pred_check
      _
    $region11: #{tpu_custom_call.1} parent=1 // pred_check_branch
      %41 = sbr.rel (0) target = $region13
    $region12: #{tpu_custom_call.1} parent=1 // pred_region
      %43 = vsyncadd [#allocation5], 0
      %s44 = sshll.u32 %s2, 4
      %s45 = int_to_ptr.hbm [resolvable:$true] %s44
      %s46 = sshll.u32 [#allocation8], 4
      %s47 = int_to_ptr.vmem [resolvable:$true] %s46
      %52 = dma.hbm_to_vmem [thread:$0]  %s45, 1024, %s47, [#allocation5], 128, 128, 8
    $region13: #{tpu_custom_call.1} parent=1 // pred_fallthru
      _
    // Predicated region
    $region14: #{tpu_custom_call.1} parent=1 // pred_check
      _
    $region15: #{tpu_custom_call.1} parent=1 // pred_check_branch
      %54 = sbr.rel (0) target = $region17
    $region16: #{tpu_custom_call.1} parent=1 // pred_region
      _
    $region17: #{tpu_custom_call.1} parent=1 // pred_fallthru
      _
    // Predicated region
    $region18: #{tpu_custom_call.1} parent=1 // pred_check
      _
    $region19: #{tpu_custom_call.1} parent=1 // pred_check_branch
      %56 = sbr.rel (0) target = $region21
    $region20: #{tpu_custom_call.1} parent=1 // pred_region
      %58 = vsyncadd [#allocation10], 0
      %s59 = sshll.u32 %s4, 4
      %s60 = int_to_ptr.hbm [resolvable:$true] %s59
      %s61 = sshll.u32 [#allocation9], 4
      %s62 = int_to_ptr.vmem [resolvable:$true] %s61
      %67 = dma.hbm_to_vmem [thread:$0]  %s60, 4608, %s62, [#allocation10], 768, 768, 48
    $region21: #{tpu_custom_call.1} parent=1 // pred_fallthru
      _
    // Predicated region
    $region22: #{tpu_custom_call.1} parent=1 // pred_check
      _
    $region23: #{tpu_custom_call.1} parent=1 // pred_check_branch
      %69 = sbr.rel (0) target = $region25
    $region24: #{tpu_custom_call.1} parent=1 // pred_region
      _
    $region25: #{tpu_custom_call.1} parent=1 // pred_fallthru
      _
    // Predicated region
    $region26: #{tpu_custom_call.1} parent=1 // pred_check
      _
    $region27: #{tpu_custom_call.1} parent=1 // pred_check_branch
      %71 = sbr.rel (0) target = $region29
    $region28: #{tpu_custom_call.1} parent=1 // pred_region
      %73 = vsyncadd [#allocation10], 0
      %s74 = sshll.u32 %s6, 4
      %s75 = int_to_ptr.hbm [resolvable:$true] %s74
      %s76 = sshll.u32 [#allocation11], 4
      %s77 = int_to_ptr.vmem [resolvable:$true] %s76
      %82 = dma.hbm_to_vmem [thread:$0]  %s75, 4096, %s77, [#allocation10], 256, 256, 16
    $region29: #{tpu_custom_call.1} parent=1 // pred_fallthru
      _
    // Predicated region
    $region30: #{tpu_custom_call.1} parent=1 // pred_check
      _
    $region31: #{tpu_custom_call.1} parent=1 // pred_check_branch
      %84 = sbr.rel (0) target = $region33
    $region32: #{tpu_custom_call.1} parent=1 // pred_region
      %86 = vsyncadd [#allocation13], 0
      %s87 = sshll.u32 %s7, 4
      %s88 = int_to_ptr.hbm [resolvable:$true] %s87
      %s89 = sshll.u32 [#allocation12], 4
      %s90 = int_to_ptr.vmem [resolvable:$true] %s89
      %95 = dma.hbm_to_vmem [thread:$0]  %s88, 4096, %s90, [#allocation13], 256, 256, 16
    $region33: #{tpu_custom_call.1} parent=1 // pred_fallthru
      _
    // Predicated region
    $region34: #{tpu_custom_call.1} parent=1 // pred_check
      _
    $region35: #{tpu_custom_call.1} parent=1 // pred_check_branch
      %97 = sbr.rel (0) target = $region37
    $region36: #{tpu_custom_call.1} parent=1 // pred_region
      _
    $region37: #{tpu_custom_call.1} parent=1 // pred_fallthru
      _
    // Predicated region
    $region38: #{tpu_custom_call.1} parent=1 // pred_check
      _
    $region39: #{tpu_custom_call.1} parent=1 // pred_check_branch
      %99 = sbr.rel (0) target = $region41
    $region40: #{tpu_custom_call.1} parent=1 // pred_region
      _
    $region41: #{tpu_custom_call.1} parent=1 // pred_fallthru
      _
    // Predicated region
    $region42: #{tpu_custom_call.1} parent=1 // pred_check
      _
    $region43: #{tpu_custom_call.1} parent=1 // pred_check_branch
      %101 = sbr.rel (0) target = $region45
    $region44: #{tpu_custom_call.1} parent=1 // pred_region
      _
    $region45: #{tpu_custom_call.1} parent=1 // pred_fallthru
      _
    // Predicated region
    $region46: #{tpu_custom_call.1} parent=1 // pred_check
      _
    $region47: #{tpu_custom_call.1} parent=1 // pred_check_branch
      %103 = sbr.rel (0) target = $region49
    $region48: #{tpu_custom_call.1} parent=1 // pred_region
      _
    $region49: #{tpu_custom_call.1} parent=1 // pred_fallthru
      _
    // Predicated region
    $region50: #{tpu_custom_call.1} parent=1 // pred_check
      _
    $region51: #{tpu_custom_call.1} parent=1 // pred_check_branch
      %105 = sbr.rel (0) target = $region53
    $region52: #{tpu_custom_call.1} parent=1 // pred_region
      _
    $region53: #{tpu_custom_call.1} parent=1 // pred_fallthru
      _
    // Predicated region
    $region54: #{tpu_custom_call.1} parent=1 // pred_check
      _
    $region55: #{tpu_custom_call.1} parent=1 // pred_check_branch
      %107 = sbr.rel (0) target = $region57
    $region56: #{tpu_custom_call.1} parent=1 // pred_region
      _
    $region57: #{tpu_custom_call.1} parent=1 // pred_fallthru
      _
    // Predicated region
    $region58: #{tpu_custom_call.1} parent=1 // pred_check
      _
    $region59: #{tpu_custom_call.1} parent=1 // pred_check_branch
      %109 = sbr.rel (0) target = $region61
    $region60: #{tpu_custom_call.1} parent=1 // pred_region
      %111 = vsyncadd [#allocation13], 0
      %s112 = sshll.u32 %s14, 4
      %s113 = int_to_ptr.hbm [resolvable:$true] %s112
      %s114 = sshll.u32 [#allocation14], 4
      %s115 = int_to_ptr.vmem [resolvable:$true] %s114
      %120 = dma.hbm_to_vmem [thread:$0]  %s113, 16384, %s115, [#allocation13], 512, 512, 32
    $region61: #{tpu_custom_call.1} parent=1 // pred_fallthru
      _
    // Predicated region
    $region62: #{tpu_custom_call.1} parent=1 // pred_check
      _
    $region63: #{tpu_custom_call.1} parent=1 // pred_check_branch
      %122 = sbr.rel (0) target = $region65
    $region64: #{tpu_custom_call.1} parent=1 // pred_region
      %124 = dma.done [#allocation7], 16
    $region65: #{tpu_custom_call.1} parent=1 // pred_fallthru
      _
    // Predicated region
    $region66: #{tpu_custom_call.1} parent=1 // pred_check
      _
    $region67: #{tpu_custom_call.1} parent=1 // pred_check_branch
      %126 = sbr.rel (0) target = $region69
    $region68: #{tpu_custom_call.1} parent=1 // pred_region
      %128 = dma.done [#allocation5], 1024
    $region69: #{tpu_custom_call.1} parent=1 // pred_fallthru
      _
    // Predicated region
    $region70: #{tpu_custom_call.1} parent=1 // pred_check
      _
    $region71: #{tpu_custom_call.1} parent=1 // pred_check_branch
      %130 = sbr.rel (0) target = $region73
    $region72: #{tpu_custom_call.1} parent=1 // pred_region
      %132 = dma.done [#allocation10], 4608
    $region73: #{tpu_custom_call.1} parent=1 // pred_fallthru
      _
    // Predicated region
    $region74: #{tpu_custom_call.1} parent=1 // pred_check
      _
    $region75: #{tpu_custom_call.1} parent=1 // pred_check_branch
      %134 = sbr.rel (0) target = $region77
    $region76: #{tpu_custom_call.1} parent=1 // pred_region
      %136 = dma.done [#allocation10], 4096
    $region77: #{tpu_custom_call.1} parent=1 // pred_fallthru
      _
    // Predicated region
    $region78: #{tpu_custom_call.1} parent=1 // pred_check
      _
    $region79: #{tpu_custom_call.1} parent=1 // pred_check_branch
      %138 = sbr.rel (0) target = $region81
    $region80: #{tpu_custom_call.1} parent=1 // pred_region
      %140 = dma.done [#allocation13], 4096
    $region81: #{tpu_custom_call.1} parent=1 // pred_fallthru
      _
    // Predicated region
    $region82: #{tpu_custom_call.1} parent=1 // pred_check
      _
    $region83: #{tpu_custom_call.1} parent=1 // pred_check_branch
      %142 = sbr.rel (0) target = $region85
    $region84: #{tpu_custom_call.1} parent=1 // pred_region
      %144 = dma.done [#allocation13], 16384
    $region85: #{tpu_custom_call.1} parent=1 // pred_fallthru
      _
    %145 = sfence
    %v146 = vld [vmem:[%s1] sm:$0xff]
    %v147 = vld [vmem:[%s1 + $0x8] sm:$0xff]
    %v148 = vld [vmem:[%s1 + $0x10] sm:$0xff]
    %v149 = vld [vmem:[%s1 + $0x18] sm:$0xff]
    %v150 = vld [vmem:[%s1 + $0x20] sm:$0xff]
    %v151 = vld [vmem:[%s1 + $0x28] sm:$0xff]
    %v152 = vld [vmem:[%s1 + $0x30] sm:$0xff]
    %v153 = vld [vmem:[%s1 + $0x38] sm:$0xff]
    %v154 = vld [vmem:[#allocation9] sm:$0xff]
    %v155 = vld [vmem:[#allocation9 + $0x8] sm:$0xff]
    %v156 = vld [vmem:[#allocation9 + $0x10] sm:$0xff]
    %v157 = vld [vmem:[#allocation9 + $0x18] sm:$0xff]
    %v158 = vld [vmem:[#allocation9 + $0x20] sm:$0xff]
    %v159 = vld [vmem:[#allocation9 + $0x28] sm:$0xff]
    %v160 = vld [vmem:[#allocation9 + $0x30] sm:$0xff]
    %v161 = vld [vmem:[#allocation9 + $0x38] sm:$0xff]
    %v162 = vld [vmem:[#allocation9 + $0x40] sm:$0xff]
    %v163 = vld [vmem:[#allocation9 + $0x48] sm:$0xff]
    %v164 = vld [vmem:[#allocation9 + $0x50] sm:$0xff]
    %v165 = vld [vmem:[#allocation9 + $0x58] sm:$0xff]
    %v166 = vld [vmem:[#allocation9 + $0x60] sm:$0xff]
    %v167 = vld [vmem:[#allocation9 + $0x68] sm:$0xff]
    %v168 = vld [vmem:[#allocation9 + $0x70] sm:$0xff]
    %v169 = vld [vmem:[#allocation9 + $0x78] sm:$0xff]
    %v170 = vld [vmem:[#allocation9 + $0x80] sm:$0xff]
    %v171 = vld [vmem:[#allocation9 + $0x88] sm:$0xff]
    %v172 = vld [vmem:[#allocation9 + $0x90] sm:$0xff]
    %v173 = vld [vmem:[#allocation9 + $0x98] sm:$0xff]
    %v174 = vld [vmem:[#allocation9 + $0xa0] sm:$0xff]
    %v175 = vld [vmem:[#allocation9 + $0xa8] sm:$0xff]
    %v176 = vld [vmem:[#allocation9 + $0xb0] sm:$0xff]
    %v177 = vld [vmem:[#allocation9 + $0xb8] sm:$0xff]
    %v178 = vld [vmem:[#allocation9 + $0xc0] sm:$0xff]
    %v179 = vld [vmem:[#allocation9 + $0xc8] sm:$0xff]
    %v180 = vld [vmem:[#allocation9 + $0xd0] sm:$0xff]
    %v181 = vld [vmem:[#allocation9 + $0xd8] sm:$0xff]
    %v182 = vld [vmem:[#allocation9 + $0xe0] sm:$0xff]
    %v183 = vld [vmem:[#allocation9 + $0xe8] sm:$0xff]
    %v184 = vld [vmem:[#allocation9 + $0xf0] sm:$0xff]
    %v185 = vld [vmem:[#allocation9 + $0xf8] sm:$0xff]
    %v186 = vld [vmem:[#allocation9 + $0x100] sm:$0xff]
    %v187 = vld [vmem:[#allocation9 + $0x108] sm:$0xff]
    %v188 = vld [vmem:[#allocation9 + $0x110] sm:$0xff]
    %v189 = vld [vmem:[#allocation9 + $0x118] sm:$0xff]
    %v190 = vld [vmem:[%s5] sm:$0x3f]
    %v192 = vperm.slane %v190, 0
    %v193 = vperm.slane %v190, 1
    %v194 = vperm.slane %v190, 2
    %v195 = vperm.slane %v190, 3
    %v196 = vperm.slane %v190, 4
    %v197 = vperm.slane %v190, 5
    %vm204 = vcmask 392192
    %v206 = vsel %vm204, %v146, 0
    %v209 = vsel %vm204, %v147, 0
    %v212 = vsel %vm204, %v148, 0
    %v215 = vsel %vm204, %v149, 0
    %v218 = vsel %vm204, %v150, 0
    %v221 = vsel %vm204, %v151, 0
    %v224 = vsel %vm204, %v152, 0
    %v227 = vsel %vm204, %v153, 0
    %229 = vmatpush.msra.mxu0 0.0
    %230 = vmatpush.msra.mxu0 0.0
    %231 = vmatpush.msra.mxu0 0.0
    %232 = vmatpush.msra.mxu0 0.0
    %233 = vmatpush.msra.mxu0 0.0
    %234 = vmatpush.msra.mxu0 0.0
    %235 = vmatpush.msra.mxu0 0.0
    %236 = vmatpush.msra.mxu0 0.0
    %237 = vmatpush.msra.mxu0 0.0
    %238 = vmatpush.msra.mxu0 0.0
    %239 = vmatpush.msra.mxu0 %v184
    %240 = vmatpush.msra.mxu0 %v178
    %241 = vmatpush.msra.mxu0 %v172
    %242 = vmatpush.msra.mxu0 %v166
    %243 = vmatpush.msra.mxu0 %v160
    %244 = vmatpush.msra.mxu0 %v154
    %245 = vmatmul.f32.gmra.mxu0 %v206
    %v246 = vpop.f32.mrf.mxu0
    %v247 = vadd.f32 %v192, %v246
    %248 = vmatmul.f32.gmra.mxu0 %v209
    %v249 = vpop.f32.mrf.mxu0
    %v250 = vadd.f32 %v192, %v249
    %251 = vmatmul.f32.gmra.mxu0 %v212
    %v252 = vpop.f32.mrf.mxu0
    %v253 = vadd.f32 %v192, %v252
    %254 = vmatmul.f32.gmra.mxu0 %v215
    %v255 = vpop.f32.mrf.mxu0
    %v256 = vadd.f32 %v192, %v255
    %257 = vmatmul.f32.gmra.mxu0 %v218
    %v258 = vpop.f32.mrf.mxu0
    %v259 = vadd.f32 %v192, %v258
    %260 = vmatmul.f32.gmra.mxu0 %v221
    %v261 = vpop.f32.mrf.mxu0
    %v262 = vadd.f32 %v192, %v261
    %263 = vmatmul.f32.gmra.mxu0 %v224
    %v264 = vpop.f32.mrf.mxu0
    %v265 = vadd.f32 %v192, %v264
    %266 = vmatmul.f32.gmra.mxu0 %v227
    %v267 = vpop.f32.mrf.mxu0
    %v268 = vadd.f32 %v192, %v267
    %269 = vdwg.mxu0
    %270 = vmatpush.msra.mxu0 0.0
    %271 = vmatpush.msra.mxu0 0.0
    %272 = vmatpush.msra.mxu0 0.0
    %273 = vmatpush.msra.mxu0 0.0
    %274 = vmatpush.msra.mxu0 0.0
    %275 = vmatpush.msra.mxu0 0.0
    %276 = vmatpush.msra.mxu0 0.0
    %277 = vmatpush.msra.mxu0 0.0
    %278 = vmatpush.msra.mxu0 0.0
    %279 = vmatpush.msra.mxu0 0.0
    %280 = vmatpush.msra.mxu0 %v185
    %281 = vmatpush.msra.mxu0 %v179
    %282 = vmatpush.msra.mxu0 %v173
    %283 = vmatpush.msra.mxu0 %v167
    %284 = vmatpush.msra.mxu0 %v161
    %285 = vmatpush.msra.mxu0 %v155
    %286 = vmatmul.f32.gmra.mxu0 %v206
    %v287 = vpop.f32.mrf.mxu0
    %v288 = vadd.f32 %v193, %v287
    %289 = vmatmul.f32.gmra.mxu0 %v209
    %v290 = vpop.f32.mrf.mxu0
    %v291 = vadd.f32 %v193, %v290
    %292 = vmatmul.f32.gmra.mxu0 %v212
    %v293 = vpop.f32.mrf.mxu0
    %v294 = vadd.f32 %v193, %v293
    %295 = vmatmul.f32.gmra.mxu0 %v215
    %v296 = vpop.f32.mrf.mxu0
    %v297 = vadd.f32 %v193, %v296
    %298 = vmatmul.f32.gmra.mxu0 %v218
    %v299 = vpop.f32.mrf.mxu0
    %v300 = vadd.f32 %v193, %v299
    %301 = vmatmul.f32.gmra.mxu0 %v221
    %v302 = vpop.f32.mrf.mxu0
    %v303 = vadd.f32 %v193, %v302
    %304 = vmatmul.f32.gmra.mxu0 %v224
    %v305 = vpop.f32.mrf.mxu0
    %v306 = vadd.f32 %v193, %v305
    %307 = vmatmul.f32.gmra.mxu0 %v227
    %v308 = vpop.f32.mrf.mxu0
    %v309 = vadd.f32 %v193, %v308
    %310 = vdwg.mxu0
    %311 = vmatpush.msra.mxu0 0.0
    %312 = vmatpush.msra.mxu0 0.0
    %313 = vmatpush.msra.mxu0 0.0
    %314 = vmatpush.msra.mxu0 0.0
    %315 = vmatpush.msra.mxu0 0.0
    %316 = vmatpush.msra.mxu0 0.0
    %317 = vmatpush.msra.mxu0 0.0
    %318 = vmatpush.msra.mxu0 0.0
    %319 = vmatpush.msra.mxu0 0.0
    %320 = vmatpush.msra.mxu0 0.0
    %321 = vmatpush.msra.mxu0 %v186
    %322 = vmatpush.msra.mxu0 %v180
    %323 = vmatpush.msra.mxu0 %v174
    %324 = vmatpush.msra.mxu0 %v168
    %325 = vmatpush.msra.mxu0 %v162
    %326 = vmatpush.msra.mxu0 %v156
    %327 = vmatmul.f32.gmra.mxu0 %v206
    %v328 = vpop.f32.mrf.mxu0
    %v329 = vadd.f32 %v194, %v328
    %330 = vmatmul.f32.gmra.mxu0 %v209
    %v331 = vpop.f32.mrf.mxu0
    %v332 = vadd.f32 %v194, %v331
    %333 = vmatmul.f32.gmra.mxu0 %v212
    %v334 = vpop.f32.mrf.mxu0
    %v335 = vadd.f32 %v194, %v334
    %336 = vmatmul.f32.gmra.mxu0 %v215
    %v337 = vpop.f32.mrf.mxu0
    %v338 = vadd.f32 %v194, %v337
    %339 = vmatmul.f32.gmra.mxu0 %v218
    %v340 = vpop.f32.mrf.mxu0
    %v341 = vadd.f32 %v194, %v340
    %342 = vmatmul.f32.gmra.mxu0 %v221
    %v343 = vpop.f32.mrf.mxu0
    %v344 = vadd.f32 %v194, %v343
    %345 = vmatmul.f32.gmra.mxu0 %v224
    %v346 = vpop.f32.mrf.mxu0
    %v347 = vadd.f32 %v194, %v346
    %348 = vmatmul.f32.gmra.mxu0 %v227
    %v349 = vpop.f32.mrf.mxu0
    %350 = vdwg.mxu0
    %351 = vmatpush.msra.mxu0 0.0
    %352 = vmatpush.msra.mxu0 0.0
    %353 = vmatpush.msra.mxu0 0.0
    %354 = vmatpush.msra.mxu0 0.0
    %355 = vmatpush.msra.mxu0 0.0
    %356 = vmatpush.msra.mxu0 0.0
    %357 = vmatpush.msra.mxu0 0.0
    %358 = vmatpush.msra.mxu0 0.0
    %359 = vmatpush.msra.mxu0 0.0
    %360 = vmatpush.msra.mxu0 0.0
    %361 = vmatpush.msra.mxu0 %v187
    %362 = vmatpush.msra.mxu0 %v181
    %363 = vmatpush.msra.mxu0 %v175
    %364 = vmatpush.msra.mxu0 %v169
    %365 = vmatpush.msra.mxu0 %v163
    %366 = vmatpush.msra.mxu0 %v157
    %367 = vmatmul.f32.gmra.mxu0 %v206
    %v368 = vpop.f32.mrf.mxu0
    %v369 = vadd.f32 %v195, %v368
    %370 = vmatmul.f32.gmra.mxu0 %v209
    %v371 = vpop.f32.mrf.mxu0
    %v372 = vadd.f32 %v195, %v371
    %373 = vmatmul.f32.gmra.mxu0 %v212
    %v374 = vpop.f32.mrf.mxu0
    %v375 = vadd.f32 %v195, %v374
    %376 = vmatmul.f32.gmra.mxu0 %v215
    %v377 = vpop.f32.mrf.mxu0
    %v378 = vadd.f32 %v195, %v377
    %379 = vmatmul.f32.gmra.mxu0 %v218
    %v380 = vpop.f32.mrf.mxu0
    %v381 = vadd.f32 %v195, %v380
    %382 = vmatmul.f32.gmra.mxu0 %v221
    %v383 = vpop.f32.mrf.mxu0
    %v384 = vadd.f32 %v195, %v383
    %385 = vmatmul.f32.gmra.mxu0 %v224
    %v386 = vpop.f32.mrf.mxu0
    %v387 = vadd.f32 %v195, %v386
    %388 = vmatmul.f32.gmra.mxu0 %v227
    %v389 = vpop.f32.mrf.mxu0
    %390 = vdwg.mxu0
    %391 = vmatpush.msra.mxu0 0.0
    %392 = vmatpush.msra.mxu0 0.0
    %393 = vmatpush.msra.mxu0 0.0
    %394 = vmatpush.msra.mxu0 0.0
    %395 = vmatpush.msra.mxu0 0.0
    %396 = vmatpush.msra.mxu0 0.0
    %397 = vmatpush.msra.mxu0 0.0
    %398 = vmatpush.msra.mxu0 0.0
    %399 = vmatpush.msra.mxu0 0.0
    %400 = vmatpush.msra.mxu0 0.0
    %401 = vmatpush.msra.mxu0 %v188
    %402 = vmatpush.msra.mxu0 %v182
    %403 = vmatpush.msra.mxu0 %v176
    %404 = vmatpush.msra.mxu0 %v170
    %405 = vmatpush.msra.mxu0 %v164
    %406 = vmatpush.msra.mxu0 %v158
    %407 = vmatmul.f32.gmra.mxu0 %v206
    %v408 = vpop.f32.mrf.mxu0
    %v409 = vadd.f32 %v196, %v408
    %410 = vmatmul.f32.gmra.mxu0 %v209
    %v411 = vpop.f32.mrf.mxu0
    %v412 = vadd.f32 %v196, %v411
    %413 = vmatmul.f32.gmra.mxu0 %v212
    %v414 = vpop.f32.mrf.mxu0
    %v415 = vadd.f32 %v196, %v414
    %416 = vmatmul.f32.gmra.mxu0 %v215
    %v417 = vpop.f32.mrf.mxu0
    %v418 = vadd.f32 %v196, %v417
    %419 = vmatmul.f32.gmra.mxu0 %v218
    %v420 = vpop.f32.mrf.mxu0
    %v421 = vadd.f32 %v196, %v420
    %422 = vmatmul.f32.gmra.mxu0 %v221
    %v423 = vpop.f32.mrf.mxu0
    %v424 = vadd.f32 %v196, %v423
    %425 = vmatmul.f32.gmra.mxu0 %v224
    %v426 = vpop.f32.mrf.mxu0
    %v427 = vadd.f32 %v196, %v426
    %428 = vmatmul.f32.gmra.mxu0 %v227
    %v429 = vpop.f32.mrf.mxu0
    %430 = vdwg.mxu0
    %431 = vmatpush.msra.mxu0 0.0
    %432 = vmatpush.msra.mxu0 0.0
    %433 = vmatpush.msra.mxu0 0.0
    %434 = vmatpush.msra.mxu0 0.0
    %435 = vmatpush.msra.mxu0 0.0
    %436 = vmatpush.msra.mxu0 0.0
    %437 = vmatpush.msra.mxu0 0.0
    %438 = vmatpush.msra.mxu0 0.0
    %439 = vmatpush.msra.mxu0 0.0
    %440 = vmatpush.msra.mxu0 0.0
    %441 = vmatpush.msra.mxu0 %v189
    %442 = vmatpush.msra.mxu0 %v183
    %443 = vmatpush.msra.mxu0 %v177
    %444 = vmatpush.msra.mxu0 %v171
    %445 = vmatpush.msra.mxu0 %v165
    %446 = vmatpush.msra.mxu0 %v159
    %447 = vmatmul.f32.gmra.mxu0 %v206
    %v448 = vpop.f32.mrf.mxu0
    %v449 = vadd.f32 %v197, %v448
    %450 = vmatmul.f32.gmra.mxu0 %v209
    %v451 = vpop.f32.mrf.mxu0
    %v452 = vadd.f32 %v197, %v451
    %453 = vmatmul.f32.gmra.mxu0 %v212
    %v454 = vpop.f32.mrf.mxu0
    %v455 = vadd.f32 %v197, %v454
    %456 = vmatmul.f32.gmra.mxu0 %v215
    %v457 = vpop.f32.mrf.mxu0
    %v458 = vadd.f32 %v197, %v457
    %459 = vmatmul.f32.gmra.mxu0 %v218
    %v460 = vpop.f32.mrf.mxu0
    %v461 = vadd.f32 %v197, %v460
    %462 = vmatmul.f32.gmra.mxu0 %v221
    %v463 = vpop.f32.mrf.mxu0
    %v464 = vadd.f32 %v197, %v463
    %465 = vmatmul.f32.gmra.mxu0 %v224
    %v466 = vpop.f32.mrf.mxu0
    %v467 = vadd.f32 %v197, %v466
    %468 = vmatmul.f32.gmra.mxu0 %v227
    %v469 = vpop.f32.mrf.mxu0
    %470 = vdwg.mxu0
    %v471 = vld [vmem:[#allocation11] sm:$0xff]
    %v472 = vld [vmem:[#allocation11 + $0x8] sm:$0xff]
    %v473 = vld [vmem:[#allocation11 + $0x10] sm:$0xff]
    %v474 = vld [vmem:[#allocation11 + $0x18] sm:$0xff]
    %v475 = vld [vmem:[#allocation11 + $0x20] sm:$0xff]
    %v476 = vld [vmem:[#allocation11 + $0x28] sm:$0xff]
    %v477 = vld [vmem:[#allocation11 + $0x30] sm:$0xff]
    %v478 = vld [vmem:[#allocation11 + $0x38] sm:$0xff]
    %v479 = vld [vmem:[#allocation11 + $0x40] sm:$0xff]
    %v480 = vld [vmem:[#allocation11 + $0x48] sm:$0xff]
    %v481 = vld [vmem:[#allocation11 + $0x50] sm:$0xff]
    %v482 = vld [vmem:[#allocation11 + $0x58] sm:$0xff]
    %v483 = vld [vmem:[#allocation11 + $0x60] sm:$0xff]
    %v484 = vld [vmem:[#allocation11 + $0x68] sm:$0xff]
    %v485 = vld [vmem:[#allocation11 + $0x70] sm:$0xff]
    %v486 = vld [vmem:[#allocation11 + $0x78] sm:$0xff]
    %v487 = vld [vmem:[#allocation11 + $0x80] sm:$0xff]
    %v488 = vld [vmem:[#allocation11 + $0x88] sm:$0xff]
    %v489 = vld [vmem:[#allocation11 + $0x90] sm:$0xff]
    %v490 = vld [vmem:[#allocation11 + $0x98] sm:$0xff]
    %v491 = vld [vmem:[#allocation11 + $0xa0] sm:$0xff]
    %v492 = vld [vmem:[#allocation11 + $0xa8] sm:$0xff]
    %v493 = vld [vmem:[#allocation11 + $0xb0] sm:$0xff]
    %v494 = vld [vmem:[#allocation11 + $0xb8] sm:$0xff]
    %v495 = vld [vmem:[#allocation11 + $0xc0] sm:$0xff]
    %v496 = vld [vmem:[#allocation11 + $0xc8] sm:$0xff]
    %v497 = vld [vmem:[#allocation11 + $0xd0] sm:$0xff]
    %v498 = vld [vmem:[#allocation11 + $0xd8] sm:$0xff]
    %v499 = vld [vmem:[#allocation11 + $0xe0] sm:$0xff]
    %v500 = vld [vmem:[#allocation11 + $0xe8] sm:$0xff]
    %v501 = vld [vmem:[#allocation11 + $0xf0] sm:$0xff]
    %v502 = vld [vmem:[#allocation11 + $0xf8] sm:$0xff]
    %v503 = vld [vmem:[%s8] sm:$0x3]
    %v505 = vperm.slane %v503, 0
    %v506 = vperm.slane %v503, 1
    %509 = vmatpush.msra.mxu0 %v501
    %510 = vmatpush.msra.mxu0 %v499
    %511 = vmatpush.msra.mxu0 %v497
    %512 = vmatpush.msra.mxu0 %v495
    %513 = vmatpush.msra.mxu0 %v493
    %514 = vmatpush.msra.mxu0 %v491
    %515 = vmatpush.msra.mxu0 %v489
    %516 = vmatpush.msra.mxu0 %v487
    %517 = vmatpush.msra.mxu0 %v485
    %518 = vmatpush.msra.mxu0 %v483
    %519 = vmatpush.msra.mxu0 %v481
    %520 = vmatpush.msra.mxu0 %v479
    %521 = vmatpush.msra.mxu0 %v477
    %522 = vmatpush.msra.mxu0 %v475
    %523 = vmatpush.msra.mxu0 %v473
    %524 = vmatpush.msra.mxu0 %v471
    %525 = vmatmul.f32.gmra.mxu0 %v247
    %v526 = vpop.f32.mrf.mxu0
    %v527 = vadd.f32 %v505, %v526
    %528 = vmatmul.f32.gmra.mxu0 %v250
    %v529 = vpop.f32.mrf.mxu0
    %v530 = vadd.f32 %v505, %v529
    %531 = vmatmul.f32.gmra.mxu0 %v253
    %v532 = vpop.f32.mrf.mxu0
    %v533 = vadd.f32 %v505, %v532
    %534 = vmatmul.f32.gmra.mxu0 %v256
    %v535 = vpop.f32.mrf.mxu0
    %v536 = vadd.f32 %v505, %v535
    %537 = vmatmul.f32.gmra.mxu0 %v259
    %v538 = vpop.f32.mrf.mxu0
    %v539 = vadd.f32 %v505, %v538
    %540 = vmatmul.f32.gmra.mxu0 %v262
    %v541 = vpop.f32.mrf.mxu0
    %v542 = vadd.f32 %v505, %v541
    %543 = vmatmul.f32.gmra.mxu0 %v265
    %v544 = vpop.f32.mrf.mxu0
    %v545 = vadd.f32 %v505, %v544
    %546 = vmatmul.f32.gmra.mxu0 %v268
    %v547 = vpop.f32.mrf.mxu0
    %v548 = vadd.f32 %v505, %v547
    %549 = vdwg.mxu0
    %550 = vmatpush.msra.mxu0 %v502
    %551 = vmatpush.msra.mxu0 %v500
    %552 = vmatpush.msra.mxu0 %v498
    %553 = vmatpush.msra.mxu0 %v496
    %554 = vmatpush.msra.mxu0 %v494
    %555 = vmatpush.msra.mxu0 %v492
    %556 = vmatpush.msra.mxu0 %v490
    %557 = vmatpush.msra.mxu0 %v488
    %558 = vmatpush.msra.mxu0 %v486
    %559 = vmatpush.msra.mxu0 %v484
    %560 = vmatpush.msra.mxu0 %v482
    %561 = vmatpush.msra.mxu0 %v480
    %562 = vmatpush.msra.mxu0 %v478
    %563 = vmatpush.msra.mxu0 %v476
    %564 = vmatpush.msra.mxu0 %v474
    %565 = vmatpush.msra.mxu0 %v472
    %566 = vmatmul.f32.gmra.mxu0 %v247
    %v567 = vpop.f32.mrf.mxu0
    %v568 = vadd.f32 %v506, %v567
    %569 = vmatmul.f32.gmra.mxu0 %v250
    %v570 = vpop.f32.mrf.mxu0
    %v571 = vadd.f32 %v506, %v570
    %572 = vmatmul.f32.gmra.mxu0 %v253
    %v573 = vpop.f32.mrf.mxu0
    %v574 = vadd.f32 %v506, %v573
    %575 = vmatmul.f32.gmra.mxu0 %v256
    %v576 = vpop.f32.mrf.mxu0
    %v577 = vadd.f32 %v506, %v576
    %578 = vmatmul.f32.gmra.mxu0 %v259
    %v579 = vpop.f32.mrf.mxu0
    %v580 = vadd.f32 %v506, %v579
    %581 = vmatmul.f32.gmra.mxu0 %v262
    %v582 = vpop.f32.mrf.mxu0
    %v583 = vadd.f32 %v506, %v582
    %584 = vmatmul.f32.gmra.mxu0 %v265
    %v585 = vpop.f32.mrf.mxu0
    %v586 = vadd.f32 %v506, %v585
    %587 = vmatmul.f32.gmra.mxu0 %v268
    %v588 = vpop.f32.mrf.mxu0
    %v589 = vadd.f32 %v506, %v588
    %590 = vdwg.mxu0
    %v591 = vld [vmem:[#allocation8] sm:$0xff]
    %v592 = vld [vmem:[#allocation8 + $0x8] sm:$0xff]
    %v593 = vld [vmem:[#allocation8 + $0x10] sm:$0xff]
    %v594 = vld [vmem:[#allocation8 + $0x18] sm:$0xff]
    %v595 = vld [vmem:[#allocation8 + $0x20] sm:$0xff]
    %v596 = vld [vmem:[#allocation8 + $0x28] sm:$0xff]
    %v597 = vld [vmem:[#allocation8 + $0x30] sm:$0xff]
    %v598 = vld [vmem:[#allocation8 + $0x38] sm:$0xff]
    %v599 = vld [vmem:[#allocation12] sm:$0xff]
    %v600 = vld [vmem:[#allocation12 + $0x8] sm:$0xff]
    %v601 = vld [vmem:[#allocation12 + $0x10] sm:$0xff]
    %v602 = vld [vmem:[#allocation12 + $0x18] sm:$0xff]
    %v603 = vld [vmem:[#allocation12 + $0x20] sm:$0xff]
    %v604 = vld [vmem:[#allocation12 + $0x28] sm:$0xff]
    %v605 = vld [vmem:[#allocation12 + $0x30] sm:$0xff]
    %v606 = vld [vmem:[#allocation12 + $0x38] sm:$0xff]
    %v607 = vld [vmem:[#allocation12 + $0x40] sm:$0xff]
    %v608 = vld [vmem:[#allocation12 + $0x48] sm:$0xff]
    %v609 = vld [vmem:[#allocation12 + $0x50] sm:$0xff]
    %v610 = vld [vmem:[#allocation12 + $0x58] sm:$0xff]
    %v611 = vld [vmem:[#allocation12 + $0x60] sm:$0xff]
    %v612 = vld [vmem:[#allocation12 + $0x68] sm:$0xff]
    %v613 = vld [vmem:[#allocation12 + $0x70] sm:$0xff]
    %v614 = vld [vmem:[#allocation12 + $0x78] sm:$0xff]
    %v615 = vld [vmem:[#allocation12 + $0x80] sm:$0xff]
    %v616 = vld [vmem:[#allocation12 + $0x88] sm:$0xff]
    %v617 = vld [vmem:[#allocation12 + $0x90] sm:$0xff]
    %v618 = vld [vmem:[#allocation12 + $0x98] sm:$0xff]
    %v619 = vld [vmem:[#allocation12 + $0xa0] sm:$0xff]
    %v620 = vld [vmem:[#allocation12 + $0xa8] sm:$0xff]
    %v621 = vld [vmem:[#allocation12 + $0xb0] sm:$0xff]
    %v622 = vld [vmem:[#allocation12 + $0xb8] sm:$0xff]
    %v623 = vld [vmem:[#allocation12 + $0xc0] sm:$0xff]
    %v624 = vld [vmem:[#allocation12 + $0xc8] sm:$0xff]
    %v625 = vld [vmem:[#allocation12 + $0xd0] sm:$0xff]
    %v626 = vld [vmem:[#allocation12 + $0xd8] sm:$0xff]
    %v627 = vld [vmem:[#allocation12 + $0xe0] sm:$0xff]
    %v628 = vld [vmem:[#allocation12 + $0xe8] sm:$0xff]
    %v629 = vld [vmem:[#allocation12 + $0xf0] sm:$0xff]
    %v630 = vld [vmem:[#allocation12 + $0xf8] sm:$0xff]
    %631 = vmatpush.msra.mxu0 %v629
    %632 = vmatpush.msra.mxu0 %v627
    %633 = vmatpush.msra.mxu0 %v625
    %634 = vmatpush.msra.mxu0 %v623
    %635 = vmatpush.msra.mxu0 %v621
    %636 = vmatpush.msra.mxu0 %v619
    %637 = vmatpush.msra.mxu0 %v617
    %638 = vmatpush.msra.mxu0 %v615
    %639 = vmatpush.msra.mxu0 %v613
    %640 = vmatpush.msra.mxu0 %v611
    %641 = vmatpush.msra.mxu0 %v609
    %642 = vmatpush.msra.mxu0 %v607
    %643 = vmatpush.msra.mxu0 %v605
    %644 = vmatpush.msra.mxu0 %v603
    %645 = vmatpush.msra.mxu0 %v601
    %646 = vmatpush.msra.mxu0 %v599
    %647 = vmatmul.f32.gmra.mxu0 0.0
    %v648 = vpop.f32.mrf.mxu0
    %v649 = vadd.f32 0.0, %v648
    %650 = vdwg.mxu0
    %651 = vmatpush.msra.mxu0 %v630
    %652 = vmatpush.msra.mxu0 %v628
    %653 = vmatpush.msra.mxu0 %v626
    %654 = vmatpush.msra.mxu0 %v624
    %655 = vmatpush.msra.mxu0 %v622
    %656 = vmatpush.msra.mxu0 %v620
    %657 = vmatpush.msra.mxu0 %v618
    %658 = vmatpush.msra.mxu0 %v616
    %659 = vmatpush.msra.mxu0 %v614
    %660 = vmatpush.msra.mxu0 %v612
    %661 = vmatpush.msra.mxu0 %v610
    %662 = vmatpush.msra.mxu0 %v608
    %663 = vmatpush.msra.mxu0 %v606
    %664 = vmatpush.msra.mxu0 %v604
    %665 = vmatpush.msra.mxu0 %v602
    %666 = vmatpush.msra.mxu0 %v600
    %667 = vmatmul.f32.gmra.mxu0 0.0
    %v668 = vpop.f32.mrf.mxu0
    %v669 = vadd.f32 0.0, %v668
    %670 = vdwg.mxu0
    %v671 = vadd.f32 %v527, %v649
    %v672 = vadd.f32 %v568, %v669
    %v673 = vmul.f32 %v672, 0.5
    %v674 = vmul.f32 %v673, 1.442695
    %v675 = vpow.pop %v674
    %v676 = vmul.f32 %v675, %v675
    %v677 = vmul.f32 %v675, %v591
    %v678 = vadd.f32 %v671, %v677
    %v679 = vld [vmem:[%s9] sm:$0xff]
    %v680 = vld [vmem:[%s9 + $0x8] sm:$0xff]
    %v681 = vld [vmem:[%s9 + $0x10] sm:$0xff]
    %v682 = vld [vmem:[%s9 + $0x18] sm:$0xff]
    %v683 = vld [vmem:[%s9 + $0x20] sm:$0xff]
    %v684 = vld [vmem:[%s9 + $0x28] sm:$0xff]
    %v685 = vld [vmem:[%s9 + $0x30] sm:$0xff]
    %v686 = vld [vmem:[%s9 + $0x38] sm:$0xff]
    %v687 = vld [vmem:[%s9 + $0x40] sm:$0xff]
    %v688 = vld [vmem:[%s9 + $0x48] sm:$0xff]
    %v689 = vld [vmem:[%s9 + $0x50] sm:$0xff]
    %v690 = vld [vmem:[%s9 + $0x58] sm:$0xff]
    %v691 = vld [vmem:[%s9 + $0x60] sm:$0xff]
    %v692 = vld [vmem:[%s9 + $0x68] sm:$0xff]
    %v693 = vld [vmem:[%s9 + $0x70] sm:$0xff]
    %v694 = vld [vmem:[%s9 + $0x78] sm:$0xff]
    %v695 = vld [vmem:[%s10] sm:$0x1]
    %v697 = vperm.slane %v695, 0
    %699 = vmatpush.msra.mxu0 %v694
    %700 = vmatpush.msra.mxu0 %v693
    %701 = vmatpush.msra.mxu0 %v692
    %702 = vmatpush.msra.mxu0 %v691
    %703 = vmatpush.msra.mxu0 %v690
    %704 = vmatpush.msra.mxu0 %v689
    %705 = vmatpush.msra.mxu0 %v688
    %706 = vmatpush.msra.mxu0 %v687
    %707 = vmatpush.msra.mxu0 %v686
    %708 = vmatpush.msra.mxu0 %v685
    %709 = vmatpush.msra.mxu0 %v684
    %710 = vmatpush.msra.mxu0 %v683
    %711 = vmatpush.msra.mxu0 %v682
    %712 = vmatpush.msra.mxu0 %v681
    %713 = vmatpush.msra.mxu0 %v680
    %714 = vmatpush.msra.mxu0 %v679
    %715 = vmatmul.f32.gmra.mxu0 %v678
    %v716 = vpop.f32.mrf.mxu0
    %v717 = vadd.f32 %v697, %v716
    %718 = vdwg.mxu0
    %v719 = vmax.f32 %v717, 0.0
    %vm720 = vcmp.ne.f32.partialorder %v717, %v717
    %v721 = vadd.f32 %v717, 0.0
    %v722 = vand.u32 2147483647, %v717
    %v723 = vsub.f32 0.0, %v722
    %v724 = vmul.f32 %v723, 1.442695
    %v725 = vpow.pop %v724
    %v726 = vadd.f32 %v725, 1.0
    %v727 = vlog2.pop %v726
    %v728 = vmul.f32 %v727, 0.6931472
    %v729 = vmul.f32 -0.5, %v725
    %v730 = vadd.f32 %v729, 1.0
    %v731 = vmul.f32 %v730, %v725
    %v732 = vand.u32 2147483647, %v725
    %vm733 = vcmp.lt.f32.partialorder %v732, 0.0004427343
    %v734 = vsel %vm733, %v731, %v728
    %v735 = vadd.f32 %v719, %v734
    %v736 = vsel %vm720, %v721, %v735
    %v737 = vadd.f32 %v672, 1.0
    %v738 = vmul.f32 %v671, %v671
    %v739 = vsub.f32 %v737, %v738
    %v740 = vsub.f32 %v739, %v676
    %v741 = vadd.f32 %v740, 0.0
    %742 = vst [vmem:[#allocation3] sm:$0xff] %v736
    %743 = vst [vmem:[#allocation2] sm:$0xff] %v736
    %744 = vst [vmem:[#allocation2 + $0x8] sm:$0xff] 0.0
    %v745 = vld [vmem:[#allocation2] sm:$0xff]
    %v746 = vld [vmem:[#allocation2 + $0x8] sm:$0xff]
    %v747 = vld [vmem:[#allocation14] sm:$0xff]
    %v748 = vld [vmem:[#allocation14 + $0x8] sm:$0xff]
    %v749 = vld [vmem:[#allocation14 + $0x10] sm:$0xff]
    %v750 = vld [vmem:[#allocation14 + $0x18] sm:$0xff]
    %v751 = vld [vmem:[#allocation14 + $0x20] sm:$0xff]
    %v752 = vld [vmem:[#allocation14 + $0x28] sm:$0xff]
    %v753 = vld [vmem:[#allocation14 + $0x30] sm:$0xff]
    %v754 = vld [vmem:[#allocation14 + $0x38] sm:$0xff]
    %v755 = vld [vmem:[#allocation14 + $0x40] sm:$0xff]
    %v756 = vld [vmem:[#allocation14 + $0x48] sm:$0xff]
    %v757 = vld [vmem:[#allocation14 + $0x50] sm:$0xff]
    %v758 = vld [vmem:[#allocation14 + $0x58] sm:$0xff]
    %v759 = vld [vmem:[#allocation14 + $0x60] sm:$0xff]
    %v760 = vld [vmem:[#allocation14 + $0x68] sm:$0xff]
    %v761 = vld [vmem:[#allocation14 + $0x70] sm:$0xff]
    %v762 = vld [vmem:[#allocation14 + $0x78] sm:$0xff]
    %v763 = vld [vmem:[#allocation14 + $0x80] sm:$0xff]
    %v764 = vld [vmem:[#allocation14 + $0x88] sm:$0xff]
    %v765 = vld [vmem:[#allocation14 + $0x90] sm:$0xff]
    %v766 = vld [vmem:[#allocation14 + $0x98] sm:$0xff]
    %v767 = vld [vmem:[#allocation14 + $0xa0] sm:$0xff]
    %v768 = vld [vmem:[#allocation14 + $0xa8] sm:$0xff]
    %v769 = vld [vmem:[#allocation14 + $0xb0] sm:$0xff]
    %v770 = vld [vmem:[#allocation14 + $0xb8] sm:$0xff]
    %v771 = vld [vmem:[#allocation14 + $0xc0] sm:$0xff]
    %v772 = vld [vmem:[#allocation14 + $0xc8] sm:$0xff]
    %v773 = vld [vmem:[#allocation14 + $0xd0] sm:$0xff]
    %v774 = vld [vmem:[#allocation14 + $0xd8] sm:$0xff]
    %v775 = vld [vmem:[#allocation14 + $0xe0] sm:$0xff]
    %v776 = vld [vmem:[#allocation14 + $0xe8] sm:$0xff]
    %v777 = vld [vmem:[#allocation14 + $0xf0] sm:$0xff]
    %v778 = vld [vmem:[#allocation14 + $0xf8] sm:$0xff]
    %v779 = vld [vmem:[#allocation14 + $0x100] sm:$0xff]
    %v780 = vld [vmem:[#allocation14 + $0x108] sm:$0xff]
    %v781 = vld [vmem:[#allocation14 + $0x110] sm:$0xff]
    %v782 = vld [vmem:[#allocation14 + $0x118] sm:$0xff]
    %v783 = vld [vmem:[#allocation14 + $0x120] sm:$0xff]
    %v784 = vld [vmem:[#allocation14 + $0x128] sm:$0xff]
    %v785 = vld [vmem:[#allocation14 + $0x130] sm:$0xff]
    %v786 = vld [vmem:[#allocation14 + $0x138] sm:$0xff]
    %v787 = vld [vmem:[#allocation14 + $0x140] sm:$0xff]
    %v788 = vld [vmem:[#allocation14 + $0x148] sm:$0xff]
    %v789 = vld [vmem:[#allocation14 + $0x150] sm:$0xff]
    %v790 = vld [vmem:[#allocation14 + $0x158] sm:$0xff]
    %v791 = vld [vmem:[#allocation14 + $0x160] sm:$0xff]
    %v792 = vld [vmem:[#allocation14 + $0x168] sm:$0xff]
    %v793 = vld [vmem:[#allocation14 + $0x170] sm:$0xff]
    %v794 = vld [vmem:[#allocation14 + $0x178] sm:$0xff]
    %v795 = vld [vmem:[#allocation14 + $0x180] sm:$0xff]
    %v796 = vld [vmem:[#allocation14 + $0x188] sm:$0xff]
    %v797 = vld [vmem:[#allocation14 + $0x190] sm:$0xff]
    %v798 = vld [vmem:[#allocation14 + $0x198] sm:$0xff]
    %v799 = vld [vmem:[#allocation14 + $0x1a0] sm:$0xff]
    %v800 = vld [vmem:[#allocation14 + $0x1a8] sm:$0xff]
    %v801 = vld [vmem:[#allocation14 + $0x1b0] sm:$0xff]
    %v802 = vld [vmem:[#allocation14 + $0x1b8] sm:$0xff]
    %v803 = vld [vmem:[#allocation14 + $0x1c0] sm:$0xff]
    %v804 = vld [vmem:[#allocation14 + $0x1c8] sm:$0xff]
    %v805 = vld [vmem:[#allocation14 + $0x1d0] sm:$0xff]
    %v806 = vld [vmem:[#allocation14 + $0x1d8] sm:$0xff]
    %v807 = vld [vmem:[#allocation14 + $0x1e0] sm:$0xff]
    %v808 = vld [vmem:[#allocation14 + $0x1e8] sm:$0xff]
    %v809 = vld [vmem:[#allocation14 + $0x1f0] sm:$0xff]
    %v810 = vld [vmem:[#allocation14 + $0x1f8] sm:$0xff]
    %v811 = vld [vmem:[#allocation14 + $0x200] sm:$0xff]
    %v812 = vld [vmem:[#allocation14 + $0x208] sm:$0xff]
    %v813 = vld [vmem:[#allocation14 + $0x210] sm:$0xff]
    %v814 = vld [vmem:[#allocation14 + $0x218] sm:$0xff]
    %v815 = vld [vmem:[#allocation14 + $0x220] sm:$0xff]
    %v816 = vld [vmem:[#allocation14 + $0x228] sm:$0xff]
    %v817 = vld [vmem:[#allocation14 + $0x230] sm:$0xff]
    %v818 = vld [vmem:[#allocation14 + $0x238] sm:$0xff]
    %v819 = vld [vmem:[#allocation14 + $0x240] sm:$0xff]
    %v820 = vld [vmem:[#allocation14 + $0x248] sm:$0xff]
    %v821 = vld [vmem:[#allocation14 + $0x250] sm:$0xff]
    %v822 = vld [vmem:[#allocation14 + $0x258] sm:$0xff]
    %v823 = vld [vmem:[#allocation14 + $0x260] sm:$0xff]
    %v824 = vld [vmem:[#allocation14 + $0x268] sm:$0xff]
    %v825 = vld [vmem:[#allocation14 + $0x270] sm:$0xff]
    %v826 = vld [vmem:[#allocation14 + $0x278] sm:$0xff]
    %v827 = vld [vmem:[#allocation14 + $0x280] sm:$0xff]
    %v828 = vld [vmem:[#allocation14 + $0x288] sm:$0xff]
    %v829 = vld [vmem:[#allocation14 + $0x290] sm:$0xff]
    %v830 = vld [vmem:[#allocation14 + $0x298] sm:$0xff]
    %v831 = vld [vmem:[#allocation14 + $0x2a0] sm:$0xff]
    %v832 = vld [vmem:[#allocation14 + $0x2a8] sm:$0xff]
    %v833 = vld [vmem:[#allocation14 + $0x2b0] sm:$0xff]
    %v834 = vld [vmem:[#allocation14 + $0x2b8] sm:$0xff]
    %v835 = vld [vmem:[#allocation14 + $0x2c0] sm:$0xff]
    %v836 = vld [vmem:[#allocation14 + $0x2c8] sm:$0xff]
    %v837 = vld [vmem:[#allocation14 + $0x2d0] sm:$0xff]
    %v838 = vld [vmem:[#allocation14 + $0x2d8] sm:$0xff]
    %v839 = vld [vmem:[#allocation14 + $0x2e0] sm:$0xff]
    %v840 = vld [vmem:[#allocation14 + $0x2e8] sm:$0xff]
    %v841 = vld [vmem:[#allocation14 + $0x2f0] sm:$0xff]
    %v842 = vld [vmem:[#allocation14 + $0x2f8] sm:$0xff]
    %v843 = vld [vmem:[#allocation14 + $0x300] sm:$0xff]
    %v844 = vld [vmem:[#allocation14 + $0x308] sm:$0xff]
    %v845 = vld [vmem:[#allocation14 + $0x310] sm:$0xff]
    %v846 = vld [vmem:[#allocation14 + $0x318] sm:$0xff]
    %v847 = vld [vmem:[#allocation14 + $0x320] sm:$0xff]
    %v848 = vld [vmem:[#allocation14 + $0x328] sm:$0xff]
    %v849 = vld [vmem:[#allocation14 + $0x330] sm:$0xff]
    %v850 = vld [vmem:[#allocation14 + $0x338] sm:$0xff]
    %v851 = vld [vmem:[#allocation14 + $0x340] sm:$0xff]
    %v852 = vld [vmem:[#allocation14 + $0x348] sm:$0xff]
    %v853 = vld [vmem:[#allocation14 + $0x350] sm:$0xff]
    %v854 = vld [vmem:[#allocation14 + $0x358] sm:$0xff]
    %v855 = vld [vmem:[#allocation14 + $0x360] sm:$0xff]
    %v856 = vld [vmem:[#allocation14 + $0x368] sm:$0xff]
    %v857 = vld [vmem:[#allocation14 + $0x370] sm:$0xff]
    %v858 = vld [vmem:[#allocation14 + $0x378] sm:$0xff]
    %v859 = vld [vmem:[#allocation14 + $0x380] sm:$0xff]
    %v860 = vld [vmem:[#allocation14 + $0x388] sm:$0xff]
    %v861 = vld [vmem:[#allocation14 + $0x390] sm:$0xff]
    %v862 = vld [vmem:[#allocation14 + $0x398] sm:$0xff]
    %v863 = vld [vmem:[#allocation14 + $0x3a0] sm:$0xff]
    %v864 = vld [vmem:[#allocation14 + $0x3a8] sm:$0xff]
    %v865 = vld [vmem:[#allocation14 + $0x3b0] sm:$0xff]
    %v866 = vld [vmem:[#allocation14 + $0x3b8] sm:$0xff]
    %v867 = vld [vmem:[#allocation14 + $0x3c0] sm:$0xff]
    %v868 = vld [vmem:[#allocation14 + $0x3c8] sm:$0xff]
    %v869 = vld [vmem:[#allocation14 + $0x3d0] sm:$0xff]
    %v870 = vld [vmem:[#allocation14 + $0x3d8] sm:$0xff]
    %v871 = vld [vmem:[#allocation14 + $0x3e0] sm:$0xff]
    %v872 = vld [vmem:[#allocation14 + $0x3e8] sm:$0xff]
    %v873 = vld [vmem:[#allocation14 + $0x3f0] sm:$0xff]
    %v874 = vld [vmem:[#allocation14 + $0x3f8] sm:$0xff]
    %875 = vmatpush.msra.mxu0 %v807
    %876 = vmatpush.msra.mxu0 %v803
    %877 = vmatpush.msra.mxu0 %v799
    %878 = vmatpush.msra.mxu0 %v795
    %879 = vmatpush.msra.mxu0 %v791
    %880 = vmatpush.msra.mxu0 %v787
    %881 = vmatpush.msra.mxu0 %v783
    %882 = vmatpush.msra.mxu0 %v779
    %883 = vmatpush.msra.mxu0 %v775
    %884 = vmatpush.msra.mxu0 %v771
    %885 = vmatpush.msra.mxu0 %v767
    %886 = vmatpush.msra.mxu0 %v763
    %887 = vmatpush.msra.mxu0 %v759
    %888 = vmatpush.msra.mxu0 %v755
    %889 = vmatpush.msra.mxu0 %v751
    %890 = vmatpush.msra.mxu0 %v747
    %891 = vmatmul.f32.gmra.mxu0 %v745
    %v892 = vpop.f32.mrf.mxu0
    %v893 = vadd.f32 0.0, %v892
    %894 = vdwg.mxu0
    %895 = vmatpush.msra.mxu0 %v871
    %896 = vmatpush.msra.mxu0 %v867
    %897 = vmatpush.msra.mxu0 %v863
    %898 = vmatpush.msra.mxu0 %v859
    %899 = vmatpush.msra.mxu0 %v855
    %900 = vmatpush.msra.mxu0 %v851
    %901 = vmatpush.msra.mxu0 %v847
    %902 = vmatpush.msra.mxu0 %v843
    %903 = vmatpush.msra.mxu0 %v839
    %904 = vmatpush.msra.mxu0 %v835
    %905 = vmatpush.msra.mxu0 %v831
    %906 = vmatpush.msra.mxu0 %v827
    %907 = vmatpush.msra.mxu0 %v823
    %908 = vmatpush.msra.mxu0 %v819
    %909 = vmatpush.msra.mxu0 %v815
    %910 = vmatpush.msra.mxu0 %v811
    %911 = vmatmul.f32.gmra.mxu0 %v746
    %v912 = vpop.f32.mrf.mxu0
    %v913 = vadd.f32 %v893, %v912
    %914 = vdwg.mxu0
    %915 = vmatpush.msra.mxu0 %v808
    %916 = vmatpush.msra.mxu0 %v804
    %917 = vmatpush.msra.mxu0 %v800
    %918 = vmatpush.msra.mxu0 %v796
    %919 = vmatpush.msra.mxu0 %v792
    %920 = vmatpush.msra.mxu0 %v788
    %921 = vmatpush.msra.mxu0 %v784
    %922 = vmatpush.msra.mxu0 %v780
    %923 = vmatpush.msra.mxu0 %v776
    %924 = vmatpush.msra.mxu0 %v772
    %925 = vmatpush.msra.mxu0 %v768
    %926 = vmatpush.msra.mxu0 %v764
    %927 = vmatpush.msra.mxu0 %v760
    %928 = vmatpush.msra.mxu0 %v756
    %929 = vmatpush.msra.mxu0 %v752
    %930 = vmatpush.msra.mxu0 %v748
    %931 = vmatmul.f32.gmra.mxu0 %v745
    %v932 = vpop.f32.mrf.mxu0
    %v933 = vadd.f32 0.0, %v932
    %934 = vdwg.mxu0
    %935 = vmatpush.msra.mxu0 %v872
    %936 = vmatpush.msra.mxu0 %v868
    %937 = vmatpush.msra.mxu0 %v864
    %938 = vmatpush.msra.mxu0 %v860
    %939 = vmatpush.msra.mxu0 %v856
    %940 = vmatpush.msra.mxu0 %v852
    %941 = vmatpush.msra.mxu0 %v848
    %942 = vmatpush.msra.mxu0 %v844
    %943 = vmatpush.msra.mxu0 %v840
    %944 = vmatpush.msra.mxu0 %v836
    %945 = vmatpush.msra.mxu0 %v832
    %946 = vmatpush.msra.mxu0 %v828
    %947 = vmatpush.msra.mxu0 %v824
    %948 = vmatpush.msra.mxu0 %v820
    %949 = vmatpush.msra.mxu0 %v816
    %950 = vmatpush.msra.mxu0 %v812
    %951 = vmatmul.f32.gmra.mxu0 %v746
    %v952 = vpop.f32.mrf.mxu0
    %v953 = vadd.f32 %v933, %v952
    %954 = vdwg.mxu0
    %955 = vmatpush.msra.mxu0 %v809
    %956 = vmatpush.msra.mxu0 %v805
    %957 = vmatpush.msra.mxu0 %v801
    %958 = vmatpush.msra.mxu0 %v797
    %959 = vmatpush.msra.mxu0 %v793
    %960 = vmatpush.msra.mxu0 %v789
    %961 = vmatpush.msra.mxu0 %v785
    %962 = vmatpush.msra.mxu0 %v781
    %963 = vmatpush.msra.mxu0 %v777
    %964 = vmatpush.msra.mxu0 %v773
    %965 = vmatpush.msra.mxu0 %v769
    %966 = vmatpush.msra.mxu0 %v765
    %967 = vmatpush.msra.mxu0 %v761
    %968 = vmatpush.msra.mxu0 %v757
    %969 = vmatpush.msra.mxu0 %v753
    %970 = vmatpush.msra.mxu0 %v749
    %971 = vmatmul.f32.gmra.mxu0 %v745
    %v972 = vpop.f32.mrf.mxu0
    %v973 = vadd.f32 0.0, %v972
    %974 = vdwg.mxu0
    %975 = vmatpush.msra.mxu0 %v873
    %976 = vmatpush.msra.mxu0 %v869
    %977 = vmatpush.msra.mxu0 %v865
    %978 = vmatpush.msra.mxu0 %v861
    %979 = vmatpush.msra.mxu0 %v857
    %980 = vmatpush.msra.mxu0 %v853
    %981 = vmatpush.msra.mxu0 %v849
    %982 = vmatpush.msra.mxu0 %v845
    %983 = vmatpush.msra.mxu0 %v841
    %984 = vmatpush.msra.mxu0 %v837
    %985 = vmatpush.msra.mxu0 %v833
    %986 = vmatpush.msra.mxu0 %v829
    %987 = vmatpush.msra.mxu0 %v825
    %988 = vmatpush.msra.mxu0 %v821
    %989 = vmatpush.msra.mxu0 %v817
    %990 = vmatpush.msra.mxu0 %v813
    %991 = vmatmul.f32.gmra.mxu0 %v746
    %v992 = vpop.f32.mrf.mxu0
    %v993 = vadd.f32 %v973, %v992
    %994 = vdwg.mxu0
    %995 = vmatpush.msra.mxu0 %v810
    %996 = vmatpush.msra.mxu0 %v806
    %997 = vmatpush.msra.mxu0 %v802
    %998 = vmatpush.msra.mxu0 %v798
    %999 = vmatpush.msra.mxu0 %v794
    %1000 = vmatpush.msra.mxu0 %v790
    %1001 = vmatpush.msra.mxu0 %v786
    %1002 = vmatpush.msra.mxu0 %v782
    %1003 = vmatpush.msra.mxu0 %v778
    %1004 = vmatpush.msra.mxu0 %v774
    %1005 = vmatpush.msra.mxu0 %v770
    %1006 = vmatpush.msra.mxu0 %v766
    %1007 = vmatpush.msra.mxu0 %v762
    %1008 = vmatpush.msra.mxu0 %v758
    %1009 = vmatpush.msra.mxu0 %v754
    %1010 = vmatpush.msra.mxu0 %v750
    %1011 = vmatmul.f32.gmra.mxu0 %v745
    %v1012 = vpop.f32.mrf.mxu0
    %v1013 = vadd.f32 0.0, %v1012
    %1014 = vdwg.mxu0
    %1015 = vmatpush.msra.mxu0 %v874
    %1016 = vmatpush.msra.mxu0 %v870
    %1017 = vmatpush.msra.mxu0 %v866
    %1018 = vmatpush.msra.mxu0 %v862
    %1019 = vmatpush.msra.mxu0 %v858
    %1020 = vmatpush.msra.mxu0 %v854
    %1021 = vmatpush.msra.mxu0 %v850
    %1022 = vmatpush.msra.mxu0 %v846
    %1023 = vmatpush.msra.mxu0 %v842
    %1024 = vmatpush.msra.mxu0 %v838
    %1025 = vmatpush.msra.mxu0 %v834
    %1026 = vmatpush.msra.mxu0 %v830
    %1027 = vmatpush.msra.mxu0 %v826
    %1028 = vmatpush.msra.mxu0 %v822
    %1029 = vmatpush.msra.mxu0 %v818
    %1030 = vmatpush.msra.mxu0 %v814
    %1031 = vmatmul.f32.gmra.mxu0 %v746
    %v1032 = vpop.f32.mrf.mxu0
    %v1033 = vadd.f32 %v1013, %v1032
    %1034 = vdwg.mxu0
    %v1035 = vadd.f32 %v329, %v913
    %v1036 = vadd.f32 %v369, %v953
    %v1037 = vadd.f32 %v409, %v993
    %v1038 = vadd.f32 %v449, %v1033
    %v1039 = vxor.u32 %v1035, 2147483648
    %v1040 = vmul.f32 %v1039, 1.442695
    %v1041 = vpow.pop %v1040
    %v1042 = vadd.f32 %v1041, 1.0
    %v1043 = vrcp.pop %v1042
    %v1044 = vmul.f32 %v1042, %v1043
    %v1045 = vsub.f32 1.0, %v1044
    %v1046 = vmul.f32 %v1043, %v1045
    %v1047 = vadd.f32 %v1043, %v1046
    %vm1048 = vweird.f32 %v1042
    %vm1049 = vweird.f32 %v1043
    %vm1050 = vmor %vm1048, %vm1049
    %v1051 = vsel %vm1050, %v1043, %v1047
    %v1052 = vand.u32 2147483647, %v1042
    %vm1053 = vcmp.eq.f32.partialorder %v1052, 8.507059e+37
    %v1054 = vand.u32 %v1042, 2147483648
    %v1055 = vor.u32 1.1754944e-38, %v1054
    %v1056 = vsel %vm1053, %v1055, %v1051
    %v1057 = vmul.f32 1.0, %v1056
    %v1058 = vxor.u32 %v1036, 2147483648
    %v1059 = vmul.f32 %v1058, 1.442695
    %v1060 = vpow.pop %v1059
    %v1061 = vadd.f32 %v1060, 1.0
    %v1062 = vrcp.pop %v1061
    %v1063 = vmul.f32 %v1061, %v1062
    %v1064 = vsub.f32 1.0, %v1063
    %v1065 = vmul.f32 %v1062, %v1064
    %v1066 = vadd.f32 %v1062, %v1065
    %vm1067 = vweird.f32 %v1061
    %vm1068 = vweird.f32 %v1062
    %vm1069 = vmor %vm1067, %vm1068
    %v1070 = vsel %vm1069, %v1062, %v1066
    %v1071 = vand.u32 2147483647, %v1061
    %vm1072 = vcmp.eq.f32.partialorder %v1071, 8.507059e+37
    %v1073 = vand.u32 %v1061, 2147483648
    %v1074 = vor.u32 1.1754944e-38, %v1073
    %v1075 = vsel %vm1072, %v1074, %v1070
    %v1076 = vmul.f32 1.0, %v1075
    %v1077 = vtanh.pop %v1037
    %v1078 = vxor.u32 %v1038, 2147483648
    %v1079 = vmul.f32 %v1078, 1.442695
    %v1080 = vpow.pop %v1079
    %v1081 = vadd.f32 %v1080, 1.0
    %v1082 = vrcp.pop %v1081
    %v1083 = vmul.f32 %v1081, %v1082
    %v1084 = vsub.f32 1.0, %v1083
    %v1085 = vmul.f32 %v1082, %v1084
    %v1086 = vadd.f32 %v1082, %v1085
    %vm1087 = vweird.f32 %v1081
    %vm1088 = vweird.f32 %v1082
    %vm1089 = vmor %vm1087, %vm1088
    %v1090 = vsel %vm1089, %v1082, %v1086
    %v1091 = vand.u32 2147483647, %v1081
    %vm1092 = vcmp.eq.f32.partialorder %v1091, 8.507059e+37
    %v1093 = vand.u32 %v1081, 2147483648
    %v1094 = vor.u32 1.1754944e-38, %v1093
    %v1095 = vsel %vm1092, %v1094, %v1090
    %v1096 = vmul.f32 1.0, %v1095
    %v1097 = vmul.f32 %v1076, 0.0
    %v1098 = vmul.f32 %v1057, %v1077
    %v1099 = vadd.f32 %v1097, %v1098
    %v1100 = vtanh.pop %v1099
    %v1101 = vmul.f32 %v1096, %v1100
    %v1102 = vadd.f32 %v1101, %v1099
    %v1103 = vld [vmem:[#allocation12] sm:$0xff]
    %v1104 = vld [vmem:[#allocation12 + $0x8] sm:$0xff]
    %v1105 = vld [vmem:[#allocation12 + $0x10] sm:$0xff]
    %v1106 = vld [vmem:[#allocation12 + $0x18] sm:$0xff]
    %v1107 = vld [vmem:[#allocation12 + $0x20] sm:$0xff]
    %v1108 = vld [vmem:[#allocation12 + $0x28] sm:$0xff]
    %v1109 = vld [vmem:[#allocation12 + $0x30] sm:$0xff]
    %v1110 = vld [vmem:[#allocation12 + $0x38] sm:$0xff]
    %v1111 = vld [vmem:[#allocation12 + $0x40] sm:$0xff]
    %v1112 = vld [vmem:[#allocation12 + $0x48] sm:$0xff]
    %v1113 = vld [vmem:[#allocation12 + $0x50] sm:$0xff]
    %v1114 = vld [vmem:[#allocation12 + $0x58] sm:$0xff]
    %v1115 = vld [vmem:[#allocation12 + $0x60] sm:$0xff]
    %v1116 = vld [vmem:[#allocation12 + $0x68] sm:$0xff]
    %v1117 = vld [vmem:[#allocation12 + $0x70] sm:$0xff]
    %v1118 = vld [vmem:[#allocation12 + $0x78] sm:$0xff]
    %v1119 = vld [vmem:[#allocation12 + $0x80] sm:$0xff]
    %v1120 = vld [vmem:[#allocation12 + $0x88] sm:$0xff]
    %v1121 = vld [vmem:[#allocation12 + $0x90] sm:$0xff]
    %v1122 = vld [vmem:[#allocation12 + $0x98] sm:$0xff]
    %v1123 = vld [vmem:[#allocation12 + $0xa0] sm:$0xff]
    %v1124 = vld [vmem:[#allocation12 + $0xa8] sm:$0xff]
    %v1125 = vld [vmem:[#allocation12 + $0xb0] sm:$0xff]
    %v1126 = vld [vmem:[#allocation12 + $0xb8] sm:$0xff]
    %v1127 = vld [vmem:[#allocation12 + $0xc0] sm:$0xff]
    %v1128 = vld [vmem:[#allocation12 + $0xc8] sm:$0xff]
    %v1129 = vld [vmem:[#allocation12 + $0xd0] sm:$0xff]
    %v1130 = vld [vmem:[#allocation12 + $0xd8] sm:$0xff]
    %v1131 = vld [vmem:[#allocation12 + $0xe0] sm:$0xff]
    %v1132 = vld [vmem:[#allocation12 + $0xe8] sm:$0xff]
    %v1133 = vld [vmem:[#allocation12 + $0xf0] sm:$0xff]
    %v1134 = vld [vmem:[#allocation12 + $0xf8] sm:$0xff]
    %1135 = vmatpush.msra.mxu0 %v1133
    %1136 = vmatpush.msra.mxu0 %v1131
    %1137 = vmatpush.msra.mxu0 %v1129
    %1138 = vmatpush.msra.mxu0 %v1127
    %1139 = vmatpush.msra.mxu0 %v1125
    %1140 = vmatpush.msra.mxu0 %v1123
    %1141 = vmatpush.msra.mxu0 %v1121
    %1142 = vmatpush.msra.mxu0 %v1119
    %1143 = vmatpush.msra.mxu0 %v1117
    %1144 = vmatpush.msra.mxu0 %v1115
    %1145 = vmatpush.msra.mxu0 %v1113
    %1146 = vmatpush.msra.mxu0 %v1111
    %1147 = vmatpush.msra.mxu0 %v1109
    %1148 = vmatpush.msra.mxu0 %v1107
    %1149 = vmatpush.msra.mxu0 %v1105
    %1150 = vmatpush.msra.mxu0 %v1103
    %1151 = vmatmul.f32.gmra.mxu0 %v1102
    %v1152 = vpop.f32.mrf.mxu0
    %v1153 = vadd.f32 0.0, %v1152
    %1154 = vdwg.mxu0
    %1155 = vmatpush.msra.mxu0 %v1134
    %1156 = vmatpush.msra.mxu0 %v1132
    %1157 = vmatpush.msra.mxu0 %v1130
    %1158 = vmatpush.msra.mxu0 %v1128
    %1159 = vmatpush.msra.mxu0 %v1126
    %1160 = vmatpush.msra.mxu0 %v1124
    %1161 = vmatpush.msra.mxu0 %v1122
    %1162 = vmatpush.msra.mxu0 %v1120
    %1163 = vmatpush.msra.mxu0 %v1118
    %1164 = vmatpush.msra.mxu0 %v1116
    %1165 = vmatpush.msra.mxu0 %v1114
    %1166 = vmatpush.msra.mxu0 %v1112
    %1167 = vmatpush.msra.mxu0 %v1110
    %1168 = vmatpush.msra.mxu0 %v1108
    %1169 = vmatpush.msra.mxu0 %v1106
    %1170 = vmatpush.msra.mxu0 %v1104
    %1171 = vmatmul.f32.gmra.mxu0 %v1102
    %v1172 = vpop.f32.mrf.mxu0
    %v1173 = vadd.f32 0.0, %v1172
    %1174 = vdwg.mxu0
    %v1175 = vadd.f32 %v530, %v1153
    %v1176 = vadd.f32 %v571, %v1173
    %v1177 = vmul.f32 %v1176, 0.5
    %v1178 = vmul.f32 %v1177, 1.442695
    %v1179 = vpow.pop %v1178
    %v1180 = vmul.f32 %v1179, %v1179
    %v1181 = vmul.f32 %v1179, %v592
    %v1182 = vadd.f32 %v1175, %v1181
    %v1183 = vld [vmem:[%s9] sm:$0xff]
    %v1184 = vld [vmem:[%s9 + $0x8] sm:$0xff]
    %v1185 = vld [vmem:[%s9 + $0x10] sm:$0xff]
    %v1186 = vld [vmem:[%s9 + $0x18] sm:$0xff]
    %v1187 = vld [vmem:[%s9 + $0x20] sm:$0xff]
    %v1188 = vld [vmem:[%s9 + $0x28] sm:$0xff]
    %v1189 = vld [vmem:[%s9 + $0x30] sm:$0xff]
    %v1190 = vld [vmem:[%s9 + $0x38] sm:$0xff]
    %v1191 = vld [vmem:[%s9 + $0x40] sm:$0xff]
    %v1192 = vld [vmem:[%s9 + $0x48] sm:$0xff]
    %v1193 = vld [vmem:[%s9 + $0x50] sm:$0xff]
    %v1194 = vld [vmem:[%s9 + $0x58] sm:$0xff]
    %v1195 = vld [vmem:[%s9 + $0x60] sm:$0xff]
    %v1196 = vld [vmem:[%s9 + $0x68] sm:$0xff]
    %v1197 = vld [vmem:[%s9 + $0x70] sm:$0xff]
    %v1198 = vld [vmem:[%s9 + $0x78] sm:$0xff]
    %v1199 = vld [vmem:[%s10] sm:$0x1]
    %v1201 = vperm.slane %v1199, 0
    %1203 = vmatpush.msra.mxu0 %v1198
    %1204 = vmatpush.msra.mxu0 %v1197
    %1205 = vmatpush.msra.mxu0 %v1196
    %1206 = vmatpush.msra.mxu0 %v1195
    %1207 = vmatpush.msra.mxu0 %v1194
    %1208 = vmatpush.msra.mxu0 %v1193
    %1209 = vmatpush.msra.mxu0 %v1192
    %1210 = vmatpush.msra.mxu0 %v1191
    %1211 = vmatpush.msra.mxu0 %v1190
    %1212 = vmatpush.msra.mxu0 %v1189
    %1213 = vmatpush.msra.mxu0 %v1188
    %1214 = vmatpush.msra.mxu0 %v1187
    %1215 = vmatpush.msra.mxu0 %v1186
    %1216 = vmatpush.msra.mxu0 %v1185
    %1217 = vmatpush.msra.mxu0 %v1184
    %1218 = vmatpush.msra.mxu0 %v1183
    %1219 = vmatmul.f32.gmra.mxu0 %v1182
    %v1220 = vpop.f32.mrf.mxu0
    %v1221 = vadd.f32 %v1201, %v1220
    %1222 = vdwg.mxu0
    %v1223 = vmax.f32 %v1221, 0.0
    %vm1224 = vcmp.ne.f32.partialorder %v1221, %v1221
    %v1225 = vadd.f32 %v1221, 0.0
    %v1226 = vand.u32 2147483647, %v1221
    %v1227 = vsub.f32 0.0, %v1226
    %v1228 = vmul.f32 %v1227, 1.442695
    %v1229 = vpow.pop %v1228
    %v1230 = vadd.f32 %v1229, 1.0
    %v1231 = vlog2.pop %v1230
    %v1232 = vmul.f32 %v1231, 0.6931472
    %v1233 = vmul.f32 -0.5, %v1229
    %v1234 = vadd.f32 %v1233, 1.0
    %v1235 = vmul.f32 %v1234, %v1229
    %v1236 = vand.u32 2147483647, %v1229
    %vm1237 = vcmp.lt.f32.partialorder %v1236, 0.0004427343
    %v1238 = vsel %vm1237, %v1235, %v1232
    %v1239 = vadd.f32 %v1223, %v1238
    %v1240 = vsel %vm1224, %v1225, %v1239
    %v1241 = vadd.f32 %v1176, 1.0
    %v1242 = vmul.f32 %v1175, %v1175
    %v1243 = vsub.f32 %v1241, %v1242
    %v1244 = vsub.f32 %v1243, %v1180
    %v1245 = vadd.f32 %v741, %v1244
    %1246 = vst [vmem:[#allocation3 + $0x8] sm:$0xff] %v1240
    %1247 = vst [vmem:[#allocation2] sm:$0xff] %v1240
    %1248 = vst [vmem:[#allocation2 + $0x8] sm:$0xff] %v1101
    %v1249 = vld [vmem:[#allocation2] sm:$0xff]
    %v1250 = vld [vmem:[#allocation2 + $0x8] sm:$0xff]
    %v1251 = vld [vmem:[#allocation14] sm:$0xff]
    %v1252 = vld [vmem:[#allocation14 + $0x8] sm:$0xff]
    %v1253 = vld [vmem:[#allocation14 + $0x10] sm:$0xff]
    %v1254 = vld [vmem:[#allocation14 + $0x18] sm:$0xff]
    %v1255 = vld [vmem:[#allocation14 + $0x20] sm:$0xff]
    %v1256 = vld [vmem:[#allocation14 + $0x28] sm:$0xff]
    %v1257 = vld [vmem:[#allocation14 + $0x30] sm:$0xff]
    %v1258 = vld [vmem:[#allocation14 + $0x38] sm:$0xff]
    %v1259 = vld [vmem:[#allocation14 + $0x40] sm:$0xff]
    %v1260 = vld [vmem:[#allocation14 + $0x48] sm:$0xff]
    %v1261 = vld [vmem:[#allocation14 + $0x50] sm:$0xff]
    %v1262 = vld [vmem:[#allocation14 + $0x58] sm:$0xff]
    %v1263 = vld [vmem:[#allocation14 + $0x60] sm:$0xff]
    %v1264 = vld [vmem:[#allocation14 + $0x68] sm:$0xff]
    %v1265 = vld [vmem:[#allocation14 + $0x70] sm:$0xff]
    %v1266 = vld [vmem:[#allocation14 + $0x78] sm:$0xff]
    %v1267 = vld [vmem:[#allocation14 + $0x80] sm:$0xff]
    %v1268 = vld [vmem:[#allocation14 + $0x88] sm:$0xff]
    %v1269 = vld [vmem:[#allocation14 + $0x90] sm:$0xff]
    %v1270 = vld [vmem:[#allocation14 + $0x98] sm:$0xff]
    %v1271 = vld [vmem:[#allocation14 + $0xa0] sm:$0xff]
    %v1272 = vld [vmem:[#allocation14 + $0xa8] sm:$0xff]
    %v1273 = vld [vmem:[#allocation14 + $0xb0] sm:$0xff]
    %v1274 = vld [vmem:[#allocation14 + $0xb8] sm:$0xff]
    %v1275 = vld [vmem:[#allocation14 + $0xc0] sm:$0xff]
    %v1276 = vld [vmem:[#allocation14 + $0xc8] sm:$0xff]
    %v1277 = vld [vmem:[#allocation14 + $0xd0] sm:$0xff]
    %v1278 = vld [vmem:[#allocation14 + $0xd8] sm:$0xff]
    %v1279 = vld [vmem:[#allocation14 + $0xe0] sm:$0xff]
    %v1280 = vld [vmem:[#allocation14 + $0xe8] sm:$0xff]
    %v1281 = vld [vmem:[#allocation14 + $0xf0] sm:$0xff]
    %v1282 = vld [vmem:[#allocation14 + $0xf8] sm:$0xff]
    %v1283 = vld [vmem:[#allocation14 + $0x100] sm:$0xff]
    %v1284 = vld [vmem:[#allocation14 + $0x108] sm:$0xff]
    %v1285 = vld [vmem:[#allocation14 + $0x110] sm:$0xff]
    %v1286 = vld [vmem:[#allocation14 + $0x118] sm:$0xff]
    %v1287 = vld [vmem:[#allocation14 + $0x120] sm:$0xff]
    %v1288 = vld [vmem:[#allocation14 + $0x128] sm:$0xff]
    %v1289 = vld [vmem:[#allocation14 + $0x130] sm:$0xff]
    %v1290 = vld [vmem:[#allocation14 + $0x138] sm:$0xff]
    %v1291 = vld [vmem:[#allocation14 + $0x140] sm:$0xff]
    %v1292 = vld [vmem:[#allocation14 + $0x148] sm:$0xff]
    %v1293 = vld [vmem:[#allocation14 + $0x150] sm:$0xff]
    %v1294 = vld [vmem:[#allocation14 + $0x158] sm:$0xff]
    %v1295 = vld [vmem:[#allocation14 + $0x160] sm:$0xff]
    %v1296 = vld [vmem:[#allocation14 + $0x168] sm:$0xff]
    %v1297 = vld [vmem:[#allocation14 + $0x170] sm:$0xff]
    %v1298 = vld [vmem:[#allocation14 + $0x178] sm:$0xff]
    %v1299 = vld [vmem:[#allocation14 + $0x180] sm:$0xff]
    %v1300 = vld [vmem:[#allocation14 + $0x188] sm:$0xff]
    %v1301 = vld [vmem:[#allocation14 + $0x190] sm:$0xff]
    %v1302 = vld [vmem:[#allocation14 + $0x198] sm:$0xff]
    %v1303 = vld [vmem:[#allocation14 + $0x1a0] sm:$0xff]
    %v1304 = vld [vmem:[#allocation14 + $0x1a8] sm:$0xff]
    %v1305 = vld [vmem:[#allocation14 + $0x1b0] sm:$0xff]
    %v1306 = vld [vmem:[#allocation14 + $0x1b8] sm:$0xff]
    %v1307 = vld [vmem:[#allocation14 + $0x1c0] sm:$0xff]
    %v1308 = vld [vmem:[#allocation14 + $0x1c8] sm:$0xff]
    %v1309 = vld [vmem:[#allocation14 + $0x1d0] sm:$0xff]
    %v1310 = vld [vmem:[#allocation14 + $0x1d8] sm:$0xff]
    %v1311 = vld [vmem:[#allocation14 + $0x1e0] sm:$0xff]
    %v1312 = vld [vmem:[#allocation14 + $0x1e8] sm:$0xff]
    %v1313 = vld [vmem:[#allocation14 + $0x1f0] sm:$0xff]
    %v1314 = vld [vmem:[#allocation14 + $0x1f8] sm:$0xff]
    %v1315 = vld [vmem:[#allocation14 + $0x200] sm:$0xff]
    %v1316 = vld [vmem:[#allocation14 + $0x208] sm:$0xff]
    %v1317 = vld [vmem:[#allocation14 + $0x210] sm:$0xff]
    %v1318 = vld [vmem:[#allocation14 + $0x218] sm:$0xff]
    %v1319 = vld [vmem:[#allocation14 + $0x220] sm:$0xff]
    %v1320 = vld [vmem:[#allocation14 + $0x228] sm:$0xff]
    %v1321 = vld [vmem:[#allocation14 + $0x230] sm:$0xff]
    %v1322 = vld [vmem:[#allocation14 + $0x238] sm:$0xff]
    %v1323 = vld [vmem:[#allocation14 + $0x240] sm:$0xff]
    %v1324 = vld [vmem:[#allocation14 + $0x248] sm:$0xff]
    %v1325 = vld [vmem:[#allocation14 + $0x250] sm:$0xff]
    %v1326 = vld [vmem:[#allocation14 + $0x258] sm:$0xff]
    %v1327 = vld [vmem:[#allocation14 + $0x260] sm:$0xff]
    %v1328 = vld [vmem:[#allocation14 + $0x268] sm:$0xff]
    %v1329 = vld [vmem:[#allocation14 + $0x270] sm:$0xff]
    %v1330 = vld [vmem:[#allocation14 + $0x278] sm:$0xff]
    %v1331 = vld [vmem:[#allocation14 + $0x280] sm:$0xff]
    %v1332 = vld [vmem:[#allocation14 + $0x288] sm:$0xff]
    %v1333 = vld [vmem:[#allocation14 + $0x290] sm:$0xff]
    %v1334 = vld [vmem:[#allocation14 + $0x298] sm:$0xff]
    %v1335 = vld [vmem:[#allocation14 + $0x2a0] sm:$0xff]
    %v1336 = vld [vmem:[#allocation14 + $0x2a8] sm:$0xff]
    %v1337 = vld [vmem:[#allocation14 + $0x2b0] sm:$0xff]
    %v1338 = vld [vmem:[#allocation14 + $0x2b8] sm:$0xff]
    %v1339 = vld [vmem:[#allocation14 + $0x2c0] sm:$0xff]
    %v1340 = vld [vmem:[#allocation14 + $0x2c8] sm:$0xff]
    %v1341 = vld [vmem:[#allocation14 + $0x2d0] sm:$0xff]
    %v1342 = vld [vmem:[#allocation14 + $0x2d8] sm:$0xff]
    %v1343 = vld [vmem:[#allocation14 + $0x2e0] sm:$0xff]
    %v1344 = vld [vmem:[#allocation14 + $0x2e8] sm:$0xff]
    %v1345 = vld [vmem:[#allocation14 + $0x2f0] sm:$0xff]
    %v1346 = vld [vmem:[#allocation14 + $0x2f8] sm:$0xff]
    %v1347 = vld [vmem:[#allocation14 + $0x300] sm:$0xff]
    %v1348 = vld [vmem:[#allocation14 + $0x308] sm:$0xff]
    %v1349 = vld [vmem:[#allocation14 + $0x310] sm:$0xff]
    %v1350 = vld [vmem:[#allocation14 + $0x318] sm:$0xff]
    %v1351 = vld [vmem:[#allocation14 + $0x320] sm:$0xff]
    %v1352 = vld [vmem:[#allocation14 + $0x328] sm:$0xff]
    %v1353 = vld [vmem:[#allocation14 + $0x330] sm:$0xff]
    %v1354 = vld [vmem:[#allocation14 + $0x338] sm:$0xff]
    %v1355 = vld [vmem:[#allocation14 + $0x340] sm:$0xff]
    %v1356 = vld [vmem:[#allocation14 + $0x348] sm:$0xff]
    %v1357 = vld [vmem:[#allocation14 + $0x350] sm:$0xff]
    %v1358 = vld [vmem:[#allocation14 + $0x358] sm:$0xff]
    %v1359 = vld [vmem:[#allocation14 + $0x360] sm:$0xff]
    %v1360 = vld [vmem:[#allocation14 + $0x368] sm:$0xff]
    %v1361 = vld [vmem:[#allocation14 + $0x370] sm:$0xff]
    %v1362 = vld [vmem:[#allocation14 + $0x378] sm:$0xff]
    %v1363 = vld [vmem:[#allocation14 + $0x380] sm:$0xff]
    %v1364 = vld [vmem:[#allocation14 + $0x388] sm:$0xff]
    %v1365 = vld [vmem:[#allocation14 + $0x390] sm:$0xff]
    %v1366 = vld [vmem:[#allocation14 + $0x398] sm:$0xff]
    %v1367 = vld [vmem:[#allocation14 + $0x3a0] sm:$0xff]
    %v1368 = vld [vmem:[#allocation14 + $0x3a8] sm:$0xff]
    %v1369 = vld [vmem:[#allocation14 + $0x3b0] sm:$0xff]
    %v1370 = vld [vmem:[#allocation14 + $0x3b8] sm:$0xff]
    %v1371 = vld [vmem:[#allocation14 + $0x3c0] sm:$0xff]
    %v1372 = vld [vmem:[#allocation14 + $0x3c8] sm:$0xff]
    %v1373 = vld [vmem:[#allocation14 + $0x3d0] sm:$0xff]
    %v1374 = vld [vmem:[#allocation14 + $0x3d8] sm:$0xff]
    %v1375 = vld [vmem:[#allocation14 + $0x3e0] sm:$0xff]
    %v1376 = vld [vmem:[#allocation14 + $0x3e8] sm:$0xff]
    %v1377 = vld [vmem:[#allocation14 + $0x3f0] sm:$0xff]
    %v1378 = vld [vmem:[#allocation14 + $0x3f8] sm:$0xff]
    %1379 = vmatpush.msra.mxu0 %v1311
    %1380 = vmatpush.msra.mxu0 %v1307
    %1381 = vmatpush.msra.mxu0 %v1303
    %1382 = vmatpush.msra.mxu0 %v1299
    %1383 = vmatpush.msra.mxu0 %v1295
    %1384 = vmatpush.msra.mxu0 %v1291
    %1385 = vmatpush.msra.mxu0 %v1287
    %1386 = vmatpush.msra.mxu0 %v1283
    %1387 = vmatpush.msra.mxu0 %v1279
    %1388 = vmatpush.msra.mxu0 %v1275
    %1389 = vmatpush.msra.mxu0 %v1271
    %1390 = vmatpush.msra.mxu0 %v1267
    %1391 = vmatpush.msra.mxu0 %v1263
    %1392 = vmatpush.msra.mxu0 %v1259
    %1393 = vmatpush.msra.mxu0 %v1255
    %1394 = vmatpush.msra.mxu0 %v1251
    %1395 = vmatmul.f32.gmra.mxu0 %v1249
    %v1396 = vpop.f32.mrf.mxu0
    %v1397 = vadd.f32 0.0, %v1396
    %1398 = vdwg.mxu0
    %1399 = vmatpush.msra.mxu0 %v1375
    %1400 = vmatpush.msra.mxu0 %v1371
    %1401 = vmatpush.msra.mxu0 %v1367
    %1402 = vmatpush.msra.mxu0 %v1363
    %1403 = vmatpush.msra.mxu0 %v1359
    %1404 = vmatpush.msra.mxu0 %v1355
    %1405 = vmatpush.msra.mxu0 %v1351
    %1406 = vmatpush.msra.mxu0 %v1347
    %1407 = vmatpush.msra.mxu0 %v1343
    %1408 = vmatpush.msra.mxu0 %v1339
    %1409 = vmatpush.msra.mxu0 %v1335
    %1410 = vmatpush.msra.mxu0 %v1331
    %1411 = vmatpush.msra.mxu0 %v1327
    %1412 = vmatpush.msra.mxu0 %v1323
    %1413 = vmatpush.msra.mxu0 %v1319
    %1414 = vmatpush.msra.mxu0 %v1315
    %1415 = vmatmul.f32.gmra.mxu0 %v1250
    %v1416 = vpop.f32.mrf.mxu0
    %v1417 = vadd.f32 %v1397, %v1416
    %1418 = vdwg.mxu0
    %1419 = vmatpush.msra.mxu0 %v1312
    %1420 = vmatpush.msra.mxu0 %v1308
    %1421 = vmatpush.msra.mxu0 %v1304
    %1422 = vmatpush.msra.mxu0 %v1300
    %1423 = vmatpush.msra.mxu0 %v1296
    %1424 = vmatpush.msra.mxu0 %v1292
    %1425 = vmatpush.msra.mxu0 %v1288
    %1426 = vmatpush.msra.mxu0 %v1284
    %1427 = vmatpush.msra.mxu0 %v1280
    %1428 = vmatpush.msra.mxu0 %v1276
    %1429 = vmatpush.msra.mxu0 %v1272
    %1430 = vmatpush.msra.mxu0 %v1268
    %1431 = vmatpush.msra.mxu0 %v1264
    %1432 = vmatpush.msra.mxu0 %v1260
    %1433 = vmatpush.msra.mxu0 %v1256
    %1434 = vmatpush.msra.mxu0 %v1252
    %1435 = vmatmul.f32.gmra.mxu0 %v1249
    %v1436 = vpop.f32.mrf.mxu0
    %v1437 = vadd.f32 0.0, %v1436
    %1438 = vdwg.mxu0
    %1439 = vmatpush.msra.mxu0 %v1376
    %1440 = vmatpush.msra.mxu0 %v1372
    %1441 = vmatpush.msra.mxu0 %v1368
    %1442 = vmatpush.msra.mxu0 %v1364
    %1443 = vmatpush.msra.mxu0 %v1360
    %1444 = vmatpush.msra.mxu0 %v1356
    %1445 = vmatpush.msra.mxu0 %v1352
    %1446 = vmatpush.msra.mxu0 %v1348
    %1447 = vmatpush.msra.mxu0 %v1344
    %1448 = vmatpush.msra.mxu0 %v1340
    %1449 = vmatpush.msra.mxu0 %v1336
    %1450 = vmatpush.msra.mxu0 %v1332
    %1451 = vmatpush.msra.mxu0 %v1328
    %1452 = vmatpush.msra.mxu0 %v1324
    %1453 = vmatpush.msra.mxu0 %v1320
    %1454 = vmatpush.msra.mxu0 %v1316
    %1455 = vmatmul.f32.gmra.mxu0 %v1250
    %v1456 = vpop.f32.mrf.mxu0
    %v1457 = vadd.f32 %v1437, %v1456
    %1458 = vdwg.mxu0
    %1459 = vmatpush.msra.mxu0 %v1313
    %1460 = vmatpush.msra.mxu0 %v1309
    %1461 = vmatpush.msra.mxu0 %v1305
    %1462 = vmatpush.msra.mxu0 %v1301
    %1463 = vmatpush.msra.mxu0 %v1297
    %1464 = vmatpush.msra.mxu0 %v1293
    %1465 = vmatpush.msra.mxu0 %v1289
    %1466 = vmatpush.msra.mxu0 %v1285
    %1467 = vmatpush.msra.mxu0 %v1281
    %1468 = vmatpush.msra.mxu0 %v1277
    %1469 = vmatpush.msra.mxu0 %v1273
    %1470 = vmatpush.msra.mxu0 %v1269
    %1471 = vmatpush.msra.mxu0 %v1265
    %1472 = vmatpush.msra.mxu0 %v1261
    %1473 = vmatpush.msra.mxu0 %v1257
    %1474 = vmatpush.msra.mxu0 %v1253
    %1475 = vmatmul.f32.gmra.mxu0 %v1249
    %v1476 = vpop.f32.mrf.mxu0
    %v1477 = vadd.f32 0.0, %v1476
    %1478 = vdwg.mxu0
    %1479 = vmatpush.msra.mxu0 %v1377
    %1480 = vmatpush.msra.mxu0 %v1373
    %1481 = vmatpush.msra.mxu0 %v1369
    %1482 = vmatpush.msra.mxu0 %v1365
    %1483 = vmatpush.msra.mxu0 %v1361
    %1484 = vmatpush.msra.mxu0 %v1357
    %1485 = vmatpush.msra.mxu0 %v1353
    %1486 = vmatpush.msra.mxu0 %v1349
    %1487 = vmatpush.msra.mxu0 %v1345
    %1488 = vmatpush.msra.mxu0 %v1341
    %1489 = vmatpush.msra.mxu0 %v1337
    %1490 = vmatpush.msra.mxu0 %v1333
    %1491 = vmatpush.msra.mxu0 %v1329
    %1492 = vmatpush.msra.mxu0 %v1325
    %1493 = vmatpush.msra.mxu0 %v1321
    %1494 = vmatpush.msra.mxu0 %v1317
    %1495 = vmatmul.f32.gmra.mxu0 %v1250
    %v1496 = vpop.f32.mrf.mxu0
    %v1497 = vadd.f32 %v1477, %v1496
    %1498 = vdwg.mxu0
    %1499 = vmatpush.msra.mxu0 %v1314
    %1500 = vmatpush.msra.mxu0 %v1310
    %1501 = vmatpush.msra.mxu0 %v1306
    %1502 = vmatpush.msra.mxu0 %v1302
    %1503 = vmatpush.msra.mxu0 %v1298
    %1504 = vmatpush.msra.mxu0 %v1294
    %1505 = vmatpush.msra.mxu0 %v1290
    %1506 = vmatpush.msra.mxu0 %v1286
    %1507 = vmatpush.msra.mxu0 %v1282
    %1508 = vmatpush.msra.mxu0 %v1278
    %1509 = vmatpush.msra.mxu0 %v1274
    %1510 = vmatpush.msra.mxu0 %v1270
    %1511 = vmatpush.msra.mxu0 %v1266
    %1512 = vmatpush.msra.mxu0 %v1262
    %1513 = vmatpush.msra.mxu0 %v1258
    %1514 = vmatpush.msra.mxu0 %v1254
    %1515 = vmatmul.f32.gmra.mxu0 %v1249
    %v1516 = vpop.f32.mrf.mxu0
    %v1517 = vadd.f32 0.0, %v1516
    %1518 = vdwg.mxu0
    %1519 = vmatpush.msra.mxu0 %v1378
    %1520 = vmatpush.msra.mxu0 %v1374
    %1521 = vmatpush.msra.mxu0 %v1370
    %1522 = vmatpush.msra.mxu0 %v1366
    %1523 = vmatpush.msra.mxu0 %v1362
    %1524 = vmatpush.msra.mxu0 %v1358
    %1525 = vmatpush.msra.mxu0 %v1354
    %1526 = vmatpush.msra.mxu0 %v1350
    %1527 = vmatpush.msra.mxu0 %v1346
    %1528 = vmatpush.msra.mxu0 %v1342
    %1529 = vmatpush.msra.mxu0 %v1338
    %1530 = vmatpush.msra.mxu0 %v1334
    %1531 = vmatpush.msra.mxu0 %v1330
    %1532 = vmatpush.msra.mxu0 %v1326
    %1533 = vmatpush.msra.mxu0 %v1322
    %1534 = vmatpush.msra.mxu0 %v1318
    %1535 = vmatmul.f32.gmra.mxu0 %v1250
    %v1536 = vpop.f32.mrf.mxu0
    %v1537 = vadd.f32 %v1517, %v1536
    %1538 = vdwg.mxu0
    %v1539 = vadd.f32 %v332, %v1417
    %v1540 = vadd.f32 %v372, %v1457
    %v1541 = vadd.f32 %v412, %v1497
    %v1542 = vadd.f32 %v452, %v1537
    %v1543 = vxor.u32 %v1539, 2147483648
    %v1544 = vmul.f32 %v1543, 1.442695
    %v1545 = vpow.pop %v1544
    %v1546 = vadd.f32 %v1545, 1.0
    %v1547 = vrcp.pop %v1546
    %v1548 = vmul.f32 %v1546, %v1547
    %v1549 = vsub.f32 1.0, %v1548
    %v1550 = vmul.f32 %v1547, %v1549
    %v1551 = vadd.f32 %v1547, %v1550
    %vm1552 = vweird.f32 %v1546
    %vm1553 = vweird.f32 %v1547
    %vm1554 = vmor %vm1552, %vm1553
    %v1555 = vsel %vm1554, %v1547, %v1551
    %v1556 = vand.u32 2147483647, %v1546
    %vm1557 = vcmp.eq.f32.partialorder %v1556, 8.507059e+37
    %v1558 = vand.u32 %v1546, 2147483648
    %v1559 = vor.u32 1.1754944e-38, %v1558
    %v1560 = vsel %vm1557, %v1559, %v1555
    %v1561 = vmul.f32 1.0, %v1560
    %v1562 = vxor.u32 %v1540, 2147483648
    %v1563 = vmul.f32 %v1562, 1.442695
    %v1564 = vpow.pop %v1563
    %v1565 = vadd.f32 %v1564, 1.0
    %v1566 = vrcp.pop %v1565
    %v1567 = vmul.f32 %v1565, %v1566
    %v1568 = vsub.f32 1.0, %v1567
    %v1569 = vmul.f32 %v1566, %v1568
    %v1570 = vadd.f32 %v1566, %v1569
    %vm1571 = vweird.f32 %v1565
    %vm1572 = vweird.f32 %v1566
    %vm1573 = vmor %vm1571, %vm1572
    %v1574 = vsel %vm1573, %v1566, %v1570
    %v1575 = vand.u32 2147483647, %v1565
    %vm1576 = vcmp.eq.f32.partialorder %v1575, 8.507059e+37
    %v1577 = vand.u32 %v1565, 2147483648
    %v1578 = vor.u32 1.1754944e-38, %v1577
    %v1579 = vsel %vm1576, %v1578, %v1574
    %v1580 = vmul.f32 1.0, %v1579
    %v1581 = vtanh.pop %v1541
    %v1582 = vxor.u32 %v1542, 2147483648
    %v1583 = vmul.f32 %v1582, 1.442695
    %v1584 = vpow.pop %v1583
    %v1585 = vadd.f32 %v1584, 1.0
    %v1586 = vrcp.pop %v1585
    %v1587 = vmul.f32 %v1585, %v1586
    %v1588 = vsub.f32 1.0, %v1587
    %v1589 = vmul.f32 %v1586, %v1588
    %v1590 = vadd.f32 %v1586, %v1589
    %vm1591 = vweird.f32 %v1585
    %vm1592 = vweird.f32 %v1586
    %vm1593 = vmor %vm1591, %vm1592
    %v1594 = vsel %vm1593, %v1586, %v1590
    %v1595 = vand.u32 2147483647, %v1585
    %vm1596 = vcmp.eq.f32.partialorder %v1595, 8.507059e+37
    %v1597 = vand.u32 %v1585, 2147483648
    %v1598 = vor.u32 1.1754944e-38, %v1597
    %v1599 = vsel %vm1596, %v1598, %v1594
    %v1600 = vmul.f32 1.0, %v1599
    %v1601 = vmul.f32 %v1580, %v1099
    %v1602 = vmul.f32 %v1561, %v1581
    %v1603 = vadd.f32 %v1601, %v1602
    %v1604 = vtanh.pop %v1603
    %v1605 = vmul.f32 %v1600, %v1604
    %v1606 = vadd.f32 %v1605, %v1603
    %v1607 = vld [vmem:[#allocation12] sm:$0xff]
    %v1608 = vld [vmem:[#allocation12 + $0x8] sm:$0xff]
    %v1609 = vld [vmem:[#allocation12 + $0x10] sm:$0xff]
    %v1610 = vld [vmem:[#allocation12 + $0x18] sm:$0xff]
    %v1611 = vld [vmem:[#allocation12 + $0x20] sm:$0xff]
    %v1612 = vld [vmem:[#allocation12 + $0x28] sm:$0xff]
    %v1613 = vld [vmem:[#allocation12 + $0x30] sm:$0xff]
    %v1614 = vld [vmem:[#allocation12 + $0x38] sm:$0xff]
    %v1615 = vld [vmem:[#allocation12 + $0x40] sm:$0xff]
    %v1616 = vld [vmem:[#allocation12 + $0x48] sm:$0xff]
    %v1617 = vld [vmem:[#allocation12 + $0x50] sm:$0xff]
    %v1618 = vld [vmem:[#allocation12 + $0x58] sm:$0xff]
    %v1619 = vld [vmem:[#allocation12 + $0x60] sm:$0xff]
    %v1620 = vld [vmem:[#allocation12 + $0x68] sm:$0xff]
    %v1621 = vld [vmem:[#allocation12 + $0x70] sm:$0xff]
    %v1622 = vld [vmem:[#allocation12 + $0x78] sm:$0xff]
    %v1623 = vld [vmem:[#allocation12 + $0x80] sm:$0xff]
    %v1624 = vld [vmem:[#allocation12 + $0x88] sm:$0xff]
    %v1625 = vld [vmem:[#allocation12 + $0x90] sm:$0xff]
    %v1626 = vld [vmem:[#allocation12 + $0x98] sm:$0xff]
    %v1627 = vld [vmem:[#allocation12 + $0xa0] sm:$0xff]
    %v1628 = vld [vmem:[#allocation12 + $0xa8] sm:$0xff]
    %v1629 = vld [vmem:[#allocation12 + $0xb0] sm:$0xff]
    %v1630 = vld [vmem:[#allocation12 + $0xb8] sm:$0xff]
    %v1631 = vld [vmem:[#allocation12 + $0xc0] sm:$0xff]
    %v1632 = vld [vmem:[#allocation12 + $0xc8] sm:$0xff]
    %v1633 = vld [vmem:[#allocation12 + $0xd0] sm:$0xff]
    %v1634 = vld [vmem:[#allocation12 + $0xd8] sm:$0xff]
    %v1635 = vld [vmem:[#allocation12 + $0xe0] sm:$0xff]
    %v1636 = vld [vmem:[#allocation12 + $0xe8] sm:$0xff]
    %v1637 = vld [vmem:[#allocation12 + $0xf0] sm:$0xff]
    %v1638 = vld [vmem:[#allocation12 + $0xf8] sm:$0xff]
    %1639 = vmatpush.msra.mxu0 %v1637
    %1640 = vmatpush.msra.mxu0 %v1635
    %1641 = vmatpush.msra.mxu0 %v1633
    %1642 = vmatpush.msra.mxu0 %v1631
    %1643 = vmatpush.msra.mxu0 %v1629
    %1644 = vmatpush.msra.mxu0 %v1627
    %1645 = vmatpush.msra.mxu0 %v1625
    %1646 = vmatpush.msra.mxu0 %v1623
    %1647 = vmatpush.msra.mxu0 %v1621
    %1648 = vmatpush.msra.mxu0 %v1619
    %1649 = vmatpush.msra.mxu0 %v1617
    %1650 = vmatpush.msra.mxu0 %v1615
    %1651 = vmatpush.msra.mxu0 %v1613
    %1652 = vmatpush.msra.mxu0 %v1611
    %1653 = vmatpush.msra.mxu0 %v1609
    %1654 = vmatpush.msra.mxu0 %v1607
    %1655 = vmatmul.f32.gmra.mxu0 %v1606
    %v1656 = vpop.f32.mrf.mxu0
    %v1657 = vadd.f32 0.0, %v1656
    %1658 = vdwg.mxu0
    %1659 = vmatpush.msra.mxu0 %v1638
    %1660 = vmatpush.msra.mxu0 %v1636
    %1661 = vmatpush.msra.mxu0 %v1634
    %1662 = vmatpush.msra.mxu0 %v1632
    %1663 = vmatpush.msra.mxu0 %v1630
    %1664 = vmatpush.msra.mxu0 %v1628
    %1665 = vmatpush.msra.mxu0 %v1626
    %1666 = vmatpush.msra.mxu0 %v1624
    %1667 = vmatpush.msra.mxu0 %v1622
    %1668 = vmatpush.msra.mxu0 %v1620
    %1669 = vmatpush.msra.mxu0 %v1618
    %1670 = vmatpush.msra.mxu0 %v1616
    %1671 = vmatpush.msra.mxu0 %v1614
    %1672 = vmatpush.msra.mxu0 %v1612
    %1673 = vmatpush.msra.mxu0 %v1610
    %1674 = vmatpush.msra.mxu0 %v1608
    %1675 = vmatmul.f32.gmra.mxu0 %v1606
    %v1676 = vpop.f32.mrf.mxu0
    %v1677 = vadd.f32 0.0, %v1676
    %1678 = vdwg.mxu0
    %v1679 = vadd.f32 %v533, %v1657
    %v1680 = vadd.f32 %v574, %v1677
    %v1681 = vmul.f32 %v1680, 0.5
    %v1682 = vmul.f32 %v1681, 1.442695
    %v1683 = vpow.pop %v1682
    %v1684 = vmul.f32 %v1683, %v1683
    %v1685 = vmul.f32 %v1683, %v593
    %v1686 = vadd.f32 %v1679, %v1685
    %v1687 = vld [vmem:[%s9] sm:$0xff]
    %v1688 = vld [vmem:[%s9 + $0x8] sm:$0xff]
    %v1689 = vld [vmem:[%s9 + $0x10] sm:$0xff]
    %v1690 = vld [vmem:[%s9 + $0x18] sm:$0xff]
    %v1691 = vld [vmem:[%s9 + $0x20] sm:$0xff]
    %v1692 = vld [vmem:[%s9 + $0x28] sm:$0xff]
    %v1693 = vld [vmem:[%s9 + $0x30] sm:$0xff]
    %v1694 = vld [vmem:[%s9 + $0x38] sm:$0xff]
    %v1695 = vld [vmem:[%s9 + $0x40] sm:$0xff]
    %v1696 = vld [vmem:[%s9 + $0x48] sm:$0xff]
    %v1697 = vld [vmem:[%s9 + $0x50] sm:$0xff]
    %v1698 = vld [vmem:[%s9 + $0x58] sm:$0xff]
    %v1699 = vld [vmem:[%s9 + $0x60] sm:$0xff]
    %v1700 = vld [vmem:[%s9 + $0x68] sm:$0xff]
    %v1701 = vld [vmem:[%s9 + $0x70] sm:$0xff]
    %v1702 = vld [vmem:[%s9 + $0x78] sm:$0xff]
    %v1703 = vld [vmem:[%s10] sm:$0x1]
    %v1705 = vperm.slane %v1703, 0
    %1707 = vmatpush.msra.mxu0 %v1702
    %1708 = vmatpush.msra.mxu0 %v1701
    %1709 = vmatpush.msra.mxu0 %v1700
    %1710 = vmatpush.msra.mxu0 %v1699
    %1711 = vmatpush.msra.mxu0 %v1698
    %1712 = vmatpush.msra.mxu0 %v1697
    %1713 = vmatpush.msra.mxu0 %v1696
    %1714 = vmatpush.msra.mxu0 %v1695
    %1715 = vmatpush.msra.mxu0 %v1694
    %1716 = vmatpush.msra.mxu0 %v1693
    %1717 = vmatpush.msra.mxu0 %v1692
    %1718 = vmatpush.msra.mxu0 %v1691
    %1719 = vmatpush.msra.mxu0 %v1690
    %1720 = vmatpush.msra.mxu0 %v1689
    %1721 = vmatpush.msra.mxu0 %v1688
    %1722 = vmatpush.msra.mxu0 %v1687
    %1723 = vmatmul.f32.gmra.mxu0 %v1686
    %v1724 = vpop.f32.mrf.mxu0
    %v1725 = vadd.f32 %v1705, %v1724
    %1726 = vdwg.mxu0
    %v1727 = vmax.f32 %v1725, 0.0
    %vm1728 = vcmp.ne.f32.partialorder %v1725, %v1725
    %v1729 = vadd.f32 %v1725, 0.0
    %v1730 = vand.u32 2147483647, %v1725
    %v1731 = vsub.f32 0.0, %v1730
    %v1732 = vmul.f32 %v1731, 1.442695
    %v1733 = vpow.pop %v1732
    %v1734 = vadd.f32 %v1733, 1.0
    %v1735 = vlog2.pop %v1734
    %v1736 = vmul.f32 %v1735, 0.6931472
    %v1737 = vmul.f32 -0.5, %v1733
    %v1738 = vadd.f32 %v1737, 1.0
    %v1739 = vmul.f32 %v1738, %v1733
    %v1740 = vand.u32 2147483647, %v1733
    %vm1741 = vcmp.lt.f32.partialorder %v1740, 0.0004427343
    %v1742 = vsel %vm1741, %v1739, %v1736
    %v1743 = vadd.f32 %v1727, %v1742
    %v1744 = vsel %vm1728, %v1729, %v1743
    %v1745 = vadd.f32 %v1680, 1.0
    %v1746 = vmul.f32 %v1679, %v1679
    %v1747 = vsub.f32 %v1745, %v1746
    %v1748 = vsub.f32 %v1747, %v1684
    %v1749 = vadd.f32 %v1245, %v1748
    %1750 = vst [vmem:[#allocation3 + $0x10] sm:$0xff] %v1744
    %1751 = vst [vmem:[#allocation2] sm:$0xff] %v1744
    %1752 = vst [vmem:[#allocation2 + $0x8] sm:$0xff] %v1605
    %v1753 = vld [vmem:[#allocation2] sm:$0xff]
    %v1754 = vld [vmem:[#allocation2 + $0x8] sm:$0xff]
    %v1755 = vld [vmem:[#allocation14] sm:$0xff]
    %v1756 = vld [vmem:[#allocation14 + $0x8] sm:$0xff]
    %v1757 = vld [vmem:[#allocation14 + $0x10] sm:$0xff]
    %v1758 = vld [vmem:[#allocation14 + $0x18] sm:$0xff]
    %v1759 = vld [vmem:[#allocation14 + $0x20] sm:$0xff]
    %v1760 = vld [vmem:[#allocation14 + $0x28] sm:$0xff]
    %v1761 = vld [vmem:[#allocation14 + $0x30] sm:$0xff]
    %v1762 = vld [vmem:[#allocation14 + $0x38] sm:$0xff]
    %v1763 = vld [vmem:[#allocation14 + $0x40] sm:$0xff]
    %v1764 = vld [vmem:[#allocation14 + $0x48] sm:$0xff]
    %v1765 = vld [vmem:[#allocation14 + $0x50] sm:$0xff]
    %v1766 = vld [vmem:[#allocation14 + $0x58] sm:$0xff]
    %v1767 = vld [vmem:[#allocation14 + $0x60] sm:$0xff]
    %v1768 = vld [vmem:[#allocation14 + $0x68] sm:$0xff]
    %v1769 = vld [vmem:[#allocation14 + $0x70] sm:$0xff]
    %v1770 = vld [vmem:[#allocation14 + $0x78] sm:$0xff]
    %v1771 = vld [vmem:[#allocation14 + $0x80] sm:$0xff]
    %v1772 = vld [vmem:[#allocation14 + $0x88] sm:$0xff]
    %v1773 = vld [vmem:[#allocation14 + $0x90] sm:$0xff]
    %v1774 = vld [vmem:[#allocation14 + $0x98] sm:$0xff]
    %v1775 = vld [vmem:[#allocation14 + $0xa0] sm:$0xff]
    %v1776 = vld [vmem:[#allocation14 + $0xa8] sm:$0xff]
    %v1777 = vld [vmem:[#allocation14 + $0xb0] sm:$0xff]
    %v1778 = vld [vmem:[#allocation14 + $0xb8] sm:$0xff]
    %v1779 = vld [vmem:[#allocation14 + $0xc0] sm:$0xff]
    %v1780 = vld [vmem:[#allocation14 + $0xc8] sm:$0xff]
    %v1781 = vld [vmem:[#allocation14 + $0xd0] sm:$0xff]
    %v1782 = vld [vmem:[#allocation14 + $0xd8] sm:$0xff]
    %v1783 = vld [vmem:[#allocation14 + $0xe0] sm:$0xff]
    %v1784 = vld [vmem:[#allocation14 + $0xe8] sm:$0xff]
    %v1785 = vld [vmem:[#allocation14 + $0xf0] sm:$0xff]
    %v1786 = vld [vmem:[#allocation14 + $0xf8] sm:$0xff]
    %v1787 = vld [vmem:[#allocation14 + $0x100] sm:$0xff]
    %v1788 = vld [vmem:[#allocation14 + $0x108] sm:$0xff]
    %v1789 = vld [vmem:[#allocation14 + $0x110] sm:$0xff]
    %v1790 = vld [vmem:[#allocation14 + $0x118] sm:$0xff]
    %v1791 = vld [vmem:[#allocation14 + $0x120] sm:$0xff]
    %v1792 = vld [vmem:[#allocation14 + $0x128] sm:$0xff]
    %v1793 = vld [vmem:[#allocation14 + $0x130] sm:$0xff]
    %v1794 = vld [vmem:[#allocation14 + $0x138] sm:$0xff]
    %v1795 = vld [vmem:[#allocation14 + $0x140] sm:$0xff]
    %v1796 = vld [vmem:[#allocation14 + $0x148] sm:$0xff]
    %v1797 = vld [vmem:[#allocation14 + $0x150] sm:$0xff]
    %v1798 = vld [vmem:[#allocation14 + $0x158] sm:$0xff]
    %v1799 = vld [vmem:[#allocation14 + $0x160] sm:$0xff]
    %v1800 = vld [vmem:[#allocation14 + $0x168] sm:$0xff]
    %v1801 = vld [vmem:[#allocation14 + $0x170] sm:$0xff]
    %v1802 = vld [vmem:[#allocation14 + $0x178] sm:$0xff]
    %v1803 = vld [vmem:[#allocation14 + $0x180] sm:$0xff]
    %v1804 = vld [vmem:[#allocation14 + $0x188] sm:$0xff]
    %v1805 = vld [vmem:[#allocation14 + $0x190] sm:$0xff]
    %v1806 = vld [vmem:[#allocation14 + $0x198] sm:$0xff]
    %v1807 = vld [vmem:[#allocation14 + $0x1a0] sm:$0xff]
    %v1808 = vld [vmem:[#allocation14 + $0x1a8] sm:$0xff]
    %v1809 = vld [vmem:[#allocation14 + $0x1b0] sm:$0xff]
    %v1810 = vld [vmem:[#allocation14 + $0x1b8] sm:$0xff]
    %v1811 = vld [vmem:[#allocation14 + $0x1c0] sm:$0xff]
    %v1812 = vld [vmem:[#allocation14 + $0x1c8] sm:$0xff]
    %v1813 = vld [vmem:[#allocation14 + $0x1d0] sm:$0xff]
    %v1814 = vld [vmem:[#allocation14 + $0x1d8] sm:$0xff]
    %v1815 = vld [vmem:[#allocation14 + $0x1e0] sm:$0xff]
    %v1816 = vld [vmem:[#allocation14 + $0x1e8] sm:$0xff]
    %v1817 = vld [vmem:[#allocation14 + $0x1f0] sm:$0xff]
    %v1818 = vld [vmem:[#allocation14 + $0x1f8] sm:$0xff]
    %v1819 = vld [vmem:[#allocation14 + $0x200] sm:$0xff]
    %v1820 = vld [vmem:[#allocation14 + $0x208] sm:$0xff]
    %v1821 = vld [vmem:[#allocation14 + $0x210] sm:$0xff]
    %v1822 = vld [vmem:[#allocation14 + $0x218] sm:$0xff]
    %v1823 = vld [vmem:[#allocation14 + $0x220] sm:$0xff]
    %v1824 = vld [vmem:[#allocation14 + $0x228] sm:$0xff]
    %v1825 = vld [vmem:[#allocation14 + $0x230] sm:$0xff]
    %v1826 = vld [vmem:[#allocation14 + $0x238] sm:$0xff]
    %v1827 = vld [vmem:[#allocation14 + $0x240] sm:$0xff]
    %v1828 = vld [vmem:[#allocation14 + $0x248] sm:$0xff]
    %v1829 = vld [vmem:[#allocation14 + $0x250] sm:$0xff]
    %v1830 = vld [vmem:[#allocation14 + $0x258] sm:$0xff]
    %v1831 = vld [vmem:[#allocation14 + $0x260] sm:$0xff]
    %v1832 = vld [vmem:[#allocation14 + $0x268] sm:$0xff]
    %v1833 = vld [vmem:[#allocation14 + $0x270] sm:$0xff]
    %v1834 = vld [vmem:[#allocation14 + $0x278] sm:$0xff]
    %v1835 = vld [vmem:[#allocation14 + $0x280] sm:$0xff]
    %v1836 = vld [vmem:[#allocation14 + $0x288] sm:$0xff]
    %v1837 = vld [vmem:[#allocation14 + $0x290] sm:$0xff]
    %v1838 = vld [vmem:[#allocation14 + $0x298] sm:$0xff]
    %v1839 = vld [vmem:[#allocation14 + $0x2a0] sm:$0xff]
    %v1840 = vld [vmem:[#allocation14 + $0x2a8] sm:$0xff]
    %v1841 = vld [vmem:[#allocation14 + $0x2b0] sm:$0xff]
    %v1842 = vld [vmem:[#allocation14 + $0x2b8] sm:$0xff]
    %v1843 = vld [vmem:[#allocation14 + $0x2c0] sm:$0xff]
    %v1844 = vld [vmem:[#allocation14 + $0x2c8] sm:$0xff]
    %v1845 = vld [vmem:[#allocation14 + $0x2d0] sm:$0xff]
    %v1846 = vld [vmem:[#allocation14 + $0x2d8] sm:$0xff]
    %v1847 = vld [vmem:[#allocation14 + $0x2e0] sm:$0xff]
    %v1848 = vld [vmem:[#allocation14 + $0x2e8] sm:$0xff]
    %v1849 = vld [vmem:[#allocation14 + $0x2f0] sm:$0xff]
    %v1850 = vld [vmem:[#allocation14 + $0x2f8] sm:$0xff]
    %v1851 = vld [vmem:[#allocation14 + $0x300] sm:$0xff]
    %v1852 = vld [vmem:[#allocation14 + $0x308] sm:$0xff]
    %v1853 = vld [vmem:[#allocation14 + $0x310] sm:$0xff]
    %v1854 = vld [vmem:[#allocation14 + $0x318] sm:$0xff]
    %v1855 = vld [vmem:[#allocation14 + $0x320] sm:$0xff]
    %v1856 = vld [vmem:[#allocation14 + $0x328] sm:$0xff]
    %v1857 = vld [vmem:[#allocation14 + $0x330] sm:$0xff]
    %v1858 = vld [vmem:[#allocation14 + $0x338] sm:$0xff]
    %v1859 = vld [vmem:[#allocation14 + $0x340] sm:$0xff]
    %v1860 = vld [vmem:[#allocation14 + $0x348] sm:$0xff]
    %v1861 = vld [vmem:[#allocation14 + $0x350] sm:$0xff]
    %v1862 = vld [vmem:[#allocation14 + $0x358] sm:$0xff]
    %v1863 = vld [vmem:[#allocation14 + $0x360] sm:$0xff]
    %v1864 = vld [vmem:[#allocation14 + $0x368] sm:$0xff]
    %v1865 = vld [vmem:[#allocation14 + $0x370] sm:$0xff]
    %v1866 = vld [vmem:[#allocation14 + $0x378] sm:$0xff]
    %v1867 = vld [vmem:[#allocation14 + $0x380] sm:$0xff]
    %v1868 = vld [vmem:[#allocation14 + $0x388] sm:$0xff]
    %v1869 = vld [vmem:[#allocation14 + $0x390] sm:$0xff]
    %v1870 = vld [vmem:[#allocation14 + $0x398] sm:$0xff]
    %v1871 = vld [vmem:[#allocation14 + $0x3a0] sm:$0xff]
    %v1872 = vld [vmem:[#allocation14 + $0x3a8] sm:$0xff]
    %v1873 = vld [vmem:[#allocation14 + $0x3b0] sm:$0xff]
    %v1874 = vld [vmem:[#allocation14 + $0x3b8] sm:$0xff]
    %v1875 = vld [vmem:[#allocation14 + $0x3c0] sm:$0xff]
    %v1876 = vld [vmem:[#allocation14 + $0x3c8] sm:$0xff]
    %v1877 = vld [vmem:[#allocation14 + $0x3d0] sm:$0xff]
    %v1878 = vld [vmem:[#allocation14 + $0x3d8] sm:$0xff]
    %v1879 = vld [vmem:[#allocation14 + $0x3e0] sm:$0xff]
    %v1880 = vld [vmem:[#allocation14 + $0x3e8] sm:$0xff]
    %v1881 = vld [vmem:[#allocation14 + $0x3f0] sm:$0xff]
    %v1882 = vld [vmem:[#allocation14 + $0x3f8] sm:$0xff]
    %1883 = vmatpush.msra.mxu0 %v1815
    %1884 = vmatpush.msra.mxu0 %v1811
    %1885 = vmatpush.msra.mxu0 %v1807
    %1886 = vmatpush.msra.mxu0 %v1803
    %1887 = vmatpush.msra.mxu0 %v1799
    %1888 = vmatpush.msra.mxu0 %v1795
    %1889 = vmatpush.msra.mxu0 %v1791
    %1890 = vmatpush.msra.mxu0 %v1787
    %1891 = vmatpush.msra.mxu0 %v1783
    %1892 = vmatpush.msra.mxu0 %v1779
    %1893 = vmatpush.msra.mxu0 %v1775
    %1894 = vmatpush.msra.mxu0 %v1771
    %1895 = vmatpush.msra.mxu0 %v1767
    %1896 = vmatpush.msra.mxu0 %v1763
    %1897 = vmatpush.msra.mxu0 %v1759
    %1898 = vmatpush.msra.mxu0 %v1755
    %1899 = vmatmul.f32.gmra.mxu0 %v1753
    %v1900 = vpop.f32.mrf.mxu0
    %v1901 = vadd.f32 0.0, %v1900
    %1902 = vdwg.mxu0
    %1903 = vmatpush.msra.mxu0 %v1879
    %1904 = vmatpush.msra.mxu0 %v1875
    %1905 = vmatpush.msra.mxu0 %v1871
    %1906 = vmatpush.msra.mxu0 %v1867
    %1907 = vmatpush.msra.mxu0 %v1863
    %1908 = vmatpush.msra.mxu0 %v1859
    %1909 = vmatpush.msra.mxu0 %v1855
    %1910 = vmatpush.msra.mxu0 %v1851
    %1911 = vmatpush.msra.mxu0 %v1847
    %1912 = vmatpush.msra.mxu0 %v1843
    %1913 = vmatpush.msra.mxu0 %v1839
    %1914 = vmatpush.msra.mxu0 %v1835
    %1915 = vmatpush.msra.mxu0 %v1831
    %1916 = vmatpush.msra.mxu0 %v1827
    %1917 = vmatpush.msra.mxu0 %v1823
    %1918 = vmatpush.msra.mxu0 %v1819
    %1919 = vmatmul.f32.gmra.mxu0 %v1754
    %v1920 = vpop.f32.mrf.mxu0
    %v1921 = vadd.f32 %v1901, %v1920
    %1922 = vdwg.mxu0
    %1923 = vmatpush.msra.mxu0 %v1816
    %1924 = vmatpush.msra.mxu0 %v1812
    %1925 = vmatpush.msra.mxu0 %v1808
    %1926 = vmatpush.msra.mxu0 %v1804
    %1927 = vmatpush.msra.mxu0 %v1800
    %1928 = vmatpush.msra.mxu0 %v1796
    %1929 = vmatpush.msra.mxu0 %v1792
    %1930 = vmatpush.msra.mxu0 %v1788
    %1931 = vmatpush.msra.mxu0 %v1784
    %1932 = vmatpush.msra.mxu0 %v1780
    %1933 = vmatpush.msra.mxu0 %v1776
    %1934 = vmatpush.msra.mxu0 %v1772
    %1935 = vmatpush.msra.mxu0 %v1768
    %1936 = vmatpush.msra.mxu0 %v1764
    %1937 = vmatpush.msra.mxu0 %v1760
    %1938 = vmatpush.msra.mxu0 %v1756
    %1939 = vmatmul.f32.gmra.mxu0 %v1753
    %v1940 = vpop.f32.mrf.mxu0
    %v1941 = vadd.f32 0.0, %v1940
    %1942 = vdwg.mxu0
    %1943 = vmatpush.msra.mxu0 %v1880
    %1944 = vmatpush.msra.mxu0 %v1876
    %1945 = vmatpush.msra.mxu0 %v1872
    %1946 = vmatpush.msra.mxu0 %v1868
    %1947 = vmatpush.msra.mxu0 %v1864
    %1948 = vmatpush.msra.mxu0 %v1860
    %1949 = vmatpush.msra.mxu0 %v1856
    %1950 = vmatpush.msra.mxu0 %v1852
    %1951 = vmatpush.msra.mxu0 %v1848
    %1952 = vmatpush.msra.mxu0 %v1844
    %1953 = vmatpush.msra.mxu0 %v1840
    %1954 = vmatpush.msra.mxu0 %v1836
    %1955 = vmatpush.msra.mxu0 %v1832
    %1956 = vmatpush.msra.mxu0 %v1828
    %1957 = vmatpush.msra.mxu0 %v1824
    %1958 = vmatpush.msra.mxu0 %v1820
    %1959 = vmatmul.f32.gmra.mxu0 %v1754
    %v1960 = vpop.f32.mrf.mxu0
    %v1961 = vadd.f32 %v1941, %v1960
    %1962 = vdwg.mxu0
    %1963 = vmatpush.msra.mxu0 %v1817
    %1964 = vmatpush.msra.mxu0 %v1813
    %1965 = vmatpush.msra.mxu0 %v1809
    %1966 = vmatpush.msra.mxu0 %v1805
    %1967 = vmatpush.msra.mxu0 %v1801
    %1968 = vmatpush.msra.mxu0 %v1797
    %1969 = vmatpush.msra.mxu0 %v1793
    %1970 = vmatpush.msra.mxu0 %v1789
    %1971 = vmatpush.msra.mxu0 %v1785
    %1972 = vmatpush.msra.mxu0 %v1781
    %1973 = vmatpush.msra.mxu0 %v1777
    %1974 = vmatpush.msra.mxu0 %v1773
    %1975 = vmatpush.msra.mxu0 %v1769
    %1976 = vmatpush.msra.mxu0 %v1765
    %1977 = vmatpush.msra.mxu0 %v1761
    %1978 = vmatpush.msra.mxu0 %v1757
    %1979 = vmatmul.f32.gmra.mxu0 %v1753
    %v1980 = vpop.f32.mrf.mxu0
    %v1981 = vadd.f32 0.0, %v1980
    %1982 = vdwg.mxu0
    %1983 = vmatpush.msra.mxu0 %v1881
    %1984 = vmatpush.msra.mxu0 %v1877
    %1985 = vmatpush.msra.mxu0 %v1873
    %1986 = vmatpush.msra.mxu0 %v1869
    %1987 = vmatpush.msra.mxu0 %v1865
    %1988 = vmatpush.msra.mxu0 %v1861
    %1989 = vmatpush.msra.mxu0 %v1857
    %1990 = vmatpush.msra.mxu0 %v1853
    %1991 = vmatpush.msra.mxu0 %v1849
    %1992 = vmatpush.msra.mxu0 %v1845
    %1993 = vmatpush.msra.mxu0 %v1841
    %1994 = vmatpush.msra.mxu0 %v1837
    %1995 = vmatpush.msra.mxu0 %v1833
    %1996 = vmatpush.msra.mxu0 %v1829
    %1997 = vmatpush.msra.mxu0 %v1825
    %1998 = vmatpush.msra.mxu0 %v1821
    %1999 = vmatmul.f32.gmra.mxu0 %v1754
    %v2000 = vpop.f32.mrf.mxu0
    %v2001 = vadd.f32 %v1981, %v2000
    %2002 = vdwg.mxu0
    %2003 = vmatpush.msra.mxu0 %v1818
    %2004 = vmatpush.msra.mxu0 %v1814
    %2005 = vmatpush.msra.mxu0 %v1810
    %2006 = vmatpush.msra.mxu0 %v1806
    %2007 = vmatpush.msra.mxu0 %v1802
    %2008 = vmatpush.msra.mxu0 %v1798
    %2009 = vmatpush.msra.mxu0 %v1794
    %2010 = vmatpush.msra.mxu0 %v1790
    %2011 = vmatpush.msra.mxu0 %v1786
    %2012 = vmatpush.msra.mxu0 %v1782
    %2013 = vmatpush.msra.mxu0 %v1778
    %2014 = vmatpush.msra.mxu0 %v1774
    %2015 = vmatpush.msra.mxu0 %v1770
    %2016 = vmatpush.msra.mxu0 %v1766
    %2017 = vmatpush.msra.mxu0 %v1762
    %2018 = vmatpush.msra.mxu0 %v1758
    %2019 = vmatmul.f32.gmra.mxu0 %v1753
    %v2020 = vpop.f32.mrf.mxu0
    %v2021 = vadd.f32 0.0, %v2020
    %2022 = vdwg.mxu0
    %2023 = vmatpush.msra.mxu0 %v1882
    %2024 = vmatpush.msra.mxu0 %v1878
    %2025 = vmatpush.msra.mxu0 %v1874
    %2026 = vmatpush.msra.mxu0 %v1870
    %2027 = vmatpush.msra.mxu0 %v1866
    %2028 = vmatpush.msra.mxu0 %v1862
    %2029 = vmatpush.msra.mxu0 %v1858
    %2030 = vmatpush.msra.mxu0 %v1854
    %2031 = vmatpush.msra.mxu0 %v1850
    %2032 = vmatpush.msra.mxu0 %v1846
    %2033 = vmatpush.msra.mxu0 %v1842
    %2034 = vmatpush.msra.mxu0 %v1838
    %2035 = vmatpush.msra.mxu0 %v1834
    %2036 = vmatpush.msra.mxu0 %v1830
    %2037 = vmatpush.msra.mxu0 %v1826
    %2038 = vmatpush.msra.mxu0 %v1822
    %2039 = vmatmul.f32.gmra.mxu0 %v1754
    %v2040 = vpop.f32.mrf.mxu0
    %v2041 = vadd.f32 %v2021, %v2040
    %2042 = vdwg.mxu0
    %v2043 = vadd.f32 %v335, %v1921
    %v2044 = vadd.f32 %v375, %v1961
    %v2045 = vadd.f32 %v415, %v2001
    %v2046 = vadd.f32 %v455, %v2041
    %v2047 = vxor.u32 %v2043, 2147483648
    %v2048 = vmul.f32 %v2047, 1.442695
    %v2049 = vpow.pop %v2048
    %v2050 = vadd.f32 %v2049, 1.0
    %v2051 = vrcp.pop %v2050
    %v2052 = vmul.f32 %v2050, %v2051
    %v2053 = vsub.f32 1.0, %v2052
    %v2054 = vmul.f32 %v2051, %v2053
    %v2055 = vadd.f32 %v2051, %v2054
    %vm2056 = vweird.f32 %v2050
    %vm2057 = vweird.f32 %v2051
    %vm2058 = vmor %vm2056, %vm2057
    %v2059 = vsel %vm2058, %v2051, %v2055
    %v2060 = vand.u32 2147483647, %v2050
    %vm2061 = vcmp.eq.f32.partialorder %v2060, 8.507059e+37
    %v2062 = vand.u32 %v2050, 2147483648
    %v2063 = vor.u32 1.1754944e-38, %v2062
    %v2064 = vsel %vm2061, %v2063, %v2059
    %v2065 = vmul.f32 1.0, %v2064
    %v2066 = vxor.u32 %v2044, 2147483648
    %v2067 = vmul.f32 %v2066, 1.442695
    %v2068 = vpow.pop %v2067
    %v2069 = vadd.f32 %v2068, 1.0
    %v2070 = vrcp.pop %v2069
    %v2071 = vmul.f32 %v2069, %v2070
    %v2072 = vsub.f32 1.0, %v2071
    %v2073 = vmul.f32 %v2070, %v2072
    %v2074 = vadd.f32 %v2070, %v2073
    %vm2075 = vweird.f32 %v2069
    %vm2076 = vweird.f32 %v2070
    %vm2077 = vmor %vm2075, %vm2076
    %v2078 = vsel %vm2077, %v2070, %v2074
    %v2079 = vand.u32 2147483647, %v2069
    %vm2080 = vcmp.eq.f32.partialorder %v2079, 8.507059e+37
    %v2081 = vand.u32 %v2069, 2147483648
    %v2082 = vor.u32 1.1754944e-38, %v2081
    %v2083 = vsel %vm2080, %v2082, %v2078
    %v2084 = vmul.f32 1.0, %v2083
    %v2085 = vtanh.pop %v2045
    %v2086 = vxor.u32 %v2046, 2147483648
    %v2087 = vmul.f32 %v2086, 1.442695
    %v2088 = vpow.pop %v2087
    %v2089 = vadd.f32 %v2088, 1.0
    %v2090 = vrcp.pop %v2089
    %v2091 = vmul.f32 %v2089, %v2090
    %v2092 = vsub.f32 1.0, %v2091
    %v2093 = vmul.f32 %v2090, %v2092
    %v2094 = vadd.f32 %v2090, %v2093
    %vm2095 = vweird.f32 %v2089
    %vm2096 = vweird.f32 %v2090
    %vm2097 = vmor %vm2095, %vm2096
    %v2098 = vsel %vm2097, %v2090, %v2094
    %v2099 = vand.u32 2147483647, %v2089
    %vm2100 = vcmp.eq.f32.partialorder %v2099, 8.507059e+37
    %v2101 = vand.u32 %v2089, 2147483648
    %v2102 = vor.u32 1.1754944e-38, %v2101
    %v2103 = vsel %vm2100, %v2102, %v2098
    %v2104 = vmul.f32 1.0, %v2103
    %v2105 = vmul.f32 %v2084, %v1603
    %v2106 = vmul.f32 %v2065, %v2085
    %v2107 = vadd.f32 %v2105, %v2106
    %v2108 = vtanh.pop %v2107
    %v2109 = vmul.f32 %v2104, %v2108
    %v2110 = vadd.f32 %v2109, %v2107
    %v2111 = vld [vmem:[#allocation12] sm:$0xff]
    %v2112 = vld [vmem:[#allocation12 + $0x8] sm:$0xff]
    %v2113 = vld [vmem:[#allocation12 + $0x10] sm:$0xff]
    %v2114 = vld [vmem:[#allocation12 + $0x18] sm:$0xff]
    %v2115 = vld [vmem:[#allocation12 + $0x20] sm:$0xff]
    %v2116 = vld [vmem:[#allocation12 + $0x28] sm:$0xff]
    %v2117 = vld [vmem:[#allocation12 + $0x30] sm:$0xff]
    %v2118 = vld [vmem:[#allocation12 + $0x38] sm:$0xff]
    %v2119 = vld [vmem:[#allocation12 + $0x40] sm:$0xff]
    %v2120 = vld [vmem:[#allocation12 + $0x48] sm:$0xff]
    %v2121 = vld [vmem:[#allocation12 + $0x50] sm:$0xff]
    %v2122 = vld [vmem:[#allocation12 + $0x58] sm:$0xff]
    %v2123 = vld [vmem:[#allocation12 + $0x60] sm:$0xff]
    %v2124 = vld [vmem:[#allocation12 + $0x68] sm:$0xff]
    %v2125 = vld [vmem:[#allocation12 + $0x70] sm:$0xff]
    %v2126 = vld [vmem:[#allocation12 + $0x78] sm:$0xff]
    %v2127 = vld [vmem:[#allocation12 + $0x80] sm:$0xff]
    %v2128 = vld [vmem:[#allocation12 + $0x88] sm:$0xff]
    %v2129 = vld [vmem:[#allocation12 + $0x90] sm:$0xff]
    %v2130 = vld [vmem:[#allocation12 + $0x98] sm:$0xff]
    %v2131 = vld [vmem:[#allocation12 + $0xa0] sm:$0xff]
    %v2132 = vld [vmem:[#allocation12 + $0xa8] sm:$0xff]
    %v2133 = vld [vmem:[#allocation12 + $0xb0] sm:$0xff]
    %v2134 = vld [vmem:[#allocation12 + $0xb8] sm:$0xff]
    %v2135 = vld [vmem:[#allocation12 + $0xc0] sm:$0xff]
    %v2136 = vld [vmem:[#allocation12 + $0xc8] sm:$0xff]
    %v2137 = vld [vmem:[#allocation12 + $0xd0] sm:$0xff]
    %v2138 = vld [vmem:[#allocation12 + $0xd8] sm:$0xff]
    %v2139 = vld [vmem:[#allocation12 + $0xe0] sm:$0xff]
    %v2140 = vld [vmem:[#allocation12 + $0xe8] sm:$0xff]
    %v2141 = vld [vmem:[#allocation12 + $0xf0] sm:$0xff]
    %v2142 = vld [vmem:[#allocation12 + $0xf8] sm:$0xff]
    %2143 = vmatpush.msra.mxu0 %v2141
    %2144 = vmatpush.msra.mxu0 %v2139
    %2145 = vmatpush.msra.mxu0 %v2137
    %2146 = vmatpush.msra.mxu0 %v2135
    %2147 = vmatpush.msra.mxu0 %v2133
    %2148 = vmatpush.msra.mxu0 %v2131
    %2149 = vmatpush.msra.mxu0 %v2129
    %2150 = vmatpush.msra.mxu0 %v2127
    %2151 = vmatpush.msra.mxu0 %v2125
    %2152 = vmatpush.msra.mxu0 %v2123
    %2153 = vmatpush.msra.mxu0 %v2121
    %2154 = vmatpush.msra.mxu0 %v2119
    %2155 = vmatpush.msra.mxu0 %v2117
    %2156 = vmatpush.msra.mxu0 %v2115
    %2157 = vmatpush.msra.mxu0 %v2113
    %2158 = vmatpush.msra.mxu0 %v2111
    %2159 = vmatmul.f32.gmra.mxu0 %v2110
    %v2160 = vpop.f32.mrf.mxu0
    %v2161 = vadd.f32 0.0, %v2160
    %2162 = vdwg.mxu0
    %2163 = vmatpush.msra.mxu0 %v2142
    %2164 = vmatpush.msra.mxu0 %v2140
    %2165 = vmatpush.msra.mxu0 %v2138
    %2166 = vmatpush.msra.mxu0 %v2136
    %2167 = vmatpush.msra.mxu0 %v2134
    %2168 = vmatpush.msra.mxu0 %v2132
    %2169 = vmatpush.msra.mxu0 %v2130
    %2170 = vmatpush.msra.mxu0 %v2128
    %2171 = vmatpush.msra.mxu0 %v2126
    %2172 = vmatpush.msra.mxu0 %v2124
    %2173 = vmatpush.msra.mxu0 %v2122
    %2174 = vmatpush.msra.mxu0 %v2120
    %2175 = vmatpush.msra.mxu0 %v2118
    %2176 = vmatpush.msra.mxu0 %v2116
    %2177 = vmatpush.msra.mxu0 %v2114
    %2178 = vmatpush.msra.mxu0 %v2112
    %2179 = vmatmul.f32.gmra.mxu0 %v2110
    %v2180 = vpop.f32.mrf.mxu0
    %v2181 = vadd.f32 0.0, %v2180
    %2182 = vdwg.mxu0
    %v2183 = vadd.f32 %v536, %v2161
    %v2184 = vadd.f32 %v577, %v2181
    %v2185 = vmul.f32 %v2184, 0.5
    %v2186 = vmul.f32 %v2185, 1.442695
    %v2187 = vpow.pop %v2186
    %v2188 = vmul.f32 %v2187, %v2187
    %v2189 = vmul.f32 %v2187, %v594
    %v2190 = vadd.f32 %v2183, %v2189
    %v2191 = vld [vmem:[%s9] sm:$0xff]
    %v2192 = vld [vmem:[%s9 + $0x8] sm:$0xff]
    %v2193 = vld [vmem:[%s9 + $0x10] sm:$0xff]
    %v2194 = vld [vmem:[%s9 + $0x18] sm:$0xff]
    %v2195 = vld [vmem:[%s9 + $0x20] sm:$0xff]
    %v2196 = vld [vmem:[%s9 + $0x28] sm:$0xff]
    %v2197 = vld [vmem:[%s9 + $0x30] sm:$0xff]
    %v2198 = vld [vmem:[%s9 + $0x38] sm:$0xff]
    %v2199 = vld [vmem:[%s9 + $0x40] sm:$0xff]
    %v2200 = vld [vmem:[%s9 + $0x48] sm:$0xff]
    %v2201 = vld [vmem:[%s9 + $0x50] sm:$0xff]
    %v2202 = vld [vmem:[%s9 + $0x58] sm:$0xff]
    %v2203 = vld [vmem:[%s9 + $0x60] sm:$0xff]
    %v2204 = vld [vmem:[%s9 + $0x68] sm:$0xff]
    %v2205 = vld [vmem:[%s9 + $0x70] sm:$0xff]
    %v2206 = vld [vmem:[%s9 + $0x78] sm:$0xff]
    %v2207 = vld [vmem:[%s10] sm:$0x1]
    %v2209 = vperm.slane %v2207, 0
    %2211 = vmatpush.msra.mxu0 %v2206
    %2212 = vmatpush.msra.mxu0 %v2205
    %2213 = vmatpush.msra.mxu0 %v2204
    %2214 = vmatpush.msra.mxu0 %v2203
    %2215 = vmatpush.msra.mxu0 %v2202
    %2216 = vmatpush.msra.mxu0 %v2201
    %2217 = vmatpush.msra.mxu0 %v2200
    %2218 = vmatpush.msra.mxu0 %v2199
    %2219 = vmatpush.msra.mxu0 %v2198
    %2220 = vmatpush.msra.mxu0 %v2197
    %2221 = vmatpush.msra.mxu0 %v2196
    %2222 = vmatpush.msra.mxu0 %v2195
    %2223 = vmatpush.msra.mxu0 %v2194
    %2224 = vmatpush.msra.mxu0 %v2193
    %2225 = vmatpush.msra.mxu0 %v2192
    %2226 = vmatpush.msra.mxu0 %v2191
    %2227 = vmatmul.f32.gmra.mxu0 %v2190
    %v2228 = vpop.f32.mrf.mxu0
    %v2229 = vadd.f32 %v2209, %v2228
    %2230 = vdwg.mxu0
    %v2231 = vmax.f32 %v2229, 0.0
    %vm2232 = vcmp.ne.f32.partialorder %v2229, %v2229
    %v2233 = vadd.f32 %v2229, 0.0
    %v2234 = vand.u32 2147483647, %v2229
    %v2235 = vsub.f32 0.0, %v2234
    %v2236 = vmul.f32 %v2235, 1.442695
    %v2237 = vpow.pop %v2236
    %v2238 = vadd.f32 %v2237, 1.0
    %v2239 = vlog2.pop %v2238
    %v2240 = vmul.f32 %v2239, 0.6931472
    %v2241 = vmul.f32 -0.5, %v2237
    %v2242 = vadd.f32 %v2241, 1.0
    %v2243 = vmul.f32 %v2242, %v2237
    %v2244 = vand.u32 2147483647, %v2237
    %vm2245 = vcmp.lt.f32.partialorder %v2244, 0.0004427343
    %v2246 = vsel %vm2245, %v2243, %v2240
    %v2247 = vadd.f32 %v2231, %v2246
    %v2248 = vsel %vm2232, %v2233, %v2247
    %v2249 = vadd.f32 %v2184, 1.0
    %v2250 = vmul.f32 %v2183, %v2183
    %v2251 = vsub.f32 %v2249, %v2250
    %v2252 = vsub.f32 %v2251, %v2188
    %v2253 = vadd.f32 %v1749, %v2252
    %2254 = vst [vmem:[#allocation3 + $0x18] sm:$0xff] %v2248
    %2255 = vst [vmem:[#allocation2] sm:$0xff] %v2248
    %2256 = vst [vmem:[#allocation2 + $0x8] sm:$0xff] %v2109
    %v2257 = vld [vmem:[#allocation2] sm:$0xff]
    %v2258 = vld [vmem:[#allocation2 + $0x8] sm:$0xff]
    %v2259 = vld [vmem:[#allocation14] sm:$0xff]
    %v2260 = vld [vmem:[#allocation14 + $0x8] sm:$0xff]
    %v2261 = vld [vmem:[#allocation14 + $0x10] sm:$0xff]
    %v2262 = vld [vmem:[#allocation14 + $0x18] sm:$0xff]
    %v2263 = vld [vmem:[#allocation14 + $0x20] sm:$0xff]
    %v2264 = vld [vmem:[#allocation14 + $0x28] sm:$0xff]
    %v2265 = vld [vmem:[#allocation14 + $0x30] sm:$0xff]
    %v2266 = vld [vmem:[#allocation14 + $0x38] sm:$0xff]
    %v2267 = vld [vmem:[#allocation14 + $0x40] sm:$0xff]
    %v2268 = vld [vmem:[#allocation14 + $0x48] sm:$0xff]
    %v2269 = vld [vmem:[#allocation14 + $0x50] sm:$0xff]
    %v2270 = vld [vmem:[#allocation14 + $0x58] sm:$0xff]
    %v2271 = vld [vmem:[#allocation14 + $0x60] sm:$0xff]
    %v2272 = vld [vmem:[#allocation14 + $0x68] sm:$0xff]
    %v2273 = vld [vmem:[#allocation14 + $0x70] sm:$0xff]
    %v2274 = vld [vmem:[#allocation14 + $0x78] sm:$0xff]
    %v2275 = vld [vmem:[#allocation14 + $0x80] sm:$0xff]
    %v2276 = vld [vmem:[#allocation14 + $0x88] sm:$0xff]
    %v2277 = vld [vmem:[#allocation14 + $0x90] sm:$0xff]
    %v2278 = vld [vmem:[#allocation14 + $0x98] sm:$0xff]
    %v2279 = vld [vmem:[#allocation14 + $0xa0] sm:$0xff]
    %v2280 = vld [vmem:[#allocation14 + $0xa8] sm:$0xff]
    %v2281 = vld [vmem:[#allocation14 + $0xb0] sm:$0xff]
    %v2282 = vld [vmem:[#allocation14 + $0xb8] sm:$0xff]
    %v2283 = vld [vmem:[#allocation14 + $0xc0] sm:$0xff]
    %v2284 = vld [vmem:[#allocation14 + $0xc8] sm:$0xff]
    %v2285 = vld [vmem:[#allocation14 + $0xd0] sm:$0xff]
    %v2286 = vld [vmem:[#allocation14 + $0xd8] sm:$0xff]
    %v2287 = vld [vmem:[#allocation14 + $0xe0] sm:$0xff]
    %v2288 = vld [vmem:[#allocation14 + $0xe8] sm:$0xff]
    %v2289 = vld [vmem:[#allocation14 + $0xf0] sm:$0xff]
    %v2290 = vld [vmem:[#allocation14 + $0xf8] sm:$0xff]
    %v2291 = vld [vmem:[#allocation14 + $0x100] sm:$0xff]
    %v2292 = vld [vmem:[#allocation14 + $0x108] sm:$0xff]
    %v2293 = vld [vmem:[#allocation14 + $0x110] sm:$0xff]
    %v2294 = vld [vmem:[#allocation14 + $0x118] sm:$0xff]
    %v2295 = vld [vmem:[#allocation14 + $0x120] sm:$0xff]
    %v2296 = vld [vmem:[#allocation14 + $0x128] sm:$0xff]
    %v2297 = vld [vmem:[#allocation14 + $0x130] sm:$0xff]
    %v2298 = vld [vmem:[#allocation14 + $0x138] sm:$0xff]
    %v2299 = vld [vmem:[#allocation14 + $0x140] sm:$0xff]
    %v2300 = vld [vmem:[#allocation14 + $0x148] sm:$0xff]
    %v2301 = vld [vmem:[#allocation14 + $0x150] sm:$0xff]
    %v2302 = vld [vmem:[#allocation14 + $0x158] sm:$0xff]
    %v2303 = vld [vmem:[#allocation14 + $0x160] sm:$0xff]
    %v2304 = vld [vmem:[#allocation14 + $0x168] sm:$0xff]
    %v2305 = vld [vmem:[#allocation14 + $0x170] sm:$0xff]
    %v2306 = vld [vmem:[#allocation14 + $0x178] sm:$0xff]
    %v2307 = vld [vmem:[#allocation14 + $0x180] sm:$0xff]
    %v2308 = vld [vmem:[#allocation14 + $0x188] sm:$0xff]
    %v2309 = vld [vmem:[#allocation14 + $0x190] sm:$0xff]
    %v2310 = vld [vmem:[#allocation14 + $0x198] sm:$0xff]
    %v2311 = vld [vmem:[#allocation14 + $0x1a0] sm:$0xff]
    %v2312 = vld [vmem:[#allocation14 + $0x1a8] sm:$0xff]
    %v2313 = vld [vmem:[#allocation14 + $0x1b0] sm:$0xff]
    %v2314 = vld [vmem:[#allocation14 + $0x1b8] sm:$0xff]
    %v2315 = vld [vmem:[#allocation14 + $0x1c0] sm:$0xff]
    %v2316 = vld [vmem:[#allocation14 + $0x1c8] sm:$0xff]
    %v2317 = vld [vmem:[#allocation14 + $0x1d0] sm:$0xff]
    %v2318 = vld [vmem:[#allocation14 + $0x1d8] sm:$0xff]
    %v2319 = vld [vmem:[#allocation14 + $0x1e0] sm:$0xff]
    %v2320 = vld [vmem:[#allocation14 + $0x1e8] sm:$0xff]
    %v2321 = vld [vmem:[#allocation14 + $0x1f0] sm:$0xff]
    %v2322 = vld [vmem:[#allocation14 + $0x1f8] sm:$0xff]
    %v2323 = vld [vmem:[#allocation14 + $0x200] sm:$0xff]
    %v2324 = vld [vmem:[#allocation14 + $0x208] sm:$0xff]
    %v2325 = vld [vmem:[#allocation14 + $0x210] sm:$0xff]
    %v2326 = vld [vmem:[#allocation14 + $0x218] sm:$0xff]
    %v2327 = vld [vmem:[#allocation14 + $0x220] sm:$0xff]
    %v2328 = vld [vmem:[#allocation14 + $0x228] sm:$0xff]
    %v2329 = vld [vmem:[#allocation14 + $0x230] sm:$0xff]
    %v2330 = vld [vmem:[#allocation14 + $0x238] sm:$0xff]
    %v2331 = vld [vmem:[#allocation14 + $0x240] sm:$0xff]
    %v2332 = vld [vmem:[#allocation14 + $0x248] sm:$0xff]
    %v2333 = vld [vmem:[#allocation14 + $0x250] sm:$0xff]
    %v2334 = vld [vmem:[#allocation14 + $0x258] sm:$0xff]
    %v2335 = vld [vmem:[#allocation14 + $0x260] sm:$0xff]
    %v2336 = vld [vmem:[#allocation14 + $0x268] sm:$0xff]
    %v2337 = vld [vmem:[#allocation14 + $0x270] sm:$0xff]
    %v2338 = vld [vmem:[#allocation14 + $0x278] sm:$0xff]
    %v2339 = vld [vmem:[#allocation14 + $0x280] sm:$0xff]
    %v2340 = vld [vmem:[#allocation14 + $0x288] sm:$0xff]
    %v2341 = vld [vmem:[#allocation14 + $0x290] sm:$0xff]
    %v2342 = vld [vmem:[#allocation14 + $0x298] sm:$0xff]
    %v2343 = vld [vmem:[#allocation14 + $0x2a0] sm:$0xff]
    %v2344 = vld [vmem:[#allocation14 + $0x2a8] sm:$0xff]
    %v2345 = vld [vmem:[#allocation14 + $0x2b0] sm:$0xff]
    %v2346 = vld [vmem:[#allocation14 + $0x2b8] sm:$0xff]
    %v2347 = vld [vmem:[#allocation14 + $0x2c0] sm:$0xff]
    %v2348 = vld [vmem:[#allocation14 + $0x2c8] sm:$0xff]
    %v2349 = vld [vmem:[#allocation14 + $0x2d0] sm:$0xff]
    %v2350 = vld [vmem:[#allocation14 + $0x2d8] sm:$0xff]
    %v2351 = vld [vmem:[#allocation14 + $0x2e0] sm:$0xff]
    %v2352 = vld [vmem:[#allocation14 + $0x2e8] sm:$0xff]
    %v2353 = vld [vmem:[#allocation14 + $0x2f0] sm:$0xff]
    %v2354 = vld [vmem:[#allocation14 + $0x2f8] sm:$0xff]
    %v2355 = vld [vmem:[#allocation14 + $0x300] sm:$0xff]
    %v2356 = vld [vmem:[#allocation14 + $0x308] sm:$0xff]
    %v2357 = vld [vmem:[#allocation14 + $0x310] sm:$0xff]
    %v2358 = vld [vmem:[#allocation14 + $0x318] sm:$0xff]
    %v2359 = vld [vmem:[#allocation14 + $0x320] sm:$0xff]
    %v2360 = vld [vmem:[#allocation14 + $0x328] sm:$0xff]
    %v2361 = vld [vmem:[#allocation14 + $0x330] sm:$0xff]
    %v2362 = vld [vmem:[#allocation14 + $0x338] sm:$0xff]
    %v2363 = vld [vmem:[#allocation14 + $0x340] sm:$0xff]
    %v2364 = vld [vmem:[#allocation14 + $0x348] sm:$0xff]
    %v2365 = vld [vmem:[#allocation14 + $0x350] sm:$0xff]
    %v2366 = vld [vmem:[#allocation14 + $0x358] sm:$0xff]
    %v2367 = vld [vmem:[#allocation14 + $0x360] sm:$0xff]
    %v2368 = vld [vmem:[#allocation14 + $0x368] sm:$0xff]
    %v2369 = vld [vmem:[#allocation14 + $0x370] sm:$0xff]
    %v2370 = vld [vmem:[#allocation14 + $0x378] sm:$0xff]
    %v2371 = vld [vmem:[#allocation14 + $0x380] sm:$0xff]
    %v2372 = vld [vmem:[#allocation14 + $0x388] sm:$0xff]
    %v2373 = vld [vmem:[#allocation14 + $0x390] sm:$0xff]
    %v2374 = vld [vmem:[#allocation14 + $0x398] sm:$0xff]
    %v2375 = vld [vmem:[#allocation14 + $0x3a0] sm:$0xff]
    %v2376 = vld [vmem:[#allocation14 + $0x3a8] sm:$0xff]
    %v2377 = vld [vmem:[#allocation14 + $0x3b0] sm:$0xff]
    %v2378 = vld [vmem:[#allocation14 + $0x3b8] sm:$0xff]
    %v2379 = vld [vmem:[#allocation14 + $0x3c0] sm:$0xff]
    %v2380 = vld [vmem:[#allocation14 + $0x3c8] sm:$0xff]
    %v2381 = vld [vmem:[#allocation14 + $0x3d0] sm:$0xff]
    %v2382 = vld [vmem:[#allocation14 + $0x3d8] sm:$0xff]
    %v2383 = vld [vmem:[#allocation14 + $0x3e0] sm:$0xff]
    %v2384 = vld [vmem:[#allocation14 + $0x3e8] sm:$0xff]
    %v2385 = vld [vmem:[#allocation14 + $0x3f0] sm:$0xff]
    %v2386 = vld [vmem:[#allocation14 + $0x3f8] sm:$0xff]
    %2387 = vmatpush.msra.mxu0 %v2319
    %2388 = vmatpush.msra.mxu0 %v2315
    %2389 = vmatpush.msra.mxu0 %v2311
    %2390 = vmatpush.msra.mxu0 %v2307
    %2391 = vmatpush.msra.mxu0 %v2303
    %2392 = vmatpush.msra.mxu0 %v2299
    %2393 = vmatpush.msra.mxu0 %v2295
    %2394 = vmatpush.msra.mxu0 %v2291
    %2395 = vmatpush.msra.mxu0 %v2287
    %2396 = vmatpush.msra.mxu0 %v2283
    %2397 = vmatpush.msra.mxu0 %v2279
    %2398 = vmatpush.msra.mxu0 %v2275
    %2399 = vmatpush.msra.mxu0 %v2271
    %2400 = vmatpush.msra.mxu0 %v2267
    %2401 = vmatpush.msra.mxu0 %v2263
    %2402 = vmatpush.msra.mxu0 %v2259
    %2403 = vmatmul.f32.gmra.mxu0 %v2257
    %v2404 = vpop.f32.mrf.mxu0
    %v2405 = vadd.f32 0.0, %v2404
    %2406 = vdwg.mxu0
    %2407 = vmatpush.msra.mxu0 %v2383
    %2408 = vmatpush.msra.mxu0 %v2379
    %2409 = vmatpush.msra.mxu0 %v2375
    %2410 = vmatpush.msra.mxu0 %v2371
    %2411 = vmatpush.msra.mxu0 %v2367
    %2412 = vmatpush.msra.mxu0 %v2363
    %2413 = vmatpush.msra.mxu0 %v2359
    %2414 = vmatpush.msra.mxu0 %v2355
    %2415 = vmatpush.msra.mxu0 %v2351
    %2416 = vmatpush.msra.mxu0 %v2347
    %2417 = vmatpush.msra.mxu0 %v2343
    %2418 = vmatpush.msra.mxu0 %v2339
    %2419 = vmatpush.msra.mxu0 %v2335
    %2420 = vmatpush.msra.mxu0 %v2331
    %2421 = vmatpush.msra.mxu0 %v2327
    %2422 = vmatpush.msra.mxu0 %v2323
    %2423 = vmatmul.f32.gmra.mxu0 %v2258
    %v2424 = vpop.f32.mrf.mxu0
    %v2425 = vadd.f32 %v2405, %v2424
    %2426 = vdwg.mxu0
    %2427 = vmatpush.msra.mxu0 %v2320
    %2428 = vmatpush.msra.mxu0 %v2316
    %2429 = vmatpush.msra.mxu0 %v2312
    %2430 = vmatpush.msra.mxu0 %v2308
    %2431 = vmatpush.msra.mxu0 %v2304
    %2432 = vmatpush.msra.mxu0 %v2300
    %2433 = vmatpush.msra.mxu0 %v2296
    %2434 = vmatpush.msra.mxu0 %v2292
    %2435 = vmatpush.msra.mxu0 %v2288
    %2436 = vmatpush.msra.mxu0 %v2284
    %2437 = vmatpush.msra.mxu0 %v2280
    %2438 = vmatpush.msra.mxu0 %v2276
    %2439 = vmatpush.msra.mxu0 %v2272
    %2440 = vmatpush.msra.mxu0 %v2268
    %2441 = vmatpush.msra.mxu0 %v2264
    %2442 = vmatpush.msra.mxu0 %v2260
    %2443 = vmatmul.f32.gmra.mxu0 %v2257
    %v2444 = vpop.f32.mrf.mxu0
    %v2445 = vadd.f32 0.0, %v2444
    %2446 = vdwg.mxu0
    %2447 = vmatpush.msra.mxu0 %v2384
    %2448 = vmatpush.msra.mxu0 %v2380
    %2449 = vmatpush.msra.mxu0 %v2376
    %2450 = vmatpush.msra.mxu0 %v2372
    %2451 = vmatpush.msra.mxu0 %v2368
    %2452 = vmatpush.msra.mxu0 %v2364
    %2453 = vmatpush.msra.mxu0 %v2360
    %2454 = vmatpush.msra.mxu0 %v2356
    %2455 = vmatpush.msra.mxu0 %v2352
    %2456 = vmatpush.msra.mxu0 %v2348
    %2457 = vmatpush.msra.mxu0 %v2344
    %2458 = vmatpush.msra.mxu0 %v2340
    %2459 = vmatpush.msra.mxu0 %v2336
    %2460 = vmatpush.msra.mxu0 %v2332
    %2461 = vmatpush.msra.mxu0 %v2328
    %2462 = vmatpush.msra.mxu0 %v2324
    %2463 = vmatmul.f32.gmra.mxu0 %v2258
    %v2464 = vpop.f32.mrf.mxu0
    %v2465 = vadd.f32 %v2445, %v2464
    %2466 = vdwg.mxu0
    %2467 = vmatpush.msra.mxu0 %v2321
    %2468 = vmatpush.msra.mxu0 %v2317
    %2469 = vmatpush.msra.mxu0 %v2313
    %2470 = vmatpush.msra.mxu0 %v2309
    %2471 = vmatpush.msra.mxu0 %v2305
    %2472 = vmatpush.msra.mxu0 %v2301
    %2473 = vmatpush.msra.mxu0 %v2297
    %2474 = vmatpush.msra.mxu0 %v2293
    %2475 = vmatpush.msra.mxu0 %v2289
    %2476 = vmatpush.msra.mxu0 %v2285
    %2477 = vmatpush.msra.mxu0 %v2281
    %2478 = vmatpush.msra.mxu0 %v2277
    %2479 = vmatpush.msra.mxu0 %v2273
    %2480 = vmatpush.msra.mxu0 %v2269
    %2481 = vmatpush.msra.mxu0 %v2265
    %2482 = vmatpush.msra.mxu0 %v2261
    %2483 = vmatmul.f32.gmra.mxu0 %v2257
    %v2484 = vpop.f32.mrf.mxu0
    %v2485 = vadd.f32 0.0, %v2484
    %2486 = vdwg.mxu0
    %2487 = vmatpush.msra.mxu0 %v2385
    %2488 = vmatpush.msra.mxu0 %v2381
    %2489 = vmatpush.msra.mxu0 %v2377
    %2490 = vmatpush.msra.mxu0 %v2373
    %2491 = vmatpush.msra.mxu0 %v2369
    %2492 = vmatpush.msra.mxu0 %v2365
    %2493 = vmatpush.msra.mxu0 %v2361
    %2494 = vmatpush.msra.mxu0 %v2357
    %2495 = vmatpush.msra.mxu0 %v2353
    %2496 = vmatpush.msra.mxu0 %v2349
    %2497 = vmatpush.msra.mxu0 %v2345
    %2498 = vmatpush.msra.mxu0 %v2341
    %2499 = vmatpush.msra.mxu0 %v2337
    %2500 = vmatpush.msra.mxu0 %v2333
    %2501 = vmatpush.msra.mxu0 %v2329
    %2502 = vmatpush.msra.mxu0 %v2325
    %2503 = vmatmul.f32.gmra.mxu0 %v2258
    %v2504 = vpop.f32.mrf.mxu0
    %v2505 = vadd.f32 %v2485, %v2504
    %2506 = vdwg.mxu0
    %2507 = vmatpush.msra.mxu0 %v2322
    %2508 = vmatpush.msra.mxu0 %v2318
    %2509 = vmatpush.msra.mxu0 %v2314
    %2510 = vmatpush.msra.mxu0 %v2310
    %2511 = vmatpush.msra.mxu0 %v2306
    %2512 = vmatpush.msra.mxu0 %v2302
    %2513 = vmatpush.msra.mxu0 %v2298
    %2514 = vmatpush.msra.mxu0 %v2294
    %2515 = vmatpush.msra.mxu0 %v2290
    %2516 = vmatpush.msra.mxu0 %v2286
    %2517 = vmatpush.msra.mxu0 %v2282
    %2518 = vmatpush.msra.mxu0 %v2278
    %2519 = vmatpush.msra.mxu0 %v2274
    %2520 = vmatpush.msra.mxu0 %v2270
    %2521 = vmatpush.msra.mxu0 %v2266
    %2522 = vmatpush.msra.mxu0 %v2262
    %2523 = vmatmul.f32.gmra.mxu0 %v2257
    %v2524 = vpop.f32.mrf.mxu0
    %v2525 = vadd.f32 0.0, %v2524
    %2526 = vdwg.mxu0
    %2527 = vmatpush.msra.mxu0 %v2386
    %2528 = vmatpush.msra.mxu0 %v2382
    %2529 = vmatpush.msra.mxu0 %v2378
    %2530 = vmatpush.msra.mxu0 %v2374
    %2531 = vmatpush.msra.mxu0 %v2370
    %2532 = vmatpush.msra.mxu0 %v2366
    %2533 = vmatpush.msra.mxu0 %v2362
    %2534 = vmatpush.msra.mxu0 %v2358
    %2535 = vmatpush.msra.mxu0 %v2354
    %2536 = vmatpush.msra.mxu0 %v2350
    %2537 = vmatpush.msra.mxu0 %v2346
    %2538 = vmatpush.msra.mxu0 %v2342
    %2539 = vmatpush.msra.mxu0 %v2338
    %2540 = vmatpush.msra.mxu0 %v2334
    %2541 = vmatpush.msra.mxu0 %v2330
    %2542 = vmatpush.msra.mxu0 %v2326
    %2543 = vmatmul.f32.gmra.mxu0 %v2258
    %v2544 = vpop.f32.mrf.mxu0
    %v2545 = vadd.f32 %v2525, %v2544
    %2546 = vdwg.mxu0
    %v2547 = vadd.f32 %v338, %v2425
    %v2548 = vadd.f32 %v378, %v2465
    %v2549 = vadd.f32 %v418, %v2505
    %v2550 = vadd.f32 %v458, %v2545
    %v2551 = vxor.u32 %v2547, 2147483648
    %v2552 = vmul.f32 %v2551, 1.442695
    %v2553 = vpow.pop %v2552
    %v2554 = vadd.f32 %v2553, 1.0
    %v2555 = vrcp.pop %v2554
    %v2556 = vmul.f32 %v2554, %v2555
    %v2557 = vsub.f32 1.0, %v2556
    %v2558 = vmul.f32 %v2555, %v2557
    %v2559 = vadd.f32 %v2555, %v2558
    %vm2560 = vweird.f32 %v2554
    %vm2561 = vweird.f32 %v2555
    %vm2562 = vmor %vm2560, %vm2561
    %v2563 = vsel %vm2562, %v2555, %v2559
    %v2564 = vand.u32 2147483647, %v2554
    %vm2565 = vcmp.eq.f32.partialorder %v2564, 8.507059e+37
    %v2566 = vand.u32 %v2554, 2147483648
    %v2567 = vor.u32 1.1754944e-38, %v2566
    %v2568 = vsel %vm2565, %v2567, %v2563
    %v2569 = vmul.f32 1.0, %v2568
    %v2570 = vxor.u32 %v2548, 2147483648
    %v2571 = vmul.f32 %v2570, 1.442695
    %v2572 = vpow.pop %v2571
    %v2573 = vadd.f32 %v2572, 1.0
    %v2574 = vrcp.pop %v2573
    %v2575 = vmul.f32 %v2573, %v2574
    %v2576 = vsub.f32 1.0, %v2575
    %v2577 = vmul.f32 %v2574, %v2576
    %v2578 = vadd.f32 %v2574, %v2577
    %vm2579 = vweird.f32 %v2573
    %vm2580 = vweird.f32 %v2574
    %vm2581 = vmor %vm2579, %vm2580
    %v2582 = vsel %vm2581, %v2574, %v2578
    %v2583 = vand.u32 2147483647, %v2573
    %vm2584 = vcmp.eq.f32.partialorder %v2583, 8.507059e+37
    %v2585 = vand.u32 %v2573, 2147483648
    %v2586 = vor.u32 1.1754944e-38, %v2585
    %v2587 = vsel %vm2584, %v2586, %v2582
    %v2588 = vmul.f32 1.0, %v2587
    %v2589 = vtanh.pop %v2549
    %v2590 = vxor.u32 %v2550, 2147483648
    %v2591 = vmul.f32 %v2590, 1.442695
    %v2592 = vpow.pop %v2591
    %v2593 = vadd.f32 %v2592, 1.0
    %v2594 = vrcp.pop %v2593
    %v2595 = vmul.f32 %v2593, %v2594
    %v2596 = vsub.f32 1.0, %v2595
    %v2597 = vmul.f32 %v2594, %v2596
    %v2598 = vadd.f32 %v2594, %v2597
    %vm2599 = vweird.f32 %v2593
    %vm2600 = vweird.f32 %v2594
    %vm2601 = vmor %vm2599, %vm2600
    %v2602 = vsel %vm2601, %v2594, %v2598
    %v2603 = vand.u32 2147483647, %v2593
    %vm2604 = vcmp.eq.f32.partialorder %v2603, 8.507059e+37
    %v2605 = vand.u32 %v2593, 2147483648
    %v2606 = vor.u32 1.1754944e-38, %v2605
    %v2607 = vsel %vm2604, %v2606, %v2602
    %v2608 = vmul.f32 1.0, %v2607
    %v2609 = vmul.f32 %v2588, %v2107
    %v2610 = vmul.f32 %v2569, %v2589
    %v2611 = vadd.f32 %v2609, %v2610
    %v2612 = vtanh.pop %v2611
    %v2613 = vmul.f32 %v2608, %v2612
    %v2614 = vadd.f32 %v2613, %v2611
    %v2615 = vld [vmem:[#allocation12] sm:$0xff]
    %v2616 = vld [vmem:[#allocation12 + $0x8] sm:$0xff]
    %v2617 = vld [vmem:[#allocation12 + $0x10] sm:$0xff]
    %v2618 = vld [vmem:[#allocation12 + $0x18] sm:$0xff]
    %v2619 = vld [vmem:[#allocation12 + $0x20] sm:$0xff]
    %v2620 = vld [vmem:[#allocation12 + $0x28] sm:$0xff]
    %v2621 = vld [vmem:[#allocation12 + $0x30] sm:$0xff]
    %v2622 = vld [vmem:[#allocation12 + $0x38] sm:$0xff]
    %v2623 = vld [vmem:[#allocation12 + $0x40] sm:$0xff]
    %v2624 = vld [vmem:[#allocation12 + $0x48] sm:$0xff]
    %v2625 = vld [vmem:[#allocation12 + $0x50] sm:$0xff]
    %v2626 = vld [vmem:[#allocation12 + $0x58] sm:$0xff]
    %v2627 = vld [vmem:[#allocation12 + $0x60] sm:$0xff]
    %v2628 = vld [vmem:[#allocation12 + $0x68] sm:$0xff]
    %v2629 = vld [vmem:[#allocation12 + $0x70] sm:$0xff]
    %v2630 = vld [vmem:[#allocation12 + $0x78] sm:$0xff]
    %v2631 = vld [vmem:[#allocation12 + $0x80] sm:$0xff]
    %v2632 = vld [vmem:[#allocation12 + $0x88] sm:$0xff]
    %v2633 = vld [vmem:[#allocation12 + $0x90] sm:$0xff]
    %v2634 = vld [vmem:[#allocation12 + $0x98] sm:$0xff]
    %v2635 = vld [vmem:[#allocation12 + $0xa0] sm:$0xff]
    %v2636 = vld [vmem:[#allocation12 + $0xa8] sm:$0xff]
    %v2637 = vld [vmem:[#allocation12 + $0xb0] sm:$0xff]
    %v2638 = vld [vmem:[#allocation12 + $0xb8] sm:$0xff]
    %v2639 = vld [vmem:[#allocation12 + $0xc0] sm:$0xff]
    %v2640 = vld [vmem:[#allocation12 + $0xc8] sm:$0xff]
    %v2641 = vld [vmem:[#allocation12 + $0xd0] sm:$0xff]
    %v2642 = vld [vmem:[#allocation12 + $0xd8] sm:$0xff]
    %v2643 = vld [vmem:[#allocation12 + $0xe0] sm:$0xff]
    %v2644 = vld [vmem:[#allocation12 + $0xe8] sm:$0xff]
    %v2645 = vld [vmem:[#allocation12 + $0xf0] sm:$0xff]
    %v2646 = vld [vmem:[#allocation12 + $0xf8] sm:$0xff]
    %2647 = vmatpush.msra.mxu0 %v2645
    %2648 = vmatpush.msra.mxu0 %v2643
    %2649 = vmatpush.msra.mxu0 %v2641
    %2650 = vmatpush.msra.mxu0 %v2639
    %2651 = vmatpush.msra.mxu0 %v2637
    %2652 = vmatpush.msra.mxu0 %v2635
    %2653 = vmatpush.msra.mxu0 %v2633
    %2654 = vmatpush.msra.mxu0 %v2631
    %2655 = vmatpush.msra.mxu0 %v2629
    %2656 = vmatpush.msra.mxu0 %v2627
    %2657 = vmatpush.msra.mxu0 %v2625
    %2658 = vmatpush.msra.mxu0 %v2623
    %2659 = vmatpush.msra.mxu0 %v2621
    %2660 = vmatpush.msra.mxu0 %v2619
    %2661 = vmatpush.msra.mxu0 %v2617
    %2662 = vmatpush.msra.mxu0 %v2615
    %2663 = vmatmul.f32.gmra.mxu0 %v2614
    %v2664 = vpop.f32.mrf.mxu0
    %v2665 = vadd.f32 0.0, %v2664
    %2666 = vdwg.mxu0
    %2667 = vmatpush.msra.mxu0 %v2646
    %2668 = vmatpush.msra.mxu0 %v2644
    %2669 = vmatpush.msra.mxu0 %v2642
    %2670 = vmatpush.msra.mxu0 %v2640
    %2671 = vmatpush.msra.mxu0 %v2638
    %2672 = vmatpush.msra.mxu0 %v2636
    %2673 = vmatpush.msra.mxu0 %v2634
    %2674 = vmatpush.msra.mxu0 %v2632
    %2675 = vmatpush.msra.mxu0 %v2630
    %2676 = vmatpush.msra.mxu0 %v2628
    %2677 = vmatpush.msra.mxu0 %v2626
    %2678 = vmatpush.msra.mxu0 %v2624
    %2679 = vmatpush.msra.mxu0 %v2622
    %2680 = vmatpush.msra.mxu0 %v2620
    %2681 = vmatpush.msra.mxu0 %v2618
    %2682 = vmatpush.msra.mxu0 %v2616
    %2683 = vmatmul.f32.gmra.mxu0 %v2614
    %v2684 = vpop.f32.mrf.mxu0
    %v2685 = vadd.f32 0.0, %v2684
    %2686 = vdwg.mxu0
    %v2687 = vadd.f32 %v539, %v2665
    %v2688 = vadd.f32 %v580, %v2685
    %v2689 = vmul.f32 %v2688, 0.5
    %v2690 = vmul.f32 %v2689, 1.442695
    %v2691 = vpow.pop %v2690
    %v2692 = vmul.f32 %v2691, %v2691
    %v2693 = vmul.f32 %v2691, %v595
    %v2694 = vadd.f32 %v2687, %v2693
    %v2695 = vld [vmem:[%s9] sm:$0xff]
    %v2696 = vld [vmem:[%s9 + $0x8] sm:$0xff]
    %v2697 = vld [vmem:[%s9 + $0x10] sm:$0xff]
    %v2698 = vld [vmem:[%s9 + $0x18] sm:$0xff]
    %v2699 = vld [vmem:[%s9 + $0x20] sm:$0xff]
    %v2700 = vld [vmem:[%s9 + $0x28] sm:$0xff]
    %v2701 = vld [vmem:[%s9 + $0x30] sm:$0xff]
    %v2702 = vld [vmem:[%s9 + $0x38] sm:$0xff]
    %v2703 = vld [vmem:[%s9 + $0x40] sm:$0xff]
    %v2704 = vld [vmem:[%s9 + $0x48] sm:$0xff]
    %v2705 = vld [vmem:[%s9 + $0x50] sm:$0xff]
    %v2706 = vld [vmem:[%s9 + $0x58] sm:$0xff]
    %v2707 = vld [vmem:[%s9 + $0x60] sm:$0xff]
    %v2708 = vld [vmem:[%s9 + $0x68] sm:$0xff]
    %v2709 = vld [vmem:[%s9 + $0x70] sm:$0xff]
    %v2710 = vld [vmem:[%s9 + $0x78] sm:$0xff]
    %v2711 = vld [vmem:[%s10] sm:$0x1]
    %v2713 = vperm.slane %v2711, 0
    %2715 = vmatpush.msra.mxu0 %v2710
    %2716 = vmatpush.msra.mxu0 %v2709
    %2717 = vmatpush.msra.mxu0 %v2708
    %2718 = vmatpush.msra.mxu0 %v2707
    %2719 = vmatpush.msra.mxu0 %v2706
    %2720 = vmatpush.msra.mxu0 %v2705
    %2721 = vmatpush.msra.mxu0 %v2704
    %2722 = vmatpush.msra.mxu0 %v2703
    %2723 = vmatpush.msra.mxu0 %v2702
    %2724 = vmatpush.msra.mxu0 %v2701
    %2725 = vmatpush.msra.mxu0 %v2700
    %2726 = vmatpush.msra.mxu0 %v2699
    %2727 = vmatpush.msra.mxu0 %v2698
    %2728 = vmatpush.msra.mxu0 %v2697
    %2729 = vmatpush.msra.mxu0 %v2696
    %2730 = vmatpush.msra.mxu0 %v2695
    %2731 = vmatmul.f32.gmra.mxu0 %v2694
    %v2732 = vpop.f32.mrf.mxu0
    %v2733 = vadd.f32 %v2713, %v2732
    %2734 = vdwg.mxu0
    %v2735 = vmax.f32 %v2733, 0.0
    %vm2736 = vcmp.ne.f32.partialorder %v2733, %v2733
    %v2737 = vadd.f32 %v2733, 0.0
    %v2738 = vand.u32 2147483647, %v2733
    %v2739 = vsub.f32 0.0, %v2738
    %v2740 = vmul.f32 %v2739, 1.442695
    %v2741 = vpow.pop %v2740
    %v2742 = vadd.f32 %v2741, 1.0
    %v2743 = vlog2.pop %v2742
    %v2744 = vmul.f32 %v2743, 0.6931472
    %v2745 = vmul.f32 -0.5, %v2741
    %v2746 = vadd.f32 %v2745, 1.0
    %v2747 = vmul.f32 %v2746, %v2741
    %v2748 = vand.u32 2147483647, %v2741
    %vm2749 = vcmp.lt.f32.partialorder %v2748, 0.0004427343
    %v2750 = vsel %vm2749, %v2747, %v2744
    %v2751 = vadd.f32 %v2735, %v2750
    %v2752 = vsel %vm2736, %v2737, %v2751
    %v2753 = vadd.f32 %v2688, 1.0
    %v2754 = vmul.f32 %v2687, %v2687
    %v2755 = vsub.f32 %v2753, %v2754
    %v2756 = vsub.f32 %v2755, %v2692
    %v2757 = vadd.f32 %v2253, %v2756
    %2758 = vst [vmem:[#allocation3 + $0x20] sm:$0xff] %v2752
    %2759 = vst [vmem:[#allocation2] sm:$0xff] %v2752
    %2760 = vst [vmem:[#allocation2 + $0x8] sm:$0xff] %v2613
    %v2761 = vld [vmem:[#allocation2] sm:$0xff]
    %v2762 = vld [vmem:[#allocation2 + $0x8] sm:$0xff]
    %v2763 = vld [vmem:[#allocation14] sm:$0xff]
    %v2764 = vld [vmem:[#allocation14 + $0x8] sm:$0xff]
    %v2765 = vld [vmem:[#allocation14 + $0x10] sm:$0xff]
    %v2766 = vld [vmem:[#allocation14 + $0x18] sm:$0xff]
    %v2767 = vld [vmem:[#allocation14 + $0x20] sm:$0xff]
    %v2768 = vld [vmem:[#allocation14 + $0x28] sm:$0xff]
    %v2769 = vld [vmem:[#allocation14 + $0x30] sm:$0xff]
    %v2770 = vld [vmem:[#allocation14 + $0x38] sm:$0xff]
    %v2771 = vld [vmem:[#allocation14 + $0x40] sm:$0xff]
    %v2772 = vld [vmem:[#allocation14 + $0x48] sm:$0xff]
    %v2773 = vld [vmem:[#allocation14 + $0x50] sm:$0xff]
    %v2774 = vld [vmem:[#allocation14 + $0x58] sm:$0xff]
    %v2775 = vld [vmem:[#allocation14 + $0x60] sm:$0xff]
    %v2776 = vld [vmem:[#allocation14 + $0x68] sm:$0xff]
    %v2777 = vld [vmem:[#allocation14 + $0x70] sm:$0xff]
    %v2778 = vld [vmem:[#allocation14 + $0x78] sm:$0xff]
    %v2779 = vld [vmem:[#allocation14 + $0x80] sm:$0xff]
    %v2780 = vld [vmem:[#allocation14 + $0x88] sm:$0xff]
    %v2781 = vld [vmem:[#allocation14 + $0x90] sm:$0xff]
    %v2782 = vld [vmem:[#allocation14 + $0x98] sm:$0xff]
    %v2783 = vld [vmem:[#allocation14 + $0xa0] sm:$0xff]
    %v2784 = vld [vmem:[#allocation14 + $0xa8] sm:$0xff]
    %v2785 = vld [vmem:[#allocation14 + $0xb0] sm:$0xff]
    %v2786 = vld [vmem:[#allocation14 + $0xb8] sm:$0xff]
    %v2787 = vld [vmem:[#allocation14 + $0xc0] sm:$0xff]
    %v2788 = vld [vmem:[#allocation14 + $0xc8] sm:$0xff]
    %v2789 = vld [vmem:[#allocation14 + $0xd0] sm:$0xff]
    %v2790 = vld [vmem:[#allocation14 + $0xd8] sm:$0xff]
    %v2791 = vld [vmem:[#allocation14 + $0xe0] sm:$0xff]
    %v2792 = vld [vmem:[#allocation14 + $0xe8] sm:$0xff]
    %v2793 = vld [vmem:[#allocation14 + $0xf0] sm:$0xff]
    %v2794 = vld [vmem:[#allocation14 + $0xf8] sm:$0xff]
    %v2795 = vld [vmem:[#allocation14 + $0x100] sm:$0xff]
    %v2796 = vld [vmem:[#allocation14 + $0x108] sm:$0xff]
    %v2797 = vld [vmem:[#allocation14 + $0x110] sm:$0xff]
    %v2798 = vld [vmem:[#allocation14 + $0x118] sm:$0xff]
    %v2799 = vld [vmem:[#allocation14 + $0x120] sm:$0xff]
    %v2800 = vld [vmem:[#allocation14 + $0x128] sm:$0xff]
    %v2801 = vld [vmem:[#allocation14 + $0x130] sm:$0xff]
    %v2802 = vld [vmem:[#allocation14 + $0x138] sm:$0xff]
    %v2803 = vld [vmem:[#allocation14 + $0x140] sm:$0xff]
    %v2804 = vld [vmem:[#allocation14 + $0x148] sm:$0xff]
    %v2805 = vld [vmem:[#allocation14 + $0x150] sm:$0xff]
    %v2806 = vld [vmem:[#allocation14 + $0x158] sm:$0xff]
    %v2807 = vld [vmem:[#allocation14 + $0x160] sm:$0xff]
    %v2808 = vld [vmem:[#allocation14 + $0x168] sm:$0xff]
    %v2809 = vld [vmem:[#allocation14 + $0x170] sm:$0xff]
    %v2810 = vld [vmem:[#allocation14 + $0x178] sm:$0xff]
    %v2811 = vld [vmem:[#allocation14 + $0x180] sm:$0xff]
    %v2812 = vld [vmem:[#allocation14 + $0x188] sm:$0xff]
    %v2813 = vld [vmem:[#allocation14 + $0x190] sm:$0xff]
    %v2814 = vld [vmem:[#allocation14 + $0x198] sm:$0xff]
    %v2815 = vld [vmem:[#allocation14 + $0x1a0] sm:$0xff]
    %v2816 = vld [vmem:[#allocation14 + $0x1a8] sm:$0xff]
    %v2817 = vld [vmem:[#allocation14 + $0x1b0] sm:$0xff]
    %v2818 = vld [vmem:[#allocation14 + $0x1b8] sm:$0xff]
    %v2819 = vld [vmem:[#allocation14 + $0x1c0] sm:$0xff]
    %v2820 = vld [vmem:[#allocation14 + $0x1c8] sm:$0xff]
    %v2821 = vld [vmem:[#allocation14 + $0x1d0] sm:$0xff]
    %v2822 = vld [vmem:[#allocation14 + $0x1d8] sm:$0xff]
    %v2823 = vld [vmem:[#allocation14 + $0x1e0] sm:$0xff]
    %v2824 = vld [vmem:[#allocation14 + $0x1e8] sm:$0xff]
    %v2825 = vld [vmem:[#allocation14 + $0x1f0] sm:$0xff]
    %v2826 = vld [vmem:[#allocation14 + $0x1f8] sm:$0xff]
    %v2827 = vld [vmem:[#allocation14 + $0x200] sm:$0xff]
    %v2828 = vld [vmem:[#allocation14 + $0x208] sm:$0xff]
    %v2829 = vld [vmem:[#allocation14 + $0x210] sm:$0xff]
    %v2830 = vld [vmem:[#allocation14 + $0x218] sm:$0xff]
    %v2831 = vld [vmem:[#allocation14 + $0x220] sm:$0xff]
    %v2832 = vld [vmem:[#allocation14 + $0x228] sm:$0xff]
    %v2833 = vld [vmem:[#allocation14 + $0x230] sm:$0xff]
    %v2834 = vld [vmem:[#allocation14 + $0x238] sm:$0xff]
    %v2835 = vld [vmem:[#allocation14 + $0x240] sm:$0xff]
    %v2836 = vld [vmem:[#allocation14 + $0x248] sm:$0xff]
    %v2837 = vld [vmem:[#allocation14 + $0x250] sm:$0xff]
    %v2838 = vld [vmem:[#allocation14 + $0x258] sm:$0xff]
    %v2839 = vld [vmem:[#allocation14 + $0x260] sm:$0xff]
    %v2840 = vld [vmem:[#allocation14 + $0x268] sm:$0xff]
    %v2841 = vld [vmem:[#allocation14 + $0x270] sm:$0xff]
    %v2842 = vld [vmem:[#allocation14 + $0x278] sm:$0xff]
    %v2843 = vld [vmem:[#allocation14 + $0x280] sm:$0xff]
    %v2844 = vld [vmem:[#allocation14 + $0x288] sm:$0xff]
    %v2845 = vld [vmem:[#allocation14 + $0x290] sm:$0xff]
    %v2846 = vld [vmem:[#allocation14 + $0x298] sm:$0xff]
    %v2847 = vld [vmem:[#allocation14 + $0x2a0] sm:$0xff]
    %v2848 = vld [vmem:[#allocation14 + $0x2a8] sm:$0xff]
    %v2849 = vld [vmem:[#allocation14 + $0x2b0] sm:$0xff]
    %v2850 = vld [vmem:[#allocation14 + $0x2b8] sm:$0xff]
    %v2851 = vld [vmem:[#allocation14 + $0x2c0] sm:$0xff]
    %v2852 = vld [vmem:[#allocation14 + $0x2c8] sm:$0xff]
    %v2853 = vld [vmem:[#allocation14 + $0x2d0] sm:$0xff]
    %v2854 = vld [vmem:[#allocation14 + $0x2d8] sm:$0xff]
    %v2855 = vld [vmem:[#allocation14 + $0x2e0] sm:$0xff]
    %v2856 = vld [vmem:[#allocation14 + $0x2e8] sm:$0xff]
    %v2857 = vld [vmem:[#allocation14 + $0x2f0] sm:$0xff]
    %v2858 = vld [vmem:[#allocation14 + $0x2f8] sm:$0xff]
    %v2859 = vld [vmem:[#allocation14 + $0x300] sm:$0xff]
    %v2860 = vld [vmem:[#allocation14 + $0x308] sm:$0xff]
    %v2861 = vld [vmem:[#allocation14 + $0x310] sm:$0xff]
    %v2862 = vld [vmem:[#allocation14 + $0x318] sm:$0xff]
    %v2863 = vld [vmem:[#allocation14 + $0x320] sm:$0xff]
    %v2864 = vld [vmem:[#allocation14 + $0x328] sm:$0xff]
    %v2865 = vld [vmem:[#allocation14 + $0x330] sm:$0xff]
    %v2866 = vld [vmem:[#allocation14 + $0x338] sm:$0xff]
    %v2867 = vld [vmem:[#allocation14 + $0x340] sm:$0xff]
    %v2868 = vld [vmem:[#allocation14 + $0x348] sm:$0xff]
    %v2869 = vld [vmem:[#allocation14 + $0x350] sm:$0xff]
    %v2870 = vld [vmem:[#allocation14 + $0x358] sm:$0xff]
    %v2871 = vld [vmem:[#allocation14 + $0x360] sm:$0xff]
    %v2872 = vld [vmem:[#allocation14 + $0x368] sm:$0xff]
    %v2873 = vld [vmem:[#allocation14 + $0x370] sm:$0xff]
    %v2874 = vld [vmem:[#allocation14 + $0x378] sm:$0xff]
    %v2875 = vld [vmem:[#allocation14 + $0x380] sm:$0xff]
    %v2876 = vld [vmem:[#allocation14 + $0x388] sm:$0xff]
    %v2877 = vld [vmem:[#allocation14 + $0x390] sm:$0xff]
    %v2878 = vld [vmem:[#allocation14 + $0x398] sm:$0xff]
    %v2879 = vld [vmem:[#allocation14 + $0x3a0] sm:$0xff]
    %v2880 = vld [vmem:[#allocation14 + $0x3a8] sm:$0xff]
    %v2881 = vld [vmem:[#allocation14 + $0x3b0] sm:$0xff]
    %v2882 = vld [vmem:[#allocation14 + $0x3b8] sm:$0xff]
    %v2883 = vld [vmem:[#allocation14 + $0x3c0] sm:$0xff]
    %v2884 = vld [vmem:[#allocation14 + $0x3c8] sm:$0xff]
    %v2885 = vld [vmem:[#allocation14 + $0x3d0] sm:$0xff]
    %v2886 = vld [vmem:[#allocation14 + $0x3d8] sm:$0xff]
    %v2887 = vld [vmem:[#allocation14 + $0x3e0] sm:$0xff]
    %v2888 = vld [vmem:[#allocation14 + $0x3e8] sm:$0xff]
    %v2889 = vld [vmem:[#allocation14 + $0x3f0] sm:$0xff]
    %v2890 = vld [vmem:[#allocation14 + $0x3f8] sm:$0xff]
    %2891 = vmatpush.msra.mxu0 %v2823
    %2892 = vmatpush.msra.mxu0 %v2819
    %2893 = vmatpush.msra.mxu0 %v2815
    %2894 = vmatpush.msra.mxu0 %v2811
    %2895 = vmatpush.msra.mxu0 %v2807
    %2896 = vmatpush.msra.mxu0 %v2803
    %2897 = vmatpush.msra.mxu0 %v2799
    %2898 = vmatpush.msra.mxu0 %v2795
    %2899 = vmatpush.msra.mxu0 %v2791
    %2900 = vmatpush.msra.mxu0 %v2787
    %2901 = vmatpush.msra.mxu0 %v2783
    %2902 = vmatpush.msra.mxu0 %v2779
    %2903 = vmatpush.msra.mxu0 %v2775
    %2904 = vmatpush.msra.mxu0 %v2771
    %2905 = vmatpush.msra.mxu0 %v2767
    %2906 = vmatpush.msra.mxu0 %v2763
    %2907 = vmatmul.f32.gmra.mxu0 %v2761
    %v2908 = vpop.f32.mrf.mxu0
    %v2909 = vadd.f32 0.0, %v2908
    %2910 = vdwg.mxu0
    %2911 = vmatpush.msra.mxu0 %v2887
    %2912 = vmatpush.msra.mxu0 %v2883
    %2913 = vmatpush.msra.mxu0 %v2879
    %2914 = vmatpush.msra.mxu0 %v2875
    %2915 = vmatpush.msra.mxu0 %v2871
    %2916 = vmatpush.msra.mxu0 %v2867
    %2917 = vmatpush.msra.mxu0 %v2863
    %2918 = vmatpush.msra.mxu0 %v2859
    %2919 = vmatpush.msra.mxu0 %v2855
    %2920 = vmatpush.msra.mxu0 %v2851
    %2921 = vmatpush.msra.mxu0 %v2847
    %2922 = vmatpush.msra.mxu0 %v2843
    %2923 = vmatpush.msra.mxu0 %v2839
    %2924 = vmatpush.msra.mxu0 %v2835
    %2925 = vmatpush.msra.mxu0 %v2831
    %2926 = vmatpush.msra.mxu0 %v2827
    %2927 = vmatmul.f32.gmra.mxu0 %v2762
    %v2928 = vpop.f32.mrf.mxu0
    %v2929 = vadd.f32 %v2909, %v2928
    %2930 = vdwg.mxu0
    %2931 = vmatpush.msra.mxu0 %v2824
    %2932 = vmatpush.msra.mxu0 %v2820
    %2933 = vmatpush.msra.mxu0 %v2816
    %2934 = vmatpush.msra.mxu0 %v2812
    %2935 = vmatpush.msra.mxu0 %v2808
    %2936 = vmatpush.msra.mxu0 %v2804
    %2937 = vmatpush.msra.mxu0 %v2800
    %2938 = vmatpush.msra.mxu0 %v2796
    %2939 = vmatpush.msra.mxu0 %v2792
    %2940 = vmatpush.msra.mxu0 %v2788
    %2941 = vmatpush.msra.mxu0 %v2784
    %2942 = vmatpush.msra.mxu0 %v2780
    %2943 = vmatpush.msra.mxu0 %v2776
    %2944 = vmatpush.msra.mxu0 %v2772
    %2945 = vmatpush.msra.mxu0 %v2768
    %2946 = vmatpush.msra.mxu0 %v2764
    %2947 = vmatmul.f32.gmra.mxu0 %v2761
    %v2948 = vpop.f32.mrf.mxu0
    %v2949 = vadd.f32 0.0, %v2948
    %2950 = vdwg.mxu0
    %2951 = vmatpush.msra.mxu0 %v2888
    %2952 = vmatpush.msra.mxu0 %v2884
    %2953 = vmatpush.msra.mxu0 %v2880
    %2954 = vmatpush.msra.mxu0 %v2876
    %2955 = vmatpush.msra.mxu0 %v2872
    %2956 = vmatpush.msra.mxu0 %v2868
    %2957 = vmatpush.msra.mxu0 %v2864
    %2958 = vmatpush.msra.mxu0 %v2860
    %2959 = vmatpush.msra.mxu0 %v2856
    %2960 = vmatpush.msra.mxu0 %v2852
    %2961 = vmatpush.msra.mxu0 %v2848
    %2962 = vmatpush.msra.mxu0 %v2844
    %2963 = vmatpush.msra.mxu0 %v2840
    %2964 = vmatpush.msra.mxu0 %v2836
    %2965 = vmatpush.msra.mxu0 %v2832
    %2966 = vmatpush.msra.mxu0 %v2828
    %2967 = vmatmul.f32.gmra.mxu0 %v2762
    %v2968 = vpop.f32.mrf.mxu0
    %v2969 = vadd.f32 %v2949, %v2968
    %2970 = vdwg.mxu0
    %2971 = vmatpush.msra.mxu0 %v2825
    %2972 = vmatpush.msra.mxu0 %v2821
    %2973 = vmatpush.msra.mxu0 %v2817
    %2974 = vmatpush.msra.mxu0 %v2813
    %2975 = vmatpush.msra.mxu0 %v2809
    %2976 = vmatpush.msra.mxu0 %v2805
    %2977 = vmatpush.msra.mxu0 %v2801
    %2978 = vmatpush.msra.mxu0 %v2797
    %2979 = vmatpush.msra.mxu0 %v2793
    %2980 = vmatpush.msra.mxu0 %v2789
    %2981 = vmatpush.msra.mxu0 %v2785
    %2982 = vmatpush.msra.mxu0 %v2781
    %2983 = vmatpush.msra.mxu0 %v2777
    %2984 = vmatpush.msra.mxu0 %v2773
    %2985 = vmatpush.msra.mxu0 %v2769
    %2986 = vmatpush.msra.mxu0 %v2765
    %2987 = vmatmul.f32.gmra.mxu0 %v2761
    %v2988 = vpop.f32.mrf.mxu0
    %v2989 = vadd.f32 0.0, %v2988
    %2990 = vdwg.mxu0
    %2991 = vmatpush.msra.mxu0 %v2889
    %2992 = vmatpush.msra.mxu0 %v2885
    %2993 = vmatpush.msra.mxu0 %v2881
    %2994 = vmatpush.msra.mxu0 %v2877
    %2995 = vmatpush.msra.mxu0 %v2873
    %2996 = vmatpush.msra.mxu0 %v2869
    %2997 = vmatpush.msra.mxu0 %v2865
    %2998 = vmatpush.msra.mxu0 %v2861
    %2999 = vmatpush.msra.mxu0 %v2857
    %3000 = vmatpush.msra.mxu0 %v2853
    %3001 = vmatpush.msra.mxu0 %v2849
    %3002 = vmatpush.msra.mxu0 %v2845
    %3003 = vmatpush.msra.mxu0 %v2841
    %3004 = vmatpush.msra.mxu0 %v2837
    %3005 = vmatpush.msra.mxu0 %v2833
    %3006 = vmatpush.msra.mxu0 %v2829
    %3007 = vmatmul.f32.gmra.mxu0 %v2762
    %v3008 = vpop.f32.mrf.mxu0
    %v3009 = vadd.f32 %v2989, %v3008
    %3010 = vdwg.mxu0
    %3011 = vmatpush.msra.mxu0 %v2826
    %3012 = vmatpush.msra.mxu0 %v2822
    %3013 = vmatpush.msra.mxu0 %v2818
    %3014 = vmatpush.msra.mxu0 %v2814
    %3015 = vmatpush.msra.mxu0 %v2810
    %3016 = vmatpush.msra.mxu0 %v2806
    %3017 = vmatpush.msra.mxu0 %v2802
    %3018 = vmatpush.msra.mxu0 %v2798
    %3019 = vmatpush.msra.mxu0 %v2794
    %3020 = vmatpush.msra.mxu0 %v2790
    %3021 = vmatpush.msra.mxu0 %v2786
    %3022 = vmatpush.msra.mxu0 %v2782
    %3023 = vmatpush.msra.mxu0 %v2778
    %3024 = vmatpush.msra.mxu0 %v2774
    %3025 = vmatpush.msra.mxu0 %v2770
    %3026 = vmatpush.msra.mxu0 %v2766
    %3027 = vmatmul.f32.gmra.mxu0 %v2761
    %v3028 = vpop.f32.mrf.mxu0
    %v3029 = vadd.f32 0.0, %v3028
    %3030 = vdwg.mxu0
    %3031 = vmatpush.msra.mxu0 %v2890
    %3032 = vmatpush.msra.mxu0 %v2886
    %3033 = vmatpush.msra.mxu0 %v2882
    %3034 = vmatpush.msra.mxu0 %v2878
    %3035 = vmatpush.msra.mxu0 %v2874
    %3036 = vmatpush.msra.mxu0 %v2870
    %3037 = vmatpush.msra.mxu0 %v2866
    %3038 = vmatpush.msra.mxu0 %v2862
    %3039 = vmatpush.msra.mxu0 %v2858
    %3040 = vmatpush.msra.mxu0 %v2854
    %3041 = vmatpush.msra.mxu0 %v2850
    %3042 = vmatpush.msra.mxu0 %v2846
    %3043 = vmatpush.msra.mxu0 %v2842
    %3044 = vmatpush.msra.mxu0 %v2838
    %3045 = vmatpush.msra.mxu0 %v2834
    %3046 = vmatpush.msra.mxu0 %v2830
    %3047 = vmatmul.f32.gmra.mxu0 %v2762
    %v3048 = vpop.f32.mrf.mxu0
    %v3049 = vadd.f32 %v3029, %v3048
    %3050 = vdwg.mxu0
    %v3051 = vadd.f32 %v341, %v2929
    %v3052 = vadd.f32 %v381, %v2969
    %v3053 = vadd.f32 %v421, %v3009
    %v3054 = vadd.f32 %v461, %v3049
    %v3055 = vxor.u32 %v3051, 2147483648
    %v3056 = vmul.f32 %v3055, 1.442695
    %v3057 = vpow.pop %v3056
    %v3058 = vadd.f32 %v3057, 1.0
    %v3059 = vrcp.pop %v3058
    %v3060 = vmul.f32 %v3058, %v3059
    %v3061 = vsub.f32 1.0, %v3060
    %v3062 = vmul.f32 %v3059, %v3061
    %v3063 = vadd.f32 %v3059, %v3062
    %vm3064 = vweird.f32 %v3058
    %vm3065 = vweird.f32 %v3059
    %vm3066 = vmor %vm3064, %vm3065
    %v3067 = vsel %vm3066, %v3059, %v3063
    %v3068 = vand.u32 2147483647, %v3058
    %vm3069 = vcmp.eq.f32.partialorder %v3068, 8.507059e+37
    %v3070 = vand.u32 %v3058, 2147483648
    %v3071 = vor.u32 1.1754944e-38, %v3070
    %v3072 = vsel %vm3069, %v3071, %v3067
    %v3073 = vmul.f32 1.0, %v3072
    %v3074 = vxor.u32 %v3052, 2147483648
    %v3075 = vmul.f32 %v3074, 1.442695
    %v3076 = vpow.pop %v3075
    %v3077 = vadd.f32 %v3076, 1.0
    %v3078 = vrcp.pop %v3077
    %v3079 = vmul.f32 %v3077, %v3078
    %v3080 = vsub.f32 1.0, %v3079
    %v3081 = vmul.f32 %v3078, %v3080
    %v3082 = vadd.f32 %v3078, %v3081
    %vm3083 = vweird.f32 %v3077
    %vm3084 = vweird.f32 %v3078
    %vm3085 = vmor %vm3083, %vm3084
    %v3086 = vsel %vm3085, %v3078, %v3082
    %v3087 = vand.u32 2147483647, %v3077
    %vm3088 = vcmp.eq.f32.partialorder %v3087, 8.507059e+37
    %v3089 = vand.u32 %v3077, 2147483648
    %v3090 = vor.u32 1.1754944e-38, %v3089
    %v3091 = vsel %vm3088, %v3090, %v3086
    %v3092 = vmul.f32 1.0, %v3091
    %v3093 = vtanh.pop %v3053
    %v3094 = vxor.u32 %v3054, 2147483648
    %v3095 = vmul.f32 %v3094, 1.442695
    %v3096 = vpow.pop %v3095
    %v3097 = vadd.f32 %v3096, 1.0
    %v3098 = vrcp.pop %v3097
    %v3099 = vmul.f32 %v3097, %v3098
    %v3100 = vsub.f32 1.0, %v3099
    %v3101 = vmul.f32 %v3098, %v3100
    %v3102 = vadd.f32 %v3098, %v3101
    %vm3103 = vweird.f32 %v3097
    %vm3104 = vweird.f32 %v3098
    %vm3105 = vmor %vm3103, %vm3104
    %v3106 = vsel %vm3105, %v3098, %v3102
    %v3107 = vand.u32 2147483647, %v3097
    %vm3108 = vcmp.eq.f32.partialorder %v3107, 8.507059e+37
    %v3109 = vand.u32 %v3097, 2147483648
    %v3110 = vor.u32 1.1754944e-38, %v3109
    %v3111 = vsel %vm3108, %v3110, %v3106
    %v3112 = vmul.f32 1.0, %v3111
    %v3113 = vmul.f32 %v3092, %v2611
    %v3114 = vmul.f32 %v3073, %v3093
    %v3115 = vadd.f32 %v3113, %v3114
    %v3116 = vtanh.pop %v3115
    %v3117 = vmul.f32 %v3112, %v3116
    %v3118 = vadd.f32 %v3117, %v3115
    %v3119 = vld [vmem:[#allocation12] sm:$0xff]
    %v3120 = vld [vmem:[#allocation12 + $0x8] sm:$0xff]
    %v3121 = vld [vmem:[#allocation12 + $0x10] sm:$0xff]
    %v3122 = vld [vmem:[#allocation12 + $0x18] sm:$0xff]
    %v3123 = vld [vmem:[#allocation12 + $0x20] sm:$0xff]
    %v3124 = vld [vmem:[#allocation12 + $0x28] sm:$0xff]
    %v3125 = vld [vmem:[#allocation12 + $0x30] sm:$0xff]
    %v3126 = vld [vmem:[#allocation12 + $0x38] sm:$0xff]
    %v3127 = vld [vmem:[#allocation12 + $0x40] sm:$0xff]
    %v3128 = vld [vmem:[#allocation12 + $0x48] sm:$0xff]
    %v3129 = vld [vmem:[#allocation12 + $0x50] sm:$0xff]
    %v3130 = vld [vmem:[#allocation12 + $0x58] sm:$0xff]
    %v3131 = vld [vmem:[#allocation12 + $0x60] sm:$0xff]
    %v3132 = vld [vmem:[#allocation12 + $0x68] sm:$0xff]
    %v3133 = vld [vmem:[#allocation12 + $0x70] sm:$0xff]
    %v3134 = vld [vmem:[#allocation12 + $0x78] sm:$0xff]
    %v3135 = vld [vmem:[#allocation12 + $0x80] sm:$0xff]
    %v3136 = vld [vmem:[#allocation12 + $0x88] sm:$0xff]
    %v3137 = vld [vmem:[#allocation12 + $0x90] sm:$0xff]
    %v3138 = vld [vmem:[#allocation12 + $0x98] sm:$0xff]
    %v3139 = vld [vmem:[#allocation12 + $0xa0] sm:$0xff]
    %v3140 = vld [vmem:[#allocation12 + $0xa8] sm:$0xff]
    %v3141 = vld [vmem:[#allocation12 + $0xb0] sm:$0xff]
    %v3142 = vld [vmem:[#allocation12 + $0xb8] sm:$0xff]
    %v3143 = vld [vmem:[#allocation12 + $0xc0] sm:$0xff]
    %v3144 = vld [vmem:[#allocation12 + $0xc8] sm:$0xff]
    %v3145 = vld [vmem:[#allocation12 + $0xd0] sm:$0xff]
    %v3146 = vld [vmem:[#allocation12 + $0xd8] sm:$0xff]
    %v3147 = vld [vmem:[#allocation12 + $0xe0] sm:$0xff]
    %v3148 = vld [vmem:[#allocation12 + $0xe8] sm:$0xff]
    %v3149 = vld [vmem:[#allocation12 + $0xf0] sm:$0xff]
    %v3150 = vld [vmem:[#allocation12 + $0xf8] sm:$0xff]
    %3151 = vmatpush.msra.mxu0 %v3149
    %3152 = vmatpush.msra.mxu0 %v3147
    %3153 = vmatpush.msra.mxu0 %v3145
    %3154 = vmatpush.msra.mxu0 %v3143
    %3155 = vmatpush.msra.mxu0 %v3141
    %3156 = vmatpush.msra.mxu0 %v3139
    %3157 = vmatpush.msra.mxu0 %v3137
    %3158 = vmatpush.msra.mxu0 %v3135
    %3159 = vmatpush.msra.mxu0 %v3133
    %3160 = vmatpush.msra.mxu0 %v3131
    %3161 = vmatpush.msra.mxu0 %v3129
    %3162 = vmatpush.msra.mxu0 %v3127
    %3163 = vmatpush.msra.mxu0 %v3125
    %3164 = vmatpush.msra.mxu0 %v3123
    %3165 = vmatpush.msra.mxu0 %v3121
    %3166 = vmatpush.msra.mxu0 %v3119
    %3167 = vmatmul.f32.gmra.mxu0 %v3118
    %v3168 = vpop.f32.mrf.mxu0
    %v3169 = vadd.f32 0.0, %v3168
    %3170 = vdwg.mxu0
    %3171 = vmatpush.msra.mxu0 %v3150
    %3172 = vmatpush.msra.mxu0 %v3148
    %3173 = vmatpush.msra.mxu0 %v3146
    %3174 = vmatpush.msra.mxu0 %v3144
    %3175 = vmatpush.msra.mxu0 %v3142
    %3176 = vmatpush.msra.mxu0 %v3140
    %3177 = vmatpush.msra.mxu0 %v3138
    %3178 = vmatpush.msra.mxu0 %v3136
    %3179 = vmatpush.msra.mxu0 %v3134
    %3180 = vmatpush.msra.mxu0 %v3132
    %3181 = vmatpush.msra.mxu0 %v3130
    %3182 = vmatpush.msra.mxu0 %v3128
    %3183 = vmatpush.msra.mxu0 %v3126
    %3184 = vmatpush.msra.mxu0 %v3124
    %3185 = vmatpush.msra.mxu0 %v3122
    %3186 = vmatpush.msra.mxu0 %v3120
    %3187 = vmatmul.f32.gmra.mxu0 %v3118
    %v3188 = vpop.f32.mrf.mxu0
    %v3189 = vadd.f32 0.0, %v3188
    %3190 = vdwg.mxu0
    %v3191 = vadd.f32 %v542, %v3169
    %v3192 = vadd.f32 %v583, %v3189
    %v3193 = vmul.f32 %v3192, 0.5
    %v3194 = vmul.f32 %v3193, 1.442695
    %v3195 = vpow.pop %v3194
    %v3196 = vmul.f32 %v3195, %v3195
    %v3197 = vmul.f32 %v3195, %v596
    %v3198 = vadd.f32 %v3191, %v3197
    %v3199 = vld [vmem:[%s9] sm:$0xff]
    %v3200 = vld [vmem:[%s9 + $0x8] sm:$0xff]
    %v3201 = vld [vmem:[%s9 + $0x10] sm:$0xff]
    %v3202 = vld [vmem:[%s9 + $0x18] sm:$0xff]
    %v3203 = vld [vmem:[%s9 + $0x20] sm:$0xff]
    %v3204 = vld [vmem:[%s9 + $0x28] sm:$0xff]
    %v3205 = vld [vmem:[%s9 + $0x30] sm:$0xff]
    %v3206 = vld [vmem:[%s9 + $0x38] sm:$0xff]
    %v3207 = vld [vmem:[%s9 + $0x40] sm:$0xff]
    %v3208 = vld [vmem:[%s9 + $0x48] sm:$0xff]
    %v3209 = vld [vmem:[%s9 + $0x50] sm:$0xff]
    %v3210 = vld [vmem:[%s9 + $0x58] sm:$0xff]
    %v3211 = vld [vmem:[%s9 + $0x60] sm:$0xff]
    %v3212 = vld [vmem:[%s9 + $0x68] sm:$0xff]
    %v3213 = vld [vmem:[%s9 + $0x70] sm:$0xff]
    %v3214 = vld [vmem:[%s9 + $0x78] sm:$0xff]
    %v3215 = vld [vmem:[%s10] sm:$0x1]
    %v3217 = vperm.slane %v3215, 0
    %3219 = vmatpush.msra.mxu0 %v3214
    %3220 = vmatpush.msra.mxu0 %v3213
    %3221 = vmatpush.msra.mxu0 %v3212
    %3222 = vmatpush.msra.mxu0 %v3211
    %3223 = vmatpush.msra.mxu0 %v3210
    %3224 = vmatpush.msra.mxu0 %v3209
    %3225 = vmatpush.msra.mxu0 %v3208
    %3226 = vmatpush.msra.mxu0 %v3207
    %3227 = vmatpush.msra.mxu0 %v3206
    %3228 = vmatpush.msra.mxu0 %v3205
    %3229 = vmatpush.msra.mxu0 %v3204
    %3230 = vmatpush.msra.mxu0 %v3203
    %3231 = vmatpush.msra.mxu0 %v3202
    %3232 = vmatpush.msra.mxu0 %v3201
    %3233 = vmatpush.msra.mxu0 %v3200
    %3234 = vmatpush.msra.mxu0 %v3199
    %3235 = vmatmul.f32.gmra.mxu0 %v3198
    %v3236 = vpop.f32.mrf.mxu0
    %v3237 = vadd.f32 %v3217, %v3236
    %3238 = vdwg.mxu0
    %v3239 = vmax.f32 %v3237, 0.0
    %vm3240 = vcmp.ne.f32.partialorder %v3237, %v3237
    %v3241 = vadd.f32 %v3237, 0.0
    %v3242 = vand.u32 2147483647, %v3237
    %v3243 = vsub.f32 0.0, %v3242
    %v3244 = vmul.f32 %v3243, 1.442695
    %v3245 = vpow.pop %v3244
    %v3246 = vadd.f32 %v3245, 1.0
    %v3247 = vlog2.pop %v3246
    %v3248 = vmul.f32 %v3247, 0.6931472
    %v3249 = vmul.f32 -0.5, %v3245
    %v3250 = vadd.f32 %v3249, 1.0
    %v3251 = vmul.f32 %v3250, %v3245
    %v3252 = vand.u32 2147483647, %v3245
    %vm3253 = vcmp.lt.f32.partialorder %v3252, 0.0004427343
    %v3254 = vsel %vm3253, %v3251, %v3248
    %v3255 = vadd.f32 %v3239, %v3254
    %v3256 = vsel %vm3240, %v3241, %v3255
    %v3257 = vadd.f32 %v3192, 1.0
    %v3258 = vmul.f32 %v3191, %v3191
    %v3259 = vsub.f32 %v3257, %v3258
    %v3260 = vsub.f32 %v3259, %v3196
    %v3261 = vadd.f32 %v2757, %v3260
    %3262 = vst [vmem:[#allocation3 + $0x28] sm:$0xff] %v3256
    %3263 = vst [vmem:[#allocation2] sm:$0xff] %v3256
    %3264 = vst [vmem:[#allocation2 + $0x8] sm:$0xff] %v3117
    %v3265 = vld [vmem:[#allocation2] sm:$0xff]
    %v3266 = vld [vmem:[#allocation2 + $0x8] sm:$0xff]
    %v3267 = vld [vmem:[#allocation14] sm:$0xff]
    %v3268 = vld [vmem:[#allocation14 + $0x8] sm:$0xff]
    %v3269 = vld [vmem:[#allocation14 + $0x10] sm:$0xff]
    %v3270 = vld [vmem:[#allocation14 + $0x18] sm:$0xff]
    %v3271 = vld [vmem:[#allocation14 + $0x20] sm:$0xff]
    %v3272 = vld [vmem:[#allocation14 + $0x28] sm:$0xff]
    %v3273 = vld [vmem:[#allocation14 + $0x30] sm:$0xff]
    %v3274 = vld [vmem:[#allocation14 + $0x38] sm:$0xff]
    %v3275 = vld [vmem:[#allocation14 + $0x40] sm:$0xff]
    %v3276 = vld [vmem:[#allocation14 + $0x48] sm:$0xff]
    %v3277 = vld [vmem:[#allocation14 + $0x50] sm:$0xff]
    %v3278 = vld [vmem:[#allocation14 + $0x58] sm:$0xff]
    %v3279 = vld [vmem:[#allocation14 + $0x60] sm:$0xff]
    %v3280 = vld [vmem:[#allocation14 + $0x68] sm:$0xff]
    %v3281 = vld [vmem:[#allocation14 + $0x70] sm:$0xff]
    %v3282 = vld [vmem:[#allocation14 + $0x78] sm:$0xff]
    %v3283 = vld [vmem:[#allocation14 + $0x80] sm:$0xff]
    %v3284 = vld [vmem:[#allocation14 + $0x88] sm:$0xff]
    %v3285 = vld [vmem:[#allocation14 + $0x90] sm:$0xff]
    %v3286 = vld [vmem:[#allocation14 + $0x98] sm:$0xff]
    %v3287 = vld [vmem:[#allocation14 + $0xa0] sm:$0xff]
    %v3288 = vld [vmem:[#allocation14 + $0xa8] sm:$0xff]
    %v3289 = vld [vmem:[#allocation14 + $0xb0] sm:$0xff]
    %v3290 = vld [vmem:[#allocation14 + $0xb8] sm:$0xff]
    %v3291 = vld [vmem:[#allocation14 + $0xc0] sm:$0xff]
    %v3292 = vld [vmem:[#allocation14 + $0xc8] sm:$0xff]
    %v3293 = vld [vmem:[#allocation14 + $0xd0] sm:$0xff]
    %v3294 = vld [vmem:[#allocation14 + $0xd8] sm:$0xff]
    %v3295 = vld [vmem:[#allocation14 + $0xe0] sm:$0xff]
    %v3296 = vld [vmem:[#allocation14 + $0xe8] sm:$0xff]
    %v3297 = vld [vmem:[#allocation14 + $0xf0] sm:$0xff]
    %v3298 = vld [vmem:[#allocation14 + $0xf8] sm:$0xff]
    %v3299 = vld [vmem:[#allocation14 + $0x100] sm:$0xff]
    %v3300 = vld [vmem:[#allocation14 + $0x108] sm:$0xff]
    %v3301 = vld [vmem:[#allocation14 + $0x110] sm:$0xff]
    %v3302 = vld [vmem:[#allocation14 + $0x118] sm:$0xff]
    %v3303 = vld [vmem:[#allocation14 + $0x120] sm:$0xff]
    %v3304 = vld [vmem:[#allocation14 + $0x128] sm:$0xff]
    %v3305 = vld [vmem:[#allocation14 + $0x130] sm:$0xff]
    %v3306 = vld [vmem:[#allocation14 + $0x138] sm:$0xff]
    %v3307 = vld [vmem:[#allocation14 + $0x140] sm:$0xff]
    %v3308 = vld [vmem:[#allocation14 + $0x148] sm:$0xff]
    %v3309 = vld [vmem:[#allocation14 + $0x150] sm:$0xff]
    %v3310 = vld [vmem:[#allocation14 + $0x158] sm:$0xff]
    %v3311 = vld [vmem:[#allocation14 + $0x160] sm:$0xff]
    %v3312 = vld [vmem:[#allocation14 + $0x168] sm:$0xff]
    %v3313 = vld [vmem:[#allocation14 + $0x170] sm:$0xff]
    %v3314 = vld [vmem:[#allocation14 + $0x178] sm:$0xff]
    %v3315 = vld [vmem:[#allocation14 + $0x180] sm:$0xff]
    %v3316 = vld [vmem:[#allocation14 + $0x188] sm:$0xff]
    %v3317 = vld [vmem:[#allocation14 + $0x190] sm:$0xff]
    %v3318 = vld [vmem:[#allocation14 + $0x198] sm:$0xff]
    %v3319 = vld [vmem:[#allocation14 + $0x1a0] sm:$0xff]
    %v3320 = vld [vmem:[#allocation14 + $0x1a8] sm:$0xff]
    %v3321 = vld [vmem:[#allocation14 + $0x1b0] sm:$0xff]
    %v3322 = vld [vmem:[#allocation14 + $0x1b8] sm:$0xff]
    %v3323 = vld [vmem:[#allocation14 + $0x1c0] sm:$0xff]
    %v3324 = vld [vmem:[#allocation14 + $0x1c8] sm:$0xff]
    %v3325 = vld [vmem:[#allocation14 + $0x1d0] sm:$0xff]
    %v3326 = vld [vmem:[#allocation14 + $0x1d8] sm:$0xff]
    %v3327 = vld [vmem:[#allocation14 + $0x1e0] sm:$0xff]
    %v3328 = vld [vmem:[#allocation14 + $0x1e8] sm:$0xff]
    %v3329 = vld [vmem:[#allocation14 + $0x1f0] sm:$0xff]
    %v3330 = vld [vmem:[#allocation14 + $0x1f8] sm:$0xff]
    %v3331 = vld [vmem:[#allocation14 + $0x200] sm:$0xff]
    %v3332 = vld [vmem:[#allocation14 + $0x208] sm:$0xff]
    %v3333 = vld [vmem:[#allocation14 + $0x210] sm:$0xff]
    %v3334 = vld [vmem:[#allocation14 + $0x218] sm:$0xff]
    %v3335 = vld [vmem:[#allocation14 + $0x220] sm:$0xff]
    %v3336 = vld [vmem:[#allocation14 + $0x228] sm:$0xff]
    %v3337 = vld [vmem:[#allocation14 + $0x230] sm:$0xff]
    %v3338 = vld [vmem:[#allocation14 + $0x238] sm:$0xff]
    %v3339 = vld [vmem:[#allocation14 + $0x240] sm:$0xff]
    %v3340 = vld [vmem:[#allocation14 + $0x248] sm:$0xff]
    %v3341 = vld [vmem:[#allocation14 + $0x250] sm:$0xff]
    %v3342 = vld [vmem:[#allocation14 + $0x258] sm:$0xff]
    %v3343 = vld [vmem:[#allocation14 + $0x260] sm:$0xff]
    %v3344 = vld [vmem:[#allocation14 + $0x268] sm:$0xff]
    %v3345 = vld [vmem:[#allocation14 + $0x270] sm:$0xff]
    %v3346 = vld [vmem:[#allocation14 + $0x278] sm:$0xff]
    %v3347 = vld [vmem:[#allocation14 + $0x280] sm:$0xff]
    %v3348 = vld [vmem:[#allocation14 + $0x288] sm:$0xff]
    %v3349 = vld [vmem:[#allocation14 + $0x290] sm:$0xff]
    %v3350 = vld [vmem:[#allocation14 + $0x298] sm:$0xff]
    %v3351 = vld [vmem:[#allocation14 + $0x2a0] sm:$0xff]
    %v3352 = vld [vmem:[#allocation14 + $0x2a8] sm:$0xff]
    %v3353 = vld [vmem:[#allocation14 + $0x2b0] sm:$0xff]
    %v3354 = vld [vmem:[#allocation14 + $0x2b8] sm:$0xff]
    %v3355 = vld [vmem:[#allocation14 + $0x2c0] sm:$0xff]
    %v3356 = vld [vmem:[#allocation14 + $0x2c8] sm:$0xff]
    %v3357 = vld [vmem:[#allocation14 + $0x2d0] sm:$0xff]
    %v3358 = vld [vmem:[#allocation14 + $0x2d8] sm:$0xff]
    %v3359 = vld [vmem:[#allocation14 + $0x2e0] sm:$0xff]
    %v3360 = vld [vmem:[#allocation14 + $0x2e8] sm:$0xff]
    %v3361 = vld [vmem:[#allocation14 + $0x2f0] sm:$0xff]
    %v3362 = vld [vmem:[#allocation14 + $0x2f8] sm:$0xff]
    %v3363 = vld [vmem:[#allocation14 + $0x300] sm:$0xff]
    %v3364 = vld [vmem:[#allocation14 + $0x308] sm:$0xff]
    %v3365 = vld [vmem:[#allocation14 + $0x310] sm:$0xff]
    %v3366 = vld [vmem:[#allocation14 + $0x318] sm:$0xff]
    %v3367 = vld [vmem:[#allocation14 + $0x320] sm:$0xff]
    %v3368 = vld [vmem:[#allocation14 + $0x328] sm:$0xff]
    %v3369 = vld [vmem:[#allocation14 + $0x330] sm:$0xff]
    %v3370 = vld [vmem:[#allocation14 + $0x338] sm:$0xff]
    %v3371 = vld [vmem:[#allocation14 + $0x340] sm:$0xff]
    %v3372 = vld [vmem:[#allocation14 + $0x348] sm:$0xff]
    %v3373 = vld [vmem:[#allocation14 + $0x350] sm:$0xff]
    %v3374 = vld [vmem:[#allocation14 + $0x358] sm:$0xff]
    %v3375 = vld [vmem:[#allocation14 + $0x360] sm:$0xff]
    %v3376 = vld [vmem:[#allocation14 + $0x368] sm:$0xff]
    %v3377 = vld [vmem:[#allocation14 + $0x370] sm:$0xff]
    %v3378 = vld [vmem:[#allocation14 + $0x378] sm:$0xff]
    %v3379 = vld [vmem:[#allocation14 + $0x380] sm:$0xff]
    %v3380 = vld [vmem:[#allocation14 + $0x388] sm:$0xff]
    %v3381 = vld [vmem:[#allocation14 + $0x390] sm:$0xff]
    %v3382 = vld [vmem:[#allocation14 + $0x398] sm:$0xff]
    %v3383 = vld [vmem:[#allocation14 + $0x3a0] sm:$0xff]
    %v3384 = vld [vmem:[#allocation14 + $0x3a8] sm:$0xff]
    %v3385 = vld [vmem:[#allocation14 + $0x3b0] sm:$0xff]
    %v3386 = vld [vmem:[#allocation14 + $0x3b8] sm:$0xff]
    %v3387 = vld [vmem:[#allocation14 + $0x3c0] sm:$0xff]
    %v3388 = vld [vmem:[#allocation14 + $0x3c8] sm:$0xff]
    %v3389 = vld [vmem:[#allocation14 + $0x3d0] sm:$0xff]
    %v3390 = vld [vmem:[#allocation14 + $0x3d8] sm:$0xff]
    %v3391 = vld [vmem:[#allocation14 + $0x3e0] sm:$0xff]
    %v3392 = vld [vmem:[#allocation14 + $0x3e8] sm:$0xff]
    %v3393 = vld [vmem:[#allocation14 + $0x3f0] sm:$0xff]
    %v3394 = vld [vmem:[#allocation14 + $0x3f8] sm:$0xff]
    %3395 = vmatpush.msra.mxu0 %v3327
    %3396 = vmatpush.msra.mxu0 %v3323
    %3397 = vmatpush.msra.mxu0 %v3319
    %3398 = vmatpush.msra.mxu0 %v3315
    %3399 = vmatpush.msra.mxu0 %v3311
    %3400 = vmatpush.msra.mxu0 %v3307
    %3401 = vmatpush.msra.mxu0 %v3303
    %3402 = vmatpush.msra.mxu0 %v3299
    %3403 = vmatpush.msra.mxu0 %v3295
    %3404 = vmatpush.msra.mxu0 %v3291
    %3405 = vmatpush.msra.mxu0 %v3287
    %3406 = vmatpush.msra.mxu0 %v3283
    %3407 = vmatpush.msra.mxu0 %v3279
    %3408 = vmatpush.msra.mxu0 %v3275
    %3409 = vmatpush.msra.mxu0 %v3271
    %3410 = vmatpush.msra.mxu0 %v3267
    %3411 = vmatmul.f32.gmra.mxu0 %v3265
    %v3412 = vpop.f32.mrf.mxu0
    %v3413 = vadd.f32 0.0, %v3412
    %3414 = vdwg.mxu0
    %3415 = vmatpush.msra.mxu0 %v3391
    %3416 = vmatpush.msra.mxu0 %v3387
    %3417 = vmatpush.msra.mxu0 %v3383
    %3418 = vmatpush.msra.mxu0 %v3379
    %3419 = vmatpush.msra.mxu0 %v3375
    %3420 = vmatpush.msra.mxu0 %v3371
    %3421 = vmatpush.msra.mxu0 %v3367
    %3422 = vmatpush.msra.mxu0 %v3363
    %3423 = vmatpush.msra.mxu0 %v3359
    %3424 = vmatpush.msra.mxu0 %v3355
    %3425 = vmatpush.msra.mxu0 %v3351
    %3426 = vmatpush.msra.mxu0 %v3347
    %3427 = vmatpush.msra.mxu0 %v3343
    %3428 = vmatpush.msra.mxu0 %v3339
    %3429 = vmatpush.msra.mxu0 %v3335
    %3430 = vmatpush.msra.mxu0 %v3331
    %3431 = vmatmul.f32.gmra.mxu0 %v3266
    %v3432 = vpop.f32.mrf.mxu0
    %v3433 = vadd.f32 %v3413, %v3432
    %3434 = vdwg.mxu0
    %3435 = vmatpush.msra.mxu0 %v3328
    %3436 = vmatpush.msra.mxu0 %v3324
    %3437 = vmatpush.msra.mxu0 %v3320
    %3438 = vmatpush.msra.mxu0 %v3316
    %3439 = vmatpush.msra.mxu0 %v3312
    %3440 = vmatpush.msra.mxu0 %v3308
    %3441 = vmatpush.msra.mxu0 %v3304
    %3442 = vmatpush.msra.mxu0 %v3300
    %3443 = vmatpush.msra.mxu0 %v3296
    %3444 = vmatpush.msra.mxu0 %v3292
    %3445 = vmatpush.msra.mxu0 %v3288
    %3446 = vmatpush.msra.mxu0 %v3284
    %3447 = vmatpush.msra.mxu0 %v3280
    %3448 = vmatpush.msra.mxu0 %v3276
    %3449 = vmatpush.msra.mxu0 %v3272
    %3450 = vmatpush.msra.mxu0 %v3268
    %3451 = vmatmul.f32.gmra.mxu0 %v3265
    %v3452 = vpop.f32.mrf.mxu0
    %v3453 = vadd.f32 0.0, %v3452
    %3454 = vdwg.mxu0
    %3455 = vmatpush.msra.mxu0 %v3392
    %3456 = vmatpush.msra.mxu0 %v3388
    %3457 = vmatpush.msra.mxu0 %v3384
    %3458 = vmatpush.msra.mxu0 %v3380
    %3459 = vmatpush.msra.mxu0 %v3376
    %3460 = vmatpush.msra.mxu0 %v3372
    %3461 = vmatpush.msra.mxu0 %v3368
    %3462 = vmatpush.msra.mxu0 %v3364
    %3463 = vmatpush.msra.mxu0 %v3360
    %3464 = vmatpush.msra.mxu0 %v3356
    %3465 = vmatpush.msra.mxu0 %v3352
    %3466 = vmatpush.msra.mxu0 %v3348
    %3467 = vmatpush.msra.mxu0 %v3344
    %3468 = vmatpush.msra.mxu0 %v3340
    %3469 = vmatpush.msra.mxu0 %v3336
    %3470 = vmatpush.msra.mxu0 %v3332
    %3471 = vmatmul.f32.gmra.mxu0 %v3266
    %v3472 = vpop.f32.mrf.mxu0
    %v3473 = vadd.f32 %v3453, %v3472
    %3474 = vdwg.mxu0
    %3475 = vmatpush.msra.mxu0 %v3329
    %3476 = vmatpush.msra.mxu0 %v3325
    %3477 = vmatpush.msra.mxu0 %v3321
    %3478 = vmatpush.msra.mxu0 %v3317
    %3479 = vmatpush.msra.mxu0 %v3313
    %3480 = vmatpush.msra.mxu0 %v3309
    %3481 = vmatpush.msra.mxu0 %v3305
    %3482 = vmatpush.msra.mxu0 %v3301
    %3483 = vmatpush.msra.mxu0 %v3297
    %3484 = vmatpush.msra.mxu0 %v3293
    %3485 = vmatpush.msra.mxu0 %v3289
    %3486 = vmatpush.msra.mxu0 %v3285
    %3487 = vmatpush.msra.mxu0 %v3281
    %3488 = vmatpush.msra.mxu0 %v3277
    %3489 = vmatpush.msra.mxu0 %v3273
    %3490 = vmatpush.msra.mxu0 %v3269
    %3491 = vmatmul.f32.gmra.mxu0 %v3265
    %v3492 = vpop.f32.mrf.mxu0
    %v3493 = vadd.f32 0.0, %v3492
    %3494 = vdwg.mxu0
    %3495 = vmatpush.msra.mxu0 %v3393
    %3496 = vmatpush.msra.mxu0 %v3389
    %3497 = vmatpush.msra.mxu0 %v3385
    %3498 = vmatpush.msra.mxu0 %v3381
    %3499 = vmatpush.msra.mxu0 %v3377
    %3500 = vmatpush.msra.mxu0 %v3373
    %3501 = vmatpush.msra.mxu0 %v3369
    %3502 = vmatpush.msra.mxu0 %v3365
    %3503 = vmatpush.msra.mxu0 %v3361
    %3504 = vmatpush.msra.mxu0 %v3357
    %3505 = vmatpush.msra.mxu0 %v3353
    %3506 = vmatpush.msra.mxu0 %v3349
    %3507 = vmatpush.msra.mxu0 %v3345
    %3508 = vmatpush.msra.mxu0 %v3341
    %3509 = vmatpush.msra.mxu0 %v3337
    %3510 = vmatpush.msra.mxu0 %v3333
    %3511 = vmatmul.f32.gmra.mxu0 %v3266
    %v3512 = vpop.f32.mrf.mxu0
    %v3513 = vadd.f32 %v3493, %v3512
    %3514 = vdwg.mxu0
    %3515 = vmatpush.msra.mxu0 %v3330
    %3516 = vmatpush.msra.mxu0 %v3326
    %3517 = vmatpush.msra.mxu0 %v3322
    %3518 = vmatpush.msra.mxu0 %v3318
    %3519 = vmatpush.msra.mxu0 %v3314
    %3520 = vmatpush.msra.mxu0 %v3310
    %3521 = vmatpush.msra.mxu0 %v3306
    %3522 = vmatpush.msra.mxu0 %v3302
    %3523 = vmatpush.msra.mxu0 %v3298
    %3524 = vmatpush.msra.mxu0 %v3294
    %3525 = vmatpush.msra.mxu0 %v3290
    %3526 = vmatpush.msra.mxu0 %v3286
    %3527 = vmatpush.msra.mxu0 %v3282
    %3528 = vmatpush.msra.mxu0 %v3278
    %3529 = vmatpush.msra.mxu0 %v3274
    %3530 = vmatpush.msra.mxu0 %v3270
    %3531 = vmatmul.f32.gmra.mxu0 %v3265
    %v3532 = vpop.f32.mrf.mxu0
    %v3533 = vadd.f32 0.0, %v3532
    %3534 = vdwg.mxu0
    %3535 = vmatpush.msra.mxu0 %v3394
    %3536 = vmatpush.msra.mxu0 %v3390
    %3537 = vmatpush.msra.mxu0 %v3386
    %3538 = vmatpush.msra.mxu0 %v3382
    %3539 = vmatpush.msra.mxu0 %v3378
    %3540 = vmatpush.msra.mxu0 %v3374
    %3541 = vmatpush.msra.mxu0 %v3370
    %3542 = vmatpush.msra.mxu0 %v3366
    %3543 = vmatpush.msra.mxu0 %v3362
    %3544 = vmatpush.msra.mxu0 %v3358
    %3545 = vmatpush.msra.mxu0 %v3354
    %3546 = vmatpush.msra.mxu0 %v3350
    %3547 = vmatpush.msra.mxu0 %v3346
    %3548 = vmatpush.msra.mxu0 %v3342
    %3549 = vmatpush.msra.mxu0 %v3338
    %3550 = vmatpush.msra.mxu0 %v3334
    %3551 = vmatmul.f32.gmra.mxu0 %v3266
    %v3552 = vpop.f32.mrf.mxu0
    %v3553 = vadd.f32 %v3533, %v3552
    %3554 = vdwg.mxu0
    %v3555 = vadd.f32 %v344, %v3433
    %v3556 = vadd.f32 %v384, %v3473
    %v3557 = vadd.f32 %v424, %v3513
    %v3558 = vadd.f32 %v464, %v3553
    %v3559 = vxor.u32 %v3555, 2147483648
    %v3560 = vmul.f32 %v3559, 1.442695
    %v3561 = vpow.pop %v3560
    %v3562 = vadd.f32 %v3561, 1.0
    %v3563 = vrcp.pop %v3562
    %v3564 = vmul.f32 %v3562, %v3563
    %v3565 = vsub.f32 1.0, %v3564
    %v3566 = vmul.f32 %v3563, %v3565
    %v3567 = vadd.f32 %v3563, %v3566
    %vm3568 = vweird.f32 %v3562
    %vm3569 = vweird.f32 %v3563
    %vm3570 = vmor %vm3568, %vm3569
    %v3571 = vsel %vm3570, %v3563, %v3567
    %v3572 = vand.u32 2147483647, %v3562
    %vm3573 = vcmp.eq.f32.partialorder %v3572, 8.507059e+37
    %v3574 = vand.u32 %v3562, 2147483648
    %v3575 = vor.u32 1.1754944e-38, %v3574
    %v3576 = vsel %vm3573, %v3575, %v3571
    %v3577 = vmul.f32 1.0, %v3576
    %v3578 = vxor.u32 %v3556, 2147483648
    %v3579 = vmul.f32 %v3578, 1.442695
    %v3580 = vpow.pop %v3579
    %v3581 = vadd.f32 %v3580, 1.0
    %v3582 = vrcp.pop %v3581
    %v3583 = vmul.f32 %v3581, %v3582
    %v3584 = vsub.f32 1.0, %v3583
    %v3585 = vmul.f32 %v3582, %v3584
    %v3586 = vadd.f32 %v3582, %v3585
    %vm3587 = vweird.f32 %v3581
    %vm3588 = vweird.f32 %v3582
    %vm3589 = vmor %vm3587, %vm3588
    %v3590 = vsel %vm3589, %v3582, %v3586
    %v3591 = vand.u32 2147483647, %v3581
    %vm3592 = vcmp.eq.f32.partialorder %v3591, 8.507059e+37
    %v3593 = vand.u32 %v3581, 2147483648
    %v3594 = vor.u32 1.1754944e-38, %v3593
    %v3595 = vsel %vm3592, %v3594, %v3590
    %v3596 = vmul.f32 1.0, %v3595
    %v3597 = vtanh.pop %v3557
    %v3598 = vxor.u32 %v3558, 2147483648
    %v3599 = vmul.f32 %v3598, 1.442695
    %v3600 = vpow.pop %v3599
    %v3601 = vadd.f32 %v3600, 1.0
    %v3602 = vrcp.pop %v3601
    %v3603 = vmul.f32 %v3601, %v3602
    %v3604 = vsub.f32 1.0, %v3603
    %v3605 = vmul.f32 %v3602, %v3604
    %v3606 = vadd.f32 %v3602, %v3605
    %vm3607 = vweird.f32 %v3601
    %vm3608 = vweird.f32 %v3602
    %vm3609 = vmor %vm3607, %vm3608
    %v3610 = vsel %vm3609, %v3602, %v3606
    %v3611 = vand.u32 2147483647, %v3601
    %vm3612 = vcmp.eq.f32.partialorder %v3611, 8.507059e+37
    %v3613 = vand.u32 %v3601, 2147483648
    %v3614 = vor.u32 1.1754944e-38, %v3613
    %v3615 = vsel %vm3612, %v3614, %v3610
    %v3616 = vmul.f32 1.0, %v3615
    %v3617 = vmul.f32 %v3596, %v3115
    %v3618 = vmul.f32 %v3577, %v3597
    %v3619 = vadd.f32 %v3617, %v3618
    %v3620 = vtanh.pop %v3619
    %v3621 = vmul.f32 %v3616, %v3620
    %v3622 = vadd.f32 %v3621, %v3619
    %v3623 = vld [vmem:[#allocation12] sm:$0xff]
    %v3624 = vld [vmem:[#allocation12 + $0x8] sm:$0xff]
    %v3625 = vld [vmem:[#allocation12 + $0x10] sm:$0xff]
    %v3626 = vld [vmem:[#allocation12 + $0x18] sm:$0xff]
    %v3627 = vld [vmem:[#allocation12 + $0x20] sm:$0xff]
    %v3628 = vld [vmem:[#allocation12 + $0x28] sm:$0xff]
    %v3629 = vld [vmem:[#allocation12 + $0x30] sm:$0xff]
    %v3630 = vld [vmem:[#allocation12 + $0x38] sm:$0xff]
    %v3631 = vld [vmem:[#allocation12 + $0x40] sm:$0xff]
    %v3632 = vld [vmem:[#allocation12 + $0x48] sm:$0xff]
    %v3633 = vld [vmem:[#allocation12 + $0x50] sm:$0xff]
    %v3634 = vld [vmem:[#allocation12 + $0x58] sm:$0xff]
    %v3635 = vld [vmem:[#allocation12 + $0x60] sm:$0xff]
    %v3636 = vld [vmem:[#allocation12 + $0x68] sm:$0xff]
    %v3637 = vld [vmem:[#allocation12 + $0x70] sm:$0xff]
    %v3638 = vld [vmem:[#allocation12 + $0x78] sm:$0xff]
    %v3639 = vld [vmem:[#allocation12 + $0x80] sm:$0xff]
    %v3640 = vld [vmem:[#allocation12 + $0x88] sm:$0xff]
    %v3641 = vld [vmem:[#allocation12 + $0x90] sm:$0xff]
    %v3642 = vld [vmem:[#allocation12 + $0x98] sm:$0xff]
    %v3643 = vld [vmem:[#allocation12 + $0xa0] sm:$0xff]
    %v3644 = vld [vmem:[#allocation12 + $0xa8] sm:$0xff]
    %v3645 = vld [vmem:[#allocation12 + $0xb0] sm:$0xff]
    %v3646 = vld [vmem:[#allocation12 + $0xb8] sm:$0xff]
    %v3647 = vld [vmem:[#allocation12 + $0xc0] sm:$0xff]
    %v3648 = vld [vmem:[#allocation12 + $0xc8] sm:$0xff]
    %v3649 = vld [vmem:[#allocation12 + $0xd0] sm:$0xff]
    %v3650 = vld [vmem:[#allocation12 + $0xd8] sm:$0xff]
    %v3651 = vld [vmem:[#allocation12 + $0xe0] sm:$0xff]
    %v3652 = vld [vmem:[#allocation12 + $0xe8] sm:$0xff]
    %v3653 = vld [vmem:[#allocation12 + $0xf0] sm:$0xff]
    %v3654 = vld [vmem:[#allocation12 + $0xf8] sm:$0xff]
    %3655 = vmatpush.msra.mxu0 %v3653
    %3656 = vmatpush.msra.mxu0 %v3651
    %3657 = vmatpush.msra.mxu0 %v3649
    %3658 = vmatpush.msra.mxu0 %v3647
    %3659 = vmatpush.msra.mxu0 %v3645
    %3660 = vmatpush.msra.mxu0 %v3643
    %3661 = vmatpush.msra.mxu0 %v3641
    %3662 = vmatpush.msra.mxu0 %v3639
    %3663 = vmatpush.msra.mxu0 %v3637
    %3664 = vmatpush.msra.mxu0 %v3635
    %3665 = vmatpush.msra.mxu0 %v3633
    %3666 = vmatpush.msra.mxu0 %v3631
    %3667 = vmatpush.msra.mxu0 %v3629
    %3668 = vmatpush.msra.mxu0 %v3627
    %3669 = vmatpush.msra.mxu0 %v3625
    %3670 = vmatpush.msra.mxu0 %v3623
    %3671 = vmatmul.f32.gmra.mxu0 %v3622
    %v3672 = vpop.f32.mrf.mxu0
    %v3673 = vadd.f32 0.0, %v3672
    %3674 = vdwg.mxu0
    %3675 = vmatpush.msra.mxu0 %v3654
    %3676 = vmatpush.msra.mxu0 %v3652
    %3677 = vmatpush.msra.mxu0 %v3650
    %3678 = vmatpush.msra.mxu0 %v3648
    %3679 = vmatpush.msra.mxu0 %v3646
    %3680 = vmatpush.msra.mxu0 %v3644
    %3681 = vmatpush.msra.mxu0 %v3642
    %3682 = vmatpush.msra.mxu0 %v3640
    %3683 = vmatpush.msra.mxu0 %v3638
    %3684 = vmatpush.msra.mxu0 %v3636
    %3685 = vmatpush.msra.mxu0 %v3634
    %3686 = vmatpush.msra.mxu0 %v3632
    %3687 = vmatpush.msra.mxu0 %v3630
    %3688 = vmatpush.msra.mxu0 %v3628
    %3689 = vmatpush.msra.mxu0 %v3626
    %3690 = vmatpush.msra.mxu0 %v3624
    %3691 = vmatmul.f32.gmra.mxu0 %v3622
    %v3692 = vpop.f32.mrf.mxu0
    %v3693 = vadd.f32 0.0, %v3692
    %3694 = vdwg.mxu0
    %v3695 = vadd.f32 %v545, %v3673
    %v3696 = vadd.f32 %v586, %v3693
    %v3697 = vmul.f32 %v3696, 0.5
    %v3698 = vmul.f32 %v3697, 1.442695
    %v3699 = vpow.pop %v3698
    %v3700 = vmul.f32 %v3699, %v3699
    %v3701 = vmul.f32 %v3699, %v597
    %v3702 = vadd.f32 %v3695, %v3701
    %v3703 = vld [vmem:[%s9] sm:$0xff]
    %v3704 = vld [vmem:[%s9 + $0x8] sm:$0xff]
    %v3705 = vld [vmem:[%s9 + $0x10] sm:$0xff]
    %v3706 = vld [vmem:[%s9 + $0x18] sm:$0xff]
    %v3707 = vld [vmem:[%s9 + $0x20] sm:$0xff]
    %v3708 = vld [vmem:[%s9 + $0x28] sm:$0xff]
    %v3709 = vld [vmem:[%s9 + $0x30] sm:$0xff]
    %v3710 = vld [vmem:[%s9 + $0x38] sm:$0xff]
    %v3711 = vld [vmem:[%s9 + $0x40] sm:$0xff]
    %v3712 = vld [vmem:[%s9 + $0x48] sm:$0xff]
    %v3713 = vld [vmem:[%s9 + $0x50] sm:$0xff]
    %v3714 = vld [vmem:[%s9 + $0x58] sm:$0xff]
    %v3715 = vld [vmem:[%s9 + $0x60] sm:$0xff]
    %v3716 = vld [vmem:[%s9 + $0x68] sm:$0xff]
    %v3717 = vld [vmem:[%s9 + $0x70] sm:$0xff]
    %v3718 = vld [vmem:[%s9 + $0x78] sm:$0xff]
    %v3719 = vld [vmem:[%s10] sm:$0x1]
    %v3721 = vperm.slane %v3719, 0
    %3723 = vmatpush.msra.mxu0 %v3718
    %3724 = vmatpush.msra.mxu0 %v3717
    %3725 = vmatpush.msra.mxu0 %v3716
    %3726 = vmatpush.msra.mxu0 %v3715
    %3727 = vmatpush.msra.mxu0 %v3714
    %3728 = vmatpush.msra.mxu0 %v3713
    %3729 = vmatpush.msra.mxu0 %v3712
    %3730 = vmatpush.msra.mxu0 %v3711
    %3731 = vmatpush.msra.mxu0 %v3710
    %3732 = vmatpush.msra.mxu0 %v3709
    %3733 = vmatpush.msra.mxu0 %v3708
    %3734 = vmatpush.msra.mxu0 %v3707
    %3735 = vmatpush.msra.mxu0 %v3706
    %3736 = vmatpush.msra.mxu0 %v3705
    %3737 = vmatpush.msra.mxu0 %v3704
    %3738 = vmatpush.msra.mxu0 %v3703
    %3739 = vmatmul.f32.gmra.mxu0 %v3702
    %v3740 = vpop.f32.mrf.mxu0
    %v3741 = vadd.f32 %v3721, %v3740
    %3742 = vdwg.mxu0
    %v3743 = vmax.f32 %v3741, 0.0
    %vm3744 = vcmp.ne.f32.partialorder %v3741, %v3741
    %v3745 = vadd.f32 %v3741, 0.0
    %v3746 = vand.u32 2147483647, %v3741
    %v3747 = vsub.f32 0.0, %v3746
    %v3748 = vmul.f32 %v3747, 1.442695
    %v3749 = vpow.pop %v3748
    %v3750 = vadd.f32 %v3749, 1.0
    %v3751 = vlog2.pop %v3750
    %v3752 = vmul.f32 %v3751, 0.6931472
    %v3753 = vmul.f32 -0.5, %v3749
    %v3754 = vadd.f32 %v3753, 1.0
    %v3755 = vmul.f32 %v3754, %v3749
    %v3756 = vand.u32 2147483647, %v3749
    %vm3757 = vcmp.lt.f32.partialorder %v3756, 0.0004427343
    %v3758 = vsel %vm3757, %v3755, %v3752
    %v3759 = vadd.f32 %v3743, %v3758
    %v3760 = vsel %vm3744, %v3745, %v3759
    %v3761 = vadd.f32 %v3696, 1.0
    %v3762 = vmul.f32 %v3695, %v3695
    %v3763 = vsub.f32 %v3761, %v3762
    %v3764 = vsub.f32 %v3763, %v3700
    %v3765 = vadd.f32 %v3261, %v3764
    %3766 = vst [vmem:[#allocation3 + $0x30] sm:$0xff] %v3760
    %3767 = vst [vmem:[#allocation2] sm:$0xff] %v3760
    %3768 = vst [vmem:[#allocation2 + $0x8] sm:$0xff] %v3621
    %v3769 = vld [vmem:[#allocation2] sm:$0xff]
    %v3770 = vld [vmem:[#allocation2 + $0x8] sm:$0xff]
    %v3771 = vld [vmem:[#allocation14] sm:$0xff]
    %v3772 = vld [vmem:[#allocation14 + $0x8] sm:$0xff]
    %v3773 = vld [vmem:[#allocation14 + $0x10] sm:$0xff]
    %v3774 = vld [vmem:[#allocation14 + $0x18] sm:$0xff]
    %v3775 = vld [vmem:[#allocation14 + $0x20] sm:$0xff]
    %v3776 = vld [vmem:[#allocation14 + $0x28] sm:$0xff]
    %v3777 = vld [vmem:[#allocation14 + $0x30] sm:$0xff]
    %v3778 = vld [vmem:[#allocation14 + $0x38] sm:$0xff]
    %v3779 = vld [vmem:[#allocation14 + $0x40] sm:$0xff]
    %v3780 = vld [vmem:[#allocation14 + $0x48] sm:$0xff]
    %v3781 = vld [vmem:[#allocation14 + $0x50] sm:$0xff]
    %v3782 = vld [vmem:[#allocation14 + $0x58] sm:$0xff]
    %v3783 = vld [vmem:[#allocation14 + $0x60] sm:$0xff]
    %v3784 = vld [vmem:[#allocation14 + $0x68] sm:$0xff]
    %v3785 = vld [vmem:[#allocation14 + $0x70] sm:$0xff]
    %v3786 = vld [vmem:[#allocation14 + $0x78] sm:$0xff]
    %v3787 = vld [vmem:[#allocation14 + $0x80] sm:$0xff]
    %v3788 = vld [vmem:[#allocation14 + $0x88] sm:$0xff]
    %v3789 = vld [vmem:[#allocation14 + $0x90] sm:$0xff]
    %v3790 = vld [vmem:[#allocation14 + $0x98] sm:$0xff]
    %v3791 = vld [vmem:[#allocation14 + $0xa0] sm:$0xff]
    %v3792 = vld [vmem:[#allocation14 + $0xa8] sm:$0xff]
    %v3793 = vld [vmem:[#allocation14 + $0xb0] sm:$0xff]
    %v3794 = vld [vmem:[#allocation14 + $0xb8] sm:$0xff]
    %v3795 = vld [vmem:[#allocation14 + $0xc0] sm:$0xff]
    %v3796 = vld [vmem:[#allocation14 + $0xc8] sm:$0xff]
    %v3797 = vld [vmem:[#allocation14 + $0xd0] sm:$0xff]
    %v3798 = vld [vmem:[#allocation14 + $0xd8] sm:$0xff]
    %v3799 = vld [vmem:[#allocation14 + $0xe0] sm:$0xff]
    %v3800 = vld [vmem:[#allocation14 + $0xe8] sm:$0xff]
    %v3801 = vld [vmem:[#allocation14 + $0xf0] sm:$0xff]
    %v3802 = vld [vmem:[#allocation14 + $0xf8] sm:$0xff]
    %v3803 = vld [vmem:[#allocation14 + $0x100] sm:$0xff]
    %v3804 = vld [vmem:[#allocation14 + $0x108] sm:$0xff]
    %v3805 = vld [vmem:[#allocation14 + $0x110] sm:$0xff]
    %v3806 = vld [vmem:[#allocation14 + $0x118] sm:$0xff]
    %v3807 = vld [vmem:[#allocation14 + $0x120] sm:$0xff]
    %v3808 = vld [vmem:[#allocation14 + $0x128] sm:$0xff]
    %v3809 = vld [vmem:[#allocation14 + $0x130] sm:$0xff]
    %v3810 = vld [vmem:[#allocation14 + $0x138] sm:$0xff]
    %v3811 = vld [vmem:[#allocation14 + $0x140] sm:$0xff]
    %v3812 = vld [vmem:[#allocation14 + $0x148] sm:$0xff]
    %v3813 = vld [vmem:[#allocation14 + $0x150] sm:$0xff]
    %v3814 = vld [vmem:[#allocation14 + $0x158] sm:$0xff]
    %v3815 = vld [vmem:[#allocation14 + $0x160] sm:$0xff]
    %v3816 = vld [vmem:[#allocation14 + $0x168] sm:$0xff]
    %v3817 = vld [vmem:[#allocation14 + $0x170] sm:$0xff]
    %v3818 = vld [vmem:[#allocation14 + $0x178] sm:$0xff]
    %v3819 = vld [vmem:[#allocation14 + $0x180] sm:$0xff]
    %v3820 = vld [vmem:[#allocation14 + $0x188] sm:$0xff]
    %v3821 = vld [vmem:[#allocation14 + $0x190] sm:$0xff]
    %v3822 = vld [vmem:[#allocation14 + $0x198] sm:$0xff]
    %v3823 = vld [vmem:[#allocation14 + $0x1a0] sm:$0xff]
    %v3824 = vld [vmem:[#allocation14 + $0x1a8] sm:$0xff]
    %v3825 = vld [vmem:[#allocation14 + $0x1b0] sm:$0xff]
    %v3826 = vld [vmem:[#allocation14 + $0x1b8] sm:$0xff]
    %v3827 = vld [vmem:[#allocation14 + $0x1c0] sm:$0xff]
    %v3828 = vld [vmem:[#allocation14 + $0x1c8] sm:$0xff]
    %v3829 = vld [vmem:[#allocation14 + $0x1d0] sm:$0xff]
    %v3830 = vld [vmem:[#allocation14 + $0x1d8] sm:$0xff]
    %v3831 = vld [vmem:[#allocation14 + $0x1e0] sm:$0xff]
    %v3832 = vld [vmem:[#allocation14 + $0x1e8] sm:$0xff]
    %v3833 = vld [vmem:[#allocation14 + $0x1f0] sm:$0xff]
    %v3834 = vld [vmem:[#allocation14 + $0x1f8] sm:$0xff]
    %v3835 = vld [vmem:[#allocation14 + $0x200] sm:$0xff]
    %v3836 = vld [vmem:[#allocation14 + $0x208] sm:$0xff]
    %v3837 = vld [vmem:[#allocation14 + $0x210] sm:$0xff]
    %v3838 = vld [vmem:[#allocation14 + $0x218] sm:$0xff]
    %v3839 = vld [vmem:[#allocation14 + $0x220] sm:$0xff]
    %v3840 = vld [vmem:[#allocation14 + $0x228] sm:$0xff]
    %v3841 = vld [vmem:[#allocation14 + $0x230] sm:$0xff]
    %v3842 = vld [vmem:[#allocation14 + $0x238] sm:$0xff]
    %v3843 = vld [vmem:[#allocation14 + $0x240] sm:$0xff]
    %v3844 = vld [vmem:[#allocation14 + $0x248] sm:$0xff]
    %v3845 = vld [vmem:[#allocation14 + $0x250] sm:$0xff]
    %v3846 = vld [vmem:[#allocation14 + $0x258] sm:$0xff]
    %v3847 = vld [vmem:[#allocation14 + $0x260] sm:$0xff]
    %v3848 = vld [vmem:[#allocation14 + $0x268] sm:$0xff]
    %v3849 = vld [vmem:[#allocation14 + $0x270] sm:$0xff]
    %v3850 = vld [vmem:[#allocation14 + $0x278] sm:$0xff]
    %v3851 = vld [vmem:[#allocation14 + $0x280] sm:$0xff]
    %v3852 = vld [vmem:[#allocation14 + $0x288] sm:$0xff]
    %v3853 = vld [vmem:[#allocation14 + $0x290] sm:$0xff]
    %v3854 = vld [vmem:[#allocation14 + $0x298] sm:$0xff]
    %v3855 = vld [vmem:[#allocation14 + $0x2a0] sm:$0xff]
    %v3856 = vld [vmem:[#allocation14 + $0x2a8] sm:$0xff]
    %v3857 = vld [vmem:[#allocation14 + $0x2b0] sm:$0xff]
    %v3858 = vld [vmem:[#allocation14 + $0x2b8] sm:$0xff]
    %v3859 = vld [vmem:[#allocation14 + $0x2c0] sm:$0xff]
    %v3860 = vld [vmem:[#allocation14 + $0x2c8] sm:$0xff]
    %v3861 = vld [vmem:[#allocation14 + $0x2d0] sm:$0xff]
    %v3862 = vld [vmem:[#allocation14 + $0x2d8] sm:$0xff]
    %v3863 = vld [vmem:[#allocation14 + $0x2e0] sm:$0xff]
    %v3864 = vld [vmem:[#allocation14 + $0x2e8] sm:$0xff]
    %v3865 = vld [vmem:[#allocation14 + $0x2f0] sm:$0xff]
    %v3866 = vld [vmem:[#allocation14 + $0x2f8] sm:$0xff]
    %v3867 = vld [vmem:[#allocation14 + $0x300] sm:$0xff]
    %v3868 = vld [vmem:[#allocation14 + $0x308] sm:$0xff]
    %v3869 = vld [vmem:[#allocation14 + $0x310] sm:$0xff]
    %v3870 = vld [vmem:[#allocation14 + $0x318] sm:$0xff]
    %v3871 = vld [vmem:[#allocation14 + $0x320] sm:$0xff]
    %v3872 = vld [vmem:[#allocation14 + $0x328] sm:$0xff]
    %v3873 = vld [vmem:[#allocation14 + $0x330] sm:$0xff]
    %v3874 = vld [vmem:[#allocation14 + $0x338] sm:$0xff]
    %v3875 = vld [vmem:[#allocation14 + $0x340] sm:$0xff]
    %v3876 = vld [vmem:[#allocation14 + $0x348] sm:$0xff]
    %v3877 = vld [vmem:[#allocation14 + $0x350] sm:$0xff]
    %v3878 = vld [vmem:[#allocation14 + $0x358] sm:$0xff]
    %v3879 = vld [vmem:[#allocation14 + $0x360] sm:$0xff]
    %v3880 = vld [vmem:[#allocation14 + $0x368] sm:$0xff]
    %v3881 = vld [vmem:[#allocation14 + $0x370] sm:$0xff]
    %v3882 = vld [vmem:[#allocation14 + $0x378] sm:$0xff]
    %v3883 = vld [vmem:[#allocation14 + $0x380] sm:$0xff]
    %v3884 = vld [vmem:[#allocation14 + $0x388] sm:$0xff]
    %v3885 = vld [vmem:[#allocation14 + $0x390] sm:$0xff]
    %v3886 = vld [vmem:[#allocation14 + $0x398] sm:$0xff]
    %v3887 = vld [vmem:[#allocation14 + $0x3a0] sm:$0xff]
    %v3888 = vld [vmem:[#allocation14 + $0x3a8] sm:$0xff]
    %v3889 = vld [vmem:[#allocation14 + $0x3b0] sm:$0xff]
    %v3890 = vld [vmem:[#allocation14 + $0x3b8] sm:$0xff]
    %v3891 = vld [vmem:[#allocation14 + $0x3c0] sm:$0xff]
    %v3892 = vld [vmem:[#allocation14 + $0x3c8] sm:$0xff]
    %v3893 = vld [vmem:[#allocation14 + $0x3d0] sm:$0xff]
    %v3894 = vld [vmem:[#allocation14 + $0x3d8] sm:$0xff]
    %v3895 = vld [vmem:[#allocation14 + $0x3e0] sm:$0xff]
    %v3896 = vld [vmem:[#allocation14 + $0x3e8] sm:$0xff]
    %v3897 = vld [vmem:[#allocation14 + $0x3f0] sm:$0xff]
    %v3898 = vld [vmem:[#allocation14 + $0x3f8] sm:$0xff]
    %3899 = vmatpush.msra.mxu0 %v3831
    %3900 = vmatpush.msra.mxu0 %v3827
    %3901 = vmatpush.msra.mxu0 %v3823
    %3902 = vmatpush.msra.mxu0 %v3819
    %3903 = vmatpush.msra.mxu0 %v3815
    %3904 = vmatpush.msra.mxu0 %v3811
    %3905 = vmatpush.msra.mxu0 %v3807
    %3906 = vmatpush.msra.mxu0 %v3803
    %3907 = vmatpush.msra.mxu0 %v3799
    %3908 = vmatpush.msra.mxu0 %v3795
    %3909 = vmatpush.msra.mxu0 %v3791
    %3910 = vmatpush.msra.mxu0 %v3787
    %3911 = vmatpush.msra.mxu0 %v3783
    %3912 = vmatpush.msra.mxu0 %v3779
    %3913 = vmatpush.msra.mxu0 %v3775
    %3914 = vmatpush.msra.mxu0 %v3771
    %3915 = vmatmul.f32.gmra.mxu0 %v3769
    %v3916 = vpop.f32.mrf.mxu0
    %v3917 = vadd.f32 0.0, %v3916
    %3918 = vdwg.mxu0
    %3919 = vmatpush.msra.mxu0 %v3895
    %3920 = vmatpush.msra.mxu0 %v3891
    %3921 = vmatpush.msra.mxu0 %v3887
    %3922 = vmatpush.msra.mxu0 %v3883
    %3923 = vmatpush.msra.mxu0 %v3879
    %3924 = vmatpush.msra.mxu0 %v3875
    %3925 = vmatpush.msra.mxu0 %v3871
    %3926 = vmatpush.msra.mxu0 %v3867
    %3927 = vmatpush.msra.mxu0 %v3863
    %3928 = vmatpush.msra.mxu0 %v3859
    %3929 = vmatpush.msra.mxu0 %v3855
    %3930 = vmatpush.msra.mxu0 %v3851
    %3931 = vmatpush.msra.mxu0 %v3847
    %3932 = vmatpush.msra.mxu0 %v3843
    %3933 = vmatpush.msra.mxu0 %v3839
    %3934 = vmatpush.msra.mxu0 %v3835
    %3935 = vmatmul.f32.gmra.mxu0 %v3770
    %v3936 = vpop.f32.mrf.mxu0
    %v3937 = vadd.f32 %v3917, %v3936
    %3938 = vdwg.mxu0
    %3939 = vmatpush.msra.mxu0 %v3832
    %3940 = vmatpush.msra.mxu0 %v3828
    %3941 = vmatpush.msra.mxu0 %v3824
    %3942 = vmatpush.msra.mxu0 %v3820
    %3943 = vmatpush.msra.mxu0 %v3816
    %3944 = vmatpush.msra.mxu0 %v3812
    %3945 = vmatpush.msra.mxu0 %v3808
    %3946 = vmatpush.msra.mxu0 %v3804
    %3947 = vmatpush.msra.mxu0 %v3800
    %3948 = vmatpush.msra.mxu0 %v3796
    %3949 = vmatpush.msra.mxu0 %v3792
    %3950 = vmatpush.msra.mxu0 %v3788
    %3951 = vmatpush.msra.mxu0 %v3784
    %3952 = vmatpush.msra.mxu0 %v3780
    %3953 = vmatpush.msra.mxu0 %v3776
    %3954 = vmatpush.msra.mxu0 %v3772
    %3955 = vmatmul.f32.gmra.mxu0 %v3769
    %v3956 = vpop.f32.mrf.mxu0
    %v3957 = vadd.f32 0.0, %v3956
    %3958 = vdwg.mxu0
    %3959 = vmatpush.msra.mxu0 %v3896
    %3960 = vmatpush.msra.mxu0 %v3892
    %3961 = vmatpush.msra.mxu0 %v3888
    %3962 = vmatpush.msra.mxu0 %v3884
    %3963 = vmatpush.msra.mxu0 %v3880
    %3964 = vmatpush.msra.mxu0 %v3876
    %3965 = vmatpush.msra.mxu0 %v3872
    %3966 = vmatpush.msra.mxu0 %v3868
    %3967 = vmatpush.msra.mxu0 %v3864
    %3968 = vmatpush.msra.mxu0 %v3860
    %3969 = vmatpush.msra.mxu0 %v3856
    %3970 = vmatpush.msra.mxu0 %v3852
    %3971 = vmatpush.msra.mxu0 %v3848
    %3972 = vmatpush.msra.mxu0 %v3844
    %3973 = vmatpush.msra.mxu0 %v3840
    %3974 = vmatpush.msra.mxu0 %v3836
    %3975 = vmatmul.f32.gmra.mxu0 %v3770
    %v3976 = vpop.f32.mrf.mxu0
    %v3977 = vadd.f32 %v3957, %v3976
    %3978 = vdwg.mxu0
    %3979 = vmatpush.msra.mxu0 %v3833
    %3980 = vmatpush.msra.mxu0 %v3829
    %3981 = vmatpush.msra.mxu0 %v3825
    %3982 = vmatpush.msra.mxu0 %v3821
    %3983 = vmatpush.msra.mxu0 %v3817
    %3984 = vmatpush.msra.mxu0 %v3813
    %3985 = vmatpush.msra.mxu0 %v3809
    %3986 = vmatpush.msra.mxu0 %v3805
    %3987 = vmatpush.msra.mxu0 %v3801
    %3988 = vmatpush.msra.mxu0 %v3797
    %3989 = vmatpush.msra.mxu0 %v3793
    %3990 = vmatpush.msra.mxu0 %v3789
    %3991 = vmatpush.msra.mxu0 %v3785
    %3992 = vmatpush.msra.mxu0 %v3781
    %3993 = vmatpush.msra.mxu0 %v3777
    %3994 = vmatpush.msra.mxu0 %v3773
    %3995 = vmatmul.f32.gmra.mxu0 %v3769
    %v3996 = vpop.f32.mrf.mxu0
    %v3997 = vadd.f32 0.0, %v3996
    %3998 = vdwg.mxu0
    %3999 = vmatpush.msra.mxu0 %v3897
    %4000 = vmatpush.msra.mxu0 %v3893
    %4001 = vmatpush.msra.mxu0 %v3889
    %4002 = vmatpush.msra.mxu0 %v3885
    %4003 = vmatpush.msra.mxu0 %v3881
    %4004 = vmatpush.msra.mxu0 %v3877
    %4005 = vmatpush.msra.mxu0 %v3873
    %4006 = vmatpush.msra.mxu0 %v3869
    %4007 = vmatpush.msra.mxu0 %v3865
    %4008 = vmatpush.msra.mxu0 %v3861
    %4009 = vmatpush.msra.mxu0 %v3857
    %4010 = vmatpush.msra.mxu0 %v3853
    %4011 = vmatpush.msra.mxu0 %v3849
    %4012 = vmatpush.msra.mxu0 %v3845
    %4013 = vmatpush.msra.mxu0 %v3841
    %4014 = vmatpush.msra.mxu0 %v3837
    %4015 = vmatmul.f32.gmra.mxu0 %v3770
    %v4016 = vpop.f32.mrf.mxu0
    %v4017 = vadd.f32 %v3997, %v4016
    %4018 = vdwg.mxu0
    %4019 = vmatpush.msra.mxu0 %v3834
    %4020 = vmatpush.msra.mxu0 %v3830
    %4021 = vmatpush.msra.mxu0 %v3826
    %4022 = vmatpush.msra.mxu0 %v3822
    %4023 = vmatpush.msra.mxu0 %v3818
    %4024 = vmatpush.msra.mxu0 %v3814
    %4025 = vmatpush.msra.mxu0 %v3810
    %4026 = vmatpush.msra.mxu0 %v3806
    %4027 = vmatpush.msra.mxu0 %v3802
    %4028 = vmatpush.msra.mxu0 %v3798
    %4029 = vmatpush.msra.mxu0 %v3794
    %4030 = vmatpush.msra.mxu0 %v3790
    %4031 = vmatpush.msra.mxu0 %v3786
    %4032 = vmatpush.msra.mxu0 %v3782
    %4033 = vmatpush.msra.mxu0 %v3778
    %4034 = vmatpush.msra.mxu0 %v3774
    %4035 = vmatmul.f32.gmra.mxu0 %v3769
    %v4036 = vpop.f32.mrf.mxu0
    %v4037 = vadd.f32 0.0, %v4036
    %4038 = vdwg.mxu0
    %4039 = vmatpush.msra.mxu0 %v3898
    %4040 = vmatpush.msra.mxu0 %v3894
    %4041 = vmatpush.msra.mxu0 %v3890
    %4042 = vmatpush.msra.mxu0 %v3886
    %4043 = vmatpush.msra.mxu0 %v3882
    %4044 = vmatpush.msra.mxu0 %v3878
    %4045 = vmatpush.msra.mxu0 %v3874
    %4046 = vmatpush.msra.mxu0 %v3870
    %4047 = vmatpush.msra.mxu0 %v3866
    %4048 = vmatpush.msra.mxu0 %v3862
    %4049 = vmatpush.msra.mxu0 %v3858
    %4050 = vmatpush.msra.mxu0 %v3854
    %4051 = vmatpush.msra.mxu0 %v3850
    %4052 = vmatpush.msra.mxu0 %v3846
    %4053 = vmatpush.msra.mxu0 %v3842
    %4054 = vmatpush.msra.mxu0 %v3838
    %4055 = vmatmul.f32.gmra.mxu0 %v3770
    %v4056 = vpop.f32.mrf.mxu0
    %v4057 = vadd.f32 %v4037, %v4056
    %4058 = vdwg.mxu0
    %v4059 = vadd.f32 %v347, %v3937
    %v4060 = vadd.f32 %v387, %v3977
    %v4061 = vadd.f32 %v427, %v4017
    %v4062 = vadd.f32 %v467, %v4057
    %v4063 = vxor.u32 %v4059, 2147483648
    %v4064 = vmul.f32 %v4063, 1.442695
    %v4065 = vpow.pop %v4064
    %v4066 = vadd.f32 %v4065, 1.0
    %v4067 = vrcp.pop %v4066
    %v4068 = vmul.f32 %v4066, %v4067
    %v4069 = vsub.f32 1.0, %v4068
    %v4070 = vmul.f32 %v4067, %v4069
    %v4071 = vadd.f32 %v4067, %v4070
    %vm4072 = vweird.f32 %v4066
    %vm4073 = vweird.f32 %v4067
    %vm4074 = vmor %vm4072, %vm4073
    %v4075 = vsel %vm4074, %v4067, %v4071
    %v4076 = vand.u32 2147483647, %v4066
    %vm4077 = vcmp.eq.f32.partialorder %v4076, 8.507059e+37
    %v4078 = vand.u32 %v4066, 2147483648
    %v4079 = vor.u32 1.1754944e-38, %v4078
    %v4080 = vsel %vm4077, %v4079, %v4075
    %v4081 = vmul.f32 1.0, %v4080
    %v4082 = vxor.u32 %v4060, 2147483648
    %v4083 = vmul.f32 %v4082, 1.442695
    %v4084 = vpow.pop %v4083
    %v4085 = vadd.f32 %v4084, 1.0
    %v4086 = vrcp.pop %v4085
    %v4087 = vmul.f32 %v4085, %v4086
    %v4088 = vsub.f32 1.0, %v4087
    %v4089 = vmul.f32 %v4086, %v4088
    %v4090 = vadd.f32 %v4086, %v4089
    %vm4091 = vweird.f32 %v4085
    %vm4092 = vweird.f32 %v4086
    %vm4093 = vmor %vm4091, %vm4092
    %v4094 = vsel %vm4093, %v4086, %v4090
    %v4095 = vand.u32 2147483647, %v4085
    %vm4096 = vcmp.eq.f32.partialorder %v4095, 8.507059e+37
    %v4097 = vand.u32 %v4085, 2147483648
    %v4098 = vor.u32 1.1754944e-38, %v4097
    %v4099 = vsel %vm4096, %v4098, %v4094
    %v4100 = vmul.f32 1.0, %v4099
    %v4101 = vtanh.pop %v4061
    %v4102 = vxor.u32 %v4062, 2147483648
    %v4103 = vmul.f32 %v4102, 1.442695
    %v4104 = vpow.pop %v4103
    %v4105 = vadd.f32 %v4104, 1.0
    %v4106 = vrcp.pop %v4105
    %v4107 = vmul.f32 %v4105, %v4106
    %v4108 = vsub.f32 1.0, %v4107
    %v4109 = vmul.f32 %v4106, %v4108
    %v4110 = vadd.f32 %v4106, %v4109
    %vm4111 = vweird.f32 %v4105
    %vm4112 = vweird.f32 %v4106
    %vm4113 = vmor %vm4111, %vm4112
    %v4114 = vsel %vm4113, %v4106, %v4110
    %v4115 = vand.u32 2147483647, %v4105
    %vm4116 = vcmp.eq.f32.partialorder %v4115, 8.507059e+37
    %v4117 = vand.u32 %v4105, 2147483648
    %v4118 = vor.u32 1.1754944e-38, %v4117
    %v4119 = vsel %vm4116, %v4118, %v4114
    %v4120 = vmul.f32 1.0, %v4119
    %v4121 = vmul.f32 %v4100, %v3619
    %v4122 = vmul.f32 %v4081, %v4101
    %v4123 = vadd.f32 %v4121, %v4122
    %v4124 = vtanh.pop %v4123
    %v4125 = vmul.f32 %v4120, %v4124
    %v4126 = vadd.f32 %v4125, %v4123
    %v4127 = vld [vmem:[#allocation12] sm:$0xff]
    %v4128 = vld [vmem:[#allocation12 + $0x8] sm:$0xff]
    %v4129 = vld [vmem:[#allocation12 + $0x10] sm:$0xff]
    %v4130 = vld [vmem:[#allocation12 + $0x18] sm:$0xff]
    %v4131 = vld [vmem:[#allocation12 + $0x20] sm:$0xff]
    %v4132 = vld [vmem:[#allocation12 + $0x28] sm:$0xff]
    %v4133 = vld [vmem:[#allocation12 + $0x30] sm:$0xff]
    %v4134 = vld [vmem:[#allocation12 + $0x38] sm:$0xff]
    %v4135 = vld [vmem:[#allocation12 + $0x40] sm:$0xff]
    %v4136 = vld [vmem:[#allocation12 + $0x48] sm:$0xff]
    %v4137 = vld [vmem:[#allocation12 + $0x50] sm:$0xff]
    %v4138 = vld [vmem:[#allocation12 + $0x58] sm:$0xff]
    %v4139 = vld [vmem:[#allocation12 + $0x60] sm:$0xff]
    %v4140 = vld [vmem:[#allocation12 + $0x68] sm:$0xff]
    %v4141 = vld [vmem:[#allocation12 + $0x70] sm:$0xff]
    %v4142 = vld [vmem:[#allocation12 + $0x78] sm:$0xff]
    %v4143 = vld [vmem:[#allocation12 + $0x80] sm:$0xff]
    %v4144 = vld [vmem:[#allocation12 + $0x88] sm:$0xff]
    %v4145 = vld [vmem:[#allocation12 + $0x90] sm:$0xff]
    %v4146 = vld [vmem:[#allocation12 + $0x98] sm:$0xff]
    %v4147 = vld [vmem:[#allocation12 + $0xa0] sm:$0xff]
    %v4148 = vld [vmem:[#allocation12 + $0xa8] sm:$0xff]
    %v4149 = vld [vmem:[#allocation12 + $0xb0] sm:$0xff]
    %v4150 = vld [vmem:[#allocation12 + $0xb8] sm:$0xff]
    %v4151 = vld [vmem:[#allocation12 + $0xc0] sm:$0xff]
    %v4152 = vld [vmem:[#allocation12 + $0xc8] sm:$0xff]
    %v4153 = vld [vmem:[#allocation12 + $0xd0] sm:$0xff]
    %v4154 = vld [vmem:[#allocation12 + $0xd8] sm:$0xff]
    %v4155 = vld [vmem:[#allocation12 + $0xe0] sm:$0xff]
    %v4156 = vld [vmem:[#allocation12 + $0xe8] sm:$0xff]
    %v4157 = vld [vmem:[#allocation12 + $0xf0] sm:$0xff]
    %v4158 = vld [vmem:[#allocation12 + $0xf8] sm:$0xff]
    %4159 = vmatpush.msra.mxu0 %v4157
    %4160 = vmatpush.msra.mxu0 %v4155
    %4161 = vmatpush.msra.mxu0 %v4153
    %4162 = vmatpush.msra.mxu0 %v4151
    %4163 = vmatpush.msra.mxu0 %v4149
    %4164 = vmatpush.msra.mxu0 %v4147
    %4165 = vmatpush.msra.mxu0 %v4145
    %4166 = vmatpush.msra.mxu0 %v4143
    %4167 = vmatpush.msra.mxu0 %v4141
    %4168 = vmatpush.msra.mxu0 %v4139
    %4169 = vmatpush.msra.mxu0 %v4137
    %4170 = vmatpush.msra.mxu0 %v4135
    %4171 = vmatpush.msra.mxu0 %v4133
    %4172 = vmatpush.msra.mxu0 %v4131
    %4173 = vmatpush.msra.mxu0 %v4129
    %4174 = vmatpush.msra.mxu0 %v4127
    %4175 = vmatmul.f32.gmra.mxu0 %v4126
    %v4176 = vpop.f32.mrf.mxu0
    %v4177 = vadd.f32 0.0, %v4176
    %4178 = vdwg.mxu0
    %4179 = vmatpush.msra.mxu0 %v4158
    %4180 = vmatpush.msra.mxu0 %v4156
    %4181 = vmatpush.msra.mxu0 %v4154
    %4182 = vmatpush.msra.mxu0 %v4152
    %4183 = vmatpush.msra.mxu0 %v4150
    %4184 = vmatpush.msra.mxu0 %v4148
    %4185 = vmatpush.msra.mxu0 %v4146
    %4186 = vmatpush.msra.mxu0 %v4144
    %4187 = vmatpush.msra.mxu0 %v4142
    %4188 = vmatpush.msra.mxu0 %v4140
    %4189 = vmatpush.msra.mxu0 %v4138
    %4190 = vmatpush.msra.mxu0 %v4136
    %4191 = vmatpush.msra.mxu0 %v4134
    %4192 = vmatpush.msra.mxu0 %v4132
    %4193 = vmatpush.msra.mxu0 %v4130
    %4194 = vmatpush.msra.mxu0 %v4128
    %4195 = vmatmul.f32.gmra.mxu0 %v4126
    %v4196 = vpop.f32.mrf.mxu0
    %v4197 = vadd.f32 0.0, %v4196
    %4198 = vdwg.mxu0
    %v4199 = vadd.f32 %v548, %v4177
    %v4200 = vadd.f32 %v589, %v4197
    %v4201 = vmul.f32 %v4200, 0.5
    %v4202 = vmul.f32 %v4201, 1.442695
    %v4203 = vpow.pop %v4202
    %v4204 = vmul.f32 %v4203, %v4203
    %v4205 = vmul.f32 %v4203, %v598
    %v4206 = vadd.f32 %v4199, %v4205
    %v4207 = vld [vmem:[%s9] sm:$0xff]
    %v4208 = vld [vmem:[%s9 + $0x8] sm:$0xff]
    %v4209 = vld [vmem:[%s9 + $0x10] sm:$0xff]
    %v4210 = vld [vmem:[%s9 + $0x18] sm:$0xff]
    %v4211 = vld [vmem:[%s9 + $0x20] sm:$0xff]
    %v4212 = vld [vmem:[%s9 + $0x28] sm:$0xff]
    %v4213 = vld [vmem:[%s9 + $0x30] sm:$0xff]
    %v4214 = vld [vmem:[%s9 + $0x38] sm:$0xff]
    %v4215 = vld [vmem:[%s9 + $0x40] sm:$0xff]
    %v4216 = vld [vmem:[%s9 + $0x48] sm:$0xff]
    %v4217 = vld [vmem:[%s9 + $0x50] sm:$0xff]
    %v4218 = vld [vmem:[%s9 + $0x58] sm:$0xff]
    %v4219 = vld [vmem:[%s9 + $0x60] sm:$0xff]
    %v4220 = vld [vmem:[%s9 + $0x68] sm:$0xff]
    %v4221 = vld [vmem:[%s9 + $0x70] sm:$0xff]
    %v4222 = vld [vmem:[%s9 + $0x78] sm:$0xff]
    %v4223 = vld [vmem:[%s10] sm:$0x1]
    %v4225 = vperm.slane %v4223, 0
    %4227 = vmatpush.msra.mxu0 %v4222
    %4228 = vmatpush.msra.mxu0 %v4221
    %4229 = vmatpush.msra.mxu0 %v4220
    %4230 = vmatpush.msra.mxu0 %v4219
    %4231 = vmatpush.msra.mxu0 %v4218
    %4232 = vmatpush.msra.mxu0 %v4217
    %4233 = vmatpush.msra.mxu0 %v4216
    %4234 = vmatpush.msra.mxu0 %v4215
    %4235 = vmatpush.msra.mxu0 %v4214
    %4236 = vmatpush.msra.mxu0 %v4213
    %4237 = vmatpush.msra.mxu0 %v4212
    %4238 = vmatpush.msra.mxu0 %v4211
    %4239 = vmatpush.msra.mxu0 %v4210
    %4240 = vmatpush.msra.mxu0 %v4209
    %4241 = vmatpush.msra.mxu0 %v4208
    %4242 = vmatpush.msra.mxu0 %v4207
    %4243 = vmatmul.f32.gmra.mxu0 %v4206
    %v4244 = vpop.f32.mrf.mxu0
    %v4245 = vadd.f32 %v4225, %v4244
    %4246 = vdwg.mxu0
    %v4247 = vmax.f32 %v4245, 0.0
    %vm4248 = vcmp.ne.f32.partialorder %v4245, %v4245
    %v4249 = vadd.f32 %v4245, 0.0
    %v4250 = vand.u32 2147483647, %v4245
    %v4251 = vsub.f32 0.0, %v4250
    %v4252 = vmul.f32 %v4251, 1.442695
    %v4253 = vpow.pop %v4252
    %v4254 = vadd.f32 %v4253, 1.0
    %v4255 = vlog2.pop %v4254
    %v4256 = vmul.f32 %v4255, 0.6931472
    %v4257 = vmul.f32 -0.5, %v4253
    %v4258 = vadd.f32 %v4257, 1.0
    %v4259 = vmul.f32 %v4258, %v4253
    %v4260 = vand.u32 2147483647, %v4253
    %vm4261 = vcmp.lt.f32.partialorder %v4260, 0.0004427343
    %v4262 = vsel %vm4261, %v4259, %v4256
    %v4263 = vadd.f32 %v4247, %v4262
    %v4264 = vsel %vm4248, %v4249, %v4263
    %v4265 = vadd.f32 %v4200, 1.0
    %v4266 = vmul.f32 %v4199, %v4199
    %v4267 = vsub.f32 %v4265, %v4266
    %v4268 = vsub.f32 %v4267, %v4204
    %v4269 = vadd.f32 %v3765, %v4268
    %4270 = vst [vmem:[#allocation3 + $0x38] sm:$0xff] %v4264
    %4271 = vst [vmem:[#allocation2] sm:$0xff] %v4264
    %4272 = vst [vmem:[#allocation2 + $0x8] sm:$0xff] %v4125
    %v4273 = vld [vmem:[#allocation3] sm:$0xff]
    %v4274 = vld [vmem:[#allocation3 + $0x8] sm:$0xff]
    %v4275 = vld [vmem:[#allocation3 + $0x10] sm:$0xff]
    %v4276 = vld [vmem:[#allocation3 + $0x18] sm:$0xff]
    %v4277 = vld [vmem:[#allocation3 + $0x20] sm:$0xff]
    %v4278 = vld [vmem:[#allocation3 + $0x28] sm:$0xff]
    %v4279 = vld [vmem:[#allocation3 + $0x30] sm:$0xff]
    %v4280 = vld [vmem:[#allocation3 + $0x38] sm:$0xff]
    %v4281 = vld [vmem:[%s11] sm:$0xff]
    %v4282 = vld [vmem:[%s11 + $0x8] sm:$0xff]
    %v4283 = vld [vmem:[%s11 + $0x10] sm:$0xff]
    %v4284 = vld [vmem:[%s11 + $0x18] sm:$0xff]
    %v4285 = vld [vmem:[%s11 + $0x20] sm:$0xff]
    %v4286 = vld [vmem:[%s11 + $0x28] sm:$0xff]
    %v4287 = vld [vmem:[%s11 + $0x30] sm:$0xff]
    %v4288 = vld [vmem:[%s11 + $0x38] sm:$0xff]
    %v4289 = vld [vmem:[%s11 + $0x40] sm:$0xff]
    %v4290 = vld [vmem:[%s11 + $0x48] sm:$0xff]
    %v4291 = vld [vmem:[%s11 + $0x50] sm:$0xff]
    %v4292 = vld [vmem:[%s11 + $0x58] sm:$0xff]
    %v4293 = vld [vmem:[%s11 + $0x60] sm:$0xff]
    %v4294 = vld [vmem:[%s11 + $0x68] sm:$0xff]
    %v4295 = vld [vmem:[%s11 + $0x70] sm:$0xff]
    %v4296 = vld [vmem:[%s11 + $0x78] sm:$0xff]
    %4297 = vmatpush.msra.mxu0 %v4296
    %4298 = vmatpush.msra.mxu0 %v4295
    %4299 = vmatpush.msra.mxu0 %v4294
    %4300 = vmatpush.msra.mxu0 %v4293
    %4301 = vmatpush.msra.mxu0 %v4292
    %4302 = vmatpush.msra.mxu0 %v4291
    %4303 = vmatpush.msra.mxu0 %v4290
    %4304 = vmatpush.msra.mxu0 %v4289
    %4305 = vmatpush.msra.mxu0 %v4288
    %4306 = vmatpush.msra.mxu0 %v4287
    %4307 = vmatpush.msra.mxu0 %v4286
    %4308 = vmatpush.msra.mxu0 %v4285
    %4309 = vmatpush.msra.mxu0 %v4284
    %4310 = vmatpush.msra.mxu0 %v4283
    %4311 = vmatpush.msra.mxu0 %v4282
    %4312 = vmatpush.msra.mxu0 %v4281
    %4313 = vmatmul.f32.gmra.mxu0 %v4273
    %v4314 = vpop.f32.mrf.mxu0
    %v4315 = vadd.f32 0.0, %v4314
    %4316 = vmatmul.f32.gmra.mxu0 %v4274
    %v4317 = vpop.f32.mrf.mxu0
    %v4318 = vadd.f32 0.0, %v4317
    %4319 = vmatmul.f32.gmra.mxu0 %v4275
    %v4320 = vpop.f32.mrf.mxu0
    %v4321 = vadd.f32 0.0, %v4320
    %4322 = vmatmul.f32.gmra.mxu0 %v4276
    %v4323 = vpop.f32.mrf.mxu0
    %v4324 = vadd.f32 0.0, %v4323
    %4325 = vmatmul.f32.gmra.mxu0 %v4277
    %v4326 = vpop.f32.mrf.mxu0
    %v4327 = vadd.f32 0.0, %v4326
    %4328 = vmatmul.f32.gmra.mxu0 %v4278
    %v4329 = vpop.f32.mrf.mxu0
    %v4330 = vadd.f32 0.0, %v4329
    %4331 = vmatmul.f32.gmra.mxu0 %v4279
    %v4332 = vpop.f32.mrf.mxu0
    %v4333 = vadd.f32 0.0, %v4332
    %4334 = vmatmul.f32.gmra.mxu0 %v4280
    %v4335 = vpop.f32.mrf.mxu0
    %v4336 = vadd.f32 0.0, %v4335
    %4337 = vdwg.mxu0
    %v4338 = vadd.f32 %v288, %v4315
    %v4339 = vadd.f32 %v291, %v4318
    %v4340 = vadd.f32 %v294, %v4321
    %v4341 = vadd.f32 %v297, %v4324
    %v4342 = vadd.f32 %v300, %v4327
    %v4343 = vadd.f32 %v303, %v4330
    %v4344 = vadd.f32 %v306, %v4333
    %v4345 = vadd.f32 %v309, %v4336
    %v4346 = vtanh.pop %v4338
    %v4347 = vtanh.pop %v4339
    %v4348 = vtanh.pop %v4340
    %v4349 = vtanh.pop %v4341
    %v4350 = vtanh.pop %v4342
    %v4351 = vtanh.pop %v4343
    %v4352 = vtanh.pop %v4344
    %v4353 = vtanh.pop %v4345
    %v4354 = vld [vmem:[%s12] sm:$0xff]
    %v4355 = vld [vmem:[%s12 + $0x8] sm:$0xff]
    %v4356 = vld [vmem:[%s12 + $0x10] sm:$0xff]
    %v4357 = vld [vmem:[%s12 + $0x18] sm:$0xff]
    %v4358 = vld [vmem:[%s12 + $0x20] sm:$0xff]
    %v4359 = vld [vmem:[%s12 + $0x28] sm:$0xff]
    %v4360 = vld [vmem:[%s12 + $0x30] sm:$0xff]
    %v4361 = vld [vmem:[%s12 + $0x38] sm:$0xff]
    %v4362 = vld [vmem:[%s12 + $0x40] sm:$0xff]
    %v4363 = vld [vmem:[%s12 + $0x48] sm:$0xff]
    %v4364 = vld [vmem:[%s12 + $0x50] sm:$0xff]
    %v4365 = vld [vmem:[%s12 + $0x58] sm:$0xff]
    %v4366 = vld [vmem:[%s12 + $0x60] sm:$0xff]
    %v4367 = vld [vmem:[%s12 + $0x68] sm:$0xff]
    %v4368 = vld [vmem:[%s12 + $0x70] sm:$0xff]
    %v4369 = vld [vmem:[%s12 + $0x78] sm:$0xff]
    %v4370 = vld [vmem:[%s13] sm:$0x1]
    %v4372 = vperm.slane %v4370, 0
    %4374 = vmatpush.msra.mxu0 %v4369
    %4375 = vmatpush.msra.mxu0 %v4368
    %4376 = vmatpush.msra.mxu0 %v4367
    %4377 = vmatpush.msra.mxu0 %v4366
    %4378 = vmatpush.msra.mxu0 %v4365
    %4379 = vmatpush.msra.mxu0 %v4364
    %4380 = vmatpush.msra.mxu0 %v4363
    %4381 = vmatpush.msra.mxu0 %v4362
    %4382 = vmatpush.msra.mxu0 %v4361
    %4383 = vmatpush.msra.mxu0 %v4360
    %4384 = vmatpush.msra.mxu0 %v4359
    %4385 = vmatpush.msra.mxu0 %v4358
    %4386 = vmatpush.msra.mxu0 %v4357
    %4387 = vmatpush.msra.mxu0 %v4356
    %4388 = vmatpush.msra.mxu0 %v4355
    %4389 = vmatpush.msra.mxu0 %v4354
    %4390 = vmatmul.f32.gmra.mxu0 %v4346
    %v4391 = vpop.f32.mrf.mxu0
    %v4392 = vadd.f32 %v4372, %v4391
    %4393 = vmatmul.f32.gmra.mxu0 %v4347
    %v4394 = vpop.f32.mrf.mxu0
    %v4395 = vadd.f32 %v4372, %v4394
    %4396 = vmatmul.f32.gmra.mxu0 %v4348
    %v4397 = vpop.f32.mrf.mxu0
    %v4398 = vadd.f32 %v4372, %v4397
    %4399 = vmatmul.f32.gmra.mxu0 %v4349
    %v4400 = vpop.f32.mrf.mxu0
    %v4401 = vadd.f32 %v4372, %v4400
    %4402 = vmatmul.f32.gmra.mxu0 %v4350
    %v4403 = vpop.f32.mrf.mxu0
    %v4404 = vadd.f32 %v4372, %v4403
    %4405 = vmatmul.f32.gmra.mxu0 %v4351
    %v4406 = vpop.f32.mrf.mxu0
    %v4407 = vadd.f32 %v4372, %v4406
    %4408 = vmatmul.f32.gmra.mxu0 %v4352
    %v4409 = vpop.f32.mrf.mxu0
    %v4410 = vadd.f32 %v4372, %v4409
    %4411 = vmatmul.f32.gmra.mxu0 %v4353
    %v4412 = vpop.f32.mrf.mxu0
    %v4413 = vadd.f32 %v4372, %v4412
    %4414 = vdwg.mxu0
    %v4415 = vlaneseq
    %v4416 = vshrl.u32 %v4415, 7
    %vm4417 = vcmp.lt.s32.totalorder %v4416, 2
    %v4418 = vsel %vm4417, 1, 0
    %v4419 = vcvt.s32.f32 %v4418
    %v4420 = vld [vmem:[%s3] sm:$0xff]
    %v4421 = vld [vmem:[%s3 + $0x8] sm:$0xff]
    %v4422 = vld [vmem:[%s3 + $0x10] sm:$0xff]
    %v4423 = vld [vmem:[%s3 + $0x18] sm:$0xff]
    %v4424 = vld [vmem:[%s3 + $0x20] sm:$0xff]
    %v4425 = vld [vmem:[%s3 + $0x28] sm:$0xff]
    %v4426 = vld [vmem:[%s3 + $0x30] sm:$0xff]
    %v4427 = vld [vmem:[%s3 + $0x38] sm:$0xff]
    %v4428 = vsub.f32 %v4392, %v4420
    %v4429 = vsub.f32 %v4395, %v4421
    %v4430 = vsub.f32 %v4398, %v4422
    %v4431 = vsub.f32 %v4401, %v4423
    %v4432 = vsub.f32 %v4404, %v4424
    %v4433 = vsub.f32 %v4407, %v4425
    %v4434 = vsub.f32 %v4410, %v4426
    %v4435 = vsub.f32 %v4413, %v4427
    %v4436 = vmul.f32 %v4428, %v4428
    %v4437 = vmul.f32 %v4429, %v4429
    %v4438 = vmul.f32 %v4430, %v4430
    %v4439 = vmul.f32 %v4431, %v4431
    %v4440 = vmul.f32 %v4432, %v4432
    %v4441 = vmul.f32 %v4433, %v4433
    %v4442 = vmul.f32 %v4434, %v4434
    %v4443 = vmul.f32 %v4435, %v4435
    %v4444 = vmul.f32 %v4436, %v4419
    %v4445 = vmul.f32 %v4437, %v4419
    %v4446 = vmul.f32 %v4438, %v4419
    %v4447 = vmul.f32 %v4439, %v4419
    %v4448 = vmul.f32 %v4440, %v4419
    %v4449 = vmul.f32 %v4441, %v4419
    %v4450 = vmul.f32 %v4442, %v4419
    %v4451 = vmul.f32 %v4443, %v4419
    %vm4452 = vcmask 64512
    %v4453 = vsel %vm4452, %v4444, 0.0
    %4454 = vadd.xlane.f32.xlu0 %v4453
    %v4455 = vpop.xlane.xlu0 %4454
    %v4456 = vsel %vm4452, %v4445, 0.0
    %4457 = vadd.xlane.f32.xlu0 %v4456
    %v4458 = vpop.xlane.xlu0 %4457
    %v4459 = vsel %vm4452, %v4446, 0.0
    %4460 = vadd.xlane.f32.xlu0 %v4459
    %v4461 = vpop.xlane.xlu0 %4460
    %v4462 = vsel %vm4452, %v4447, 0.0
    %4463 = vadd.xlane.f32.xlu0 %v4462
    %v4464 = vpop.xlane.xlu0 %4463
    %v4465 = vsel %vm4452, %v4448, 0.0
    %4466 = vadd.xlane.f32.xlu0 %v4465
    %v4467 = vpop.xlane.xlu0 %4466
    %v4468 = vsel %vm4452, %v4449, 0.0
    %4469 = vadd.xlane.f32.xlu0 %v4468
    %v4470 = vpop.xlane.xlu0 %4469
    %v4471 = vsel %vm4452, %v4450, 0.0
    %4472 = vadd.xlane.f32.xlu0 %v4471
    %v4473 = vpop.xlane.xlu0 %4472
    %v4474 = vsel %vm4452, %v4451, 0.0
    %4475 = vadd.xlane.f32.xlu0 %v4474
    %v4476 = vpop.xlane.xlu0 %4475
    %v4477 = vadd.f32 %v4455, %v4458
    %v4478 = vadd.f32 %v4477, %v4461
    %v4479 = vadd.f32 %v4478, %v4464
    %v4480 = vadd.f32 %v4479, %v4467
    %v4481 = vadd.f32 %v4480, %v4470
    %v4482 = vadd.f32 %v4481, %v4473
    %v4483 = vadd.f32 %v4482, %v4476
    %v4484 = vrot.slane %v4483, 4
    %v4485 = vadd.f32 %v4483, %v4484
    %v4486 = vrot.slane %v4485, 2
    %v4487 = vadd.f32 %v4485, %v4486
    %v4488 = vrot.slane %v4487, 1
    %v4489 = vadd.f32 %v4487, %v4488
    %v4490 = vrcp.pop 16.0
    %v4491 = vmul.f32 16.0, %v4490
    %v4492 = vsub.f32 1.0, %v4491
    %v4493 = vmul.f32 %v4490, %v4492
    %v4494 = vadd.f32 %v4490, %v4493
    %vm4495 = vweird.f32 %v4490
    %v4496 = vsel %vm4495, %v4490, %v4494
    %v4497 = vmul.f32 %v4489, %v4496
    %v4498 = vmul.f32 %v4269, %v4419
    %4499 = vadd.xlane.f32.xlu0 %v4498
    %v4500 = vpop.xlane.xlu0 %4499
    %v4501 = vrot.slane %v4500, 4
    %v4502 = vadd.f32 %v4500, %v4501
    %v4503 = vrot.slane %v4502, 2
    %v4504 = vadd.f32 %v4502, %v4503
    %v4505 = vrot.slane %v4504, 1
    %v4506 = vadd.f32 %v4504, %v4505
    %v4507 = vmul.f32 %v4506, -0.5
    %s4508 = sld [smem:[#allocation4]]
    %s4509 = sld [smem:[#allocation4 + $0x1]]
    %vm4510 = vcmask 0
    %4511 = vst.msk [vmem:[#allocation16] sm:$0x1] %vm4510, %v4507
    %4512 = vst.msk [vmem:[#allocation18] sm:$0x1] %vm4510, %v4497
    %v4513 = vstv %s4508
    %v4514 = vmul.f32 %v4507, %v4513
    %v4515 = vstv %s4509
    %v4516 = vmul.f32 %v4497, %v4515
    %v4517 = vadd.f32 %v4514, %v4516
    %v4518 = vrcp.pop 8.0
    %v4519 = vmul.f32 8.0, %v4518
    %v4520 = vsub.f32 1.0, %v4519
    %v4521 = vmul.f32 %v4518, %v4520
    %v4522 = vadd.f32 %v4518, %v4521
    %vm4523 = vweird.f32 %v4518
    %v4524 = vsel %vm4523, %v4518, %v4522
    %v4525 = vmul.f32 %v4517, %v4524
    %4526 = vst.msk [vmem:[#allocation15] sm:$0x1] %vm4510, %v4525
    // Predicated region
    $region86: #{tpu_custom_call.1} parent=1 // pred_check
      _
    $region87: #{tpu_custom_call.1} parent=1 // pred_check_branch
      %4528 = sbr.rel (0) target = $region89
    $region88: #{tpu_custom_call.1} parent=1 // pred_region
      %4530 = vsyncadd [#allocation6], 0
      %s4532 = sshll.u32 [#allocation15], 4
      %s4533 = int_to_ptr.vmem [resolvable:$true] %s4532
      %s4534 = sshll.u32 %s15, 4
      %s4535 = int_to_ptr.hbm [resolvable:$true] %s4534
      %4537 = dma.vmem_to_hbm [thread:$0]  %s4533, 16, %s4535, [#allocation6]
    $region89: #{tpu_custom_call.1} parent=1 // pred_fallthru
      _
    // Predicated region
    $region90: #{tpu_custom_call.1} parent=1 // pred_check
      _
    $region91: #{tpu_custom_call.1} parent=1 // pred_check_branch
      %4539 = sbr.rel (0) target = $region93
    $region92: #{tpu_custom_call.1} parent=1 // pred_region
      %4541 = vsyncadd [#allocation17], 0
      %s4543 = sshll.u32 [#allocation16], 4
      %s4544 = int_to_ptr.vmem [resolvable:$true] %s4543
      %s4545 = sshll.u32 %s16, 4
      %s4546 = int_to_ptr.hbm [resolvable:$true] %s4545
      %4548 = dma.vmem_to_hbm [thread:$0]  %s4544, 16, %s4546, [#allocation17]
    $region93: #{tpu_custom_call.1} parent=1 // pred_fallthru
      _
    // Predicated region
    $region94: #{tpu_custom_call.1} parent=1 // pred_check
      _
    $region95: #{tpu_custom_call.1} parent=1 // pred_check_branch
      %4550 = sbr.rel (0) target = $region97
    $region96: #{tpu_custom_call.1} parent=1 // pred_region
      %4552 = vsyncadd [#allocation17], 0
      %s4554 = sshll.u32 [#allocation18], 4
      %s4555 = int_to_ptr.vmem [resolvable:$true] %s4554
      %s4556 = sshll.u32 %s17, 4
      %s4557 = int_to_ptr.hbm [resolvable:$true] %s4556
      %4559 = dma.vmem_to_hbm [thread:$0]  %s4555, 16, %s4557, [#allocation17]
    $region97: #{tpu_custom_call.1} parent=1 // pred_fallthru
      _
    // Predicated region
    $region98: #{tpu_custom_call.1} parent=1 // pred_check
      _
    $region99: #{tpu_custom_call.1} parent=1 // pred_check_branch
      %4561 = sbr.rel (0) target = $region101
    $region100: #{tpu_custom_call.1} parent=1 // pred_region
      %4563 = dma.done [#allocation6], 16
    $region101: #{tpu_custom_call.1} parent=1 // pred_fallthru
      _
    // Predicated region
    $region102: #{tpu_custom_call.1} parent=1 // pred_check
      _
    $region103: #{tpu_custom_call.1} parent=1 // pred_check_branch
      %4565 = sbr.rel (0) target = $region105
    $region104: #{tpu_custom_call.1} parent=1 // pred_region
      %4567 = dma.done [#allocation17], 16
    $region105: #{tpu_custom_call.1} parent=1 // pred_fallthru
      _
    // Predicated region
    $region106: #{tpu_custom_call.1} parent=1 // pred_check
      _
    $region107: #{tpu_custom_call.1} parent=1 // pred_check_branch
      %4569 = sbr.rel (0) target = $region109
    $region108: #{tpu_custom_call.1} parent=1 // pred_region
      %4571 = dma.done [#allocation17], 16
    $region109: #{tpu_custom_call.1} parent=1 // pred_fallthru
      _
    %4572 = vsyncpa [#allocation5], 1
    %4573 = vsyncpa [#allocation10], 1
    %4574 = vsyncpa [#allocation13], 1
    %4575 = vsyncpa [#allocation6], 1
    %4576 = vsyncpa [#allocation17], 1
    %4577 = vsyncpa [#allocation7], 1

</llo_original>
